<compile_context>
chip_gen: v5e
topology: v5e:2x2
jax: 0.10.0
libtpu: 0.0.40
codegen_flags: <defaults>
</compile_context>

<pallas_src>
import math
import functools

import jax
import jax.numpy as jnp
from jax import lax
from jax.experimental import pallas as pl
from jax.experimental.pallas import tpu as pltpu


_WEIGHT_ORDER = (
    "ia1_w", "ia1_b", "ia2_w", "ia2_b",
    "pe", "le1", "le2",
    "enc_wq", "enc_bq", "enc_wk", "enc_bk", "enc_wvo", "enc_ab",
    "enc_ln1_g", "enc_ln1_b",
    "enc_w1", "enc_b1", "enc_w2", "enc_b2",
    "enc_ln2_g", "enc_ln2_b",
    "ca_wq", "ca_bq", "ca_wk", "ca_bk", "ca_wvo", "ca_ab",
    "out_w1", "out_w2", "out_b",
)


# ----------------------------------------------------------------------------
# Fused forward kernel
# ----------------------------------------------------------------------------

def _fused_forward_kernel(
    x_ref,
    bd_ss_ref, bd_ff_ref, bd_sf_ref, bd_fs_ref,
    ia1_w_ref, ia1_b_ref, ia2_w_ref, ia2_b_ref,
    pe_ref, le1_ref, le2_ref,
    enc_wq_ref, enc_bq_ref, enc_wk_ref, enc_bk_ref, enc_wvo_ref, enc_ab_ref,
    enc_ln1_g_ref, enc_ln1_b_ref,
    enc_w1_ref, enc_b1_ref, enc_w2_ref, enc_b2_ref,
    enc_ln2_g_ref, enc_ln2_b_ref,
    ca_wq_ref, ca_bq_ref, ca_wk_ref, ca_bk_ref, ca_wvo_ref, ca_ab_ref,
    out_w1_ref, out_w2_ref, out_b_ref,
    o_ref,
    *, nhead, num_layers):
  f32 = jnp.float32
  Bt, S, F = x_ref.shape
  d = ia1_b_ref.shape[-1]
  dh = d // nhead

  # Hoisted constants: head-h channel mask over the d lanes (built once).
  col = lax.broadcasted_iota(jnp.int32, (1, d), 1)
  head_masks = [((col >= h * dh) & (col < (h + 1) * dh)).astype(f32)
                for h in range(nhead)]

  def mm(x2, w, b):
    return jnp.dot(x2, w, preferred_element_type=f32) + b

  def layernorm(x3, g, b):
    mu = jnp.mean(x3, axis=-1, keepdims=True)
    var = jnp.mean(jnp.square(x3 - mu), axis=-1, keepdims=True)
    return (x3 - mu) * lax.rsqrt(var + 1e-5) * g + b

  def gelu(x):
    # exact (erf-based) GELU, matching nn.GELU() default
    return 0.5 * x * (1.0 + lax.erf(x * (1.0 / math.sqrt(2.0))))

  def softmax(s):
    s = s - jnp.max(s, axis=-1, keepdims=True)
    p = jnp.exp(s)
    return p * pl.reciprocal(jnp.sum(p, axis=-1, keepdims=True), approx=True)

  def mha(q3, kv3, wq, bq, wk, bk, wvo_ref, li, ab, bd_bias):
    """Multi-head attention on merged batch rows.

    - batch separation: additive block-diagonal bias on the (Rq, Rk) scores
      (cross-batch entries get -1e30, exp -> exactly 0) -> one matmul per head
      for scores and one for the context, no per-batch unroll.
    - head separation: zero-mask Q's non-head channels (VPU), contract the
      full d axis -> identical per-head scores, no lane-offset slices.
    - wq/bq are pre-scaled by 1/sqrt(dh); wvo_ref[li, h] = Wv_h @ Wo_h and
      ab = bv @ Wo + bo are folded at the wrapper (V & out proj merged).
    """
    Bb, Tq, _ = q3.shape
    Tk = kv3.shape[1]
    xq = q3.reshape(Bb * Tq, d)
    xk = kv3.reshape(Bb * Tk, d)
    q2 = mm(xq, wq, bq)
    k2 = mm(xk, wk, bk)
    acc = jnp.zeros((Bb * Tq, d), f32) + ab
    for h in range(nhead):
      s = lax.dot_general(q2 * head_masks[h], k2,
                          (((1,), (1,)), ((), ())),
                          preferred_element_type=f32)             # (Rq, Rk)
      p = softmax(s + bd_bias)
      vo = jnp.dot(xk, wvo_ref[li, h], preferred_element_type=f32)  # (Rk, d)
      acc = acc + jnp.dot(p, vo, preferred_element_type=f32)
    return acc.reshape(Bb, Tq, d)

  def encoder_layer(x3, li, bd_bias):
    """Post-norm TransformerEncoderLayer (PyTorch norm_first=False)."""
    sa = mha(x3, x3, enc_wq_ref[li], enc_bq_ref[li],
             enc_wk_ref[li], enc_bk_ref[li],
             enc_wvo_ref, li, enc_ab_ref[li], bd_bias)
    x3 = layernorm(x3 + sa, enc_ln1_g_ref[li], enc_ln1_b_ref[li])
    Bb, T, _ = x3.shape
    h2 = gelu(mm(x3.reshape(Bb * T, d), enc_w1_ref[li], enc_b1_ref[li]))
    ff = mm(h2, enc_w2_ref[li], enc_b2_ref[li]).reshape(Bb, T, d)
    return layernorm(x3 + ff, enc_ln2_g_ref[li], enc_ln2_b_ref[li])

  # ---- forward pass ---------------------------------------------------------
  x = x_ref[...].astype(f32)                      # (Bt, S, F)
  xT = jnp.transpose(x, (0, 2, 1))                # (Bt, F, S): minor-dims swap

  s1 = mm(x.reshape(Bt * S, F), ia1_w_ref[...], ia1_b_ref[...]).reshape(Bt, S, d)
  s2 = mm(xT.reshape(Bt * F, S), ia2_w_ref[...], ia2_b_ref[...]).reshape(Bt, F, d)
  s1 = s1 + pe_ref[...]
  s2 = s2 + le1_ref[...]

  bd_ss = bd_ss_ref[...]
  bd_ff = bd_ff_ref[...]

  for l in range(num_layers):                     # encoder 1
    s1 = encoder_layer(s1, l, bd_ss)
  for l in range(num_layers):                     # encoder 2
    s2 = encoder_layer(s2, num_layers + l, bd_ff)

  e1 = s1 + pe_ref[...]
  e2 = s2 + le2_ref[...]

  c1 = mha(e1, e2, ca_wq_ref[0], ca_bq_ref[0], ca_wk_ref[0], ca_bk_ref[0],
           ca_wvo_ref, 0, ca_ab_ref[0], bd_sf_ref[...])        # (Bt, S, d)
  c2 = mha(e2, e1, ca_wq_ref[1], ca_bq_ref[1], ca_wk_ref[1], ca_bk_ref[1],
           ca_wvo_ref, 1, ca_ab_ref[1], bd_fs_ref[...])        # (Bt, F, d)

  # Output head: cat([flatten(c1), flatten(c2)]) @ W + b, computed as
  # accumulated per-position dots (weight row slices are sublane-aligned
  # multiples of d; avoids a minor-dim-changing activation reshape).
  w1 = out_w1_ref[...]                             # (S*d, O)
  w2 = out_w2_ref[...]                             # (F*d, O)
  out = jnp.zeros((Bt, o_ref.shape[-1]), f32) + out_b_ref[...]
  for s in range(S):
    out = out + jnp.dot(c1[:, s, :], w1[s * d:(s + 1) * d, :],
                        preferred_element_type=f32)
  for f in range(F):
    out = out + jnp.dot(c2[:, f, :], w2[f * d:(f + 1) * d, :],
                        preferred_element_type=f32)
  o_ref[...] = out.astype(o_ref.dtype)


# ----------------------------------------------------------------------------
# Wrapper: one pallas_call, batch grid marked "parallel"
# ----------------------------------------------------------------------------

def forward(x, P, *, nhead, num_layers, batch_tile=None):
  B, S, F = x.shape
  O = P["out_b"].shape[-1]
  # One kernel invocation handles `bt` batch rows; grid steps are independent
  # ("parallel"), so at larger batch they shard across TensorCores (v7x) and
  # pipeline the input DMA.  For B > 8 pick bt as a multiple of 8.
  bt = B if batch_tile is None else batch_tile
  assert B % bt == 0

  def bd_bias(tq, tk):
    rq = jnp.arange(bt * tq, dtype=jnp.int32) // tq
    rk = jnp.arange(bt * tk, dtype=jnp.int32) // tk
    return jnp.where(rq[:, None] == rk[None, :], 0.0, -1e30).astype(jnp.float32)

  bd = (bd_bias(S, S), bd_bias(F, F), bd_bias(S, F), bd_bias(F, S))
  weights = [P[k] for k in _WEIGHT_ORDER]

  def full_spec(a):
    return pl.BlockSpec(a.shape, lambda b, _n=a.ndim: (0,) * _n)

  in_specs = ([pl.BlockSpec((bt, S, F), lambda b: (b, 0, 0))]
              + [full_spec(m) for m in bd]
              + [full_spec(w) for w in weights])
  out_specs = pl.BlockSpec((bt, O), lambda b: (b, 0))

  kern = functools.partial(_fused_forward_kernel,
                           nhead=nhead, num_layers=num_layers)
  return pl.pallas_call(
      kern,
      out_shape=jax.ShapeDtypeStruct((B, O), jnp.float32),
      grid_spec=pltpu.PrefetchScalarGridSpec(
          num_scalar_prefetch=0,
          grid=(B // bt,),
          in_specs=in_specs,
          out_specs=out_specs),
      compiler_params=pltpu.CompilerParams(
          dimension_semantics=("parallel",),
          vmem_limit_bytes=16 * 1024 * 1024),
  )(x, *bd, *weights)


# ----------------------------------------------------------------------------
# Parameters: raw (PyTorch-like) init + wrapper-side folding for the kernel
# ----------------------------------------------------------------------------

def sinusoidal_pe(max_len, d_model):
  pos = jnp.arange(max_len, dtype=jnp.float32)[:, None]
  div = jnp.exp(jnp.arange(0, d_model, 2, dtype=jnp.float32)
                * (-math.log(10000.0) / d_model))
  pe = jnp.zeros((max_len, d_model), jnp.float32)
  pe = pe.at[:, 0::2].set(jnp.sin(pos * div))
  pe = pe.at[:, 1::2].set(jnp.cos(pos * div))
  return pe


def init_raw_params(seed, S, F, d, nhead, L, dff, O):
  key = jax.random.PRNGKey(seed)
  c = [0]

  def w(*shape):
    c[0] += 1
    return jax.random.normal(jax.random.fold_in(key, c[0]), shape,
                             jnp.float32) * 0.05

  twoL = 2 * L          # [encoder1 layers..., encoder2 layers...]
  return dict(
      ia1_w=w(F, d), ia1_b=w(1, d),
      ia2_w=w(S, d), ia2_b=w(1, d),
      pe=sinusoidal_pe(S, d),
      le1=w(F, d), le2=w(F, d),
      enc_wq=w(twoL, d, d), enc_wk=w(twoL, d, d),
      enc_wv=w(twoL, d, d), enc_wo=w(twoL, d, d),
      enc_bq=w(twoL, 1, d), enc_bk=w(twoL, 1, d),
      enc_bv=w(twoL, 1, d), enc_bo=w(twoL, 1, d),
      enc_ln1_g=jnp.ones((twoL, 1, d), jnp.float32),
      enc_ln1_b=jnp.zeros((twoL, 1, d), jnp.float32),
      enc_w1=w(twoL, d, dff), enc_b1=w(twoL, 1, dff),
      enc_w2=w(twoL, dff, d), enc_b2=w(twoL, 1, d),
      enc_ln2_g=jnp.ones((twoL, 1, d), jnp.float32),
      enc_ln2_b=jnp.zeros((twoL, 1, d), jnp.float32),
      ca_wq=w(2, d, d), ca_wk=w(2, d, d), ca_wv=w(2, d, d), ca_wo=w(2, d, d),
      ca_bq=w(2, 1, d), ca_bk=w(2, 1, d), ca_bv=w(2, 1, d), ca_bo=w(2, 1, d),
      out_w1=w(S * d, O), out_w2=w(F * d, O), out_b=w(1, O))


def pack_params(R, *, nhead):
  """Fold softmax scale into Wq/bq, Wv_h@Wo_h per head, and bv@Wo+bo."""
  d = R["ia1_b"].shape[-1]
  dh = d // nhead
  scale = 1.0 / math.sqrt(dh)

  def fold_vo(wv, wo):      # (d, d), (d, d) -> (H, d, d)
    return jnp.stack([wv[:, h * dh:(h + 1) * dh] @ wo[h * dh:(h + 1) * dh, :]
                      for h in range(nhead)], axis=0)

  def fold_vo_stack(wv_s, wo_s):
    return jnp.stack([fold_vo(wv_s[i], wo_s[i])
                      for i in range(wv_s.shape[0])], axis=0)

  P = {k: R[k] for k in (
      "ia1_w", "ia1_b", "ia2_w", "ia2_b", "pe", "le1", "le2",
      "enc_wk", "enc_bk", "enc_ln1_g", "enc_ln1_b",
      "enc_w1", "enc_b1", "enc_w2", "enc_b2", "enc_ln2_g", "enc_ln2_b",
      "ca_wk", "ca_bk", "out_w1", "out_w2", "out_b")}
  P["enc_wq"] = R["enc_wq"] * scale
  P["enc_bq"] = R["enc_bq"] * scale
  P["enc_wvo"] = fold_vo_stack(R["enc_wv"], R["enc_wo"])        # (2L, H, d, d)
  P["enc_ab"] = jnp.einsum("lod,ldk->lok", R["enc_bv"], R["enc_wo"]) + R["enc_bo"]
  P["ca_wq"] = R["ca_wq"] * scale
  P["ca_bq"] = R["ca_bq"] * scale
  P["ca_wvo"] = fold_vo_stack(R["ca_wv"], R["ca_wo"])           # (2, H, d, d)
  P["ca_ab"] = jnp.einsum("lod,ldk->lok", R["ca_bv"], R["ca_wo"]) + R["ca_bo"]
  return P


# ----------------------------------------------------------------------------
# Pure-JAX reference (uses the RAW params -> also validates the folding)
# ----------------------------------------------------------------------------

def _reference_forward(x, R, *, nhead, num_layers):
  d = R["ia1_b"].shape[-1]
  dh = d // nhead

  def ln(h, g, b):
    mu = jnp.mean(h, -1, keepdims=True)
    var = jnp.mean((h - mu) ** 2, -1, keepdims=True)
    return (h - mu) / jnp.sqrt(var + 1e-5) * g + b

  def gelu(h):
    return 0.5 * h * (1.0 + jax.scipy.special.erf(h / jnp.sqrt(2.0)))

  def mha(q3, k3, v3, wq, bq, wk, bk, wv, bv, wo, bo):
    q = q3 @ wq + bq
    k = k3 @ wk + bk
    v = v3 @ wv + bv
    B_, Tq, _ = q.shape
    Tk = k.shape[1]
    qh = q.reshape(B_, Tq, nhead, dh).transpose(0, 2, 1, 3)
    kh = k.reshape(B_, Tk, nhead, dh).transpose(0, 2, 1, 3)
    vh = v.reshape(B_, Tk, nhead, dh).transpose(0, 2, 1, 3)
    s = jnp.einsum('bhqc,bhkc->bhqk', qh, kh) / math.sqrt(dh)
    p = jax.nn.softmax(s, axis=-1)
    o = jnp.einsum('bhqk,bhkc->bhqc', p, vh)
    o = o.transpose(0, 2, 1, 3).reshape(B_, Tq, d)
    return o @ wo + bo

  def enc_layer(h, l):
    sa = mha(h, h, h, R["enc_wq"][l], R["enc_bq"][l], R["enc_wk"][l],
             R["enc_bk"][l], R["enc_wv"][l], R["enc_bv"][l],
             R["enc_wo"][l], R["enc_bo"][l])
    h = ln(h + sa, R["enc_ln1_g"][l], R["enc_ln1_b"][l])
    ff = gelu(h @ R["enc_w1"][l] + R["enc_b1"][l]) @ R["enc_w2"][l] + R["enc_b2"][l]
    return ln(h + ff, R["enc_ln2_g"][l], R["enc_ln2_b"][l])

  xT = jnp.transpose(x, (0, 2, 1))
  s1 = x @ R["ia1_w"] + R["ia1_b"] + R["pe"]
  s2 = xT @ R["ia2_w"] + R["ia2_b"] + R["le1"]
  for l in range(num_layers):
    s1 = enc_layer(s1, l)
  for l in range(num_layers):
    s2 = enc_layer(s2, num_layers + l)
  e1 = s1 + R["pe"]
  e2 = s2 + R["le2"]
  c1 = mha(e1, e2, e2, R["ca_wq"][0], R["ca_bq"][0], R["ca_wk"][0], R["ca_bk"][0],
           R["ca_wv"][0], R["ca_bv"][0], R["ca_wo"][0], R["ca_bo"][0])
  c2 = mha(e2, e1, e1, R["ca_wq"][1], R["ca_bq"][1], R["ca_wk"][1], R["ca_bk"][1],
           R["ca_wv"][1], R["ca_bv"][1], R["ca_wo"][1], R["ca_bo"][1])
  B = x.shape[0]
  flat = jnp.concatenate([c1.reshape(B, -1), c2.reshape(B, -1)], axis=1)
  W = jnp.concatenate([R["out_w1"], R["out_w2"]], axis=0)
  return flat @ W + R["out_b"]


# ----------------------------------------------------------------------------
# Main
# ----------------------------------------------------------------------------

if __name__ == "__main__":
  seq_length = 8
  feature_dim = 4
  d_model = 32
  nhead = 4
  num_encoder_layers = 2
  dim_feedforward = 64
  output_dim = 3
  batch = 2

  R = init_raw_params(42, seq_length, feature_dim, d_model, nhead,
                      num_encoder_layers, dim_feedforward, output_dim)
  P = pack_params(R, nhead=nhead)

  x = jax.random.normal(jax.random.PRNGKey(0),
                        (batch, seq_length, feature_dim), jnp.float32)

  fwd = jax.jit(functools.partial(forward, nhead=nhead,
                                  num_layers=num_encoder_layers))
  out = jax.block_until_ready(fwd(x, P))

  assert out.shape == (batch, output_dim), out.shape
  assert bool(jnp.all(jnp.isfinite(out)))

  ref = _reference_forward(x, R, nhead=nhead, num_layers=num_encoder_layers)
  assert bool(jnp.allclose(out, ref, atol=5e-3, rtol=5e-3)), (out, ref)

  print("KERNEL_OK")
</pallas_src>

<mosaic_0001>
module attributes {stable_mosaic.version = 11 : i64} {
  func.func @_fused_forward_kernel(%arg0: i32, %arg1: memref<2x8x4xf32, #tpu.memory_space<vmem>>, %arg2: memref<16x16xf32, #tpu.memory_space<vmem>>, %arg3: memref<8x8xf32, #tpu.memory_space<vmem>>, %arg4: memref<16x8xf32, #tpu.memory_space<vmem>>, %arg5: memref<8x16xf32, #tpu.memory_space<vmem>>, %arg6: memref<4x32xf32, #tpu.memory_space<vmem>>, %arg7: memref<1x32xf32, #tpu.memory_space<vmem>>, %arg8: memref<8x32xf32, #tpu.memory_space<vmem>>, %arg9: memref<1x32xf32, #tpu.memory_space<vmem>>, %arg10: memref<8x32xf32, #tpu.memory_space<vmem>>, %arg11: memref<4x32xf32, #tpu.memory_space<vmem>>, %arg12: memref<4x32xf32, #tpu.memory_space<vmem>>, %arg13: memref<4x32x32xf32, #tpu.memory_space<vmem>>, %arg14: memref<4x1x32xf32, #tpu.memory_space<vmem>>, %arg15: memref<4x32x32xf32, #tpu.memory_space<vmem>>, %arg16: memref<4x1x32xf32, #tpu.memory_space<vmem>>, %arg17: memref<4x4x32x32xf32, #tpu.memory_space<vmem>>, %arg18: memref<4x1x32xf32, #tpu.memory_space<vmem>>, %arg19: memref<4x1x32xf32, #tpu.memory_space<vmem>>, %arg20: memref<4x1x32xf32, #tpu.memory_space<vmem>>, %arg21: memref<4x32x64xf32, #tpu.memory_space<vmem>>, %arg22: memref<4x1x64xf32, #tpu.memory_space<vmem>>, %arg23: memref<4x64x32xf32, #tpu.memory_space<vmem>>, %arg24: memref<4x1x32xf32, #tpu.memory_space<vmem>>, %arg25: memref<4x1x32xf32, #tpu.memory_space<vmem>>, %arg26: memref<4x1x32xf32, #tpu.memory_space<vmem>>, %arg27: memref<2x32x32xf32, #tpu.memory_space<vmem>>, %arg28: memref<2x1x32xf32, #tpu.memory_space<vmem>>, %arg29: memref<2x32x32xf32, #tpu.memory_space<vmem>>, %arg30: memref<2x1x32xf32, #tpu.memory_space<vmem>>, %arg31: memref<2x4x32x32xf32, #tpu.memory_space<vmem>>, %arg32: memref<2x1x32xf32, #tpu.memory_space<vmem>>, %arg33: memref<256x3xf32, #tpu.memory_space<vmem>>, %arg34: memref<128x3xf32, #tpu.memory_space<vmem>>, %arg35: memref<1x3xf32, #tpu.memory_space<vmem>>, %arg36: memref<2x3xf32, #tpu.memory_space<vmem>>) attributes {dimension_semantics = [#tpu.dimension_semantics<parallel>], iteration_bounds = array<i64: 1>, scalar_prefetch = 0 : i64, scratch_operands = 0 : i64, tpu.core_type = #tpu.core_type<tc>, window_params = [{transform_indices = @transform_0, window_bounds = array<i64: 2, 8, 4>}, {pipeline_mode = #tpu.pipeline_mode<synchronous>, transform_indices = @transform_1, window_bounds = array<i64: 16, 16>}, {pipeline_mode = #tpu.pipeline_mode<synchronous>, transform_indices = @transform_2, window_bounds = array<i64: 8, 8>}, {pipeline_mode = #tpu.pipeline_mode<synchronous>, transform_indices = @transform_3, window_bounds = array<i64: 16, 8>}, {pipeline_mode = #tpu.pipeline_mode<synchronous>, transform_indices = @transform_4, window_bounds = array<i64: 8, 16>}, {pipeline_mode = #tpu.pipeline_mode<synchronous>, transform_indices = @transform_5, window_bounds = array<i64: 4, 32>}, {pipeline_mode = #tpu.pipeline_mode<synchronous>, transform_indices = @transform_6, window_bounds = array<i64: 1, 32>}, {pipeline_mode = #tpu.pipeline_mode<synchronous>, transform_indices = @transform_7, window_bounds = array<i64: 8, 32>}, {pipeline_mode = #tpu.pipeline_mode<synchronous>, transform_indices = @transform_8, window_bounds = array<i64: 1, 32>}, {pipeline_mode = #tpu.pipeline_mode<synchronous>, transform_indices = @transform_9, window_bounds = array<i64: 8, 32>}, {pipeline_mode = #tpu.pipeline_mode<synchronous>, transform_indices = @transform_10, window_bounds = array<i64: 4, 32>}, {pipeline_mode = #tpu.pipeline_mode<synchronous>, transform_indices = @transform_11, window_bounds = array<i64: 4, 32>}, {pipeline_mode = #tpu.pipeline_mode<synchronous>, transform_indices = @transform_12, window_bounds = array<i64: 4, 32, 32>}, {pipeline_mode = #tpu.pipeline_mode<synchronous>, transform_indices = @transform_13, window_bounds = array<i64: 4, 1, 32>}, {pipeline_mode = #tpu.pipeline_mode<synchronous>, transform_indices = @transform_14, window_bounds = array<i64: 4, 32, 32>}, {pipeline_mode = #tpu.pipeline_mode<synchronous>, transform_indices = @transform_15, window_bounds = array<i64: 4, 1, 32>}, {pipeline_mode = #tpu.pipeline_mode<synchronous>, transform_indices = @transform_16, window_bounds = array<i64: 4, 4, 32, 32>}, {pipeline_mode = #tpu.pipeline_mode<synchronous>, transform_indices = @transform_17, window_bounds = array<i64: 4, 1, 32>}, {pipeline_mode = #tpu.pipeline_mode<synchronous>, transform_indices = @transform_18, window_bounds = array<i64: 4, 1, 32>}, {pipeline_mode = #tpu.pipeline_mode<synchronous>, transform_indices = @transform_19, window_bounds = array<i64: 4, 1, 32>}, {pipeline_mode = #tpu.pipeline_mode<synchronous>, transform_indices = @transform_20, window_bounds = array<i64: 4, 32, 64>}, {pipeline_mode = #tpu.pipeline_mode<synchronous>, transform_indices = @transform_21, window_bounds = array<i64: 4, 1, 64>}, {pipeline_mode = #tpu.pipeline_mode<synchronous>, transform_indices = @transform_22, window_bounds = array<i64: 4, 64, 32>}, {pipeline_mode = #tpu.pipeline_mode<synchronous>, transform_indices = @transform_23, window_bounds = array<i64: 4, 1, 32>}, {pipeline_mode = #tpu.pipeline_mode<synchronous>, transform_indices = @transform_24, window_bounds = array<i64: 4, 1, 32>}, {pipeline_mode = #tpu.pipeline_mode<synchronous>, transform_indices = @transform_25, window_bounds = array<i64: 4, 1, 32>}, {pipeline_mode = #tpu.pipeline_mode<synchronous>, transform_indices = @transform_26, window_bounds = array<i64: 2, 32, 32>}, {pipeline_mode = #tpu.pipeline_mode<synchronous>, transform_indices = @transform_27, window_bounds = array<i64: 2, 1, 32>}, {pipeline_mode = #tpu.pipeline_mode<synchronous>, transform_indices = @transform_28, window_bounds = array<i64: 2, 32, 32>}, {pipeline_mode = #tpu.pipeline_mode<synchronous>, transform_indices = @transform_29, window_bounds = array<i64: 2, 1, 32>}, {pipeline_mode = #tpu.pipeline_mode<synchronous>, transform_indices = @transform_30, window_bounds = array<i64: 2, 4, 32, 32>}, {pipeline_mode = #tpu.pipeline_mode<synchronous>, transform_indices = @transform_31, window_bounds = array<i64: 2, 1, 32>}, {pipeline_mode = #tpu.pipeline_mode<synchronous>, transform_indices = @transform_32, window_bounds = array<i64: 256, 3>}, {pipeline_mode = #tpu.pipeline_mode<synchronous>, transform_indices = @transform_33, window_bounds = array<i64: 128, 3>}, {pipeline_mode = #tpu.pipeline_mode<synchronous>, transform_indices = @transform_34, window_bounds = array<i64: 1, 3>}, {transform_indices = @transform_35, window_bounds = array<i64: 2, 3>}]} {
    %0 = tpu.iota {dimensions = array<i32: 1>} : vector<1x32xi32>
    %c0_i32 = arith.constant 0 : i32
    %1 = vector.broadcast %c0_i32 : i32 to vector<1x32xi32>
    %2 = arith.cmpi sge, %0, %1 : vector<1x32xi32>
    %c8_i32 = arith.constant 8 : i32
    %3 = vector.broadcast %c8_i32 : i32 to vector<1x32xi32>
    %4 = arith.cmpi slt, %0, %3 : vector<1x32xi32>
    %5 = arith.andi %2, %4 : vector<1x32xi1>
    %6 = arith.extui %5 : vector<1x32xi1> to vector<1x32xi32>
    %7 = arith.sitofp %6 : vector<1x32xi32> to vector<1x32xf32>
    %c8_i32_0 = arith.constant 8 : i32
    %8 = vector.broadcast %c8_i32_0 : i32 to vector<1x32xi32>
    %9 = arith.cmpi sge, %0, %8 : vector<1x32xi32>
    %c16_i32 = arith.constant 16 : i32
    %10 = vector.broadcast %c16_i32 : i32 to vector<1x32xi32>
    %11 = arith.cmpi slt, %0, %10 : vector<1x32xi32>
    %12 = arith.andi %9, %11 : vector<1x32xi1>
    %13 = arith.extui %12 : vector<1x32xi1> to vector<1x32xi32>
    %14 = arith.sitofp %13 : vector<1x32xi32> to vector<1x32xf32>
    %c16_i32_1 = arith.constant 16 : i32
    %15 = vector.broadcast %c16_i32_1 : i32 to vector<1x32xi32>
    %16 = arith.cmpi sge, %0, %15 : vector<1x32xi32>
    %c24_i32 = arith.constant 24 : i32
    %17 = vector.broadcast %c24_i32 : i32 to vector<1x32xi32>
    %18 = arith.cmpi slt, %0, %17 : vector<1x32xi32>
    %19 = arith.andi %16, %18 : vector<1x32xi1>
    %20 = arith.extui %19 : vector<1x32xi1> to vector<1x32xi32>
    %21 = arith.sitofp %20 : vector<1x32xi32> to vector<1x32xf32>
    %c24_i32_2 = arith.constant 24 : i32
    %22 = vector.broadcast %c24_i32_2 : i32 to vector<1x32xi32>
    %23 = arith.cmpi sge, %0, %22 : vector<1x32xi32>
    %c32_i32 = arith.constant 32 : i32
    %24 = vector.broadcast %c32_i32 : i32 to vector<1x32xi32>
    %25 = arith.cmpi slt, %0, %24 : vector<1x32xi32>
    %26 = arith.andi %23, %25 : vector<1x32xi1>
    %27 = arith.extui %26 : vector<1x32xi1> to vector<1x32xi32>
    %28 = arith.sitofp %27 : vector<1x32xi32> to vector<1x32xf32>
    %c0 = arith.constant 0 : index
    %c0_3 = arith.constant 0 : index
    %c0_4 = arith.constant 0 : index
    %29 = vector.load %arg1[%c0, %c0_3, %c0_4] : memref<2x8x4xf32, #tpu.memory_space<vmem>>, vector<2x8x4xf32>
    %30 = tpu.transpose %29, [0, 2, 1] : vector<2x8x4xf32> -> vector<2x4x8xf32>
    %31 = vector.shape_cast %29 : vector<2x8x4xf32> to vector<16x4xf32>
    %c0_5 = arith.constant 0 : index
    %c0_6 = arith.constant 0 : index
    %32 = vector.load %arg6[%c0_5, %c0_6] : memref<4x32xf32, #tpu.memory_space<vmem>>, vector<4x32xf32>
    %c0_7 = arith.constant 0 : index
    %c0_8 = arith.constant 0 : index
    %33 = vector.load %arg7[%c0_7, %c0_8] : memref<1x32xf32, #tpu.memory_space<vmem>>, vector<1x32xf32>
    %cst = arith.constant dense<0.000000e+00> : vector<16x32xf32>
    %34 = tpu.matmul %31, %32, %cst {dimension_numbers = #tpu.dot_dimension_numbers<[1], [0], [0], [1], [0, 0, 1, 1], [], []>} : vector<16x4xf32>, vector<4x32xf32>, vector<16x32xf32> -> vector<16x32xf32>
    %35 = vector.broadcast %33 : vector<1x32xf32> to vector<16x32xf32>
    %36 = arith.addf %34, %35 : vector<16x32xf32>
    %37 = vector.shape_cast %36 : vector<16x32xf32> to vector<2x8x32xf32>
    %38 = vector.shape_cast %30 : vector<2x4x8xf32> to vector<8x8xf32>
    %c0_9 = arith.constant 0 : index
    %c0_10 = arith.constant 0 : index
    %39 = vector.load %arg8[%c0_9, %c0_10] : memref<8x32xf32, #tpu.memory_space<vmem>>, vector<8x32xf32>
    %c0_11 = arith.constant 0 : index
    %c0_12 = arith.constant 0 : index
    %40 = vector.load %arg9[%c0_11, %c0_12] : memref<1x32xf32, #tpu.memory_space<vmem>>, vector<1x32xf32>
    %cst_13 = arith.constant dense<0.000000e+00> : vector<8x32xf32>
    %41 = tpu.matmul %38, %39, %cst_13 {dimension_numbers = #tpu.dot_dimension_numbers<[1], [0], [0], [1], [0, 0, 1, 1], [], []>} : vector<8x8xf32>, vector<8x32xf32>, vector<8x32xf32> -> vector<8x32xf32>
    %42 = vector.broadcast %40 : vector<1x32xf32> to vector<8x32xf32>
    %43 = arith.addf %41, %42 : vector<8x32xf32>
    %44 = vector.shape_cast %43 : vector<8x32xf32> to vector<2x4x32xf32>
    %c0_14 = arith.constant 0 : index
    %c0_15 = arith.constant 0 : index
    %45 = vector.load %arg10[%c0_14, %c0_15] : memref<8x32xf32, #tpu.memory_space<vmem>>, vector<8x32xf32>
    %46 = vector.shape_cast %45 : vector<8x32xf32> to vector<1x8x32xf32>
    %47 = vector.broadcast %46 : vector<1x8x32xf32> to vector<2x8x32xf32>
    %48 = arith.addf %37, %47 : vector<2x8x32xf32>
    %c0_16 = arith.constant 0 : index
    %c0_17 = arith.constant 0 : index
    %49 = vector.load %arg11[%c0_16, %c0_17] : memref<4x32xf32, #tpu.memory_space<vmem>>, vector<4x32xf32>
    %50 = vector.shape_cast %49 : vector<4x32xf32> to vector<1x4x32xf32>
    %51 = vector.broadcast %50 : vector<1x4x32xf32> to vector<2x4x32xf32>
    %52 = arith.addf %44, %51 : vector<2x4x32xf32>
    %c0_18 = arith.constant 0 : index
    %c0_19 = arith.constant 0 : index
    %53 = vector.load %arg2[%c0_18, %c0_19] : memref<16x16xf32, #tpu.memory_space<vmem>>, vector<16x16xf32>
    %c0_20 = arith.constant 0 : index
    %c0_21 = arith.constant 0 : index
    %54 = vector.load %arg3[%c0_20, %c0_21] : memref<8x8xf32, #tpu.memory_space<vmem>>, vector<8x8xf32>
    %c0_22 = arith.constant 0 : index
    %c0_23 = arith.constant 0 : index
    %c0_24 = arith.constant 0 : index
    %55 = vector.load %arg13[%c0_22, %c0_23, %c0_24] : memref<4x32x32xf32, #tpu.memory_space<vmem>>, vector<1x32x32xf32>
    %56 = vector.shape_cast %55 : vector<1x32x32xf32> to vector<32x32xf32>
    %c0_25 = arith.constant 0 : index
    %c0_26 = arith.constant 0 : index
    %c0_27 = arith.constant 0 : index
    %57 = vector.load %arg14[%c0_25, %c0_26, %c0_27] : memref<4x1x32xf32, #tpu.memory_space<vmem>>, vector<1x1x32xf32>
    %58 = vector.shape_cast %57 : vector<1x1x32xf32> to vector<1x32xf32>
    %c0_28 = arith.constant 0 : index
    %c0_29 = arith.constant 0 : index
    %c0_30 = arith.constant 0 : index
    %59 = vector.load %arg15[%c0_28, %c0_29, %c0_30] : memref<4x32x32xf32, #tpu.memory_space<vmem>>, vector<1x32x32xf32>
    %60 = vector.shape_cast %59 : vector<1x32x32xf32> to vector<32x32xf32>
    %c0_31 = arith.constant 0 : index
    %c0_32 = arith.constant 0 : index
    %c0_33 = arith.constant 0 : index
    %61 = vector.load %arg16[%c0_31, %c0_32, %c0_33] : memref<4x1x32xf32, #tpu.memory_space<vmem>>, vector<1x1x32xf32>
    %62 = vector.shape_cast %61 : vector<1x1x32xf32> to vector<1x32xf32>
    %c0_34 = arith.constant 0 : index
    %c0_35 = arith.constant 0 : index
    %c0_36 = arith.constant 0 : index
    %63 = vector.load %arg18[%c0_34, %c0_35, %c0_36] : memref<4x1x32xf32, #tpu.memory_space<vmem>>, vector<1x1x32xf32>
    %64 = vector.shape_cast %63 : vector<1x1x32xf32> to vector<1x32xf32>
    %65 = vector.shape_cast %48 : vector<2x8x32xf32> to vector<16x32xf32>
    %66 = vector.shape_cast %48 : vector<2x8x32xf32> to vector<16x32xf32>
    %cst_37 = arith.constant dense<0.000000e+00> : vector<16x32xf32>
    %67 = tpu.matmul %65, %56, %cst_37 {dimension_numbers = #tpu.dot_dimension_numbers<[1], [0], [0], [1], [0, 0, 1, 1], [], []>} : vector<16x32xf32>, vector<32x32xf32>, vector<16x32xf32> -> vector<16x32xf32>
    %68 = vector.broadcast %58 : vector<1x32xf32> to vector<16x32xf32>
    %69 = arith.addf %67, %68 : vector<16x32xf32>
    %cst_38 = arith.constant dense<0.000000e+00> : vector<16x32xf32>
    %70 = tpu.matmul %66, %60, %cst_38 {dimension_numbers = #tpu.dot_dimension_numbers<[1], [0], [0], [1], [0, 0, 1, 1], [], []>} : vector<16x32xf32>, vector<32x32xf32>, vector<16x32xf32> -> vector<16x32xf32>
    %71 = vector.broadcast %62 : vector<1x32xf32> to vector<16x32xf32>
    %72 = arith.addf %70, %71 : vector<16x32xf32>
    %cst_39 = arith.constant 0.000000e+00 : f32
    %73 = vector.broadcast %cst_39 : f32 to vector<16x32xf32>
    %74 = vector.broadcast %64 : vector<1x32xf32> to vector<16x32xf32>
    %75 = arith.addf %73, %74 : vector<16x32xf32>
    %76 = vector.broadcast %7 : vector<1x32xf32> to vector<16x32xf32>
    %77 = arith.mulf %69, %76 : vector<16x32xf32>
    %cst_40 = arith.constant dense<0.000000e+00> : vector<16x16xf32>
    %78 = tpu.matmul %77, %72, %cst_40 {dimension_numbers = #tpu.dot_dimension_numbers<[1], [1], [0], [0], [0, 0, 1, 0], [], []>} : vector<16x32xf32>, vector<16x32xf32>, vector<16x16xf32> -> vector<16x16xf32>
    %79 = arith.addf %78, %53 : vector<16x16xf32>
    %cst_41 = arith.constant dense<0xFF800000> : vector<16xf32>
    %80 = vector.multi_reduction <maximumf>, %79, %cst_41 [1] : vector<16x16xf32> to vector<16xf32>
    %81 = vector.shape_cast %80 : vector<16xf32> to vector<16x1xf32>
    %82 = vector.broadcast %81 : vector<16x1xf32> to vector<16x16xf32>
    %83 = arith.subf %79, %82 : vector<16x16xf32>
    %84 = math.exp %83 : vector<16x16xf32>
    %cst_42 = arith.constant dense<0.000000e+00> : vector<16xf32>
    %85 = vector.multi_reduction <add>, %84, %cst_42 [1] : vector<16x16xf32> to vector<16xf32>
    %86 = vector.shape_cast %85 : vector<16xf32> to vector<16x1xf32>
    %87 = tpu.reciprocal %86 {approx = true} : vector<16x1xf32> -> vector<16x1xf32>
    %88 = vector.broadcast %87 : vector<16x1xf32> to vector<16x16xf32>
    %89 = arith.mulf %84, %88 : vector<16x16xf32>
    %c0_43 = arith.constant 0 : index
    %c0_44 = arith.constant 0 : index
    %c0_45 = arith.constant 0 : index
    %c0_46 = arith.constant 0 : index
    %90 = vector.load %arg17[%c0_43, %c0_44, %c0_45, %c0_46] : memref<4x4x32x32xf32, #tpu.memory_space<vmem>>, vector<1x1x32x32xf32>
    %91 = vector.shape_cast %90 : vector<1x1x32x32xf32> to vector<32x32xf32>
    %cst_47 = arith.constant dense<0.000000e+00> : vector<16x32xf32>
    %92 = tpu.matmul %66, %91, %cst_47 {dimension_numbers = #tpu.dot_dimension_numbers<[1], [0], [0], [1], [0, 0, 1, 1], [], []>} : vector<16x32xf32>, vector<32x32xf32>, vector<16x32xf32> -> vector<16x32xf32>
    %cst_48 = arith.constant dense<0.000000e+00> : vector<16x32xf32>
    %93 = tpu.matmul %89, %92, %cst_48 {dimension_numbers = #tpu.dot_dimension_numbers<[1], [0], [0], [1], [0, 0, 1, 1], [], []>} : vector<16x16xf32>, vector<16x32xf32>, vector<16x32xf32> -> vector<16x32xf32>
    %94 = arith.addf %75, %93 : vector<16x32xf32>
    %95 = vector.broadcast %14 : vector<1x32xf32> to vector<16x32xf32>
    %96 = arith.mulf %69, %95 : vector<16x32xf32>
    %cst_49 = arith.constant dense<0.000000e+00> : vector<16x16xf32>
    %97 = tpu.matmul %96, %72, %cst_49 {dimension_numbers = #tpu.dot_dimension_numbers<[1], [1], [0], [0], [0, 0, 1, 0], [], []>} : vector<16x32xf32>, vector<16x32xf32>, vector<16x16xf32> -> vector<16x16xf32>
    %98 = arith.addf %97, %53 : vector<16x16xf32>
    %cst_50 = arith.constant dense<0xFF800000> : vector<16xf32>
    %99 = vector.multi_reduction <maximumf>, %98, %cst_50 [1] : vector<16x16xf32> to vector<16xf32>
    %100 = vector.shape_cast %99 : vector<16xf32> to vector<16x1xf32>
    %101 = vector.broadcast %100 : vector<16x1xf32> to vector<16x16xf32>
    %102 = arith.subf %98, %101 : vector<16x16xf32>
    %103 = math.exp %102 : vector<16x16xf32>
    %cst_51 = arith.constant dense<0.000000e+00> : vector<16xf32>
    %104 = vector.multi_reduction <add>, %103, %cst_51 [1] : vector<16x16xf32> to vector<16xf32>
    %105 = vector.shape_cast %104 : vector<16xf32> to vector<16x1xf32>
    %106 = tpu.reciprocal %105 {approx = true} : vector<16x1xf32> -> vector<16x1xf32>
    %107 = vector.broadcast %106 : vector<16x1xf32> to vector<16x16xf32>
    %108 = arith.mulf %103, %107 : vector<16x16xf32>
    %c0_52 = arith.constant 0 : index
    %c1 = arith.constant 1 : index
    %c0_53 = arith.constant 0 : index
    %c0_54 = arith.constant 0 : index
    %109 = vector.load %arg17[%c0_52, %c1, %c0_53, %c0_54] : memref<4x4x32x32xf32, #tpu.memory_space<vmem>>, vector<1x1x32x32xf32>
    %110 = vector.shape_cast %109 : vector<1x1x32x32xf32> to vector<32x32xf32>
    %cst_55 = arith.constant dense<0.000000e+00> : vector<16x32xf32>
    %111 = tpu.matmul %66, %110, %cst_55 {dimension_numbers = #tpu.dot_dimension_numbers<[1], [0], [0], [1], [0, 0, 1, 1], [], []>} : vector<16x32xf32>, vector<32x32xf32>, vector<16x32xf32> -> vector<16x32xf32>
    %cst_56 = arith.constant dense<0.000000e+00> : vector<16x32xf32>
    %112 = tpu.matmul %108, %111, %cst_56 {dimension_numbers = #tpu.dot_dimension_numbers<[1], [0], [0], [1], [0, 0, 1, 1], [], []>} : vector<16x16xf32>, vector<16x32xf32>, vector<16x32xf32> -> vector<16x32xf32>
    %113 = arith.addf %94, %112 : vector<16x32xf32>
    %114 = vector.broadcast %21 : vector<1x32xf32> to vector<16x32xf32>
    %115 = arith.mulf %69, %114 : vector<16x32xf32>
    %cst_57 = arith.constant dense<0.000000e+00> : vector<16x16xf32>
    %116 = tpu.matmul %115, %72, %cst_57 {dimension_numbers = #tpu.dot_dimension_numbers<[1], [1], [0], [0], [0, 0, 1, 0], [], []>} : vector<16x32xf32>, vector<16x32xf32>, vector<16x16xf32> -> vector<16x16xf32>
    %117 = arith.addf %116, %53 : vector<16x16xf32>
    %cst_58 = arith.constant dense<0xFF800000> : vector<16xf32>
    %118 = vector.multi_reduction <maximumf>, %117, %cst_58 [1] : vector<16x16xf32> to vector<16xf32>
    %119 = vector.shape_cast %118 : vector<16xf32> to vector<16x1xf32>
    %120 = vector.broadcast %119 : vector<16x1xf32> to vector<16x16xf32>
    %121 = arith.subf %117, %120 : vector<16x16xf32>
    %122 = math.exp %121 : vector<16x16xf32>
    %cst_59 = arith.constant dense<0.000000e+00> : vector<16xf32>
    %123 = vector.multi_reduction <add>, %122, %cst_59 [1] : vector<16x16xf32> to vector<16xf32>
    %124 = vector.shape_cast %123 : vector<16xf32> to vector<16x1xf32>
    %125 = tpu.reciprocal %124 {approx = true} : vector<16x1xf32> -> vector<16x1xf32>
    %126 = vector.broadcast %125 : vector<16x1xf32> to vector<16x16xf32>
    %127 = arith.mulf %122, %126 : vector<16x16xf32>
    %c0_60 = arith.constant 0 : index
    %c2 = arith.constant 2 : index
    %c0_61 = arith.constant 0 : index
    %c0_62 = arith.constant 0 : index
    %128 = vector.load %arg17[%c0_60, %c2, %c0_61, %c0_62] : memref<4x4x32x32xf32, #tpu.memory_space<vmem>>, vector<1x1x32x32xf32>
    %129 = vector.shape_cast %128 : vector<1x1x32x32xf32> to vector<32x32xf32>
    %cst_63 = arith.constant dense<0.000000e+00> : vector<16x32xf32>
    %130 = tpu.matmul %66, %129, %cst_63 {dimension_numbers = #tpu.dot_dimension_numbers<[1], [0], [0], [1], [0, 0, 1, 1], [], []>} : vector<16x32xf32>, vector<32x32xf32>, vector<16x32xf32> -> vector<16x32xf32>
    %cst_64 = arith.constant dense<0.000000e+00> : vector<16x32xf32>
    %131 = tpu.matmul %127, %130, %cst_64 {dimension_numbers = #tpu.dot_dimension_numbers<[1], [0], [0], [1], [0, 0, 1, 1], [], []>} : vector<16x16xf32>, vector<16x32xf32>, vector<16x32xf32> -> vector<16x32xf32>
    %132 = arith.addf %113, %131 : vector<16x32xf32>
    %133 = vector.broadcast %28 : vector<1x32xf32> to vector<16x32xf32>
    %134 = arith.mulf %69, %133 : vector<16x32xf32>
    %cst_65 = arith.constant dense<0.000000e+00> : vector<16x16xf32>
    %135 = tpu.matmul %134, %72, %cst_65 {dimension_numbers = #tpu.dot_dimension_numbers<[1], [1], [0], [0], [0, 0, 1, 0], [], []>} : vector<16x32xf32>, vector<16x32xf32>, vector<16x16xf32> -> vector<16x16xf32>
    %136 = arith.addf %135, %53 : vector<16x16xf32>
    %cst_66 = arith.constant dense<0xFF800000> : vector<16xf32>
    %137 = vector.multi_reduction <maximumf>, %136, %cst_66 [1] : vector<16x16xf32> to vector<16xf32>
    %138 = vector.shape_cast %137 : vector<16xf32> to vector<16x1xf32>
    %139 = vector.broadcast %138 : vector<16x1xf32> to vector<16x16xf32>
    %140 = arith.subf %136, %139 : vector<16x16xf32>
    %141 = math.exp %140 : vector<16x16xf32>
    %cst_67 = arith.constant dense<0.000000e+00> : vector<16xf32>
    %142 = vector.multi_reduction <add>, %141, %cst_67 [1] : vector<16x16xf32> to vector<16xf32>
    %143 = vector.shape_cast %142 : vector<16xf32> to vector<16x1xf32>
    %144 = tpu.reciprocal %143 {approx = true} : vector<16x1xf32> -> vector<16x1xf32>
    %145 = vector.broadcast %144 : vector<16x1xf32> to vector<16x16xf32>
    %146 = arith.mulf %141, %145 : vector<16x16xf32>
    %c0_68 = arith.constant 0 : index
    %c3 = arith.constant 3 : index
    %c0_69 = arith.constant 0 : index
    %c0_70 = arith.constant 0 : index
    %147 = vector.load %arg17[%c0_68, %c3, %c0_69, %c0_70] : memref<4x4x32x32xf32, #tpu.memory_space<vmem>>, vector<1x1x32x32xf32>
    %148 = vector.shape_cast %147 : vector<1x1x32x32xf32> to vector<32x32xf32>
    %cst_71 = arith.constant dense<0.000000e+00> : vector<16x32xf32>
    %149 = tpu.matmul %66, %148, %cst_71 {dimension_numbers = #tpu.dot_dimension_numbers<[1], [0], [0], [1], [0, 0, 1, 1], [], []>} : vector<16x32xf32>, vector<32x32xf32>, vector<16x32xf32> -> vector<16x32xf32>
    %cst_72 = arith.constant dense<0.000000e+00> : vector<16x32xf32>
    %150 = tpu.matmul %146, %149, %cst_72 {dimension_numbers = #tpu.dot_dimension_numbers<[1], [0], [0], [1], [0, 0, 1, 1], [], []>} : vector<16x16xf32>, vector<16x32xf32>, vector<16x32xf32> -> vector<16x32xf32>
    %151 = arith.addf %132, %150 : vector<16x32xf32>
    %152 = vector.shape_cast %151 : vector<16x32xf32> to vector<2x8x32xf32>
    %153 = arith.addf %48, %152 : vector<2x8x32xf32>
    %c0_73 = arith.constant 0 : index
    %c0_74 = arith.constant 0 : index
    %c0_75 = arith.constant 0 : index
    %154 = vector.load %arg19[%c0_73, %c0_74, %c0_75] : memref<4x1x32xf32, #tpu.memory_space<vmem>>, vector<1x1x32xf32>
    %155 = vector.shape_cast %154 : vector<1x1x32xf32> to vector<1x32xf32>
    %c0_76 = arith.constant 0 : index
    %c0_77 = arith.constant 0 : index
    %c0_78 = arith.constant 0 : index
    %156 = vector.load %arg20[%c0_76, %c0_77, %c0_78] : memref<4x1x32xf32, #tpu.memory_space<vmem>>, vector<1x1x32xf32>
    %157 = vector.shape_cast %156 : vector<1x1x32xf32> to vector<1x32xf32>
    %cst_79 = arith.constant dense<0.000000e+00> : vector<2x8xf32>
    %158 = vector.multi_reduction <add>, %153, %cst_79 [2] : vector<2x8x32xf32> to vector<2x8xf32>
    %159 = vector.shape_cast %158 : vector<2x8xf32> to vector<2x8x1xf32>
    %cst_80 = arith.constant 3.200000e+01 : f32
    %160 = vector.broadcast %cst_80 : f32 to vector<2x8x1xf32>
    %161 = arith.divf %159, %160 : vector<2x8x1xf32>
    %162 = vector.broadcast %161 : vector<2x8x1xf32> to vector<2x8x32xf32>
    %163 = arith.subf %153, %162 : vector<2x8x32xf32>
    %164 = arith.mulf %163, %163 : vector<2x8x32xf32>
    %cst_81 = arith.constant dense<0.000000e+00> : vector<2x8xf32>
    %165 = vector.multi_reduction <add>, %164, %cst_81 [2] : vector<2x8x32xf32> to vector<2x8xf32>
    %166 = vector.shape_cast %165 : vector<2x8xf32> to vector<2x8x1xf32>
    %cst_82 = arith.constant 3.200000e+01 : f32
    %167 = vector.broadcast %cst_82 : f32 to vector<2x8x1xf32>
    %168 = arith.divf %166, %167 : vector<2x8x1xf32>
    %169 = vector.broadcast %161 : vector<2x8x1xf32> to vector<2x8x32xf32>
    %170 = arith.subf %153, %169 : vector<2x8x32xf32>
    %cst_83 = arith.constant 9.99999974E-6 : f32
    %171 = vector.broadcast %cst_83 : f32 to vector<2x8x1xf32>
    %172 = arith.addf %168, %171 : vector<2x8x1xf32>
    %173 = math.rsqrt %172 : vector<2x8x1xf32>
    %174 = vector.broadcast %173 : vector<2x8x1xf32> to vector<2x8x32xf32>
    %175 = arith.mulf %170, %174 : vector<2x8x32xf32>
    %176 = vector.shape_cast %155 : vector<1x32xf32> to vector<1x1x32xf32>
    %177 = vector.broadcast %176 : vector<1x1x32xf32> to vector<2x8x32xf32>
    %178 = arith.mulf %175, %177 : vector<2x8x32xf32>
    %179 = vector.shape_cast %157 : vector<1x32xf32> to vector<1x1x32xf32>
    %180 = vector.broadcast %179 : vector<1x1x32xf32> to vector<2x8x32xf32>
    %181 = arith.addf %178, %180 : vector<2x8x32xf32>
    %182 = vector.shape_cast %181 : vector<2x8x32xf32> to vector<16x32xf32>
    %c0_84 = arith.constant 0 : index
    %c0_85 = arith.constant 0 : index
    %c0_86 = arith.constant 0 : index
    %183 = vector.load %arg21[%c0_84, %c0_85, %c0_86] : memref<4x32x64xf32, #tpu.memory_space<vmem>>, vector<1x32x64xf32>
    %184 = vector.shape_cast %183 : vector<1x32x64xf32> to vector<32x64xf32>
    %c0_87 = arith.constant 0 : index
    %c0_88 = arith.constant 0 : index
    %c0_89 = arith.constant 0 : index
    %185 = vector.load %arg22[%c0_87, %c0_88, %c0_89] : memref<4x1x64xf32, #tpu.memory_space<vmem>>, vector<1x1x64xf32>
    %186 = vector.shape_cast %185 : vector<1x1x64xf32> to vector<1x64xf32>
    %cst_90 = arith.constant dense<0.000000e+00> : vector<16x64xf32>
    %187 = tpu.matmul %182, %184, %cst_90 {dimension_numbers = #tpu.dot_dimension_numbers<[1], [0], [0], [1], [0, 0, 1, 1], [], []>} : vector<16x32xf32>, vector<32x64xf32>, vector<16x64xf32> -> vector<16x64xf32>
    %188 = vector.broadcast %186 : vector<1x64xf32> to vector<16x64xf32>
    %189 = arith.addf %187, %188 : vector<16x64xf32>
    %cst_91 = arith.constant 5.000000e-01 : f32
    %190 = vector.broadcast %cst_91 : f32 to vector<16x64xf32>
    %191 = arith.mulf %190, %189 : vector<16x64xf32>
    %cst_92 = arith.constant 0.707106769 : f32
    %192 = vector.broadcast %cst_92 : f32 to vector<16x64xf32>
    %193 = arith.mulf %189, %192 : vector<16x64xf32>
    %194 = math.erf %193 : vector<16x64xf32>
    %cst_93 = arith.constant 1.000000e+00 : f32
    %195 = vector.broadcast %cst_93 : f32 to vector<16x64xf32>
    %196 = arith.addf %195, %194 : vector<16x64xf32>
    %197 = arith.mulf %191, %196 : vector<16x64xf32>
    %c0_94 = arith.constant 0 : index
    %c0_95 = arith.constant 0 : index
    %c0_96 = arith.constant 0 : index
    %198 = vector.load %arg23[%c0_94, %c0_95, %c0_96] : memref<4x64x32xf32, #tpu.memory_space<vmem>>, vector<1x64x32xf32>
    %199 = vector.shape_cast %198 : vector<1x64x32xf32> to vector<64x32xf32>
    %c0_97 = arith.constant 0 : index
    %c0_98 = arith.constant 0 : index
    %c0_99 = arith.constant 0 : index
    %200 = vector.load %arg24[%c0_97, %c0_98, %c0_99] : memref<4x1x32xf32, #tpu.memory_space<vmem>>, vector<1x1x32xf32>
    %201 = vector.shape_cast %200 : vector<1x1x32xf32> to vector<1x32xf32>
    %cst_100 = arith.constant dense<0.000000e+00> : vector<16x32xf32>
    %202 = tpu.matmul %197, %199, %cst_100 {dimension_numbers = #tpu.dot_dimension_numbers<[1], [0], [0], [1], [0, 0, 1, 1], [], []>} : vector<16x64xf32>, vector<64x32xf32>, vector<16x32xf32> -> vector<16x32xf32>
    %203 = vector.broadcast %201 : vector<1x32xf32> to vector<16x32xf32>
    %204 = arith.addf %202, %203 : vector<16x32xf32>
    %205 = vector.shape_cast %204 : vector<16x32xf32> to vector<2x8x32xf32>
    %206 = arith.addf %181, %205 : vector<2x8x32xf32>
    %c0_101 = arith.constant 0 : index
    %c0_102 = arith.constant 0 : index
    %c0_103 = arith.constant 0 : index
    %207 = vector.load %arg25[%c0_101, %c0_102, %c0_103] : memref<4x1x32xf32, #tpu.memory_space<vmem>>, vector<1x1x32xf32>
    %208 = vector.shape_cast %207 : vector<1x1x32xf32> to vector<1x32xf32>
    %c0_104 = arith.constant 0 : index
    %c0_105 = arith.constant 0 : index
    %c0_106 = arith.constant 0 : index
    %209 = vector.load %arg26[%c0_104, %c0_105, %c0_106] : memref<4x1x32xf32, #tpu.memory_space<vmem>>, vector<1x1x32xf32>
    %210 = vector.shape_cast %209 : vector<1x1x32xf32> to vector<1x32xf32>
    %cst_107 = arith.constant dense<0.000000e+00> : vector<2x8xf32>
    %211 = vector.multi_reduction <add>, %206, %cst_107 [2] : vector<2x8x32xf32> to vector<2x8xf32>
    %212 = vector.shape_cast %211 : vector<2x8xf32> to vector<2x8x1xf32>
    %cst_108 = arith.constant 3.200000e+01 : f32
    %213 = vector.broadcast %cst_108 : f32 to vector<2x8x1xf32>
    %214 = arith.divf %212, %213 : vector<2x8x1xf32>
    %215 = vector.broadcast %214 : vector<2x8x1xf32> to vector<2x8x32xf32>
    %216 = arith.subf %206, %215 : vector<2x8x32xf32>
    %217 = arith.mulf %216, %216 : vector<2x8x32xf32>
    %cst_109 = arith.constant dense<0.000000e+00> : vector<2x8xf32>
    %218 = vector.multi_reduction <add>, %217, %cst_109 [2] : vector<2x8x32xf32> to vector<2x8xf32>
    %219 = vector.shape_cast %218 : vector<2x8xf32> to vector<2x8x1xf32>
    %cst_110 = arith.constant 3.200000e+01 : f32
    %220 = vector.broadcast %cst_110 : f32 to vector<2x8x1xf32>
    %221 = arith.divf %219, %220 : vector<2x8x1xf32>
    %222 = vector.broadcast %214 : vector<2x8x1xf32> to vector<2x8x32xf32>
    %223 = arith.subf %206, %222 : vector<2x8x32xf32>
    %cst_111 = arith.constant 9.99999974E-6 : f32
    %224 = vector.broadcast %cst_111 : f32 to vector<2x8x1xf32>
    %225 = arith.addf %221, %224 : vector<2x8x1xf32>
    %226 = math.rsqrt %225 : vector<2x8x1xf32>
    %227 = vector.broadcast %226 : vector<2x8x1xf32> to vector<2x8x32xf32>
    %228 = arith.mulf %223, %227 : vector<2x8x32xf32>
    %229 = vector.shape_cast %208 : vector<1x32xf32> to vector<1x1x32xf32>
    %230 = vector.broadcast %229 : vector<1x1x32xf32> to vector<2x8x32xf32>
    %231 = arith.mulf %228, %230 : vector<2x8x32xf32>
    %232 = vector.shape_cast %210 : vector<1x32xf32> to vector<1x1x32xf32>
    %233 = vector.broadcast %232 : vector<1x1x32xf32> to vector<2x8x32xf32>
    %234 = arith.addf %231, %233 : vector<2x8x32xf32>
    %c1_112 = arith.constant 1 : index
    %c0_113 = arith.constant 0 : index
    %c0_114 = arith.constant 0 : index
    %235 = vector.load %arg13[%c1_112, %c0_113, %c0_114] : memref<4x32x32xf32, #tpu.memory_space<vmem>>, vector<1x32x32xf32>
    %236 = vector.shape_cast %235 : vector<1x32x32xf32> to vector<32x32xf32>
    %c1_115 = arith.constant 1 : index
    %c0_116 = arith.constant 0 : index
    %c0_117 = arith.constant 0 : index
    %237 = vector.load %arg14[%c1_115, %c0_116, %c0_117] : memref<4x1x32xf32, #tpu.memory_space<vmem>>, vector<1x1x32xf32>
    %238 = vector.shape_cast %237 : vector<1x1x32xf32> to vector<1x32xf32>
    %c1_118 = arith.constant 1 : index
    %c0_119 = arith.constant 0 : index
    %c0_120 = arith.constant 0 : index
    %239 = vector.load %arg15[%c1_118, %c0_119, %c0_120] : memref<4x32x32xf32, #tpu.memory_space<vmem>>, vector<1x32x32xf32>
    %240 = vector.shape_cast %239 : vector<1x32x32xf32> to vector<32x32xf32>
    %c1_121 = arith.constant 1 : index
    %c0_122 = arith.constant 0 : index
    %c0_123 = arith.constant 0 : index
    %241 = vector.load %arg16[%c1_121, %c0_122, %c0_123] : memref<4x1x32xf32, #tpu.memory_space<vmem>>, vector<1x1x32xf32>
    %242 = vector.shape_cast %241 : vector<1x1x32xf32> to vector<1x32xf32>
    %c1_124 = arith.constant 1 : index
    %c0_125 = arith.constant 0 : index
    %c0_126 = arith.constant 0 : index
    %243 = vector.load %arg18[%c1_124, %c0_125, %c0_126] : memref<4x1x32xf32, #tpu.memory_space<vmem>>, vector<1x1x32xf32>
    %244 = vector.shape_cast %243 : vector<1x1x32xf32> to vector<1x32xf32>
    %245 = vector.shape_cast %234 : vector<2x8x32xf32> to vector<16x32xf32>
    %246 = vector.shape_cast %234 : vector<2x8x32xf32> to vector<16x32xf32>
    %cst_127 = arith.constant dense<0.000000e+00> : vector<16x32xf32>
    %247 = tpu.matmul %245, %236, %cst_127 {dimension_numbers = #tpu.dot_dimension_numbers<[1], [0], [0], [1], [0, 0, 1, 1], [], []>} : vector<16x32xf32>, vector<32x32xf32>, vector<16x32xf32> -> vector<16x32xf32>
    %248 = vector.broadcast %238 : vector<1x32xf32> to vector<16x32xf32>
    %249 = arith.addf %247, %248 : vector<16x32xf32>
    %cst_128 = arith.constant dense<0.000000e+00> : vector<16x32xf32>
    %250 = tpu.matmul %246, %240, %cst_128 {dimension_numbers = #tpu.dot_dimension_numbers<[1], [0], [0], [1], [0, 0, 1, 1], [], []>} : vector<16x32xf32>, vector<32x32xf32>, vector<16x32xf32> -> vector<16x32xf32>
    %251 = vector.broadcast %242 : vector<1x32xf32> to vector<16x32xf32>
    %252 = arith.addf %250, %251 : vector<16x32xf32>
    %cst_129 = arith.constant 0.000000e+00 : f32
    %253 = vector.broadcast %cst_129 : f32 to vector<16x32xf32>
    %254 = vector.broadcast %244 : vector<1x32xf32> to vector<16x32xf32>
    %255 = arith.addf %253, %254 : vector<16x32xf32>
    %256 = vector.broadcast %7 : vector<1x32xf32> to vector<16x32xf32>
    %257 = arith.mulf %249, %256 : vector<16x32xf32>
    %cst_130 = arith.constant dense<0.000000e+00> : vector<16x16xf32>
    %258 = tpu.matmul %257, %252, %cst_130 {dimension_numbers = #tpu.dot_dimension_numbers<[1], [1], [0], [0], [0, 0, 1, 0], [], []>} : vector<16x32xf32>, vector<16x32xf32>, vector<16x16xf32> -> vector<16x16xf32>
    %259 = arith.addf %258, %53 : vector<16x16xf32>
    %cst_131 = arith.constant dense<0xFF800000> : vector<16xf32>
    %260 = vector.multi_reduction <maximumf>, %259, %cst_131 [1] : vector<16x16xf32> to vector<16xf32>
    %261 = vector.shape_cast %260 : vector<16xf32> to vector<16x1xf32>
    %262 = vector.broadcast %261 : vector<16x1xf32> to vector<16x16xf32>
    %263 = arith.subf %259, %262 : vector<16x16xf32>
    %264 = math.exp %263 : vector<16x16xf32>
    %cst_132 = arith.constant dense<0.000000e+00> : vector<16xf32>
    %265 = vector.multi_reduction <add>, %264, %cst_132 [1] : vector<16x16xf32> to vector<16xf32>
    %266 = vector.shape_cast %265 : vector<16xf32> to vector<16x1xf32>
    %267 = tpu.reciprocal %266 {approx = true} : vector<16x1xf32> -> vector<16x1xf32>
    %268 = vector.broadcast %267 : vector<16x1xf32> to vector<16x16xf32>
    %269 = arith.mulf %264, %268 : vector<16x16xf32>
    %c1_133 = arith.constant 1 : index
    %c0_134 = arith.constant 0 : index
    %c0_135 = arith.constant 0 : index
    %c0_136 = arith.constant 0 : index
    %270 = vector.load %arg17[%c1_133, %c0_134, %c0_135, %c0_136] : memref<4x4x32x32xf32, #tpu.memory_space<vmem>>, vector<1x1x32x32xf32>
    %271 = vector.shape_cast %270 : vector<1x1x32x32xf32> to vector<32x32xf32>
    %cst_137 = arith.constant dense<0.000000e+00> : vector<16x32xf32>
    %272 = tpu.matmul %246, %271, %cst_137 {dimension_numbers = #tpu.dot_dimension_numbers<[1], [0], [0], [1], [0, 0, 1, 1], [], []>} : vector<16x32xf32>, vector<32x32xf32>, vector<16x32xf32> -> vector<16x32xf32>
    %cst_138 = arith.constant dense<0.000000e+00> : vector<16x32xf32>
    %273 = tpu.matmul %269, %272, %cst_138 {dimension_numbers = #tpu.dot_dimension_numbers<[1], [0], [0], [1], [0, 0, 1, 1], [], []>} : vector<16x16xf32>, vector<16x32xf32>, vector<16x32xf32> -> vector<16x32xf32>
    %274 = arith.addf %255, %273 : vector<16x32xf32>
    %275 = vector.broadcast %14 : vector<1x32xf32> to vector<16x32xf32>
    %276 = arith.mulf %249, %275 : vector<16x32xf32>
    %cst_139 = arith.constant dense<0.000000e+00> : vector<16x16xf32>
    %277 = tpu.matmul %276, %252, %cst_139 {dimension_numbers = #tpu.dot_dimension_numbers<[1], [1], [0], [0], [0, 0, 1, 0], [], []>} : vector<16x32xf32>, vector<16x32xf32>, vector<16x16xf32> -> vector<16x16xf32>
    %278 = arith.addf %277, %53 : vector<16x16xf32>
    %cst_140 = arith.constant dense<0xFF800000> : vector<16xf32>
    %279 = vector.multi_reduction <maximumf>, %278, %cst_140 [1] : vector<16x16xf32> to vector<16xf32>
    %280 = vector.shape_cast %279 : vector<16xf32> to vector<16x1xf32>
    %281 = vector.broadcast %280 : vector<16x1xf32> to vector<16x16xf32>
    %282 = arith.subf %278, %281 : vector<16x16xf32>
    %283 = math.exp %282 : vector<16x16xf32>
    %cst_141 = arith.constant dense<0.000000e+00> : vector<16xf32>
    %284 = vector.multi_reduction <add>, %283, %cst_141 [1] : vector<16x16xf32> to vector<16xf32>
    %285 = vector.shape_cast %284 : vector<16xf32> to vector<16x1xf32>
    %286 = tpu.reciprocal %285 {approx = true} : vector<16x1xf32> -> vector<16x1xf32>
    %287 = vector.broadcast %286 : vector<16x1xf32> to vector<16x16xf32>
    %288 = arith.mulf %283, %287 : vector<16x16xf32>
    %c1_142 = arith.constant 1 : index
    %c1_143 = arith.constant 1 : index
    %c0_144 = arith.constant 0 : index
    %c0_145 = arith.constant 0 : index
    %289 = vector.load %arg17[%c1_142, %c1_143, %c0_144, %c0_145] : memref<4x4x32x32xf32, #tpu.memory_space<vmem>>, vector<1x1x32x32xf32>
    %290 = vector.shape_cast %289 : vector<1x1x32x32xf32> to vector<32x32xf32>
    %cst_146 = arith.constant dense<0.000000e+00> : vector<16x32xf32>
    %291 = tpu.matmul %246, %290, %cst_146 {dimension_numbers = #tpu.dot_dimension_numbers<[1], [0], [0], [1], [0, 0, 1, 1], [], []>} : vector<16x32xf32>, vector<32x32xf32>, vector<16x32xf32> -> vector<16x32xf32>
    %cst_147 = arith.constant dense<0.000000e+00> : vector<16x32xf32>
    %292 = tpu.matmul %288, %291, %cst_147 {dimension_numbers = #tpu.dot_dimension_numbers<[1], [0], [0], [1], [0, 0, 1, 1], [], []>} : vector<16x16xf32>, vector<16x32xf32>, vector<16x32xf32> -> vector<16x32xf32>
    %293 = arith.addf %274, %292 : vector<16x32xf32>
    %294 = vector.broadcast %21 : vector<1x32xf32> to vector<16x32xf32>
    %295 = arith.mulf %249, %294 : vector<16x32xf32>
    %cst_148 = arith.constant dense<0.000000e+00> : vector<16x16xf32>
    %296 = tpu.matmul %295, %252, %cst_148 {dimension_numbers = #tpu.dot_dimension_numbers<[1], [1], [0], [0], [0, 0, 1, 0], [], []>} : vector<16x32xf32>, vector<16x32xf32>, vector<16x16xf32> -> vector<16x16xf32>
    %297 = arith.addf %296, %53 : vector<16x16xf32>
    %cst_149 = arith.constant dense<0xFF800000> : vector<16xf32>
    %298 = vector.multi_reduction <maximumf>, %297, %cst_149 [1] : vector<16x16xf32> to vector<16xf32>
    %299 = vector.shape_cast %298 : vector<16xf32> to vector<16x1xf32>
    %300 = vector.broadcast %299 : vector<16x1xf32> to vector<16x16xf32>
    %301 = arith.subf %297, %300 : vector<16x16xf32>
    %302 = math.exp %301 : vector<16x16xf32>
    %cst_150 = arith.constant dense<0.000000e+00> : vector<16xf32>
    %303 = vector.multi_reduction <add>, %302, %cst_150 [1] : vector<16x16xf32> to vector<16xf32>
    %304 = vector.shape_cast %303 : vector<16xf32> to vector<16x1xf32>
    %305 = tpu.reciprocal %304 {approx = true} : vector<16x1xf32> -> vector<16x1xf32>
    %306 = vector.broadcast %305 : vector<16x1xf32> to vector<16x16xf32>
    %307 = arith.mulf %302, %306 : vector<16x16xf32>
    %c1_151 = arith.constant 1 : index
    %c2_152 = arith.constant 2 : index
    %c0_153 = arith.constant 0 : index
    %c0_154 = arith.constant 0 : index
    %308 = vector.load %arg17[%c1_151, %c2_152, %c0_153, %c0_154] : memref<4x4x32x32xf32, #tpu.memory_space<vmem>>, vector<1x1x32x32xf32>
    %309 = vector.shape_cast %308 : vector<1x1x32x32xf32> to vector<32x32xf32>
    %cst_155 = arith.constant dense<0.000000e+00> : vector<16x32xf32>
    %310 = tpu.matmul %246, %309, %cst_155 {dimension_numbers = #tpu.dot_dimension_numbers<[1], [0], [0], [1], [0, 0, 1, 1], [], []>} : vector<16x32xf32>, vector<32x32xf32>, vector<16x32xf32> -> vector<16x32xf32>
    %cst_156 = arith.constant dense<0.000000e+00> : vector<16x32xf32>
    %311 = tpu.matmul %307, %310, %cst_156 {dimension_numbers = #tpu.dot_dimension_numbers<[1], [0], [0], [1], [0, 0, 1, 1], [], []>} : vector<16x16xf32>, vector<16x32xf32>, vector<16x32xf32> -> vector<16x32xf32>
    %312 = arith.addf %293, %311 : vector<16x32xf32>
    %313 = vector.broadcast %28 : vector<1x32xf32> to vector<16x32xf32>
    %314 = arith.mulf %249, %313 : vector<16x32xf32>
    %cst_157 = arith.constant dense<0.000000e+00> : vector<16x16xf32>
    %315 = tpu.matmul %314, %252, %cst_157 {dimension_numbers = #tpu.dot_dimension_numbers<[1], [1], [0], [0], [0, 0, 1, 0], [], []>} : vector<16x32xf32>, vector<16x32xf32>, vector<16x16xf32> -> vector<16x16xf32>
    %316 = arith.addf %315, %53 : vector<16x16xf32>
    %cst_158 = arith.constant dense<0xFF800000> : vector<16xf32>
    %317 = vector.multi_reduction <maximumf>, %316, %cst_158 [1] : vector<16x16xf32> to vector<16xf32>
    %318 = vector.shape_cast %317 : vector<16xf32> to vector<16x1xf32>
    %319 = vector.broadcast %318 : vector<16x1xf32> to vector<16x16xf32>
    %320 = arith.subf %316, %319 : vector<16x16xf32>
    %321 = math.exp %320 : vector<16x16xf32>
    %cst_159 = arith.constant dense<0.000000e+00> : vector<16xf32>
    %322 = vector.multi_reduction <add>, %321, %cst_159 [1] : vector<16x16xf32> to vector<16xf32>
    %323 = vector.shape_cast %322 : vector<16xf32> to vector<16x1xf32>
    %324 = tpu.reciprocal %323 {approx = true} : vector<16x1xf32> -> vector<16x1xf32>
    %325 = vector.broadcast %324 : vector<16x1xf32> to vector<16x16xf32>
    %326 = arith.mulf %321, %325 : vector<16x16xf32>
    %c1_160 = arith.constant 1 : index
    %c3_161 = arith.constant 3 : index
    %c0_162 = arith.constant 0 : index
    %c0_163 = arith.constant 0 : index
    %327 = vector.load %arg17[%c1_160, %c3_161, %c0_162, %c0_163] : memref<4x4x32x32xf32, #tpu.memory_space<vmem>>, vector<1x1x32x32xf32>
    %328 = vector.shape_cast %327 : vector<1x1x32x32xf32> to vector<32x32xf32>
    %cst_164 = arith.constant dense<0.000000e+00> : vector<16x32xf32>
    %329 = tpu.matmul %246, %328, %cst_164 {dimension_numbers = #tpu.dot_dimension_numbers<[1], [0], [0], [1], [0, 0, 1, 1], [], []>} : vector<16x32xf32>, vector<32x32xf32>, vector<16x32xf32> -> vector<16x32xf32>
    %cst_165 = arith.constant dense<0.000000e+00> : vector<16x32xf32>
    %330 = tpu.matmul %326, %329, %cst_165 {dimension_numbers = #tpu.dot_dimension_numbers<[1], [0], [0], [1], [0, 0, 1, 1], [], []>} : vector<16x16xf32>, vector<16x32xf32>, vector<16x32xf32> -> vector<16x32xf32>
    %331 = arith.addf %312, %330 : vector<16x32xf32>
    %332 = vector.shape_cast %331 : vector<16x32xf32> to vector<2x8x32xf32>
    %333 = arith.addf %234, %332 : vector<2x8x32xf32>
    %c1_166 = arith.constant 1 : index
    %c0_167 = arith.constant 0 : index
    %c0_168 = arith.constant 0 : index
    %334 = vector.load %arg19[%c1_166, %c0_167, %c0_168] : memref<4x1x32xf32, #tpu.memory_space<vmem>>, vector<1x1x32xf32>
    %335 = vector.shape_cast %334 : vector<1x1x32xf32> to vector<1x32xf32>
    %c1_169 = arith.constant 1 : index
    %c0_170 = arith.constant 0 : index
    %c0_171 = arith.constant 0 : index
    %336 = vector.load %arg20[%c1_169, %c0_170, %c0_171] : memref<4x1x32xf32, #tpu.memory_space<vmem>>, vector<1x1x32xf32>
    %337 = vector.shape_cast %336 : vector<1x1x32xf32> to vector<1x32xf32>
    %cst_172 = arith.constant dense<0.000000e+00> : vector<2x8xf32>
    %338 = vector.multi_reduction <add>, %333, %cst_172 [2] : vector<2x8x32xf32> to vector<2x8xf32>
    %339 = vector.shape_cast %338 : vector<2x8xf32> to vector<2x8x1xf32>
    %cst_173 = arith.constant 3.200000e+01 : f32
    %340 = vector.broadcast %cst_173 : f32 to vector<2x8x1xf32>
    %341 = arith.divf %339, %340 : vector<2x8x1xf32>
    %342 = vector.broadcast %341 : vector<2x8x1xf32> to vector<2x8x32xf32>
    %343 = arith.subf %333, %342 : vector<2x8x32xf32>
    %344 = arith.mulf %343, %343 : vector<2x8x32xf32>
    %cst_174 = arith.constant dense<0.000000e+00> : vector<2x8xf32>
    %345 = vector.multi_reduction <add>, %344, %cst_174 [2] : vector<2x8x32xf32> to vector<2x8xf32>
    %346 = vector.shape_cast %345 : vector<2x8xf32> to vector<2x8x1xf32>
    %cst_175 = arith.constant 3.200000e+01 : f32
    %347 = vector.broadcast %cst_175 : f32 to vector<2x8x1xf32>
    %348 = arith.divf %346, %347 : vector<2x8x1xf32>
    %349 = vector.broadcast %341 : vector<2x8x1xf32> to vector<2x8x32xf32>
    %350 = arith.subf %333, %349 : vector<2x8x32xf32>
    %cst_176 = arith.constant 9.99999974E-6 : f32
    %351 = vector.broadcast %cst_176 : f32 to vector<2x8x1xf32>
    %352 = arith.addf %348, %351 : vector<2x8x1xf32>
    %353 = math.rsqrt %352 : vector<2x8x1xf32>
    %354 = vector.broadcast %353 : vector<2x8x1xf32> to vector<2x8x32xf32>
    %355 = arith.mulf %350, %354 : vector<2x8x32xf32>
    %356 = vector.shape_cast %335 : vector<1x32xf32> to vector<1x1x32xf32>
    %357 = vector.broadcast %356 : vector<1x1x32xf32> to vector<2x8x32xf32>
    %358 = arith.mulf %355, %357 : vector<2x8x32xf32>
    %359 = vector.shape_cast %337 : vector<1x32xf32> to vector<1x1x32xf32>
    %360 = vector.broadcast %359 : vector<1x1x32xf32> to vector<2x8x32xf32>
    %361 = arith.addf %358, %360 : vector<2x8x32xf32>
    %362 = vector.shape_cast %361 : vector<2x8x32xf32> to vector<16x32xf32>
    %c1_177 = arith.constant 1 : index
    %c0_178 = arith.constant 0 : index
    %c0_179 = arith.constant 0 : index
    %363 = vector.load %arg21[%c1_177, %c0_178, %c0_179] : memref<4x32x64xf32, #tpu.memory_space<vmem>>, vector<1x32x64xf32>
    %364 = vector.shape_cast %363 : vector<1x32x64xf32> to vector<32x64xf32>
    %c1_180 = arith.constant 1 : index
    %c0_181 = arith.constant 0 : index
    %c0_182 = arith.constant 0 : index
    %365 = vector.load %arg22[%c1_180, %c0_181, %c0_182] : memref<4x1x64xf32, #tpu.memory_space<vmem>>, vector<1x1x64xf32>
    %366 = vector.shape_cast %365 : vector<1x1x64xf32> to vector<1x64xf32>
    %cst_183 = arith.constant dense<0.000000e+00> : vector<16x64xf32>
    %367 = tpu.matmul %362, %364, %cst_183 {dimension_numbers = #tpu.dot_dimension_numbers<[1], [0], [0], [1], [0, 0, 1, 1], [], []>} : vector<16x32xf32>, vector<32x64xf32>, vector<16x64xf32> -> vector<16x64xf32>
    %368 = vector.broadcast %366 : vector<1x64xf32> to vector<16x64xf32>
    %369 = arith.addf %367, %368 : vector<16x64xf32>
    %cst_184 = arith.constant 5.000000e-01 : f32
    %370 = vector.broadcast %cst_184 : f32 to vector<16x64xf32>
    %371 = arith.mulf %370, %369 : vector<16x64xf32>
    %cst_185 = arith.constant 0.707106769 : f32
    %372 = vector.broadcast %cst_185 : f32 to vector<16x64xf32>
    %373 = arith.mulf %369, %372 : vector<16x64xf32>
    %374 = math.erf %373 : vector<16x64xf32>
    %cst_186 = arith.constant 1.000000e+00 : f32
    %375 = vector.broadcast %cst_186 : f32 to vector<16x64xf32>
    %376 = arith.addf %375, %374 : vector<16x64xf32>
    %377 = arith.mulf %371, %376 : vector<16x64xf32>
    %c1_187 = arith.constant 1 : index
    %c0_188 = arith.constant 0 : index
    %c0_189 = arith.constant 0 : index
    %378 = vector.load %arg23[%c1_187, %c0_188, %c0_189] : memref<4x64x32xf32, #tpu.memory_space<vmem>>, vector<1x64x32xf32>
    %379 = vector.shape_cast %378 : vector<1x64x32xf32> to vector<64x32xf32>
    %c1_190 = arith.constant 1 : index
    %c0_191 = arith.constant 0 : index
    %c0_192 = arith.constant 0 : index
    %380 = vector.load %arg24[%c1_190, %c0_191, %c0_192] : memref<4x1x32xf32, #tpu.memory_space<vmem>>, vector<1x1x32xf32>
    %381 = vector.shape_cast %380 : vector<1x1x32xf32> to vector<1x32xf32>
    %cst_193 = arith.constant dense<0.000000e+00> : vector<16x32xf32>
    %382 = tpu.matmul %377, %379, %cst_193 {dimension_numbers = #tpu.dot_dimension_numbers<[1], [0], [0], [1], [0, 0, 1, 1], [], []>} : vector<16x64xf32>, vector<64x32xf32>, vector<16x32xf32> -> vector<16x32xf32>
    %383 = vector.broadcast %381 : vector<1x32xf32> to vector<16x32xf32>
    %384 = arith.addf %382, %383 : vector<16x32xf32>
    %385 = vector.shape_cast %384 : vector<16x32xf32> to vector<2x8x32xf32>
    %386 = arith.addf %361, %385 : vector<2x8x32xf32>
    %c1_194 = arith.constant 1 : index
    %c0_195 = arith.constant 0 : index
    %c0_196 = arith.constant 0 : index
    %387 = vector.load %arg25[%c1_194, %c0_195, %c0_196] : memref<4x1x32xf32, #tpu.memory_space<vmem>>, vector<1x1x32xf32>
    %388 = vector.shape_cast %387 : vector<1x1x32xf32> to vector<1x32xf32>
    %c1_197 = arith.constant 1 : index
    %c0_198 = arith.constant 0 : index
    %c0_199 = arith.constant 0 : index
    %389 = vector.load %arg26[%c1_197, %c0_198, %c0_199] : memref<4x1x32xf32, #tpu.memory_space<vmem>>, vector<1x1x32xf32>
    %390 = vector.shape_cast %389 : vector<1x1x32xf32> to vector<1x32xf32>
    %cst_200 = arith.constant dense<0.000000e+00> : vector<2x8xf32>
    %391 = vector.multi_reduction <add>, %386, %cst_200 [2] : vector<2x8x32xf32> to vector<2x8xf32>
    %392 = vector.shape_cast %391 : vector<2x8xf32> to vector<2x8x1xf32>
    %cst_201 = arith.constant 3.200000e+01 : f32
    %393 = vector.broadcast %cst_201 : f32 to vector<2x8x1xf32>
    %394 = arith.divf %392, %393 : vector<2x8x1xf32>
    %395 = vector.broadcast %394 : vector<2x8x1xf32> to vector<2x8x32xf32>
    %396 = arith.subf %386, %395 : vector<2x8x32xf32>
    %397 = arith.mulf %396, %396 : vector<2x8x32xf32>
    %cst_202 = arith.constant dense<0.000000e+00> : vector<2x8xf32>
    %398 = vector.multi_reduction <add>, %397, %cst_202 [2] : vector<2x8x32xf32> to vector<2x8xf32>
    %399 = vector.shape_cast %398 : vector<2x8xf32> to vector<2x8x1xf32>
    %cst_203 = arith.constant 3.200000e+01 : f32
    %400 = vector.broadcast %cst_203 : f32 to vector<2x8x1xf32>
    %401 = arith.divf %399, %400 : vector<2x8x1xf32>
    %402 = vector.broadcast %394 : vector<2x8x1xf32> to vector<2x8x32xf32>
    %403 = arith.subf %386, %402 : vector<2x8x32xf32>
    %cst_204 = arith.constant 9.99999974E-6 : f32
    %404 = vector.broadcast %cst_204 : f32 to vector<2x8x1xf32>
    %405 = arith.addf %401, %404 : vector<2x8x1xf32>
    %406 = math.rsqrt %405 : vector<2x8x1xf32>
    %407 = vector.broadcast %406 : vector<2x8x1xf32> to vector<2x8x32xf32>
    %408 = arith.mulf %403, %407 : vector<2x8x32xf32>
    %409 = vector.shape_cast %388 : vector<1x32xf32> to vector<1x1x32xf32>
    %410 = vector.broadcast %409 : vector<1x1x32xf32> to vector<2x8x32xf32>
    %411 = arith.mulf %408, %410 : vector<2x8x32xf32>
    %412 = vector.shape_cast %390 : vector<1x32xf32> to vector<1x1x32xf32>
    %413 = vector.broadcast %412 : vector<1x1x32xf32> to vector<2x8x32xf32>
    %414 = arith.addf %411, %413 : vector<2x8x32xf32>
    %c2_205 = arith.constant 2 : index
    %c0_206 = arith.constant 0 : index
    %c0_207 = arith.constant 0 : index
    %415 = vector.load %arg13[%c2_205, %c0_206, %c0_207] : memref<4x32x32xf32, #tpu.memory_space<vmem>>, vector<1x32x32xf32>
    %416 = vector.shape_cast %415 : vector<1x32x32xf32> to vector<32x32xf32>
    %c2_208 = arith.constant 2 : index
    %c0_209 = arith.constant 0 : index
    %c0_210 = arith.constant 0 : index
    %417 = vector.load %arg14[%c2_208, %c0_209, %c0_210] : memref<4x1x32xf32, #tpu.memory_space<vmem>>, vector<1x1x32xf32>
    %418 = vector.shape_cast %417 : vector<1x1x32xf32> to vector<1x32xf32>
    %c2_211 = arith.constant 2 : index
    %c0_212 = arith.constant 0 : index
    %c0_213 = arith.constant 0 : index
    %419 = vector.load %arg15[%c2_211, %c0_212, %c0_213] : memref<4x32x32xf32, #tpu.memory_space<vmem>>, vector<1x32x32xf32>
    %420 = vector.shape_cast %419 : vector<1x32x32xf32> to vector<32x32xf32>
    %c2_214 = arith.constant 2 : index
    %c0_215 = arith.constant 0 : index
    %c0_216 = arith.constant 0 : index
    %421 = vector.load %arg16[%c2_214, %c0_215, %c0_216] : memref<4x1x32xf32, #tpu.memory_space<vmem>>, vector<1x1x32xf32>
    %422 = vector.shape_cast %421 : vector<1x1x32xf32> to vector<1x32xf32>
    %c2_217 = arith.constant 2 : index
    %c0_218 = arith.constant 0 : index
    %c0_219 = arith.constant 0 : index
    %423 = vector.load %arg18[%c2_217, %c0_218, %c0_219] : memref<4x1x32xf32, #tpu.memory_space<vmem>>, vector<1x1x32xf32>
    %424 = vector.shape_cast %423 : vector<1x1x32xf32> to vector<1x32xf32>
    %425 = vector.shape_cast %52 : vector<2x4x32xf32> to vector<8x32xf32>
    %426 = vector.shape_cast %52 : vector<2x4x32xf32> to vector<8x32xf32>
    %cst_220 = arith.constant dense<0.000000e+00> : vector<8x32xf32>
    %427 = tpu.matmul %425, %416, %cst_220 {dimension_numbers = #tpu.dot_dimension_numbers<[1], [0], [0], [1], [0, 0, 1, 1], [], []>} : vector<8x32xf32>, vector<32x32xf32>, vector<8x32xf32> -> vector<8x32xf32>
    %428 = vector.broadcast %418 : vector<1x32xf32> to vector<8x32xf32>
    %429 = arith.addf %427, %428 : vector<8x32xf32>
    %cst_221 = arith.constant dense<0.000000e+00> : vector<8x32xf32>
    %430 = tpu.matmul %426, %420, %cst_221 {dimension_numbers = #tpu.dot_dimension_numbers<[1], [0], [0], [1], [0, 0, 1, 1], [], []>} : vector<8x32xf32>, vector<32x32xf32>, vector<8x32xf32> -> vector<8x32xf32>
    %431 = vector.broadcast %422 : vector<1x32xf32> to vector<8x32xf32>
    %432 = arith.addf %430, %431 : vector<8x32xf32>
    %cst_222 = arith.constant 0.000000e+00 : f32
    %433 = vector.broadcast %cst_222 : f32 to vector<8x32xf32>
    %434 = vector.broadcast %424 : vector<1x32xf32> to vector<8x32xf32>
    %435 = arith.addf %433, %434 : vector<8x32xf32>
    %436 = vector.broadcast %7 : vector<1x32xf32> to vector<8x32xf32>
    %437 = arith.mulf %429, %436 : vector<8x32xf32>
    %cst_223 = arith.constant dense<0.000000e+00> : vector<8x8xf32>
    %438 = tpu.matmul %437, %432, %cst_223 {dimension_numbers = #tpu.dot_dimension_numbers<[1], [1], [0], [0], [0, 0, 1, 0], [], []>} : vector<8x32xf32>, vector<8x32xf32>, vector<8x8xf32> -> vector<8x8xf32>
    %439 = arith.addf %438, %54 : vector<8x8xf32>
    %cst_224 = arith.constant dense<0xFF800000> : vector<8xf32>
    %440 = vector.multi_reduction <maximumf>, %439, %cst_224 [1] : vector<8x8xf32> to vector<8xf32>
    %441 = vector.shape_cast %440 : vector<8xf32> to vector<8x1xf32>
    %442 = vector.broadcast %441 : vector<8x1xf32> to vector<8x8xf32>
    %443 = arith.subf %439, %442 : vector<8x8xf32>
    %444 = math.exp %443 : vector<8x8xf32>
    %cst_225 = arith.constant dense<0.000000e+00> : vector<8xf32>
    %445 = vector.multi_reduction <add>, %444, %cst_225 [1] : vector<8x8xf32> to vector<8xf32>
    %446 = vector.shape_cast %445 : vector<8xf32> to vector<8x1xf32>
    %447 = tpu.reciprocal %446 {approx = true} : vector<8x1xf32> -> vector<8x1xf32>
    %448 = vector.broadcast %447 : vector<8x1xf32> to vector<8x8xf32>
    %449 = arith.mulf %444, %448 : vector<8x8xf32>
    %c2_226 = arith.constant 2 : index
    %c0_227 = arith.constant 0 : index
    %c0_228 = arith.constant 0 : index
    %c0_229 = arith.constant 0 : index
    %450 = vector.load %arg17[%c2_226, %c0_227, %c0_228, %c0_229] : memref<4x4x32x32xf32, #tpu.memory_space<vmem>>, vector<1x1x32x32xf32>
    %451 = vector.shape_cast %450 : vector<1x1x32x32xf32> to vector<32x32xf32>
    %cst_230 = arith.constant dense<0.000000e+00> : vector<8x32xf32>
    %452 = tpu.matmul %426, %451, %cst_230 {dimension_numbers = #tpu.dot_dimension_numbers<[1], [0], [0], [1], [0, 0, 1, 1], [], []>} : vector<8x32xf32>, vector<32x32xf32>, vector<8x32xf32> -> vector<8x32xf32>
    %cst_231 = arith.constant dense<0.000000e+00> : vector<8x32xf32>
    %453 = tpu.matmul %449, %452, %cst_231 {dimension_numbers = #tpu.dot_dimension_numbers<[1], [0], [0], [1], [0, 0, 1, 1], [], []>} : vector<8x8xf32>, vector<8x32xf32>, vector<8x32xf32> -> vector<8x32xf32>
    %454 = arith.addf %435, %453 : vector<8x32xf32>
    %455 = vector.broadcast %14 : vector<1x32xf32> to vector<8x32xf32>
    %456 = arith.mulf %429, %455 : vector<8x32xf32>
    %cst_232 = arith.constant dense<0.000000e+00> : vector<8x8xf32>
    %457 = tpu.matmul %456, %432, %cst_232 {dimension_numbers = #tpu.dot_dimension_numbers<[1], [1], [0], [0], [0, 0, 1, 0], [], []>} : vector<8x32xf32>, vector<8x32xf32>, vector<8x8xf32> -> vector<8x8xf32>
    %458 = arith.addf %457, %54 : vector<8x8xf32>
    %cst_233 = arith.constant dense<0xFF800000> : vector<8xf32>
    %459 = vector.multi_reduction <maximumf>, %458, %cst_233 [1] : vector<8x8xf32> to vector<8xf32>
    %460 = vector.shape_cast %459 : vector<8xf32> to vector<8x1xf32>
    %461 = vector.broadcast %460 : vector<8x1xf32> to vector<8x8xf32>
    %462 = arith.subf %458, %461 : vector<8x8xf32>
    %463 = math.exp %462 : vector<8x8xf32>
    %cst_234 = arith.constant dense<0.000000e+00> : vector<8xf32>
    %464 = vector.multi_reduction <add>, %463, %cst_234 [1] : vector<8x8xf32> to vector<8xf32>
    %465 = vector.shape_cast %464 : vector<8xf32> to vector<8x1xf32>
    %466 = tpu.reciprocal %465 {approx = true} : vector<8x1xf32> -> vector<8x1xf32>
    %467 = vector.broadcast %466 : vector<8x1xf32> to vector<8x8xf32>
    %468 = arith.mulf %463, %467 : vector<8x8xf32>
    %c2_235 = arith.constant 2 : index
    %c1_236 = arith.constant 1 : index
    %c0_237 = arith.constant 0 : index
    %c0_238 = arith.constant 0 : index
    %469 = vector.load %arg17[%c2_235, %c1_236, %c0_237, %c0_238] : memref<4x4x32x32xf32, #tpu.memory_space<vmem>>, vector<1x1x32x32xf32>
    %470 = vector.shape_cast %469 : vector<1x1x32x32xf32> to vector<32x32xf32>
    %cst_239 = arith.constant dense<0.000000e+00> : vector<8x32xf32>
    %471 = tpu.matmul %426, %470, %cst_239 {dimension_numbers = #tpu.dot_dimension_numbers<[1], [0], [0], [1], [0, 0, 1, 1], [], []>} : vector<8x32xf32>, vector<32x32xf32>, vector<8x32xf32> -> vector<8x32xf32>
    %cst_240 = arith.constant dense<0.000000e+00> : vector<8x32xf32>
    %472 = tpu.matmul %468, %471, %cst_240 {dimension_numbers = #tpu.dot_dimension_numbers<[1], [0], [0], [1], [0, 0, 1, 1], [], []>} : vector<8x8xf32>, vector<8x32xf32>, vector<8x32xf32> -> vector<8x32xf32>
    %473 = arith.addf %454, %472 : vector<8x32xf32>
    %474 = vector.broadcast %21 : vector<1x32xf32> to vector<8x32xf32>
    %475 = arith.mulf %429, %474 : vector<8x32xf32>
    %cst_241 = arith.constant dense<0.000000e+00> : vector<8x8xf32>
    %476 = tpu.matmul %475, %432, %cst_241 {dimension_numbers = #tpu.dot_dimension_numbers<[1], [1], [0], [0], [0, 0, 1, 0], [], []>} : vector<8x32xf32>, vector<8x32xf32>, vector<8x8xf32> -> vector<8x8xf32>
    %477 = arith.addf %476, %54 : vector<8x8xf32>
    %cst_242 = arith.constant dense<0xFF800000> : vector<8xf32>
    %478 = vector.multi_reduction <maximumf>, %477, %cst_242 [1] : vector<8x8xf32> to vector<8xf32>
    %479 = vector.shape_cast %478 : vector<8xf32> to vector<8x1xf32>
    %480 = vector.broadcast %479 : vector<8x1xf32> to vector<8x8xf32>
    %481 = arith.subf %477, %480 : vector<8x8xf32>
    %482 = math.exp %481 : vector<8x8xf32>
    %cst_243 = arith.constant dense<0.000000e+00> : vector<8xf32>
    %483 = vector.multi_reduction <add>, %482, %cst_243 [1] : vector<8x8xf32> to vector<8xf32>
    %484 = vector.shape_cast %483 : vector<8xf32> to vector<8x1xf32>
    %485 = tpu.reciprocal %484 {approx = true} : vector<8x1xf32> -> vector<8x1xf32>
    %486 = vector.broadcast %485 : vector<8x1xf32> to vector<8x8xf32>
    %487 = arith.mulf %482, %486 : vector<8x8xf32>
    %c2_244 = arith.constant 2 : index
    %c2_245 = arith.constant 2 : index
    %c0_246 = arith.constant 0 : index
    %c0_247 = arith.constant 0 : index
    %488 = vector.load %arg17[%c2_244, %c2_245, %c0_246, %c0_247] : memref<4x4x32x32xf32, #tpu.memory_space<vmem>>, vector<1x1x32x32xf32>
    %489 = vector.shape_cast %488 : vector<1x1x32x32xf32> to vector<32x32xf32>
    %cst_248 = arith.constant dense<0.000000e+00> : vector<8x32xf32>
    %490 = tpu.matmul %426, %489, %cst_248 {dimension_numbers = #tpu.dot_dimension_numbers<[1], [0], [0], [1], [0, 0, 1, 1], [], []>} : vector<8x32xf32>, vector<32x32xf32>, vector<8x32xf32> -> vector<8x32xf32>
    %cst_249 = arith.constant dense<0.000000e+00> : vector<8x32xf32>
    %491 = tpu.matmul %487, %490, %cst_249 {dimension_numbers = #tpu.dot_dimension_numbers<[1], [0], [0], [1], [0, 0, 1, 1], [], []>} : vector<8x8xf32>, vector<8x32xf32>, vector<8x32xf32> -> vector<8x32xf32>
    %492 = arith.addf %473, %491 : vector<8x32xf32>
    %493 = vector.broadcast %28 : vector<1x32xf32> to vector<8x32xf32>
    %494 = arith.mulf %429, %493 : vector<8x32xf32>
    %cst_250 = arith.constant dense<0.000000e+00> : vector<8x8xf32>
    %495 = tpu.matmul %494, %432, %cst_250 {dimension_numbers = #tpu.dot_dimension_numbers<[1], [1], [0], [0], [0, 0, 1, 0], [], []>} : vector<8x32xf32>, vector<8x32xf32>, vector<8x8xf32> -> vector<8x8xf32>
    %496 = arith.addf %495, %54 : vector<8x8xf32>
    %cst_251 = arith.constant dense<0xFF800000> : vector<8xf32>
    %497 = vector.multi_reduction <maximumf>, %496, %cst_251 [1] : vector<8x8xf32> to vector<8xf32>
    %498 = vector.shape_cast %497 : vector<8xf32> to vector<8x1xf32>
    %499 = vector.broadcast %498 : vector<8x1xf32> to vector<8x8xf32>
    %500 = arith.subf %496, %499 : vector<8x8xf32>
    %501 = math.exp %500 : vector<8x8xf32>
    %cst_252 = arith.constant dense<0.000000e+00> : vector<8xf32>
    %502 = vector.multi_reduction <add>, %501, %cst_252 [1] : vector<8x8xf32> to vector<8xf32>
    %503 = vector.shape_cast %502 : vector<8xf32> to vector<8x1xf32>
    %504 = tpu.reciprocal %503 {approx = true} : vector<8x1xf32> -> vector<8x1xf32>
    %505 = vector.broadcast %504 : vector<8x1xf32> to vector<8x8xf32>
    %506 = arith.mulf %501, %505 : vector<8x8xf32>
    %c2_253 = arith.constant 2 : index
    %c3_254 = arith.constant 3 : index
    %c0_255 = arith.constant 0 : index
    %c0_256 = arith.constant 0 : index
    %507 = vector.load %arg17[%c2_253, %c3_254, %c0_255, %c0_256] : memref<4x4x32x32xf32, #tpu.memory_space<vmem>>, vector<1x1x32x32xf32>
    %508 = vector.shape_cast %507 : vector<1x1x32x32xf32> to vector<32x32xf32>
    %cst_257 = arith.constant dense<0.000000e+00> : vector<8x32xf32>
    %509 = tpu.matmul %426, %508, %cst_257 {dimension_numbers = #tpu.dot_dimension_numbers<[1], [0], [0], [1], [0, 0, 1, 1], [], []>} : vector<8x32xf32>, vector<32x32xf32>, vector<8x32xf32> -> vector<8x32xf32>
    %cst_258 = arith.constant dense<0.000000e+00> : vector<8x32xf32>
    %510 = tpu.matmul %506, %509, %cst_258 {dimension_numbers = #tpu.dot_dimension_numbers<[1], [0], [0], [1], [0, 0, 1, 1], [], []>} : vector<8x8xf32>, vector<8x32xf32>, vector<8x32xf32> -> vector<8x32xf32>
    %511 = arith.addf %492, %510 : vector<8x32xf32>
    %512 = vector.shape_cast %511 : vector<8x32xf32> to vector<2x4x32xf32>
    %513 = arith.addf %52, %512 : vector<2x4x32xf32>
    %c2_259 = arith.constant 2 : index
    %c0_260 = arith.constant 0 : index
    %c0_261 = arith.constant 0 : index
    %514 = vector.load %arg19[%c2_259, %c0_260, %c0_261] : memref<4x1x32xf32, #tpu.memory_space<vmem>>, vector<1x1x32xf32>
    %515 = vector.shape_cast %514 : vector<1x1x32xf32> to vector<1x32xf32>
    %c2_262 = arith.constant 2 : index
    %c0_263 = arith.constant 0 : index
    %c0_264 = arith.constant 0 : index
    %516 = vector.load %arg20[%c2_262, %c0_263, %c0_264] : memref<4x1x32xf32, #tpu.memory_space<vmem>>, vector<1x1x32xf32>
    %517 = vector.shape_cast %516 : vector<1x1x32xf32> to vector<1x32xf32>
    %cst_265 = arith.constant dense<0.000000e+00> : vector<2x4xf32>
    %518 = vector.multi_reduction <add>, %513, %cst_265 [2] : vector<2x4x32xf32> to vector<2x4xf32>
    %519 = vector.shape_cast %518 : vector<2x4xf32> to vector<2x4x1xf32>
    %cst_266 = arith.constant 3.200000e+01 : f32
    %520 = vector.broadcast %cst_266 : f32 to vector<2x4x1xf32>
    %521 = arith.divf %519, %520 : vector<2x4x1xf32>
    %522 = vector.broadcast %521 : vector<2x4x1xf32> to vector<2x4x32xf32>
    %523 = arith.subf %513, %522 : vector<2x4x32xf32>
    %524 = arith.mulf %523, %523 : vector<2x4x32xf32>
    %cst_267 = arith.constant dense<0.000000e+00> : vector<2x4xf32>
    %525 = vector.multi_reduction <add>, %524, %cst_267 [2] : vector<2x4x32xf32> to vector<2x4xf32>
    %526 = vector.shape_cast %525 : vector<2x4xf32> to vector<2x4x1xf32>
    %cst_268 = arith.constant 3.200000e+01 : f32
    %527 = vector.broadcast %cst_268 : f32 to vector<2x4x1xf32>
    %528 = arith.divf %526, %527 : vector<2x4x1xf32>
    %529 = vector.broadcast %521 : vector<2x4x1xf32> to vector<2x4x32xf32>
    %530 = arith.subf %513, %529 : vector<2x4x32xf32>
    %cst_269 = arith.constant 9.99999974E-6 : f32
    %531 = vector.broadcast %cst_269 : f32 to vector<2x4x1xf32>
    %532 = arith.addf %528, %531 : vector<2x4x1xf32>
    %533 = math.rsqrt %532 : vector<2x4x1xf32>
    %534 = vector.broadcast %533 : vector<2x4x1xf32> to vector<2x4x32xf32>
    %535 = arith.mulf %530, %534 : vector<2x4x32xf32>
    %536 = vector.shape_cast %515 : vector<1x32xf32> to vector<1x1x32xf32>
    %537 = vector.broadcast %536 : vector<1x1x32xf32> to vector<2x4x32xf32>
    %538 = arith.mulf %535, %537 : vector<2x4x32xf32>
    %539 = vector.shape_cast %517 : vector<1x32xf32> to vector<1x1x32xf32>
    %540 = vector.broadcast %539 : vector<1x1x32xf32> to vector<2x4x32xf32>
    %541 = arith.addf %538, %540 : vector<2x4x32xf32>
    %542 = vector.shape_cast %541 : vector<2x4x32xf32> to vector<8x32xf32>
    %c2_270 = arith.constant 2 : index
    %c0_271 = arith.constant 0 : index
    %c0_272 = arith.constant 0 : index
    %543 = vector.load %arg21[%c2_270, %c0_271, %c0_272] : memref<4x32x64xf32, #tpu.memory_space<vmem>>, vector<1x32x64xf32>
    %544 = vector.shape_cast %543 : vector<1x32x64xf32> to vector<32x64xf32>
    %c2_273 = arith.constant 2 : index
    %c0_274 = arith.constant 0 : index
    %c0_275 = arith.constant 0 : index
    %545 = vector.load %arg22[%c2_273, %c0_274, %c0_275] : memref<4x1x64xf32, #tpu.memory_space<vmem>>, vector<1x1x64xf32>
    %546 = vector.shape_cast %545 : vector<1x1x64xf32> to vector<1x64xf32>
    %cst_276 = arith.constant dense<0.000000e+00> : vector<8x64xf32>
    %547 = tpu.matmul %542, %544, %cst_276 {dimension_numbers = #tpu.dot_dimension_numbers<[1], [0], [0], [1], [0, 0, 1, 1], [], []>} : vector<8x32xf32>, vector<32x64xf32>, vector<8x64xf32> -> vector<8x64xf32>
    %548 = vector.broadcast %546 : vector<1x64xf32> to vector<8x64xf32>
    %549 = arith.addf %547, %548 : vector<8x64xf32>
    %cst_277 = arith.constant 5.000000e-01 : f32
    %550 = vector.broadcast %cst_277 : f32 to vector<8x64xf32>
    %551 = arith.mulf %550, %549 : vector<8x64xf32>
    %cst_278 = arith.constant 0.707106769 : f32
    %552 = vector.broadcast %cst_278 : f32 to vector<8x64xf32>
    %553 = arith.mulf %549, %552 : vector<8x64xf32>
    %554 = math.erf %553 : vector<8x64xf32>
    %cst_279 = arith.constant 1.000000e+00 : f32
    %555 = vector.broadcast %cst_279 : f32 to vector<8x64xf32>
    %556 = arith.addf %555, %554 : vector<8x64xf32>
    %557 = arith.mulf %551, %556 : vector<8x64xf32>
    %c2_280 = arith.constant 2 : index
    %c0_281 = arith.constant 0 : index
    %c0_282 = arith.constant 0 : index
    %558 = vector.load %arg23[%c2_280, %c0_281, %c0_282] : memref<4x64x32xf32, #tpu.memory_space<vmem>>, vector<1x64x32xf32>
    %559 = vector.shape_cast %558 : vector<1x64x32xf32> to vector<64x32xf32>
    %c2_283 = arith.constant 2 : index
    %c0_284 = arith.constant 0 : index
    %c0_285 = arith.constant 0 : index
    %560 = vector.load %arg24[%c2_283, %c0_284, %c0_285] : memref<4x1x32xf32, #tpu.memory_space<vmem>>, vector<1x1x32xf32>
    %561 = vector.shape_cast %560 : vector<1x1x32xf32> to vector<1x32xf32>
    %cst_286 = arith.constant dense<0.000000e+00> : vector<8x32xf32>
    %562 = tpu.matmul %557, %559, %cst_286 {dimension_numbers = #tpu.dot_dimension_numbers<[1], [0], [0], [1], [0, 0, 1, 1], [], []>} : vector<8x64xf32>, vector<64x32xf32>, vector<8x32xf32> -> vector<8x32xf32>
    %563 = vector.broadcast %561 : vector<1x32xf32> to vector<8x32xf32>
    %564 = arith.addf %562, %563 : vector<8x32xf32>
    %565 = vector.shape_cast %564 : vector<8x32xf32> to vector<2x4x32xf32>
    %566 = arith.addf %541, %565 : vector<2x4x32xf32>
    %c2_287 = arith.constant 2 : index
    %c0_288 = arith.constant 0 : index
    %c0_289 = arith.constant 0 : index
    %567 = vector.load %arg25[%c2_287, %c0_288, %c0_289] : memref<4x1x32xf32, #tpu.memory_space<vmem>>, vector<1x1x32xf32>
    %568 = vector.shape_cast %567 : vector<1x1x32xf32> to vector<1x32xf32>
    %c2_290 = arith.constant 2 : index
    %c0_291 = arith.constant 0 : index
    %c0_292 = arith.constant 0 : index
    %569 = vector.load %arg26[%c2_290, %c0_291, %c0_292] : memref<4x1x32xf32, #tpu.memory_space<vmem>>, vector<1x1x32xf32>
    %570 = vector.shape_cast %569 : vector<1x1x32xf32> to vector<1x32xf32>
    %cst_293 = arith.constant dense<0.000000e+00> : vector<2x4xf32>
    %571 = vector.multi_reduction <add>, %566, %cst_293 [2] : vector<2x4x32xf32> to vector<2x4xf32>
    %572 = vector.shape_cast %571 : vector<2x4xf32> to vector<2x4x1xf32>
    %cst_294 = arith.constant 3.200000e+01 : f32
    %573 = vector.broadcast %cst_294 : f32 to vector<2x4x1xf32>
    %574 = arith.divf %572, %573 : vector<2x4x1xf32>
    %575 = vector.broadcast %574 : vector<2x4x1xf32> to vector<2x4x32xf32>
    %576 = arith.subf %566, %575 : vector<2x4x32xf32>
    %577 = arith.mulf %576, %576 : vector<2x4x32xf32>
    %cst_295 = arith.constant dense<0.000000e+00> : vector<2x4xf32>
    %578 = vector.multi_reduction <add>, %577, %cst_295 [2] : vector<2x4x32xf32> to vector<2x4xf32>
    %579 = vector.shape_cast %578 : vector<2x4xf32> to vector<2x4x1xf32>
    %cst_296 = arith.constant 3.200000e+01 : f32
    %580 = vector.broadcast %cst_296 : f32 to vector<2x4x1xf32>
    %581 = arith.divf %579, %580 : vector<2x4x1xf32>
    %582 = vector.broadcast %574 : vector<2x4x1xf32> to vector<2x4x32xf32>
    %583 = arith.subf %566, %582 : vector<2x4x32xf32>
    %cst_297 = arith.constant 9.99999974E-6 : f32
    %584 = vector.broadcast %cst_297 : f32 to vector<2x4x1xf32>
    %585 = arith.addf %581, %584 : vector<2x4x1xf32>
    %586 = math.rsqrt %585 : vector<2x4x1xf32>
    %587 = vector.broadcast %586 : vector<2x4x1xf32> to vector<2x4x32xf32>
    %588 = arith.mulf %583, %587 : vector<2x4x32xf32>
    %589 = vector.shape_cast %568 : vector<1x32xf32> to vector<1x1x32xf32>
    %590 = vector.broadcast %589 : vector<1x1x32xf32> to vector<2x4x32xf32>
    %591 = arith.mulf %588, %590 : vector<2x4x32xf32>
    %592 = vector.shape_cast %570 : vector<1x32xf32> to vector<1x1x32xf32>
    %593 = vector.broadcast %592 : vector<1x1x32xf32> to vector<2x4x32xf32>
    %594 = arith.addf %591, %593 : vector<2x4x32xf32>
    %c3_298 = arith.constant 3 : index
    %c0_299 = arith.constant 0 : index
    %c0_300 = arith.constant 0 : index
    %595 = vector.load %arg13[%c3_298, %c0_299, %c0_300] : memref<4x32x32xf32, #tpu.memory_space<vmem>>, vector<1x32x32xf32>
    %596 = vector.shape_cast %595 : vector<1x32x32xf32> to vector<32x32xf32>
    %c3_301 = arith.constant 3 : index
    %c0_302 = arith.constant 0 : index
    %c0_303 = arith.constant 0 : index
    %597 = vector.load %arg14[%c3_301, %c0_302, %c0_303] : memref<4x1x32xf32, #tpu.memory_space<vmem>>, vector<1x1x32xf32>
    %598 = vector.shape_cast %597 : vector<1x1x32xf32> to vector<1x32xf32>
    %c3_304 = arith.constant 3 : index
    %c0_305 = arith.constant 0 : index
    %c0_306 = arith.constant 0 : index
    %599 = vector.load %arg15[%c3_304, %c0_305, %c0_306] : memref<4x32x32xf32, #tpu.memory_space<vmem>>, vector<1x32x32xf32>
    %600 = vector.shape_cast %599 : vector<1x32x32xf32> to vector<32x32xf32>
    %c3_307 = arith.constant 3 : index
    %c0_308 = arith.constant 0 : index
    %c0_309 = arith.constant 0 : index
    %601 = vector.load %arg16[%c3_307, %c0_308, %c0_309] : memref<4x1x32xf32, #tpu.memory_space<vmem>>, vector<1x1x32xf32>
    %602 = vector.shape_cast %601 : vector<1x1x32xf32> to vector<1x32xf32>
    %c3_310 = arith.constant 3 : index
    %c0_311 = arith.constant 0 : index
    %c0_312 = arith.constant 0 : index
    %603 = vector.load %arg18[%c3_310, %c0_311, %c0_312] : memref<4x1x32xf32, #tpu.memory_space<vmem>>, vector<1x1x32xf32>
    %604 = vector.shape_cast %603 : vector<1x1x32xf32> to vector<1x32xf32>
    %605 = vector.shape_cast %594 : vector<2x4x32xf32> to vector<8x32xf32>
    %606 = vector.shape_cast %594 : vector<2x4x32xf32> to vector<8x32xf32>
    %cst_313 = arith.constant dense<0.000000e+00> : vector<8x32xf32>
    %607 = tpu.matmul %605, %596, %cst_313 {dimension_numbers = #tpu.dot_dimension_numbers<[1], [0], [0], [1], [0, 0, 1, 1], [], []>} : vector<8x32xf32>, vector<32x32xf32>, vector<8x32xf32> -> vector<8x32xf32>
    %608 = vector.broadcast %598 : vector<1x32xf32> to vector<8x32xf32>
    %609 = arith.addf %607, %608 : vector<8x32xf32>
    %cst_314 = arith.constant dense<0.000000e+00> : vector<8x32xf32>
    %610 = tpu.matmul %606, %600, %cst_314 {dimension_numbers = #tpu.dot_dimension_numbers<[1], [0], [0], [1], [0, 0, 1, 1], [], []>} : vector<8x32xf32>, vector<32x32xf32>, vector<8x32xf32> -> vector<8x32xf32>
    %611 = vector.broadcast %602 : vector<1x32xf32> to vector<8x32xf32>
    %612 = arith.addf %610, %611 : vector<8x32xf32>
    %cst_315 = arith.constant 0.000000e+00 : f32
    %613 = vector.broadcast %cst_315 : f32 to vector<8x32xf32>
    %614 = vector.broadcast %604 : vector<1x32xf32> to vector<8x32xf32>
    %615 = arith.addf %613, %614 : vector<8x32xf32>
    %616 = vector.broadcast %7 : vector<1x32xf32> to vector<8x32xf32>
    %617 = arith.mulf %609, %616 : vector<8x32xf32>
    %cst_316 = arith.constant dense<0.000000e+00> : vector<8x8xf32>
    %618 = tpu.matmul %617, %612, %cst_316 {dimension_numbers = #tpu.dot_dimension_numbers<[1], [1], [0], [0], [0, 0, 1, 0], [], []>} : vector<8x32xf32>, vector<8x32xf32>, vector<8x8xf32> -> vector<8x8xf32>
    %619 = arith.addf %618, %54 : vector<8x8xf32>
    %cst_317 = arith.constant dense<0xFF800000> : vector<8xf32>
    %620 = vector.multi_reduction <maximumf>, %619, %cst_317 [1] : vector<8x8xf32> to vector<8xf32>
    %621 = vector.shape_cast %620 : vector<8xf32> to vector<8x1xf32>
    %622 = vector.broadcast %621 : vector<8x1xf32> to vector<8x8xf32>
    %623 = arith.subf %619, %622 : vector<8x8xf32>
    %624 = math.exp %623 : vector<8x8xf32>
    %cst_318 = arith.constant dense<0.000000e+00> : vector<8xf32>
    %625 = vector.multi_reduction <add>, %624, %cst_318 [1] : vector<8x8xf32> to vector<8xf32>
    %626 = vector.shape_cast %625 : vector<8xf32> to vector<8x1xf32>
    %627 = tpu.reciprocal %626 {approx = true} : vector<8x1xf32> -> vector<8x1xf32>
    %628 = vector.broadcast %627 : vector<8x1xf32> to vector<8x8xf32>
    %629 = arith.mulf %624, %628 : vector<8x8xf32>
    %c3_319 = arith.constant 3 : index
    %c0_320 = arith.constant 0 : index
    %c0_321 = arith.constant 0 : index
    %c0_322 = arith.constant 0 : index
    %630 = vector.load %arg17[%c3_319, %c0_320, %c0_321, %c0_322] : memref<4x4x32x32xf32, #tpu.memory_space<vmem>>, vector<1x1x32x32xf32>
    %631 = vector.shape_cast %630 : vector<1x1x32x32xf32> to vector<32x32xf32>
    %cst_323 = arith.constant dense<0.000000e+00> : vector<8x32xf32>
    %632 = tpu.matmul %606, %631, %cst_323 {dimension_numbers = #tpu.dot_dimension_numbers<[1], [0], [0], [1], [0, 0, 1, 1], [], []>} : vector<8x32xf32>, vector<32x32xf32>, vector<8x32xf32> -> vector<8x32xf32>
    %cst_324 = arith.constant dense<0.000000e+00> : vector<8x32xf32>
    %633 = tpu.matmul %629, %632, %cst_324 {dimension_numbers = #tpu.dot_dimension_numbers<[1], [0], [0], [1], [0, 0, 1, 1], [], []>} : vector<8x8xf32>, vector<8x32xf32>, vector<8x32xf32> -> vector<8x32xf32>
    %634 = arith.addf %615, %633 : vector<8x32xf32>
    %635 = vector.broadcast %14 : vector<1x32xf32> to vector<8x32xf32>
    %636 = arith.mulf %609, %635 : vector<8x32xf32>
    %cst_325 = arith.constant dense<0.000000e+00> : vector<8x8xf32>
    %637 = tpu.matmul %636, %612, %cst_325 {dimension_numbers = #tpu.dot_dimension_numbers<[1], [1], [0], [0], [0, 0, 1, 0], [], []>} : vector<8x32xf32>, vector<8x32xf32>, vector<8x8xf32> -> vector<8x8xf32>
    %638 = arith.addf %637, %54 : vector<8x8xf32>
    %cst_326 = arith.constant dense<0xFF800000> : vector<8xf32>
    %639 = vector.multi_reduction <maximumf>, %638, %cst_326 [1] : vector<8x8xf32> to vector<8xf32>
    %640 = vector.shape_cast %639 : vector<8xf32> to vector<8x1xf32>
    %641 = vector.broadcast %640 : vector<8x1xf32> to vector<8x8xf32>
    %642 = arith.subf %638, %641 : vector<8x8xf32>
    %643 = math.exp %642 : vector<8x8xf32>
    %cst_327 = arith.constant dense<0.000000e+00> : vector<8xf32>
    %644 = vector.multi_reduction <add>, %643, %cst_327 [1] : vector<8x8xf32> to vector<8xf32>
    %645 = vector.shape_cast %644 : vector<8xf32> to vector<8x1xf32>
    %646 = tpu.reciprocal %645 {approx = true} : vector<8x1xf32> -> vector<8x1xf32>
    %647 = vector.broadcast %646 : vector<8x1xf32> to vector<8x8xf32>
    %648 = arith.mulf %643, %647 : vector<8x8xf32>
    %c3_328 = arith.constant 3 : index
    %c1_329 = arith.constant 1 : index
    %c0_330 = arith.constant 0 : index
    %c0_331 = arith.constant 0 : index
    %649 = vector.load %arg17[%c3_328, %c1_329, %c0_330, %c0_331] : memref<4x4x32x32xf32, #tpu.memory_space<vmem>>, vector<1x1x32x32xf32>
    %650 = vector.shape_cast %649 : vector<1x1x32x32xf32> to vector<32x32xf32>
    %cst_332 = arith.constant dense<0.000000e+00> : vector<8x32xf32>
    %651 = tpu.matmul %606, %650, %cst_332 {dimension_numbers = #tpu.dot_dimension_numbers<[1], [0], [0], [1], [0, 0, 1, 1], [], []>} : vector<8x32xf32>, vector<32x32xf32>, vector<8x32xf32> -> vector<8x32xf32>
    %cst_333 = arith.constant dense<0.000000e+00> : vector<8x32xf32>
    %652 = tpu.matmul %648, %651, %cst_333 {dimension_numbers = #tpu.dot_dimension_numbers<[1], [0], [0], [1], [0, 0, 1, 1], [], []>} : vector<8x8xf32>, vector<8x32xf32>, vector<8x32xf32> -> vector<8x32xf32>
    %653 = arith.addf %634, %652 : vector<8x32xf32>
    %654 = vector.broadcast %21 : vector<1x32xf32> to vector<8x32xf32>
    %655 = arith.mulf %609, %654 : vector<8x32xf32>
    %cst_334 = arith.constant dense<0.000000e+00> : vector<8x8xf32>
    %656 = tpu.matmul %655, %612, %cst_334 {dimension_numbers = #tpu.dot_dimension_numbers<[1], [1], [0], [0], [0, 0, 1, 0], [], []>} : vector<8x32xf32>, vector<8x32xf32>, vector<8x8xf32> -> vector<8x8xf32>
    %657 = arith.addf %656, %54 : vector<8x8xf32>
    %cst_335 = arith.constant dense<0xFF800000> : vector<8xf32>
    %658 = vector.multi_reduction <maximumf>, %657, %cst_335 [1] : vector<8x8xf32> to vector<8xf32>
    %659 = vector.shape_cast %658 : vector<8xf32> to vector<8x1xf32>
    %660 = vector.broadcast %659 : vector<8x1xf32> to vector<8x8xf32>
    %661 = arith.subf %657, %660 : vector<8x8xf32>
    %662 = math.exp %661 : vector<8x8xf32>
    %cst_336 = arith.constant dense<0.000000e+00> : vector<8xf32>
    %663 = vector.multi_reduction <add>, %662, %cst_336 [1] : vector<8x8xf32> to vector<8xf32>
    %664 = vector.shape_cast %663 : vector<8xf32> to vector<8x1xf32>
    %665 = tpu.reciprocal %664 {approx = true} : vector<8x1xf32> -> vector<8x1xf32>
    %666 = vector.broadcast %665 : vector<8x1xf32> to vector<8x8xf32>
    %667 = arith.mulf %662, %666 : vector<8x8xf32>
    %c3_337 = arith.constant 3 : index
    %c2_338 = arith.constant 2 : index
    %c0_339 = arith.constant 0 : index
    %c0_340 = arith.constant 0 : index
    %668 = vector.load %arg17[%c3_337, %c2_338, %c0_339, %c0_340] : memref<4x4x32x32xf32, #tpu.memory_space<vmem>>, vector<1x1x32x32xf32>
    %669 = vector.shape_cast %668 : vector<1x1x32x32xf32> to vector<32x32xf32>
    %cst_341 = arith.constant dense<0.000000e+00> : vector<8x32xf32>
    %670 = tpu.matmul %606, %669, %cst_341 {dimension_numbers = #tpu.dot_dimension_numbers<[1], [0], [0], [1], [0, 0, 1, 1], [], []>} : vector<8x32xf32>, vector<32x32xf32>, vector<8x32xf32> -> vector<8x32xf32>
    %cst_342 = arith.constant dense<0.000000e+00> : vector<8x32xf32>
    %671 = tpu.matmul %667, %670, %cst_342 {dimension_numbers = #tpu.dot_dimension_numbers<[1], [0], [0], [1], [0, 0, 1, 1], [], []>} : vector<8x8xf32>, vector<8x32xf32>, vector<8x32xf32> -> vector<8x32xf32>
    %672 = arith.addf %653, %671 : vector<8x32xf32>
    %673 = vector.broadcast %28 : vector<1x32xf32> to vector<8x32xf32>
    %674 = arith.mulf %609, %673 : vector<8x32xf32>
    %cst_343 = arith.constant dense<0.000000e+00> : vector<8x8xf32>
    %675 = tpu.matmul %674, %612, %cst_343 {dimension_numbers = #tpu.dot_dimension_numbers<[1], [1], [0], [0], [0, 0, 1, 0], [], []>} : vector<8x32xf32>, vector<8x32xf32>, vector<8x8xf32> -> vector<8x8xf32>
    %676 = arith.addf %675, %54 : vector<8x8xf32>
    %cst_344 = arith.constant dense<0xFF800000> : vector<8xf32>
    %677 = vector.multi_reduction <maximumf>, %676, %cst_344 [1] : vector<8x8xf32> to vector<8xf32>
    %678 = vector.shape_cast %677 : vector<8xf32> to vector<8x1xf32>
    %679 = vector.broadcast %678 : vector<8x1xf32> to vector<8x8xf32>
    %680 = arith.subf %676, %679 : vector<8x8xf32>
    %681 = math.exp %680 : vector<8x8xf32>
    %cst_345 = arith.constant dense<0.000000e+00> : vector<8xf32>
    %682 = vector.multi_reduction <add>, %681, %cst_345 [1] : vector<8x8xf32> to vector<8xf32>
    %683 = vector.shape_cast %682 : vector<8xf32> to vector<8x1xf32>
    %684 = tpu.reciprocal %683 {approx = true} : vector<8x1xf32> -> vector<8x1xf32>
    %685 = vector.broadcast %684 : vector<8x1xf32> to vector<8x8xf32>
    %686 = arith.mulf %681, %685 : vector<8x8xf32>
    %c3_346 = arith.constant 3 : index
    %c3_347 = arith.constant 3 : index
    %c0_348 = arith.constant 0 : index
    %c0_349 = arith.constant 0 : index
    %687 = vector.load %arg17[%c3_346, %c3_347, %c0_348, %c0_349] : memref<4x4x32x32xf32, #tpu.memory_space<vmem>>, vector<1x1x32x32xf32>
    %688 = vector.shape_cast %687 : vector<1x1x32x32xf32> to vector<32x32xf32>
    %cst_350 = arith.constant dense<0.000000e+00> : vector<8x32xf32>
    %689 = tpu.matmul %606, %688, %cst_350 {dimension_numbers = #tpu.dot_dimension_numbers<[1], [0], [0], [1], [0, 0, 1, 1], [], []>} : vector<8x32xf32>, vector<32x32xf32>, vector<8x32xf32> -> vector<8x32xf32>
    %cst_351 = arith.constant dense<0.000000e+00> : vector<8x32xf32>
    %690 = tpu.matmul %686, %689, %cst_351 {dimension_numbers = #tpu.dot_dimension_numbers<[1], [0], [0], [1], [0, 0, 1, 1], [], []>} : vector<8x8xf32>, vector<8x32xf32>, vector<8x32xf32> -> vector<8x32xf32>
    %691 = arith.addf %672, %690 : vector<8x32xf32>
    %692 = vector.shape_cast %691 : vector<8x32xf32> to vector<2x4x32xf32>
    %693 = arith.addf %594, %692 : vector<2x4x32xf32>
    %c3_352 = arith.constant 3 : index
    %c0_353 = arith.constant 0 : index
    %c0_354 = arith.constant 0 : index
    %694 = vector.load %arg19[%c3_352, %c0_353, %c0_354] : memref<4x1x32xf32, #tpu.memory_space<vmem>>, vector<1x1x32xf32>
    %695 = vector.shape_cast %694 : vector<1x1x32xf32> to vector<1x32xf32>
    %c3_355 = arith.constant 3 : index
    %c0_356 = arith.constant 0 : index
    %c0_357 = arith.constant 0 : index
    %696 = vector.load %arg20[%c3_355, %c0_356, %c0_357] : memref<4x1x32xf32, #tpu.memory_space<vmem>>, vector<1x1x32xf32>
    %697 = vector.shape_cast %696 : vector<1x1x32xf32> to vector<1x32xf32>
    %cst_358 = arith.constant dense<0.000000e+00> : vector<2x4xf32>
    %698 = vector.multi_reduction <add>, %693, %cst_358 [2] : vector<2x4x32xf32> to vector<2x4xf32>
    %699 = vector.shape_cast %698 : vector<2x4xf32> to vector<2x4x1xf32>
    %cst_359 = arith.constant 3.200000e+01 : f32
    %700 = vector.broadcast %cst_359 : f32 to vector<2x4x1xf32>
    %701 = arith.divf %699, %700 : vector<2x4x1xf32>
    %702 = vector.broadcast %701 : vector<2x4x1xf32> to vector<2x4x32xf32>
    %703 = arith.subf %693, %702 : vector<2x4x32xf32>
    %704 = arith.mulf %703, %703 : vector<2x4x32xf32>
    %cst_360 = arith.constant dense<0.000000e+00> : vector<2x4xf32>
    %705 = vector.multi_reduction <add>, %704, %cst_360 [2] : vector<2x4x32xf32> to vector<2x4xf32>
    %706 = vector.shape_cast %705 : vector<2x4xf32> to vector<2x4x1xf32>
    %cst_361 = arith.constant 3.200000e+01 : f32
    %707 = vector.broadcast %cst_361 : f32 to vector<2x4x1xf32>
    %708 = arith.divf %706, %707 : vector<2x4x1xf32>
    %709 = vector.broadcast %701 : vector<2x4x1xf32> to vector<2x4x32xf32>
    %710 = arith.subf %693, %709 : vector<2x4x32xf32>
    %cst_362 = arith.constant 9.99999974E-6 : f32
    %711 = vector.broadcast %cst_362 : f32 to vector<2x4x1xf32>
    %712 = arith.addf %708, %711 : vector<2x4x1xf32>
    %713 = math.rsqrt %712 : vector<2x4x1xf32>
    %714 = vector.broadcast %713 : vector<2x4x1xf32> to vector<2x4x32xf32>
    %715 = arith.mulf %710, %714 : vector<2x4x32xf32>
    %716 = vector.shape_cast %695 : vector<1x32xf32> to vector<1x1x32xf32>
    %717 = vector.broadcast %716 : vector<1x1x32xf32> to vector<2x4x32xf32>
    %718 = arith.mulf %715, %717 : vector<2x4x32xf32>
    %719 = vector.shape_cast %697 : vector<1x32xf32> to vector<1x1x32xf32>
    %720 = vector.broadcast %719 : vector<1x1x32xf32> to vector<2x4x32xf32>
    %721 = arith.addf %718, %720 : vector<2x4x32xf32>
    %722 = vector.shape_cast %721 : vector<2x4x32xf32> to vector<8x32xf32>
    %c3_363 = arith.constant 3 : index
    %c0_364 = arith.constant 0 : index
    %c0_365 = arith.constant 0 : index
    %723 = vector.load %arg21[%c3_363, %c0_364, %c0_365] : memref<4x32x64xf32, #tpu.memory_space<vmem>>, vector<1x32x64xf32>
    %724 = vector.shape_cast %723 : vector<1x32x64xf32> to vector<32x64xf32>
    %c3_366 = arith.constant 3 : index
    %c0_367 = arith.constant 0 : index
    %c0_368 = arith.constant 0 : index
    %725 = vector.load %arg22[%c3_366, %c0_367, %c0_368] : memref<4x1x64xf32, #tpu.memory_space<vmem>>, vector<1x1x64xf32>
    %726 = vector.shape_cast %725 : vector<1x1x64xf32> to vector<1x64xf32>
    %cst_369 = arith.constant dense<0.000000e+00> : vector<8x64xf32>
    %727 = tpu.matmul %722, %724, %cst_369 {dimension_numbers = #tpu.dot_dimension_numbers<[1], [0], [0], [1], [0, 0, 1, 1], [], []>} : vector<8x32xf32>, vector<32x64xf32>, vector<8x64xf32> -> vector<8x64xf32>
    %728 = vector.broadcast %726 : vector<1x64xf32> to vector<8x64xf32>
    %729 = arith.addf %727, %728 : vector<8x64xf32>
    %cst_370 = arith.constant 5.000000e-01 : f32
    %730 = vector.broadcast %cst_370 : f32 to vector<8x64xf32>
    %731 = arith.mulf %730, %729 : vector<8x64xf32>
    %cst_371 = arith.constant 0.707106769 : f32
    %732 = vector.broadcast %cst_371 : f32 to vector<8x64xf32>
    %733 = arith.mulf %729, %732 : vector<8x64xf32>
    %734 = math.erf %733 : vector<8x64xf32>
    %cst_372 = arith.constant 1.000000e+00 : f32
    %735 = vector.broadcast %cst_372 : f32 to vector<8x64xf32>
    %736 = arith.addf %735, %734 : vector<8x64xf32>
    %737 = arith.mulf %731, %736 : vector<8x64xf32>
    %c3_373 = arith.constant 3 : index
    %c0_374 = arith.constant 0 : index
    %c0_375 = arith.constant 0 : index
    %738 = vector.load %arg23[%c3_373, %c0_374, %c0_375] : memref<4x64x32xf32, #tpu.memory_space<vmem>>, vector<1x64x32xf32>
    %739 = vector.shape_cast %738 : vector<1x64x32xf32> to vector<64x32xf32>
    %c3_376 = arith.constant 3 : index
    %c0_377 = arith.constant 0 : index
    %c0_378 = arith.constant 0 : index
    %740 = vector.load %arg24[%c3_376, %c0_377, %c0_378] : memref<4x1x32xf32, #tpu.memory_space<vmem>>, vector<1x1x32xf32>
    %741 = vector.shape_cast %740 : vector<1x1x32xf32> to vector<1x32xf32>
    %cst_379 = arith.constant dense<0.000000e+00> : vector<8x32xf32>
    %742 = tpu.matmul %737, %739, %cst_379 {dimension_numbers = #tpu.dot_dimension_numbers<[1], [0], [0], [1], [0, 0, 1, 1], [], []>} : vector<8x64xf32>, vector<64x32xf32>, vector<8x32xf32> -> vector<8x32xf32>
    %743 = vector.broadcast %741 : vector<1x32xf32> to vector<8x32xf32>
    %744 = arith.addf %742, %743 : vector<8x32xf32>
    %745 = vector.shape_cast %744 : vector<8x32xf32> to vector<2x4x32xf32>
    %746 = arith.addf %721, %745 : vector<2x4x32xf32>
    %c3_380 = arith.constant 3 : index
    %c0_381 = arith.constant 0 : index
    %c0_382 = arith.constant 0 : index
    %747 = vector.load %arg25[%c3_380, %c0_381, %c0_382] : memref<4x1x32xf32, #tpu.memory_space<vmem>>, vector<1x1x32xf32>
    %748 = vector.shape_cast %747 : vector<1x1x32xf32> to vector<1x32xf32>
    %c3_383 = arith.constant 3 : index
    %c0_384 = arith.constant 0 : index
    %c0_385 = arith.constant 0 : index
    %749 = vector.load %arg26[%c3_383, %c0_384, %c0_385] : memref<4x1x32xf32, #tpu.memory_space<vmem>>, vector<1x1x32xf32>
    %750 = vector.shape_cast %749 : vector<1x1x32xf32> to vector<1x32xf32>
    %cst_386 = arith.constant dense<0.000000e+00> : vector<2x4xf32>
    %751 = vector.multi_reduction <add>, %746, %cst_386 [2] : vector<2x4x32xf32> to vector<2x4xf32>
    %752 = vector.shape_cast %751 : vector<2x4xf32> to vector<2x4x1xf32>
    %cst_387 = arith.constant 3.200000e+01 : f32
    %753 = vector.broadcast %cst_387 : f32 to vector<2x4x1xf32>
    %754 = arith.divf %752, %753 : vector<2x4x1xf32>
    %755 = vector.broadcast %754 : vector<2x4x1xf32> to vector<2x4x32xf32>
    %756 = arith.subf %746, %755 : vector<2x4x32xf32>
    %757 = arith.mulf %756, %756 : vector<2x4x32xf32>
    %cst_388 = arith.constant dense<0.000000e+00> : vector<2x4xf32>
    %758 = vector.multi_reduction <add>, %757, %cst_388 [2] : vector<2x4x32xf32> to vector<2x4xf32>
    %759 = vector.shape_cast %758 : vector<2x4xf32> to vector<2x4x1xf32>
    %cst_389 = arith.constant 3.200000e+01 : f32
    %760 = vector.broadcast %cst_389 : f32 to vector<2x4x1xf32>
    %761 = arith.divf %759, %760 : vector<2x4x1xf32>
    %762 = vector.broadcast %754 : vector<2x4x1xf32> to vector<2x4x32xf32>
    %763 = arith.subf %746, %762 : vector<2x4x32xf32>
    %cst_390 = arith.constant 9.99999974E-6 : f32
    %764 = vector.broadcast %cst_390 : f32 to vector<2x4x1xf32>
    %765 = arith.addf %761, %764 : vector<2x4x1xf32>
    %766 = math.rsqrt %765 : vector<2x4x1xf32>
    %767 = vector.broadcast %766 : vector<2x4x1xf32> to vector<2x4x32xf32>
    %768 = arith.mulf %763, %767 : vector<2x4x32xf32>
    %769 = vector.shape_cast %748 : vector<1x32xf32> to vector<1x1x32xf32>
    %770 = vector.broadcast %769 : vector<1x1x32xf32> to vector<2x4x32xf32>
    %771 = arith.mulf %768, %770 : vector<2x4x32xf32>
    %772 = vector.shape_cast %750 : vector<1x32xf32> to vector<1x1x32xf32>
    %773 = vector.broadcast %772 : vector<1x1x32xf32> to vector<2x4x32xf32>
    %774 = arith.addf %771, %773 : vector<2x4x32xf32>
    %c0_391 = arith.constant 0 : index
    %c0_392 = arith.constant 0 : index
    %775 = vector.load %arg10[%c0_391, %c0_392] : memref<8x32xf32, #tpu.memory_space<vmem>>, vector<8x32xf32>
    %776 = vector.shape_cast %775 : vector<8x32xf32> to vector<1x8x32xf32>
    %777 = vector.broadcast %776 : vector<1x8x32xf32> to vector<2x8x32xf32>
    %778 = arith.addf %414, %777 : vector<2x8x32xf32>
    %c0_393 = arith.constant 0 : index
    %c0_394 = arith.constant 0 : index
    %779 = vector.load %arg12[%c0_393, %c0_394] : memref<4x32xf32, #tpu.memory_space<vmem>>, vector<4x32xf32>
    %780 = vector.shape_cast %779 : vector<4x32xf32> to vector<1x4x32xf32>
    %781 = vector.broadcast %780 : vector<1x4x32xf32> to vector<2x4x32xf32>
    %782 = arith.addf %774, %781 : vector<2x4x32xf32>
    %c0_395 = arith.constant 0 : index
    %c0_396 = arith.constant 0 : index
    %c0_397 = arith.constant 0 : index
    %783 = vector.load %arg27[%c0_395, %c0_396, %c0_397] : memref<2x32x32xf32, #tpu.memory_space<vmem>>, vector<1x32x32xf32>
    %784 = vector.shape_cast %783 : vector<1x32x32xf32> to vector<32x32xf32>
    %c0_398 = arith.constant 0 : index
    %c0_399 = arith.constant 0 : index
    %c0_400 = arith.constant 0 : index
    %785 = vector.load %arg28[%c0_398, %c0_399, %c0_400] : memref<2x1x32xf32, #tpu.memory_space<vmem>>, vector<1x1x32xf32>
    %786 = vector.shape_cast %785 : vector<1x1x32xf32> to vector<1x32xf32>
    %c0_401 = arith.constant 0 : index
    %c0_402 = arith.constant 0 : index
    %c0_403 = arith.constant 0 : index
    %787 = vector.load %arg29[%c0_401, %c0_402, %c0_403] : memref<2x32x32xf32, #tpu.memory_space<vmem>>, vector<1x32x32xf32>
    %788 = vector.shape_cast %787 : vector<1x32x32xf32> to vector<32x32xf32>
    %c0_404 = arith.constant 0 : index
    %c0_405 = arith.constant 0 : index
    %c0_406 = arith.constant 0 : index
    %789 = vector.load %arg30[%c0_404, %c0_405, %c0_406] : memref<2x1x32xf32, #tpu.memory_space<vmem>>, vector<1x1x32xf32>
    %790 = vector.shape_cast %789 : vector<1x1x32xf32> to vector<1x32xf32>
    %c0_407 = arith.constant 0 : index
    %c0_408 = arith.constant 0 : index
    %c0_409 = arith.constant 0 : index
    %791 = vector.load %arg32[%c0_407, %c0_408, %c0_409] : memref<2x1x32xf32, #tpu.memory_space<vmem>>, vector<1x1x32xf32>
    %792 = vector.shape_cast %791 : vector<1x1x32xf32> to vector<1x32xf32>
    %c0_410 = arith.constant 0 : index
    %c0_411 = arith.constant 0 : index
    %793 = vector.load %arg4[%c0_410, %c0_411] : memref<16x8xf32, #tpu.memory_space<vmem>>, vector<16x8xf32>
    %794 = vector.shape_cast %778 : vector<2x8x32xf32> to vector<16x32xf32>
    %795 = vector.shape_cast %782 : vector<2x4x32xf32> to vector<8x32xf32>
    %cst_412 = arith.constant dense<0.000000e+00> : vector<16x32xf32>
    %796 = tpu.matmul %794, %784, %cst_412 {dimension_numbers = #tpu.dot_dimension_numbers<[1], [0], [0], [1], [0, 0, 1, 1], [], []>} : vector<16x32xf32>, vector<32x32xf32>, vector<16x32xf32> -> vector<16x32xf32>
    %797 = vector.broadcast %786 : vector<1x32xf32> to vector<16x32xf32>
    %798 = arith.addf %796, %797 : vector<16x32xf32>
    %cst_413 = arith.constant dense<0.000000e+00> : vector<8x32xf32>
    %799 = tpu.matmul %795, %788, %cst_413 {dimension_numbers = #tpu.dot_dimension_numbers<[1], [0], [0], [1], [0, 0, 1, 1], [], []>} : vector<8x32xf32>, vector<32x32xf32>, vector<8x32xf32> -> vector<8x32xf32>
    %800 = vector.broadcast %790 : vector<1x32xf32> to vector<8x32xf32>
    %801 = arith.addf %799, %800 : vector<8x32xf32>
    %cst_414 = arith.constant 0.000000e+00 : f32
    %802 = vector.broadcast %cst_414 : f32 to vector<16x32xf32>
    %803 = vector.broadcast %792 : vector<1x32xf32> to vector<16x32xf32>
    %804 = arith.addf %802, %803 : vector<16x32xf32>
    %805 = vector.broadcast %7 : vector<1x32xf32> to vector<16x32xf32>
    %806 = arith.mulf %798, %805 : vector<16x32xf32>
    %cst_415 = arith.constant dense<0.000000e+00> : vector<16x8xf32>
    %807 = tpu.matmul %806, %801, %cst_415 {dimension_numbers = #tpu.dot_dimension_numbers<[1], [1], [0], [0], [0, 0, 1, 0], [], []>} : vector<16x32xf32>, vector<8x32xf32>, vector<16x8xf32> -> vector<16x8xf32>
    %808 = arith.addf %807, %793 : vector<16x8xf32>
    %cst_416 = arith.constant dense<0xFF800000> : vector<16xf32>
    %809 = vector.multi_reduction <maximumf>, %808, %cst_416 [1] : vector<16x8xf32> to vector<16xf32>
    %810 = vector.shape_cast %809 : vector<16xf32> to vector<16x1xf32>
    %811 = vector.broadcast %810 : vector<16x1xf32> to vector<16x8xf32>
    %812 = arith.subf %808, %811 : vector<16x8xf32>
    %813 = math.exp %812 : vector<16x8xf32>
    %cst_417 = arith.constant dense<0.000000e+00> : vector<16xf32>
    %814 = vector.multi_reduction <add>, %813, %cst_417 [1] : vector<16x8xf32> to vector<16xf32>
    %815 = vector.shape_cast %814 : vector<16xf32> to vector<16x1xf32>
    %816 = tpu.reciprocal %815 {approx = true} : vector<16x1xf32> -> vector<16x1xf32>
    %817 = vector.broadcast %816 : vector<16x1xf32> to vector<16x8xf32>
    %818 = arith.mulf %813, %817 : vector<16x8xf32>
    %c0_418 = arith.constant 0 : index
    %c0_419 = arith.constant 0 : index
    %c0_420 = arith.constant 0 : index
    %c0_421 = arith.constant 0 : index
    %819 = vector.load %arg31[%c0_418, %c0_419, %c0_420, %c0_421] : memref<2x4x32x32xf32, #tpu.memory_space<vmem>>, vector<1x1x32x32xf32>
    %820 = vector.shape_cast %819 : vector<1x1x32x32xf32> to vector<32x32xf32>
    %cst_422 = arith.constant dense<0.000000e+00> : vector<8x32xf32>
    %821 = tpu.matmul %795, %820, %cst_422 {dimension_numbers = #tpu.dot_dimension_numbers<[1], [0], [0], [1], [0, 0, 1, 1], [], []>} : vector<8x32xf32>, vector<32x32xf32>, vector<8x32xf32> -> vector<8x32xf32>
    %cst_423 = arith.constant dense<0.000000e+00> : vector<16x32xf32>
    %822 = tpu.matmul %818, %821, %cst_423 {dimension_numbers = #tpu.dot_dimension_numbers<[1], [0], [0], [1], [0, 0, 1, 1], [], []>} : vector<16x8xf32>, vector<8x32xf32>, vector<16x32xf32> -> vector<16x32xf32>
    %823 = arith.addf %804, %822 : vector<16x32xf32>
    %824 = vector.broadcast %14 : vector<1x32xf32> to vector<16x32xf32>
    %825 = arith.mulf %798, %824 : vector<16x32xf32>
    %cst_424 = arith.constant dense<0.000000e+00> : vector<16x8xf32>
    %826 = tpu.matmul %825, %801, %cst_424 {dimension_numbers = #tpu.dot_dimension_numbers<[1], [1], [0], [0], [0, 0, 1, 0], [], []>} : vector<16x32xf32>, vector<8x32xf32>, vector<16x8xf32> -> vector<16x8xf32>
    %827 = arith.addf %826, %793 : vector<16x8xf32>
    %cst_425 = arith.constant dense<0xFF800000> : vector<16xf32>
    %828 = vector.multi_reduction <maximumf>, %827, %cst_425 [1] : vector<16x8xf32> to vector<16xf32>
    %829 = vector.shape_cast %828 : vector<16xf32> to vector<16x1xf32>
    %830 = vector.broadcast %829 : vector<16x1xf32> to vector<16x8xf32>
    %831 = arith.subf %827, %830 : vector<16x8xf32>
    %832 = math.exp %831 : vector<16x8xf32>
    %cst_426 = arith.constant dense<0.000000e+00> : vector<16xf32>
    %833 = vector.multi_reduction <add>, %832, %cst_426 [1] : vector<16x8xf32> to vector<16xf32>
    %834 = vector.shape_cast %833 : vector<16xf32> to vector<16x1xf32>
    %835 = tpu.reciprocal %834 {approx = true} : vector<16x1xf32> -> vector<16x1xf32>
    %836 = vector.broadcast %835 : vector<16x1xf32> to vector<16x8xf32>
    %837 = arith.mulf %832, %836 : vector<16x8xf32>
    %c0_427 = arith.constant 0 : index
    %c1_428 = arith.constant 1 : index
    %c0_429 = arith.constant 0 : index
    %c0_430 = arith.constant 0 : index
    %838 = vector.load %arg31[%c0_427, %c1_428, %c0_429, %c0_430] : memref<2x4x32x32xf32, #tpu.memory_space<vmem>>, vector<1x1x32x32xf32>
    %839 = vector.shape_cast %838 : vector<1x1x32x32xf32> to vector<32x32xf32>
    %cst_431 = arith.constant dense<0.000000e+00> : vector<8x32xf32>
    %840 = tpu.matmul %795, %839, %cst_431 {dimension_numbers = #tpu.dot_dimension_numbers<[1], [0], [0], [1], [0, 0, 1, 1], [], []>} : vector<8x32xf32>, vector<32x32xf32>, vector<8x32xf32> -> vector<8x32xf32>
    %cst_432 = arith.constant dense<0.000000e+00> : vector<16x32xf32>
    %841 = tpu.matmul %837, %840, %cst_432 {dimension_numbers = #tpu.dot_dimension_numbers<[1], [0], [0], [1], [0, 0, 1, 1], [], []>} : vector<16x8xf32>, vector<8x32xf32>, vector<16x32xf32> -> vector<16x32xf32>
    %842 = arith.addf %823, %841 : vector<16x32xf32>
    %843 = vector.broadcast %21 : vector<1x32xf32> to vector<16x32xf32>
    %844 = arith.mulf %798, %843 : vector<16x32xf32>
    %cst_433 = arith.constant dense<0.000000e+00> : vector<16x8xf32>
    %845 = tpu.matmul %844, %801, %cst_433 {dimension_numbers = #tpu.dot_dimension_numbers<[1], [1], [0], [0], [0, 0, 1, 0], [], []>} : vector<16x32xf32>, vector<8x32xf32>, vector<16x8xf32> -> vector<16x8xf32>
    %846 = arith.addf %845, %793 : vector<16x8xf32>
    %cst_434 = arith.constant dense<0xFF800000> : vector<16xf32>
    %847 = vector.multi_reduction <maximumf>, %846, %cst_434 [1] : vector<16x8xf32> to vector<16xf32>
    %848 = vector.shape_cast %847 : vector<16xf32> to vector<16x1xf32>
    %849 = vector.broadcast %848 : vector<16x1xf32> to vector<16x8xf32>
    %850 = arith.subf %846, %849 : vector<16x8xf32>
    %851 = math.exp %850 : vector<16x8xf32>
    %cst_435 = arith.constant dense<0.000000e+00> : vector<16xf32>
    %852 = vector.multi_reduction <add>, %851, %cst_435 [1] : vector<16x8xf32> to vector<16xf32>
    %853 = vector.shape_cast %852 : vector<16xf32> to vector<16x1xf32>
    %854 = tpu.reciprocal %853 {approx = true} : vector<16x1xf32> -> vector<16x1xf32>
    %855 = vector.broadcast %854 : vector<16x1xf32> to vector<16x8xf32>
    %856 = arith.mulf %851, %855 : vector<16x8xf32>
    %c0_436 = arith.constant 0 : index
    %c2_437 = arith.constant 2 : index
    %c0_438 = arith.constant 0 : index
    %c0_439 = arith.constant 0 : index
    %857 = vector.load %arg31[%c0_436, %c2_437, %c0_438, %c0_439] : memref<2x4x32x32xf32, #tpu.memory_space<vmem>>, vector<1x1x32x32xf32>
    %858 = vector.shape_cast %857 : vector<1x1x32x32xf32> to vector<32x32xf32>
    %cst_440 = arith.constant dense<0.000000e+00> : vector<8x32xf32>
    %859 = tpu.matmul %795, %858, %cst_440 {dimension_numbers = #tpu.dot_dimension_numbers<[1], [0], [0], [1], [0, 0, 1, 1], [], []>} : vector<8x32xf32>, vector<32x32xf32>, vector<8x32xf32> -> vector<8x32xf32>
    %cst_441 = arith.constant dense<0.000000e+00> : vector<16x32xf32>
    %860 = tpu.matmul %856, %859, %cst_441 {dimension_numbers = #tpu.dot_dimension_numbers<[1], [0], [0], [1], [0, 0, 1, 1], [], []>} : vector<16x8xf32>, vector<8x32xf32>, vector<16x32xf32> -> vector<16x32xf32>
    %861 = arith.addf %842, %860 : vector<16x32xf32>
    %862 = vector.broadcast %28 : vector<1x32xf32> to vector<16x32xf32>
    %863 = arith.mulf %798, %862 : vector<16x32xf32>
    %cst_442 = arith.constant dense<0.000000e+00> : vector<16x8xf32>
    %864 = tpu.matmul %863, %801, %cst_442 {dimension_numbers = #tpu.dot_dimension_numbers<[1], [1], [0], [0], [0, 0, 1, 0], [], []>} : vector<16x32xf32>, vector<8x32xf32>, vector<16x8xf32> -> vector<16x8xf32>
    %865 = arith.addf %864, %793 : vector<16x8xf32>
    %cst_443 = arith.constant dense<0xFF800000> : vector<16xf32>
    %866 = vector.multi_reduction <maximumf>, %865, %cst_443 [1] : vector<16x8xf32> to vector<16xf32>
    %867 = vector.shape_cast %866 : vector<16xf32> to vector<16x1xf32>
    %868 = vector.broadcast %867 : vector<16x1xf32> to vector<16x8xf32>
    %869 = arith.subf %865, %868 : vector<16x8xf32>
    %870 = math.exp %869 : vector<16x8xf32>
    %cst_444 = arith.constant dense<0.000000e+00> : vector<16xf32>
    %871 = vector.multi_reduction <add>, %870, %cst_444 [1] : vector<16x8xf32> to vector<16xf32>
    %872 = vector.shape_cast %871 : vector<16xf32> to vector<16x1xf32>
    %873 = tpu.reciprocal %872 {approx = true} : vector<16x1xf32> -> vector<16x1xf32>
    %874 = vector.broadcast %873 : vector<16x1xf32> to vector<16x8xf32>
    %875 = arith.mulf %870, %874 : vector<16x8xf32>
    %c0_445 = arith.constant 0 : index
    %c3_446 = arith.constant 3 : index
    %c0_447 = arith.constant 0 : index
    %c0_448 = arith.constant 0 : index
    %876 = vector.load %arg31[%c0_445, %c3_446, %c0_447, %c0_448] : memref<2x4x32x32xf32, #tpu.memory_space<vmem>>, vector<1x1x32x32xf32>
    %877 = vector.shape_cast %876 : vector<1x1x32x32xf32> to vector<32x32xf32>
    %cst_449 = arith.constant dense<0.000000e+00> : vector<8x32xf32>
    %878 = tpu.matmul %795, %877, %cst_449 {dimension_numbers = #tpu.dot_dimension_numbers<[1], [0], [0], [1], [0, 0, 1, 1], [], []>} : vector<8x32xf32>, vector<32x32xf32>, vector<8x32xf32> -> vector<8x32xf32>
    %cst_450 = arith.constant dense<0.000000e+00> : vector<16x32xf32>
    %879 = tpu.matmul %875, %878, %cst_450 {dimension_numbers = #tpu.dot_dimension_numbers<[1], [0], [0], [1], [0, 0, 1, 1], [], []>} : vector<16x8xf32>, vector<8x32xf32>, vector<16x32xf32> -> vector<16x32xf32>
    %880 = arith.addf %861, %879 : vector<16x32xf32>
    %881 = vector.shape_cast %880 : vector<16x32xf32> to vector<2x8x32xf32>
    %c1_451 = arith.constant 1 : index
    %c0_452 = arith.constant 0 : index
    %c0_453 = arith.constant 0 : index
    %882 = vector.load %arg27[%c1_451, %c0_452, %c0_453] : memref<2x32x32xf32, #tpu.memory_space<vmem>>, vector<1x32x32xf32>
    %883 = vector.shape_cast %882 : vector<1x32x32xf32> to vector<32x32xf32>
    %c1_454 = arith.constant 1 : index
    %c0_455 = arith.constant 0 : index
    %c0_456 = arith.constant 0 : index
    %884 = vector.load %arg28[%c1_454, %c0_455, %c0_456] : memref<2x1x32xf32, #tpu.memory_space<vmem>>, vector<1x1x32xf32>
    %885 = vector.shape_cast %884 : vector<1x1x32xf32> to vector<1x32xf32>
    %c1_457 = arith.constant 1 : index
    %c0_458 = arith.constant 0 : index
    %c0_459 = arith.constant 0 : index
    %886 = vector.load %arg29[%c1_457, %c0_458, %c0_459] : memref<2x32x32xf32, #tpu.memory_space<vmem>>, vector<1x32x32xf32>
    %887 = vector.shape_cast %886 : vector<1x32x32xf32> to vector<32x32xf32>
    %c1_460 = arith.constant 1 : index
    %c0_461 = arith.constant 0 : index
    %c0_462 = arith.constant 0 : index
    %888 = vector.load %arg30[%c1_460, %c0_461, %c0_462] : memref<2x1x32xf32, #tpu.memory_space<vmem>>, vector<1x1x32xf32>
    %889 = vector.shape_cast %888 : vector<1x1x32xf32> to vector<1x32xf32>
    %c1_463 = arith.constant 1 : index
    %c0_464 = arith.constant 0 : index
    %c0_465 = arith.constant 0 : index
    %890 = vector.load %arg32[%c1_463, %c0_464, %c0_465] : memref<2x1x32xf32, #tpu.memory_space<vmem>>, vector<1x1x32xf32>
    %891 = vector.shape_cast %890 : vector<1x1x32xf32> to vector<1x32xf32>
    %c0_466 = arith.constant 0 : index
    %c0_467 = arith.constant 0 : index
    %892 = vector.load %arg5[%c0_466, %c0_467] : memref<8x16xf32, #tpu.memory_space<vmem>>, vector<8x16xf32>
    %893 = vector.shape_cast %782 : vector<2x4x32xf32> to vector<8x32xf32>
    %894 = vector.shape_cast %778 : vector<2x8x32xf32> to vector<16x32xf32>
    %cst_468 = arith.constant dense<0.000000e+00> : vector<8x32xf32>
    %895 = tpu.matmul %893, %883, %cst_468 {dimension_numbers = #tpu.dot_dimension_numbers<[1], [0], [0], [1], [0, 0, 1, 1], [], []>} : vector<8x32xf32>, vector<32x32xf32>, vector<8x32xf32> -> vector<8x32xf32>
    %896 = vector.broadcast %885 : vector<1x32xf32> to vector<8x32xf32>
    %897 = arith.addf %895, %896 : vector<8x32xf32>
    %cst_469 = arith.constant dense<0.000000e+00> : vector<16x32xf32>
    %898 = tpu.matmul %894, %887, %cst_469 {dimension_numbers = #tpu.dot_dimension_numbers<[1], [0], [0], [1], [0, 0, 1, 1], [], []>} : vector<16x32xf32>, vector<32x32xf32>, vector<16x32xf32> -> vector<16x32xf32>
    %899 = vector.broadcast %889 : vector<1x32xf32> to vector<16x32xf32>
    %900 = arith.addf %898, %899 : vector<16x32xf32>
    %cst_470 = arith.constant 0.000000e+00 : f32
    %901 = vector.broadcast %cst_470 : f32 to vector<8x32xf32>
    %902 = vector.broadcast %891 : vector<1x32xf32> to vector<8x32xf32>
    %903 = arith.addf %901, %902 : vector<8x32xf32>
    %904 = vector.broadcast %7 : vector<1x32xf32> to vector<8x32xf32>
    %905 = arith.mulf %897, %904 : vector<8x32xf32>
    %cst_471 = arith.constant dense<0.000000e+00> : vector<8x16xf32>
    %906 = tpu.matmul %905, %900, %cst_471 {dimension_numbers = #tpu.dot_dimension_numbers<[1], [1], [0], [0], [0, 0, 1, 0], [], []>} : vector<8x32xf32>, vector<16x32xf32>, vector<8x16xf32> -> vector<8x16xf32>
    %907 = arith.addf %906, %892 : vector<8x16xf32>
    %cst_472 = arith.constant dense<0xFF800000> : vector<8xf32>
    %908 = vector.multi_reduction <maximumf>, %907, %cst_472 [1] : vector<8x16xf32> to vector<8xf32>
    %909 = vector.shape_cast %908 : vector<8xf32> to vector<8x1xf32>
    %910 = vector.broadcast %909 : vector<8x1xf32> to vector<8x16xf32>
    %911 = arith.subf %907, %910 : vector<8x16xf32>
    %912 = math.exp %911 : vector<8x16xf32>
    %cst_473 = arith.constant dense<0.000000e+00> : vector<8xf32>
    %913 = vector.multi_reduction <add>, %912, %cst_473 [1] : vector<8x16xf32> to vector<8xf32>
    %914 = vector.shape_cast %913 : vector<8xf32> to vector<8x1xf32>
    %915 = tpu.reciprocal %914 {approx = true} : vector<8x1xf32> -> vector<8x1xf32>
    %916 = vector.broadcast %915 : vector<8x1xf32> to vector<8x16xf32>
    %917 = arith.mulf %912, %916 : vector<8x16xf32>
    %c1_474 = arith.constant 1 : index
    %c0_475 = arith.constant 0 : index
    %c0_476 = arith.constant 0 : index
    %c0_477 = arith.constant 0 : index
    %918 = vector.load %arg31[%c1_474, %c0_475, %c0_476, %c0_477] : memref<2x4x32x32xf32, #tpu.memory_space<vmem>>, vector<1x1x32x32xf32>
    %919 = vector.shape_cast %918 : vector<1x1x32x32xf32> to vector<32x32xf32>
    %cst_478 = arith.constant dense<0.000000e+00> : vector<16x32xf32>
    %920 = tpu.matmul %894, %919, %cst_478 {dimension_numbers = #tpu.dot_dimension_numbers<[1], [0], [0], [1], [0, 0, 1, 1], [], []>} : vector<16x32xf32>, vector<32x32xf32>, vector<16x32xf32> -> vector<16x32xf32>
    %cst_479 = arith.constant dense<0.000000e+00> : vector<8x32xf32>
    %921 = tpu.matmul %917, %920, %cst_479 {dimension_numbers = #tpu.dot_dimension_numbers<[1], [0], [0], [1], [0, 0, 1, 1], [], []>} : vector<8x16xf32>, vector<16x32xf32>, vector<8x32xf32> -> vector<8x32xf32>
    %922 = arith.addf %903, %921 : vector<8x32xf32>
    %923 = vector.broadcast %14 : vector<1x32xf32> to vector<8x32xf32>
    %924 = arith.mulf %897, %923 : vector<8x32xf32>
    %cst_480 = arith.constant dense<0.000000e+00> : vector<8x16xf32>
    %925 = tpu.matmul %924, %900, %cst_480 {dimension_numbers = #tpu.dot_dimension_numbers<[1], [1], [0], [0], [0, 0, 1, 0], [], []>} : vector<8x32xf32>, vector<16x32xf32>, vector<8x16xf32> -> vector<8x16xf32>
    %926 = arith.addf %925, %892 : vector<8x16xf32>
    %cst_481 = arith.constant dense<0xFF800000> : vector<8xf32>
    %927 = vector.multi_reduction <maximumf>, %926, %cst_481 [1] : vector<8x16xf32> to vector<8xf32>
    %928 = vector.shape_cast %927 : vector<8xf32> to vector<8x1xf32>
    %929 = vector.broadcast %928 : vector<8x1xf32> to vector<8x16xf32>
    %930 = arith.subf %926, %929 : vector<8x16xf32>
    %931 = math.exp %930 : vector<8x16xf32>
    %cst_482 = arith.constant dense<0.000000e+00> : vector<8xf32>
    %932 = vector.multi_reduction <add>, %931, %cst_482 [1] : vector<8x16xf32> to vector<8xf32>
    %933 = vector.shape_cast %932 : vector<8xf32> to vector<8x1xf32>
    %934 = tpu.reciprocal %933 {approx = true} : vector<8x1xf32> -> vector<8x1xf32>
    %935 = vector.broadcast %934 : vector<8x1xf32> to vector<8x16xf32>
    %936 = arith.mulf %931, %935 : vector<8x16xf32>
    %c1_483 = arith.constant 1 : index
    %c1_484 = arith.constant 1 : index
    %c0_485 = arith.constant 0 : index
    %c0_486 = arith.constant 0 : index
    %937 = vector.load %arg31[%c1_483, %c1_484, %c0_485, %c0_486] : memref<2x4x32x32xf32, #tpu.memory_space<vmem>>, vector<1x1x32x32xf32>
    %938 = vector.shape_cast %937 : vector<1x1x32x32xf32> to vector<32x32xf32>
    %cst_487 = arith.constant dense<0.000000e+00> : vector<16x32xf32>
    %939 = tpu.matmul %894, %938, %cst_487 {dimension_numbers = #tpu.dot_dimension_numbers<[1], [0], [0], [1], [0, 0, 1, 1], [], []>} : vector<16x32xf32>, vector<32x32xf32>, vector<16x32xf32> -> vector<16x32xf32>
    %cst_488 = arith.constant dense<0.000000e+00> : vector<8x32xf32>
    %940 = tpu.matmul %936, %939, %cst_488 {dimension_numbers = #tpu.dot_dimension_numbers<[1], [0], [0], [1], [0, 0, 1, 1], [], []>} : vector<8x16xf32>, vector<16x32xf32>, vector<8x32xf32> -> vector<8x32xf32>
    %941 = arith.addf %922, %940 : vector<8x32xf32>
    %942 = vector.broadcast %21 : vector<1x32xf32> to vector<8x32xf32>
    %943 = arith.mulf %897, %942 : vector<8x32xf32>
    %cst_489 = arith.constant dense<0.000000e+00> : vector<8x16xf32>
    %944 = tpu.matmul %943, %900, %cst_489 {dimension_numbers = #tpu.dot_dimension_numbers<[1], [1], [0], [0], [0, 0, 1, 0], [], []>} : vector<8x32xf32>, vector<16x32xf32>, vector<8x16xf32> -> vector<8x16xf32>
    %945 = arith.addf %944, %892 : vector<8x16xf32>
    %cst_490 = arith.constant dense<0xFF800000> : vector<8xf32>
    %946 = vector.multi_reduction <maximumf>, %945, %cst_490 [1] : vector<8x16xf32> to vector<8xf32>
    %947 = vector.shape_cast %946 : vector<8xf32> to vector<8x1xf32>
    %948 = vector.broadcast %947 : vector<8x1xf32> to vector<8x16xf32>
    %949 = arith.subf %945, %948 : vector<8x16xf32>
    %950 = math.exp %949 : vector<8x16xf32>
    %cst_491 = arith.constant dense<0.000000e+00> : vector<8xf32>
    %951 = vector.multi_reduction <add>, %950, %cst_491 [1] : vector<8x16xf32> to vector<8xf32>
    %952 = vector.shape_cast %951 : vector<8xf32> to vector<8x1xf32>
    %953 = tpu.reciprocal %952 {approx = true} : vector<8x1xf32> -> vector<8x1xf32>
    %954 = vector.broadcast %953 : vector<8x1xf32> to vector<8x16xf32>
    %955 = arith.mulf %950, %954 : vector<8x16xf32>
    %c1_492 = arith.constant 1 : index
    %c2_493 = arith.constant 2 : index
    %c0_494 = arith.constant 0 : index
    %c0_495 = arith.constant 0 : index
    %956 = vector.load %arg31[%c1_492, %c2_493, %c0_494, %c0_495] : memref<2x4x32x32xf32, #tpu.memory_space<vmem>>, vector<1x1x32x32xf32>
    %957 = vector.shape_cast %956 : vector<1x1x32x32xf32> to vector<32x32xf32>
    %cst_496 = arith.constant dense<0.000000e+00> : vector<16x32xf32>
    %958 = tpu.matmul %894, %957, %cst_496 {dimension_numbers = #tpu.dot_dimension_numbers<[1], [0], [0], [1], [0, 0, 1, 1], [], []>} : vector<16x32xf32>, vector<32x32xf32>, vector<16x32xf32> -> vector<16x32xf32>
    %cst_497 = arith.constant dense<0.000000e+00> : vector<8x32xf32>
    %959 = tpu.matmul %955, %958, %cst_497 {dimension_numbers = #tpu.dot_dimension_numbers<[1], [0], [0], [1], [0, 0, 1, 1], [], []>} : vector<8x16xf32>, vector<16x32xf32>, vector<8x32xf32> -> vector<8x32xf32>
    %960 = arith.addf %941, %959 : vector<8x32xf32>
    %961 = vector.broadcast %28 : vector<1x32xf32> to vector<8x32xf32>
    %962 = arith.mulf %897, %961 : vector<8x32xf32>
    %cst_498 = arith.constant dense<0.000000e+00> : vector<8x16xf32>
    %963 = tpu.matmul %962, %900, %cst_498 {dimension_numbers = #tpu.dot_dimension_numbers<[1], [1], [0], [0], [0, 0, 1, 0], [], []>} : vector<8x32xf32>, vector<16x32xf32>, vector<8x16xf32> -> vector<8x16xf32>
    %964 = arith.addf %963, %892 : vector<8x16xf32>
    %cst_499 = arith.constant dense<0xFF800000> : vector<8xf32>
    %965 = vector.multi_reduction <maximumf>, %964, %cst_499 [1] : vector<8x16xf32> to vector<8xf32>
    %966 = vector.shape_cast %965 : vector<8xf32> to vector<8x1xf32>
    %967 = vector.broadcast %966 : vector<8x1xf32> to vector<8x16xf32>
    %968 = arith.subf %964, %967 : vector<8x16xf32>
    %969 = math.exp %968 : vector<8x16xf32>
    %cst_500 = arith.constant dense<0.000000e+00> : vector<8xf32>
    %970 = vector.multi_reduction <add>, %969, %cst_500 [1] : vector<8x16xf32> to vector<8xf32>
    %971 = vector.shape_cast %970 : vector<8xf32> to vector<8x1xf32>
    %972 = tpu.reciprocal %971 {approx = true} : vector<8x1xf32> -> vector<8x1xf32>
    %973 = vector.broadcast %972 : vector<8x1xf32> to vector<8x16xf32>
    %974 = arith.mulf %969, %973 : vector<8x16xf32>
    %c1_501 = arith.constant 1 : index
    %c3_502 = arith.constant 3 : index
    %c0_503 = arith.constant 0 : index
    %c0_504 = arith.constant 0 : index
    %975 = vector.load %arg31[%c1_501, %c3_502, %c0_503, %c0_504] : memref<2x4x32x32xf32, #tpu.memory_space<vmem>>, vector<1x1x32x32xf32>
    %976 = vector.shape_cast %975 : vector<1x1x32x32xf32> to vector<32x32xf32>
    %cst_505 = arith.constant dense<0.000000e+00> : vector<16x32xf32>
    %977 = tpu.matmul %894, %976, %cst_505 {dimension_numbers = #tpu.dot_dimension_numbers<[1], [0], [0], [1], [0, 0, 1, 1], [], []>} : vector<16x32xf32>, vector<32x32xf32>, vector<16x32xf32> -> vector<16x32xf32>
    %cst_506 = arith.constant dense<0.000000e+00> : vector<8x32xf32>
    %978 = tpu.matmul %974, %977, %cst_506 {dimension_numbers = #tpu.dot_dimension_numbers<[1], [0], [0], [1], [0, 0, 1, 1], [], []>} : vector<8x16xf32>, vector<16x32xf32>, vector<8x32xf32> -> vector<8x32xf32>
    %979 = arith.addf %960, %978 : vector<8x32xf32>
    %980 = vector.shape_cast %979 : vector<8x32xf32> to vector<2x4x32xf32>
    %c0_507 = arith.constant 0 : index
    %c0_508 = arith.constant 0 : index
    %981 = vector.load %arg33[%c0_507, %c0_508] : memref<256x3xf32, #tpu.memory_space<vmem>>, vector<256x3xf32>
    %c0_509 = arith.constant 0 : index
    %c0_510 = arith.constant 0 : index
    %982 = vector.load %arg34[%c0_509, %c0_510] : memref<128x3xf32, #tpu.memory_space<vmem>>, vector<128x3xf32>
    %cst_511 = arith.constant 0.000000e+00 : f32
    %983 = vector.broadcast %cst_511 : f32 to vector<2x3xf32>
    %c0_512 = arith.constant 0 : index
    %c0_513 = arith.constant 0 : index
    %984 = vector.load %arg35[%c0_512, %c0_513] : memref<1x3xf32, #tpu.memory_space<vmem>>, vector<1x3xf32>
    %985 = vector.broadcast %984 : vector<1x3xf32> to vector<2x3xf32>
    %986 = arith.addf %983, %985 : vector<2x3xf32>
    %987 = vector.extract_strided_slice %881 {offsets = [0, 0, 0], sizes = [2, 1, 32], strides = [1, 1, 1]} : vector<2x8x32xf32> to vector<2x1x32xf32>
    %988 = vector.shape_cast %987 : vector<2x1x32xf32> to vector<2x32xf32>
    %989 = vector.extract_strided_slice %981 {offsets = [0, 0], sizes = [32, 3], strides = [1, 1]} : vector<256x3xf32> to vector<32x3xf32>
    %cst_514 = arith.constant dense<0.000000e+00> : vector<2x3xf32>
    %990 = tpu.matmul %988, %989, %cst_514 {dimension_numbers = #tpu.dot_dimension_numbers<[1], [0], [0], [1], [0, 0, 1, 1], [], []>} : vector<2x32xf32>, vector<32x3xf32>, vector<2x3xf32> -> vector<2x3xf32>
    %991 = arith.addf %986, %990 : vector<2x3xf32>
    %992 = vector.extract_strided_slice %881 {offsets = [0, 1, 0], sizes = [2, 1, 32], strides = [1, 1, 1]} : vector<2x8x32xf32> to vector<2x1x32xf32>
    %993 = vector.shape_cast %992 : vector<2x1x32xf32> to vector<2x32xf32>
    %994 = vector.extract_strided_slice %981 {offsets = [32, 0], sizes = [32, 3], strides = [1, 1]} : vector<256x3xf32> to vector<32x3xf32>
    %cst_515 = arith.constant dense<0.000000e+00> : vector<2x3xf32>
    %995 = tpu.matmul %993, %994, %cst_515 {dimension_numbers = #tpu.dot_dimension_numbers<[1], [0], [0], [1], [0, 0, 1, 1], [], []>} : vector<2x32xf32>, vector<32x3xf32>, vector<2x3xf32> -> vector<2x3xf32>
    %996 = arith.addf %991, %995 : vector<2x3xf32>
    %997 = vector.extract_strided_slice %881 {offsets = [0, 2, 0], sizes = [2, 1, 32], strides = [1, 1, 1]} : vector<2x8x32xf32> to vector<2x1x32xf32>
    %998 = vector.shape_cast %997 : vector<2x1x32xf32> to vector<2x32xf32>
    %999 = vector.extract_strided_slice %981 {offsets = [64, 0], sizes = [32, 3], strides = [1, 1]} : vector<256x3xf32> to vector<32x3xf32>
    %cst_516 = arith.constant dense<0.000000e+00> : vector<2x3xf32>
    %1000 = tpu.matmul %998, %999, %cst_516 {dimension_numbers = #tpu.dot_dimension_numbers<[1], [0], [0], [1], [0, 0, 1, 1], [], []>} : vector<2x32xf32>, vector<32x3xf32>, vector<2x3xf32> -> vector<2x3xf32>
    %1001 = arith.addf %996, %1000 : vector<2x3xf32>
    %1002 = vector.extract_strided_slice %881 {offsets = [0, 3, 0], sizes = [2, 1, 32], strides = [1, 1, 1]} : vector<2x8x32xf32> to vector<2x1x32xf32>
    %1003 = vector.shape_cast %1002 : vector<2x1x32xf32> to vector<2x32xf32>
    %1004 = vector.extract_strided_slice %981 {offsets = [96, 0], sizes = [32, 3], strides = [1, 1]} : vector<256x3xf32> to vector<32x3xf32>
    %cst_517 = arith.constant dense<0.000000e+00> : vector<2x3xf32>
    %1005 = tpu.matmul %1003, %1004, %cst_517 {dimension_numbers = #tpu.dot_dimension_numbers<[1], [0], [0], [1], [0, 0, 1, 1], [], []>} : vector<2x32xf32>, vector<32x3xf32>, vector<2x3xf32> -> vector<2x3xf32>
    %1006 = arith.addf %1001, %1005 : vector<2x3xf32>
    %1007 = vector.extract_strided_slice %881 {offsets = [0, 4, 0], sizes = [2, 1, 32], strides = [1, 1, 1]} : vector<2x8x32xf32> to vector<2x1x32xf32>
    %1008 = vector.shape_cast %1007 : vector<2x1x32xf32> to vector<2x32xf32>
    %1009 = vector.extract_strided_slice %981 {offsets = [128, 0], sizes = [32, 3], strides = [1, 1]} : vector<256x3xf32> to vector<32x3xf32>
    %cst_518 = arith.constant dense<0.000000e+00> : vector<2x3xf32>
    %1010 = tpu.matmul %1008, %1009, %cst_518 {dimension_numbers = #tpu.dot_dimension_numbers<[1], [0], [0], [1], [0, 0, 1, 1], [], []>} : vector<2x32xf32>, vector<32x3xf32>, vector<2x3xf32> -> vector<2x3xf32>
    %1011 = arith.addf %1006, %1010 : vector<2x3xf32>
    %1012 = vector.extract_strided_slice %881 {offsets = [0, 5, 0], sizes = [2, 1, 32], strides = [1, 1, 1]} : vector<2x8x32xf32> to vector<2x1x32xf32>
    %1013 = vector.shape_cast %1012 : vector<2x1x32xf32> to vector<2x32xf32>
    %1014 = vector.extract_strided_slice %981 {offsets = [160, 0], sizes = [32, 3], strides = [1, 1]} : vector<256x3xf32> to vector<32x3xf32>
    %cst_519 = arith.constant dense<0.000000e+00> : vector<2x3xf32>
    %1015 = tpu.matmul %1013, %1014, %cst_519 {dimension_numbers = #tpu.dot_dimension_numbers<[1], [0], [0], [1], [0, 0, 1, 1], [], []>} : vector<2x32xf32>, vector<32x3xf32>, vector<2x3xf32> -> vector<2x3xf32>
    %1016 = arith.addf %1011, %1015 : vector<2x3xf32>
    %1017 = vector.extract_strided_slice %881 {offsets = [0, 6, 0], sizes = [2, 1, 32], strides = [1, 1, 1]} : vector<2x8x32xf32> to vector<2x1x32xf32>
    %1018 = vector.shape_cast %1017 : vector<2x1x32xf32> to vector<2x32xf32>
    %1019 = vector.extract_strided_slice %981 {offsets = [192, 0], sizes = [32, 3], strides = [1, 1]} : vector<256x3xf32> to vector<32x3xf32>
    %cst_520 = arith.constant dense<0.000000e+00> : vector<2x3xf32>
    %1020 = tpu.matmul %1018, %1019, %cst_520 {dimension_numbers = #tpu.dot_dimension_numbers<[1], [0], [0], [1], [0, 0, 1, 1], [], []>} : vector<2x32xf32>, vector<32x3xf32>, vector<2x3xf32> -> vector<2x3xf32>
    %1021 = arith.addf %1016, %1020 : vector<2x3xf32>
    %1022 = vector.extract_strided_slice %881 {offsets = [0, 7, 0], sizes = [2, 1, 32], strides = [1, 1, 1]} : vector<2x8x32xf32> to vector<2x1x32xf32>
    %1023 = vector.shape_cast %1022 : vector<2x1x32xf32> to vector<2x32xf32>
    %1024 = vector.extract_strided_slice %981 {offsets = [224, 0], sizes = [32, 3], strides = [1, 1]} : vector<256x3xf32> to vector<32x3xf32>
    %cst_521 = arith.constant dense<0.000000e+00> : vector<2x3xf32>
    %1025 = tpu.matmul %1023, %1024, %cst_521 {dimension_numbers = #tpu.dot_dimension_numbers<[1], [0], [0], [1], [0, 0, 1, 1], [], []>} : vector<2x32xf32>, vector<32x3xf32>, vector<2x3xf32> -> vector<2x3xf32>
    %1026 = arith.addf %1021, %1025 : vector<2x3xf32>
    %1027 = vector.extract_strided_slice %980 {offsets = [0, 0, 0], sizes = [2, 1, 32], strides = [1, 1, 1]} : vector<2x4x32xf32> to vector<2x1x32xf32>
    %1028 = vector.shape_cast %1027 : vector<2x1x32xf32> to vector<2x32xf32>
    %1029 = vector.extract_strided_slice %982 {offsets = [0, 0], sizes = [32, 3], strides = [1, 1]} : vector<128x3xf32> to vector<32x3xf32>
    %cst_522 = arith.constant dense<0.000000e+00> : vector<2x3xf32>
    %1030 = tpu.matmul %1028, %1029, %cst_522 {dimension_numbers = #tpu.dot_dimension_numbers<[1], [0], [0], [1], [0, 0, 1, 1], [], []>} : vector<2x32xf32>, vector<32x3xf32>, vector<2x3xf32> -> vector<2x3xf32>
    %1031 = arith.addf %1026, %1030 : vector<2x3xf32>
    %1032 = vector.extract_strided_slice %980 {offsets = [0, 1, 0], sizes = [2, 1, 32], strides = [1, 1, 1]} : vector<2x4x32xf32> to vector<2x1x32xf32>
    %1033 = vector.shape_cast %1032 : vector<2x1x32xf32> to vector<2x32xf32>
    %1034 = vector.extract_strided_slice %982 {offsets = [32, 0], sizes = [32, 3], strides = [1, 1]} : vector<128x3xf32> to vector<32x3xf32>
    %cst_523 = arith.constant dense<0.000000e+00> : vector<2x3xf32>
    %1035 = tpu.matmul %1033, %1034, %cst_523 {dimension_numbers = #tpu.dot_dimension_numbers<[1], [0], [0], [1], [0, 0, 1, 1], [], []>} : vector<2x32xf32>, vector<32x3xf32>, vector<2x3xf32> -> vector<2x3xf32>
    %1036 = arith.addf %1031, %1035 : vector<2x3xf32>
    %1037 = vector.extract_strided_slice %980 {offsets = [0, 2, 0], sizes = [2, 1, 32], strides = [1, 1, 1]} : vector<2x4x32xf32> to vector<2x1x32xf32>
    %1038 = vector.shape_cast %1037 : vector<2x1x32xf32> to vector<2x32xf32>
    %1039 = vector.extract_strided_slice %982 {offsets = [64, 0], sizes = [32, 3], strides = [1, 1]} : vector<128x3xf32> to vector<32x3xf32>
    %cst_524 = arith.constant dense<0.000000e+00> : vector<2x3xf32>
    %1040 = tpu.matmul %1038, %1039, %cst_524 {dimension_numbers = #tpu.dot_dimension_numbers<[1], [0], [0], [1], [0, 0, 1, 1], [], []>} : vector<2x32xf32>, vector<32x3xf32>, vector<2x3xf32> -> vector<2x3xf32>
    %1041 = arith.addf %1036, %1040 : vector<2x3xf32>
    %1042 = vector.extract_strided_slice %980 {offsets = [0, 3, 0], sizes = [2, 1, 32], strides = [1, 1, 1]} : vector<2x4x32xf32> to vector<2x1x32xf32>
    %1043 = vector.shape_cast %1042 : vector<2x1x32xf32> to vector<2x32xf32>
    %1044 = vector.extract_strided_slice %982 {offsets = [96, 0], sizes = [32, 3], strides = [1, 1]} : vector<128x3xf32> to vector<32x3xf32>
    %cst_525 = arith.constant dense<0.000000e+00> : vector<2x3xf32>
    %1045 = tpu.matmul %1043, %1044, %cst_525 {dimension_numbers = #tpu.dot_dimension_numbers<[1], [0], [0], [1], [0, 0, 1, 1], [], []>} : vector<2x32xf32>, vector<32x3xf32>, vector<2x3xf32> -> vector<2x3xf32>
    %1046 = arith.addf %1041, %1045 : vector<2x3xf32>
    %c0_526 = arith.constant 0 : index
    %c0_527 = arith.constant 0 : index
    %1047 = vector.load %arg36[%c0_526, %c0_527] : memref<2x3xf32, #tpu.memory_space<vmem>>, vector<2x3xf32>
    tpu.vector_store %arg36[%c0_526, %c0_527], %1046 {strides = array<i32>} : memref<2x3xf32, #tpu.memory_space<vmem>>, vector<2x3xf32>,
    return
  }
  func.func @transform_0(%arg0: i32) -> (i32, i32, i32) {
    %c0_i32 = arith.constant 0 : i32
    %c0_i32_0 = arith.constant 0 : i32
    %c0_i32_1 = arith.constant 0 : i32
    return %arg0, %c0_i32, %c0_i32_0 : i32, i32, i32
  }
  func.func @transform_1(%arg0: i32) -> (i32, i32) {
    %c0_i32 = arith.constant 0 : i32
    %c0_i32_0 = arith.constant 0 : i32
    %c0_i32_1 = arith.constant 0 : i32
    return %c0_i32, %c0_i32_0 : i32, i32
  }
  func.func @transform_2(%arg0: i32) -> (i32, i32) {
    %c0_i32 = arith.constant 0 : i32
    %c0_i32_0 = arith.constant 0 : i32
    %c0_i32_1 = arith.constant 0 : i32
    return %c0_i32, %c0_i32_0 : i32, i32
  }
  func.func @transform_3(%arg0: i32) -> (i32, i32) {
    %c0_i32 = arith.constant 0 : i32
    %c0_i32_0 = arith.constant 0 : i32
    %c0_i32_1 = arith.constant 0 : i32
    return %c0_i32, %c0_i32_0 : i32, i32
  }
  func.func @transform_4(%arg0: i32) -> (i32, i32) {
    %c0_i32 = arith.constant 0 : i32
    %c0_i32_0 = arith.constant 0 : i32
    %c0_i32_1 = arith.constant 0 : i32
    return %c0_i32, %c0_i32_0 : i32, i32
  }
  func.func @transform_5(%arg0: i32) -> (i32, i32) {
    %c0_i32 = arith.constant 0 : i32
    %c0_i32_0 = arith.constant 0 : i32
    %c0_i32_1 = arith.constant 0 : i32
    return %c0_i32, %c0_i32_0 : i32, i32
  }
  func.func @transform_6(%arg0: i32) -> (i32, i32) {
    %c0_i32 = arith.constant 0 : i32
    %c0_i32_0 = arith.constant 0 : i32
    %c0_i32_1 = arith.constant 0 : i32
    return %c0_i32, %c0_i32_0 : i32, i32
  }
  func.func @transform_7(%arg0: i32) -> (i32, i32) {
    %c0_i32 = arith.constant 0 : i32
    %c0_i32_0 = arith.constant 0 : i32
    %c0_i32_1 = arith.constant 0 : i32
    return %c0_i32, %c0_i32_0 : i32, i32
  }
  func.func @transform_8(%arg0: i32) -> (i32, i32) {
    %c0_i32 = arith.constant 0 : i32
    %c0_i32_0 = arith.constant 0 : i32
    %c0_i32_1 = arith.constant 0 : i32
    return %c0_i32, %c0_i32_0 : i32, i32
  }
  func.func @transform_9(%arg0: i32) -> (i32, i32) {
    %c0_i32 = arith.constant 0 : i32
    %c0_i32_0 = arith.constant 0 : i32
    %c0_i32_1 = arith.constant 0 : i32
    return %c0_i32, %c0_i32_0 : i32, i32
  }
  func.func @transform_10(%arg0: i32) -> (i32, i32) {
    %c0_i32 = arith.constant 0 : i32
    %c0_i32_0 = arith.constant 0 : i32
    %c0_i32_1 = arith.constant 0 : i32
    return %c0_i32, %c0_i32_0 : i32, i32
  }
  func.func @transform_11(%arg0: i32) -> (i32, i32) {
    %c0_i32 = arith.constant 0 : i32
    %c0_i32_0 = arith.constant 0 : i32
    %c0_i32_1 = arith.constant 0 : i32
    return %c0_i32, %c0_i32_0 : i32, i32
  }
  func.func @transform_12(%arg0: i32) -> (i32, i32, i32) {
    %c0_i32 = arith.constant 0 : i32
    %c0_i32_0 = arith.constant 0 : i32
    %c0_i32_1 = arith.constant 0 : i32
    %c0_i32_2 = arith.constant 0 : i32
    return %c0_i32, %c0_i32_0, %c0_i32_1 : i32, i32, i32
  }
  func.func @transform_13(%arg0: i32) -> (i32, i32, i32) {
    %c0_i32 = arith.constant 0 : i32
    %c0_i32_0 = arith.constant 0 : i32
    %c0_i32_1 = arith.constant 0 : i32
    %c0_i32_2 = arith.constant 0 : i32
    return %c0_i32, %c0_i32_0, %c0_i32_1 : i32, i32, i32
  }
  func.func @transform_14(%arg0: i32) -> (i32, i32, i32) {
    %c0_i32 = arith.constant 0 : i32
    %c0_i32_0 = arith.constant 0 : i32
    %c0_i32_1 = arith.constant 0 : i32
    %c0_i32_2 = arith.constant 0 : i32
    return %c0_i32, %c0_i32_0, %c0_i32_1 : i32, i32, i32
  }
  func.func @transform_15(%arg0: i32) -> (i32, i32, i32) {
    %c0_i32 = arith.constant 0 : i32
    %c0_i32_0 = arith.constant 0 : i32
    %c0_i32_1 = arith.constant 0 : i32
    %c0_i32_2 = arith.constant 0 : i32
    return %c0_i32, %c0_i32_0, %c0_i32_1 : i32, i32, i32
  }
  func.func @transform_16(%arg0: i32) -> (i32, i32, i32, i32) {
    %c0_i32 = arith.constant 0 : i32
    %c0_i32_0 = arith.constant 0 : i32
    %c0_i32_1 = arith.constant 0 : i32
    %c0_i32_2 = arith.constant 0 : i32
    %c0_i32_3 = arith.constant 0 : i32
    return %c0_i32, %c0_i32_0, %c0_i32_1, %c0_i32_2 : i32, i32, i32, i32
  }
  func.func @transform_17(%arg0: i32) -> (i32, i32, i32) {
    %c0_i32 = arith.constant 0 : i32
    %c0_i32_0 = arith.constant 0 : i32
    %c0_i32_1 = arith.constant 0 : i32
    %c0_i32_2 = arith.constant 0 : i32
    return %c0_i32, %c0_i32_0, %c0_i32_1 : i32, i32, i32
  }
  func.func @transform_18(%arg0: i32) -> (i32, i32, i32) {
    %c0_i32 = arith.constant 0 : i32
    %c0_i32_0 = arith.constant 0 : i32
    %c0_i32_1 = arith.constant 0 : i32
    %c0_i32_2 = arith.constant 0 : i32
    return %c0_i32, %c0_i32_0, %c0_i32_1 : i32, i32, i32
  }
  func.func @transform_19(%arg0: i32) -> (i32, i32, i32) {
    %c0_i32 = arith.constant 0 : i32
    %c0_i32_0 = arith.constant 0 : i32
    %c0_i32_1 = arith.constant 0 : i32
    %c0_i32_2 = arith.constant 0 : i32
    return %c0_i32, %c0_i32_0, %c0_i32_1 : i32, i32, i32
  }
  func.func @transform_20(%arg0: i32) -> (i32, i32, i32) {
    %c0_i32 = arith.constant 0 : i32
    %c0_i32_0 = arith.constant 0 : i32
    %c0_i32_1 = arith.constant 0 : i32
    %c0_i32_2 = arith.constant 0 : i32
    return %c0_i32, %c0_i32_0, %c0_i32_1 : i32, i32, i32
  }
  func.func @transform_21(%arg0: i32) -> (i32, i32, i32) {
    %c0_i32 = arith.constant 0 : i32
    %c0_i32_0 = arith.constant 0 : i32
    %c0_i32_1 = arith.constant 0 : i32
    %c0_i32_2 = arith.constant 0 : i32
    return %c0_i32, %c0_i32_0, %c0_i32_1 : i32, i32, i32
  }
  func.func @transform_22(%arg0: i32) -> (i32, i32, i32) {
    %c0_i32 = arith.constant 0 : i32
    %c0_i32_0 = arith.constant 0 : i32
    %c0_i32_1 = arith.constant 0 : i32
    %c0_i32_2 = arith.constant 0 : i32
    return %c0_i32, %c0_i32_0, %c0_i32_1 : i32, i32, i32
  }
  func.func @transform_23(%arg0: i32) -> (i32, i32, i32) {
    %c0_i32 = arith.constant 0 : i32
    %c0_i32_0 = arith.constant 0 : i32
    %c0_i32_1 = arith.constant 0 : i32
    %c0_i32_2 = arith.constant 0 : i32
    return %c0_i32, %c0_i32_0, %c0_i32_1 : i32, i32, i32
  }
  func.func @transform_24(%arg0: i32) -> (i32, i32, i32) {
    %c0_i32 = arith.constant 0 : i32
    %c0_i32_0 = arith.constant 0 : i32
    %c0_i32_1 = arith.constant 0 : i32
    %c0_i32_2 = arith.constant 0 : i32
    return %c0_i32, %c0_i32_0, %c0_i32_1 : i32, i32, i32
  }
  func.func @transform_25(%arg0: i32) -> (i32, i32, i32) {
    %c0_i32 = arith.constant 0 : i32
    %c0_i32_0 = arith.constant 0 : i32
    %c0_i32_1 = arith.constant 0 : i32
    %c0_i32_2 = arith.constant 0 : i32
    return %c0_i32, %c0_i32_0, %c0_i32_1 : i32, i32, i32
  }
  func.func @transform_26(%arg0: i32) -> (i32, i32, i32) {
    %c0_i32 = arith.constant 0 : i32
    %c0_i32_0 = arith.constant 0 : i32
    %c0_i32_1 = arith.constant 0 : i32
    %c0_i32_2 = arith.constant 0 : i32
    return %c0_i32, %c0_i32_0, %c0_i32_1 : i32, i32, i32
  }
  func.func @transform_27(%arg0: i32) -> (i32, i32, i32) {
    %c0_i32 = arith.constant 0 : i32
    %c0_i32_0 = arith.constant 0 : i32
    %c0_i32_1 = arith.constant 0 : i32
    %c0_i32_2 = arith.constant 0 : i32
    return %c0_i32, %c0_i32_0, %c0_i32_1 : i32, i32, i32
  }
  func.func @transform_28(%arg0: i32) -> (i32, i32, i32) {
    %c0_i32 = arith.constant 0 : i32
    %c0_i32_0 = arith.constant 0 : i32
    %c0_i32_1 = arith.constant 0 : i32
    %c0_i32_2 = arith.constant 0 : i32
    return %c0_i32, %c0_i32_0, %c0_i32_1 : i32, i32, i32
  }
  func.func @transform_29(%arg0: i32) -> (i32, i32, i32) {
    %c0_i32 = arith.constant 0 : i32
    %c0_i32_0 = arith.constant 0 : i32
    %c0_i32_1 = arith.constant 0 : i32
    %c0_i32_2 = arith.constant 0 : i32
    return %c0_i32, %c0_i32_0, %c0_i32_1 : i32, i32, i32
  }
  func.func @transform_30(%arg0: i32) -> (i32, i32, i32, i32) {
    %c0_i32 = arith.constant 0 : i32
    %c0_i32_0 = arith.constant 0 : i32
    %c0_i32_1 = arith.constant 0 : i32
    %c0_i32_2 = arith.constant 0 : i32
    %c0_i32_3 = arith.constant 0 : i32
    return %c0_i32, %c0_i32_0, %c0_i32_1, %c0_i32_2 : i32, i32, i32, i32
  }
  func.func @transform_31(%arg0: i32) -> (i32, i32, i32) {
    %c0_i32 = arith.constant 0 : i32
    %c0_i32_0 = arith.constant 0 : i32
    %c0_i32_1 = arith.constant 0 : i32
    %c0_i32_2 = arith.constant 0 : i32
    return %c0_i32, %c0_i32_0, %c0_i32_1 : i32, i32, i32
  }
  func.func @transform_32(%arg0: i32) -> (i32, i32) {
    %c0_i32 = arith.constant 0 : i32
    %c0_i32_0 = arith.constant 0 : i32
    %c0_i32_1 = arith.constant 0 : i32
    return %c0_i32, %c0_i32_0 : i32, i32
  }
  func.func @transform_33(%arg0: i32) -> (i32, i32) {
    %c0_i32 = arith.constant 0 : i32
    %c0_i32_0 = arith.constant 0 : i32
    %c0_i32_1 = arith.constant 0 : i32
    return %c0_i32, %c0_i32_0 : i32, i32
  }
  func.func @transform_34(%arg0: i32) -> (i32, i32) {
    %c0_i32 = arith.constant 0 : i32
    %c0_i32_0 = arith.constant 0 : i32
    %c0_i32_1 = arith.constant 0 : i32
    return %c0_i32, %c0_i32_0 : i32, i32
  }
  func.func @transform_35(%arg0: i32) -> (i32, i32) {
    %c0_i32 = arith.constant 0 : i32
    %c0_i32_0 = arith.constant 0 : i32
    return %arg0, %c0_i32 : i32, i32
  }
}

</mosaic_0001>

<llo_original>
// kernel: forward.1
$region0: #{forward.1}
  #allocation0 [shape = 'u32[]', space=smem, size = 0x4, offset = 0x4, fixed_abs, tag = 'smem constant byte address 0x4 - core index']
  #allocation1 [shape = 'u32[72,128]{1,0:T(1,128)}', space=vmem, size = 0x9000, scoped, tag = 'internal scratch']
  %s0 = inlined_call_operand.smem [shape: u32[36], index: -1, kind: input, shape index: {}]
  %s1 = sld [smem:[%s0]]
  %s2 = scalar_lea.smem %s0, 1
  %s3 = sld [smem:[%s2]]
  %s4 = scalar_lea.smem %s0, 2
  %s5 = sld [smem:[%s4]]
  %s6 = scalar_lea.smem %s0, 3
  %s7 = sld [smem:[%s6]]
  %s8 = scalar_lea.smem %s0, 4
  %s9 = sld [smem:[%s8]]
  %s10 = scalar_lea.smem %s0, 5
  %s11 = sld [smem:[%s10]]
  %s12 = scalar_lea.smem %s0, 6
  %s13 = sld [smem:[%s12]]
  %s14 = scalar_lea.smem %s0, 7
  %s15 = sld [smem:[%s14]]
  %s16 = scalar_lea.smem %s0, 8
  %s17 = sld [smem:[%s16]]
  %s18 = scalar_lea.smem %s0, 9
  %s19 = sld [smem:[%s18]]
  %s20 = scalar_lea.smem %s0, 10
  %s21 = sld [smem:[%s20]]
  %s22 = scalar_lea.smem %s0, 11
  %s23 = sld [smem:[%s22]]
  %s24 = scalar_lea.smem %s0, 12
  %s25 = sld [smem:[%s24]]
  %s26 = scalar_lea.smem %s0, 13
  %s27 = sld [smem:[%s26]]
  %s28 = scalar_lea.smem %s0, 14
  %s29 = sld [smem:[%s28]]
  %s30 = scalar_lea.smem %s0, 15
  %s31 = sld [smem:[%s30]]
  %s32 = scalar_lea.smem %s0, 16
  %s33 = sld [smem:[%s32]]
  %s34 = scalar_lea.smem %s0, 17
  %s35 = sld [smem:[%s34]]
  %s36 = scalar_lea.smem %s0, 18
  %s37 = sld [smem:[%s36]]
  %s38 = scalar_lea.smem %s0, 19
  %s39 = sld [smem:[%s38]]
  %s40 = scalar_lea.smem %s0, 20
  %s41 = sld [smem:[%s40]]
  %s42 = scalar_lea.smem %s0, 21
  %s43 = sld [smem:[%s42]]
  %s44 = scalar_lea.smem %s0, 22
  %s45 = sld [smem:[%s44]]
  %s46 = scalar_lea.smem %s0, 23
  %s47 = sld [smem:[%s46]]
  %s48 = scalar_lea.smem %s0, 24
  %s49 = sld [smem:[%s48]]
  %s50 = scalar_lea.smem %s0, 25
  %s51 = sld [smem:[%s50]]
  %s52 = scalar_lea.smem %s0, 26
  %s53 = sld [smem:[%s52]]
  %s54 = scalar_lea.smem %s0, 27
  %s55 = sld [smem:[%s54]]
  %s56 = scalar_lea.smem %s0, 28
  %s57 = sld [smem:[%s56]]
  %s58 = scalar_lea.smem %s0, 29
  %s59 = sld [smem:[%s58]]
  %s60 = scalar_lea.smem %s0, 30
  %s61 = sld [smem:[%s60]]
  %s62 = scalar_lea.smem %s0, 31
  %s63 = sld [smem:[%s62]]
  %s64 = scalar_lea.smem %s0, 32
  %s65 = sld [smem:[%s64]]
  %s66 = scalar_lea.smem %s0, 33
  %s67 = sld [smem:[%s66]]
  %s68 = scalar_lea.smem %s0, 34
  %s69 = sld [smem:[%s68]]
  %s70 = scalar_lea.smem %s0, 35
  %s71 = sld [smem:[%s70]]
  %s72 = sld [smem:[#allocation0]]
  $region214: #{forward.1} parent=0
    _
  %s74 = ssub.s32 1, %s72
  %s75 = scalar_select 0, %s74, %s72
  $region1: #{forward.1} parent=0
    #allocation2 [shape = 'u8[512]{0}', space=vmem, size = 0x400, scoped, tag = 'input window, operand 8, single buffered']
    #allocation3 [shape = 's32[1]{0}', space=sflag, size = 0x4, scoped, tag = 'scoped memory for forward.1']
    #allocation4 [shape = 's32[1]{0}', space=sflag, size = 0x4, scoped, tag = 'scoped memory for forward.1']
    #allocation5 [shape = 'u8[65536]{0}', space=vmem, size = 0x10000, scoped, tag = 'input window, operand 14, single buffered']
    #allocation6 [shape = 's32[1]{0}', space=sflag, size = 0x4, scoped, tag = 'scoped memory for forward.1']
    #allocation7 [shape = 'u8[2048]{0}', space=vmem, size = 0x800, scoped, tag = 'input window, operand 15, single buffered']
    #allocation8 [shape = 'u8[2048]{0}', space=vmem, size = 0x800, scoped, tag = 'input window, operand 17, single buffered']
    #allocation9 [shape = 's32[1]{0}', space=sflag, size = 0x4, scoped, tag = 'scoped memory for forward.1']
    #allocation10 [shape = 'u8[2048]{0}', space=vmem, size = 0x800, scoped, tag = 'input window, operand 18, single buffered']
    #allocation11 [shape = 'u8[2048]{0}', space=vmem, size = 0x800, scoped, tag = 'input window, operand 19, single buffered']
    #allocation12 [shape = 's32[1]{0}', space=sflag, size = 0x4, scoped, tag = 'scoped memory for forward.1']
    #allocation13 [shape = 'u8[65536]{0}', space=vmem, size = 0x10000, scoped, tag = 'input window, operand 20, single buffered']
    #allocation14 [shape = 'u8[2048]{0}', space=vmem, size = 0x800, scoped, tag = 'input window, operand 21, single buffered']
    #allocation15 [shape = 's32[1]{0}', space=sflag, size = 0x4, scoped, tag = 'scoped memory for forward.1']
    #allocation16 [shape = 'u8[2048]{0}', space=vmem, size = 0x800, scoped, tag = 'input window, operand 23, single buffered']
    #allocation17 [shape = 'u8[2048]{0}', space=vmem, size = 0x800, scoped, tag = 'input window, operand 24, single buffered']
    #allocation18 [shape = 's32[1]{0}', space=sflag, size = 0x4, scoped, tag = 'scoped memory for forward.1']
    #allocation19 [shape = 'u8[2048]{0}', space=vmem, size = 0x800, scoped, tag = 'input window, operand 25, single buffered']
    #allocation20 [shape = 'u8[32768]{0}', space=vmem, size = 0x8000, scoped, tag = 'input window, operand 28, single buffered']
    #allocation21 [shape = 's32[1]{0}', space=sflag, size = 0x4, scoped, tag = 'scoped memory for forward.1']
    #allocation22 [shape = 'u8[1024]{0}', space=vmem, size = 0x400, scoped, tag = 'input window, operand 29, single buffered']
    #allocation23 [shape = 'u8[131072]{0}', space=vmem, size = 0x20000, scoped, tag = 'input window, operand 30, single buffered']
    #allocation24 [shape = 's32[1]{0}', space=sflag, size = 0x4, scoped, tag = 'scoped memory for forward.1']
    #allocation25 [shape = 'u8[1024]{0}', space=vmem, size = 0x400, scoped, tag = 'input window, operand 31, single buffered']
    #allocation26 [shape = 'u8[512]{0}', space=vmem, size = 0x400, scoped, tag = 'input window, operand 34, single buffered']
    #allocation27 [shape = 's32[1]{0}', space=sflag, size = 0x4, scoped, tag = 'scoped memory for forward.1']
    #allocation28 [shape = 'u8[1024]{0}', space=vmem, size = 0x400, scoped, tag = 'output window, operand 0, single buffered']
    %76 = vsyncpa [#allocation3], 0
    %77 = vsyncpa [#allocation6], 0
    %78 = vsyncpa [#allocation9], 0
    %79 = vsyncpa [#allocation12], 0
    %80 = vsyncpa [#allocation15], 0
    %81 = vsyncpa [#allocation18], 0
    %82 = vsyncpa [#allocation21], 0
    %83 = vsyncpa [#allocation24], 0
    %84 = vsyncpa [#allocation27], 0
    %85 = vsyncpa [#allocation4], 0
    // Predicated region
    $region2: #{forward.1} parent=1 // pred_check
      _
    $region3: #{forward.1} parent=1 // pred_check_branch
      %87 = sbr.rel (0) target = $region5
    $region4: #{forward.1} parent=1 // pred_region
      _
    $region5: #{forward.1} parent=1 // pred_fallthru
      _
    // Predicated region
    $region6: #{forward.1} parent=1 // pred_check
      _
    $region7: #{forward.1} parent=1 // pred_check_branch
      %89 = sbr.rel (0) target = $region9
    $region8: #{forward.1} parent=1 // pred_region
      _
    $region9: #{forward.1} parent=1 // pred_fallthru
      _
    // Predicated region
    $region10: #{forward.1} parent=1 // pred_check
      _
    $region11: #{forward.1} parent=1 // pred_check_branch
      %91 = sbr.rel (0) target = $region13
    $region12: #{forward.1} parent=1 // pred_region
      _
    $region13: #{forward.1} parent=1 // pred_fallthru
      _
    // Predicated region
    $region14: #{forward.1} parent=1 // pred_check
      _
    $region15: #{forward.1} parent=1 // pred_check_branch
      %93 = sbr.rel (0) target = $region17
    $region16: #{forward.1} parent=1 // pred_region
      _
    $region17: #{forward.1} parent=1 // pred_fallthru
      _
    // Predicated region
    $region18: #{forward.1} parent=1 // pred_check
      _
    $region19: #{forward.1} parent=1 // pred_check_branch
      %95 = sbr.rel (0) target = $region21
    $region20: #{forward.1} parent=1 // pred_region
      _
    $region21: #{forward.1} parent=1 // pred_fallthru
      _
    // Predicated region
    $region22: #{forward.1} parent=1 // pred_check
      _
    $region23: #{forward.1} parent=1 // pred_check_branch
      %97 = sbr.rel (0) target = $region25
    $region24: #{forward.1} parent=1 // pred_region
      _
    $region25: #{forward.1} parent=1 // pred_fallthru
      _
    // Predicated region
    $region26: #{forward.1} parent=1 // pred_check
      _
    $region27: #{forward.1} parent=1 // pred_check_branch
      %99 = sbr.rel (0) target = $region29
    $region28: #{forward.1} parent=1 // pred_region
      _
    $region29: #{forward.1} parent=1 // pred_fallthru
      _
    // Predicated region
    $region30: #{forward.1} parent=1 // pred_check
      _
    $region31: #{forward.1} parent=1 // pred_check_branch
      %101 = sbr.rel (0) target = $region33
    $region32: #{forward.1} parent=1 // pred_region
      _
    $region33: #{forward.1} parent=1 // pred_fallthru
      _
    // Predicated region
    $region34: #{forward.1} parent=1 // pred_check
      _
    $region35: #{forward.1} parent=1 // pred_check_branch
      %103 = sbr.rel (0) target = $region37
    $region36: #{forward.1} parent=1 // pred_region
      %105 = vsyncadd [#allocation3], 0
      %s107 = sshll.u32 %s17, 4
      %s108 = int_to_ptr.hbm [resolvable:$true] %s107
      %s109 = sshll.u32 [#allocation2], 4
      %s110 = int_to_ptr.vmem [resolvable:$true] %s109
      %112 = dma.hbm_to_vmem [thread:$0]  %s108, 16, %s110, [#allocation3]
    $region37: #{forward.1} parent=1 // pred_fallthru
      _
    // Predicated region
    $region38: #{forward.1} parent=1 // pred_check
      _
    $region39: #{forward.1} parent=1 // pred_check_branch
      %114 = sbr.rel (0) target = $region41
    $region40: #{forward.1} parent=1 // pred_region
      _
    $region41: #{forward.1} parent=1 // pred_fallthru
      _
    // Predicated region
    $region42: #{forward.1} parent=1 // pred_check
      _
    $region43: #{forward.1} parent=1 // pred_check_branch
      %116 = sbr.rel (0) target = $region45
    $region44: #{forward.1} parent=1 // pred_region
      _
    $region45: #{forward.1} parent=1 // pred_fallthru
      _
    // Predicated region
    $region46: #{forward.1} parent=1 // pred_check
      _
    $region47: #{forward.1} parent=1 // pred_check_branch
      %118 = sbr.rel (0) target = $region49
    $region48: #{forward.1} parent=1 // pred_region
      _
    $region49: #{forward.1} parent=1 // pred_fallthru
      _
    // Predicated region
    $region50: #{forward.1} parent=1 // pred_check
      _
    $region51: #{forward.1} parent=1 // pred_check_branch
      %120 = sbr.rel (0) target = $region53
    $region52: #{forward.1} parent=1 // pred_region
      _
    $region53: #{forward.1} parent=1 // pred_fallthru
      _
    // Predicated region
    $region54: #{forward.1} parent=1 // pred_check
      _
    $region55: #{forward.1} parent=1 // pred_check_branch
      %122 = sbr.rel (0) target = $region57
    $region56: #{forward.1} parent=1 // pred_region
      _
    $region57: #{forward.1} parent=1 // pred_fallthru
      _
    // Predicated region
    $region58: #{forward.1} parent=1 // pred_check
      _
    $region59: #{forward.1} parent=1 // pred_check_branch
      %124 = sbr.rel (0) target = $region61
    $region60: #{forward.1} parent=1 // pred_region
      %126 = vsyncadd [#allocation6], 0
      %s127 = sshll.u32 %s29, 4
      %s128 = int_to_ptr.hbm [resolvable:$true] %s127
      %s129 = sshll.u32 [#allocation5], 4
      %s130 = int_to_ptr.vmem [resolvable:$true] %s129
      %135 = dma.hbm_to_vmem [thread:$0]  %s128, 2048, %s130, [#allocation6], 128, 128, 8
    $region61: #{forward.1} parent=1 // pred_fallthru
      _
    // Predicated region
    $region62: #{forward.1} parent=1 // pred_check
      _
    $region63: #{forward.1} parent=1 // pred_check_branch
      %137 = sbr.rel (0) target = $region65
    $region64: #{forward.1} parent=1 // pred_region
      %139 = vsyncadd [#allocation6], 0
      %s140 = sshll.u32 %s31, 4
      %s141 = int_to_ptr.hbm [resolvable:$true] %s140
      %s142 = sshll.u32 [#allocation7], 4
      %s143 = int_to_ptr.vmem [resolvable:$true] %s142
      %148 = dma.hbm_to_vmem [thread:$0]  %s141, 64, %s143, [#allocation6], 16, 16, 1
    $region65: #{forward.1} parent=1 // pred_fallthru
      _
    // Predicated region
    $region66: #{forward.1} parent=1 // pred_check
      _
    $region67: #{forward.1} parent=1 // pred_check_branch
      %150 = sbr.rel (0) target = $region69
    $region68: #{forward.1} parent=1 // pred_region
      _
    $region69: #{forward.1} parent=1 // pred_fallthru
      _
    // Predicated region
    $region70: #{forward.1} parent=1 // pred_check
      _
    $region71: #{forward.1} parent=1 // pred_check_branch
      %152 = sbr.rel (0) target = $region73
    $region72: #{forward.1} parent=1 // pred_region
      %154 = vsyncadd [#allocation9], 0
      %s155 = sshll.u32 %s35, 4
      %s156 = int_to_ptr.hbm [resolvable:$true] %s155
      %s157 = sshll.u32 [#allocation8], 4
      %s158 = int_to_ptr.vmem [resolvable:$true] %s157
      %163 = dma.hbm_to_vmem [thread:$0]  %s156, 64, %s158, [#allocation9], 16, 16, 1
    $region73: #{forward.1} parent=1 // pred_fallthru
      _
    // Predicated region
    $region74: #{forward.1} parent=1 // pred_check
      _
    $region75: #{forward.1} parent=1 // pred_check_branch
      %165 = sbr.rel (0) target = $region77
    $region76: #{forward.1} parent=1 // pred_region
      %167 = vsyncadd [#allocation9], 0
      %s168 = sshll.u32 %s37, 4
      %s169 = int_to_ptr.hbm [resolvable:$true] %s168
      %s170 = sshll.u32 [#allocation10], 4
      %s171 = int_to_ptr.vmem [resolvable:$true] %s170
      %176 = dma.hbm_to_vmem [thread:$0]  %s169, 64, %s171, [#allocation9], 16, 16, 1
    $region77: #{forward.1} parent=1 // pred_fallthru
      _
    // Predicated region
    $region78: #{forward.1} parent=1 // pred_check
      _
    $region79: #{forward.1} parent=1 // pred_check_branch
      %178 = sbr.rel (0) target = $region81
    $region80: #{forward.1} parent=1 // pred_region
      %180 = vsyncadd [#allocation12], 0
      %s181 = sshll.u32 %s39, 4
      %s182 = int_to_ptr.hbm [resolvable:$true] %s181
      %s183 = sshll.u32 [#allocation11], 4
      %s184 = int_to_ptr.vmem [resolvable:$true] %s183
      %189 = dma.hbm_to_vmem [thread:$0]  %s182, 64, %s184, [#allocation12], 16, 16, 1
    $region81: #{forward.1} parent=1 // pred_fallthru
      _
    // Predicated region
    $region82: #{forward.1} parent=1 // pred_check
      _
    $region83: #{forward.1} parent=1 // pred_check_branch
      %191 = sbr.rel (0) target = $region85
    $region84: #{forward.1} parent=1 // pred_region
      %193 = vsyncadd [#allocation12], 0
      %s194 = sshll.u32 %s41, 4
      %s195 = int_to_ptr.hbm [resolvable:$true] %s194
      %s196 = sshll.u32 [#allocation13], 4
      %s197 = int_to_ptr.vmem [resolvable:$true] %s196
      %202 = dma.hbm_to_vmem [thread:$0]  %s195, 2048, %s197, [#allocation12], 128, 128, 8
    $region85: #{forward.1} parent=1 // pred_fallthru
      _
    // Predicated region
    $region86: #{forward.1} parent=1 // pred_check
      _
    $region87: #{forward.1} parent=1 // pred_check_branch
      %204 = sbr.rel (0) target = $region89
    $region88: #{forward.1} parent=1 // pred_region
      %206 = vsyncadd [#allocation15], 0
      %s207 = sshll.u32 %s43, 4
      %s208 = int_to_ptr.hbm [resolvable:$true] %s207
      %s209 = sshll.u32 [#allocation14], 4
      %s210 = int_to_ptr.vmem [resolvable:$true] %s209
      %215 = dma.hbm_to_vmem [thread:$0]  %s208, 64, %s210, [#allocation15], 16, 16, 1
    $region89: #{forward.1} parent=1 // pred_fallthru
      _
    // Predicated region
    $region90: #{forward.1} parent=1 // pred_check
      _
    $region91: #{forward.1} parent=1 // pred_check_branch
      %217 = sbr.rel (0) target = $region93
    $region92: #{forward.1} parent=1 // pred_region
      _
    $region93: #{forward.1} parent=1 // pred_fallthru
      _
    // Predicated region
    $region94: #{forward.1} parent=1 // pred_check
      _
    $region95: #{forward.1} parent=1 // pred_check_branch
      %219 = sbr.rel (0) target = $region97
    $region96: #{forward.1} parent=1 // pred_region
      %221 = vsyncadd [#allocation15], 0
      %s222 = sshll.u32 %s47, 4
      %s223 = int_to_ptr.hbm [resolvable:$true] %s222
      %s224 = sshll.u32 [#allocation16], 4
      %s225 = int_to_ptr.vmem [resolvable:$true] %s224
      %230 = dma.hbm_to_vmem [thread:$0]  %s223, 64, %s225, [#allocation15], 16, 16, 1
    $region97: #{forward.1} parent=1 // pred_fallthru
      _
    // Predicated region
    $region98: #{forward.1} parent=1 // pred_check
      _
    $region99: #{forward.1} parent=1 // pred_check_branch
      %232 = sbr.rel (0) target = $region101
    $region100: #{forward.1} parent=1 // pred_region
      %234 = vsyncadd [#allocation18], 0
      %s235 = sshll.u32 %s49, 4
      %s236 = int_to_ptr.hbm [resolvable:$true] %s235
      %s237 = sshll.u32 [#allocation17], 4
      %s238 = int_to_ptr.vmem [resolvable:$true] %s237
      %243 = dma.hbm_to_vmem [thread:$0]  %s236, 64, %s238, [#allocation18], 16, 16, 1
    $region101: #{forward.1} parent=1 // pred_fallthru
      _
    // Predicated region
    $region102: #{forward.1} parent=1 // pred_check
      _
    $region103: #{forward.1} parent=1 // pred_check_branch
      %245 = sbr.rel (0) target = $region105
    $region104: #{forward.1} parent=1 // pred_region
      %247 = vsyncadd [#allocation18], 0
      %s248 = sshll.u32 %s51, 4
      %s249 = int_to_ptr.hbm [resolvable:$true] %s248
      %s250 = sshll.u32 [#allocation19], 4
      %s251 = int_to_ptr.vmem [resolvable:$true] %s250
      %256 = dma.hbm_to_vmem [thread:$0]  %s249, 64, %s251, [#allocation18], 16, 16, 1
    $region105: #{forward.1} parent=1 // pred_fallthru
      _
    // Predicated region
    $region106: #{forward.1} parent=1 // pred_check
      _
    $region107: #{forward.1} parent=1 // pred_check_branch
      %258 = sbr.rel (0) target = $region109
    $region108: #{forward.1} parent=1 // pred_region
      _
    $region109: #{forward.1} parent=1 // pred_fallthru
      _
    // Predicated region
    $region110: #{forward.1} parent=1 // pred_check
      _
    $region111: #{forward.1} parent=1 // pred_check_branch
      %260 = sbr.rel (0) target = $region113
    $region112: #{forward.1} parent=1 // pred_region
      _
    $region113: #{forward.1} parent=1 // pred_fallthru
      _
    // Predicated region
    $region114: #{forward.1} parent=1 // pred_check
      _
    $region115: #{forward.1} parent=1 // pred_check_branch
      %262 = sbr.rel (0) target = $region117
    $region116: #{forward.1} parent=1 // pred_region
      %264 = vsyncadd [#allocation21], 0
      %s265 = sshll.u32 %s57, 4
      %s266 = int_to_ptr.hbm [resolvable:$true] %s265
      %s267 = sshll.u32 [#allocation20], 4
      %s268 = int_to_ptr.vmem [resolvable:$true] %s267
      %273 = dma.hbm_to_vmem [thread:$0]  %s266, 1024, %s268, [#allocation21], 128, 128, 8
    $region117: #{forward.1} parent=1 // pred_fallthru
      _
    // Predicated region
    $region118: #{forward.1} parent=1 // pred_check
      _
    $region119: #{forward.1} parent=1 // pred_check_branch
      %275 = sbr.rel (0) target = $region121
    $region120: #{forward.1} parent=1 // pred_region
      %277 = vsyncadd [#allocation21], 0
      %s278 = sshll.u32 %s59, 4
      %s279 = int_to_ptr.hbm [resolvable:$true] %s278
      %s280 = sshll.u32 [#allocation22], 4
      %s281 = int_to_ptr.vmem [resolvable:$true] %s280
      %286 = dma.hbm_to_vmem [thread:$0]  %s279, 32, %s281, [#allocation21], 16, 16, 1
    $region121: #{forward.1} parent=1 // pred_fallthru
      _
    // Predicated region
    $region122: #{forward.1} parent=1 // pred_check
      _
    $region123: #{forward.1} parent=1 // pred_check_branch
      %288 = sbr.rel (0) target = $region125
    $region124: #{forward.1} parent=1 // pred_region
      %290 = vsyncadd [#allocation24], 0
      %s291 = sshll.u32 %s61, 4
      %s292 = int_to_ptr.hbm [resolvable:$true] %s291
      %s293 = sshll.u32 [#allocation23], 4
      %s294 = int_to_ptr.vmem [resolvable:$true] %s293
      %299 = dma.hbm_to_vmem [thread:$0]  %s292, 4096, %s294, [#allocation24], 128, 128, 8
    $region125: #{forward.1} parent=1 // pred_fallthru
      _
    // Predicated region
    $region126: #{forward.1} parent=1 // pred_check
      _
    $region127: #{forward.1} parent=1 // pred_check_branch
      %301 = sbr.rel (0) target = $region129
    $region128: #{forward.1} parent=1 // pred_region
      %303 = vsyncadd [#allocation24], 0
      %s304 = sshll.u32 %s63, 4
      %s305 = int_to_ptr.hbm [resolvable:$true] %s304
      %s306 = sshll.u32 [#allocation25], 4
      %s307 = int_to_ptr.vmem [resolvable:$true] %s306
      %312 = dma.hbm_to_vmem [thread:$0]  %s305, 32, %s307, [#allocation24], 16, 16, 1
    $region129: #{forward.1} parent=1 // pred_fallthru
      _
    // Predicated region
    $region130: #{forward.1} parent=1 // pred_check
      _
    $region131: #{forward.1} parent=1 // pred_check_branch
      %314 = sbr.rel (0) target = $region133
    $region132: #{forward.1} parent=1 // pred_region
      _
    $region133: #{forward.1} parent=1 // pred_fallthru
      _
    // Predicated region
    $region134: #{forward.1} parent=1 // pred_check
      _
    $region135: #{forward.1} parent=1 // pred_check_branch
      %316 = sbr.rel (0) target = $region137
    $region136: #{forward.1} parent=1 // pred_region
      _
    $region137: #{forward.1} parent=1 // pred_fallthru
      _
    // Predicated region
    $region138: #{forward.1} parent=1 // pred_check
      _
    $region139: #{forward.1} parent=1 // pred_check_branch
      %318 = sbr.rel (0) target = $region141
    $region140: #{forward.1} parent=1 // pred_region
      %320 = vsyncadd [#allocation27], 0
      %s322 = sshll.u32 %s69, 4
      %s323 = int_to_ptr.hbm [resolvable:$true] %s322
      %s324 = sshll.u32 [#allocation26], 4
      %s325 = int_to_ptr.vmem [resolvable:$true] %s324
      %327 = dma.hbm_to_vmem [thread:$0]  %s323, 16, %s325, [#allocation27]
    $region141: #{forward.1} parent=1 // pred_fallthru
      _
    // Predicated region
    $region142: #{forward.1} parent=1 // pred_check
      _
    $region143: #{forward.1} parent=1 // pred_check_branch
      %329 = sbr.rel (0) target = $region145
    $region144: #{forward.1} parent=1 // pred_region
      %331 = dma.done [#allocation3], 16
    $region145: #{forward.1} parent=1 // pred_fallthru
      _
    // Predicated region
    $region146: #{forward.1} parent=1 // pred_check
      _
    $region147: #{forward.1} parent=1 // pred_check_branch
      %333 = sbr.rel (0) target = $region149
    $region148: #{forward.1} parent=1 // pred_region
      %335 = dma.done [#allocation6], 2048
    $region149: #{forward.1} parent=1 // pred_fallthru
      _
    // Predicated region
    $region150: #{forward.1} parent=1 // pred_check
      _
    $region151: #{forward.1} parent=1 // pred_check_branch
      %337 = sbr.rel (0) target = $region153
    $region152: #{forward.1} parent=1 // pred_region
      %339 = dma.done [#allocation6], 64
    $region153: #{forward.1} parent=1 // pred_fallthru
      _
    // Predicated region
    $region154: #{forward.1} parent=1 // pred_check
      _
    $region155: #{forward.1} parent=1 // pred_check_branch
      %341 = sbr.rel (0) target = $region157
    $region156: #{forward.1} parent=1 // pred_region
      %343 = dma.done [#allocation9], 64
    $region157: #{forward.1} parent=1 // pred_fallthru
      _
    // Predicated region
    $region158: #{forward.1} parent=1 // pred_check
      _
    $region159: #{forward.1} parent=1 // pred_check_branch
      %345 = sbr.rel (0) target = $region161
    $region160: #{forward.1} parent=1 // pred_region
      %347 = dma.done [#allocation9], 64
    $region161: #{forward.1} parent=1 // pred_fallthru
      _
    // Predicated region
    $region162: #{forward.1} parent=1 // pred_check
      _
    $region163: #{forward.1} parent=1 // pred_check_branch
      %349 = sbr.rel (0) target = $region165
    $region164: #{forward.1} parent=1 // pred_region
      %351 = dma.done [#allocation12], 64
    $region165: #{forward.1} parent=1 // pred_fallthru
      _
    // Predicated region
    $region166: #{forward.1} parent=1 // pred_check
      _
    $region167: #{forward.1} parent=1 // pred_check_branch
      %353 = sbr.rel (0) target = $region169
    $region168: #{forward.1} parent=1 // pred_region
      %355 = dma.done [#allocation12], 2048
    $region169: #{forward.1} parent=1 // pred_fallthru
      _
    // Predicated region
    $region170: #{forward.1} parent=1 // pred_check
      _
    $region171: #{forward.1} parent=1 // pred_check_branch
      %357 = sbr.rel (0) target = $region173
    $region172: #{forward.1} parent=1 // pred_region
      %359 = dma.done [#allocation15], 64
    $region173: #{forward.1} parent=1 // pred_fallthru
      _
    // Predicated region
    $region174: #{forward.1} parent=1 // pred_check
      _
    $region175: #{forward.1} parent=1 // pred_check_branch
      %361 = sbr.rel (0) target = $region177
    $region176: #{forward.1} parent=1 // pred_region
      %363 = dma.done [#allocation15], 64
    $region177: #{forward.1} parent=1 // pred_fallthru
      _
    // Predicated region
    $region178: #{forward.1} parent=1 // pred_check
      _
    $region179: #{forward.1} parent=1 // pred_check_branch
      %365 = sbr.rel (0) target = $region181
    $region180: #{forward.1} parent=1 // pred_region
      %367 = dma.done [#allocation18], 64
    $region181: #{forward.1} parent=1 // pred_fallthru
      _
    // Predicated region
    $region182: #{forward.1} parent=1 // pred_check
      _
    $region183: #{forward.1} parent=1 // pred_check_branch
      %369 = sbr.rel (0) target = $region185
    $region184: #{forward.1} parent=1 // pred_region
      %371 = dma.done [#allocation18], 64
    $region185: #{forward.1} parent=1 // pred_fallthru
      _
    // Predicated region
    $region186: #{forward.1} parent=1 // pred_check
      _
    $region187: #{forward.1} parent=1 // pred_check_branch
      %373 = sbr.rel (0) target = $region189
    $region188: #{forward.1} parent=1 // pred_region
      %375 = dma.done [#allocation21], 1024
    $region189: #{forward.1} parent=1 // pred_fallthru
      _
    // Predicated region
    $region190: #{forward.1} parent=1 // pred_check
      _
    $region191: #{forward.1} parent=1 // pred_check_branch
      %377 = sbr.rel (0) target = $region193
    $region192: #{forward.1} parent=1 // pred_region
      %379 = dma.done [#allocation21], 32
    $region193: #{forward.1} parent=1 // pred_fallthru
      _
    // Predicated region
    $region194: #{forward.1} parent=1 // pred_check
      _
    $region195: #{forward.1} parent=1 // pred_check_branch
      %381 = sbr.rel (0) target = $region197
    $region196: #{forward.1} parent=1 // pred_region
      %383 = dma.done [#allocation24], 4096
    $region197: #{forward.1} parent=1 // pred_fallthru
      _
    // Predicated region
    $region198: #{forward.1} parent=1 // pred_check
      _
    $region199: #{forward.1} parent=1 // pred_check_branch
      %385 = sbr.rel (0) target = $region201
    $region200: #{forward.1} parent=1 // pred_region
      %387 = dma.done [#allocation24], 32
    $region201: #{forward.1} parent=1 // pred_fallthru
      _
    // Predicated region
    $region202: #{forward.1} parent=1 // pred_check
      _
    $region203: #{forward.1} parent=1 // pred_check_branch
      %389 = sbr.rel (0) target = $region205
    $region204: #{forward.1} parent=1 // pred_region
      %391 = dma.done [#allocation27], 16
    $region205: #{forward.1} parent=1 // pred_fallthru
      _
    %v392 = vlaneseq
    %v393 = vand.u32 %v392, 127
    %vm394 = vcmp.ge.s32.totalorder %v393, 0
    %vm395 = vcmp.lt.s32.totalorder %v393, 8
    %vm396 = vmand %vm394, %vm395
    %v397 = vsel %vm396, 1, 0
    %v398 = vcvt.s32.f32 %v397
    %vm399 = vcmp.ge.s32.totalorder %v393, 8
    %vm400 = vcmp.lt.s32.totalorder %v393, 16
    %vm401 = vmand %vm399, %vm400
    %v402 = vsel %vm401, 1, 0
    %v403 = vcvt.s32.f32 %v402
    %vm404 = vcmp.ge.s32.totalorder %v393, 16
    %vm405 = vcmp.lt.s32.totalorder %v393, 24
    %vm406 = vmand %vm404, %vm405
    %v407 = vsel %vm406, 1, 0
    %v408 = vcvt.s32.f32 %v407
    %vm409 = vcmp.ge.s32.totalorder %v393, 24
    %vm410 = vcmp.lt.s32.totalorder %v393, 32
    %vm411 = vmand %vm409, %vm410
    %v412 = vsel %vm411, 1, 0
    %v413 = vcvt.s32.f32 %v412
    %v414 = vld [vmem:[%s1] sm:$0xff]
    %v415 = vld [vmem:[%s1 + $0x8] sm:$0xff]
    %416 = vxpose.xlu0.b32.start [1/16] %v414, 128
    %417 = vxpose.xlu0.b32.cont [2/16] 0.0, 128
    %418 = vxpose.xlu0.b32.cont [3/16] 0.0, 128
    %419 = vxpose.xlu0.b32.cont [4/16] 0.0, 128
    %420 = vxpose.xlu0.b32.cont [5/16] 0.0, 128
    %421 = vxpose.xlu0.b32.cont [6/16] 0.0, 128
    %422 = vxpose.xlu0.b32.cont [7/16] 0.0, 128
    %423 = vxpose.xlu0.b32.cont [8/16] 0.0, 128
    %424 = vxpose.xlu0.b32.cont [9/16] 0.0, 128
    %425 = vxpose.xlu0.b32.cont [10/16] 0.0, 128
    %426 = vxpose.xlu0.b32.cont [11/16] 0.0, 128
    %427 = vxpose.xlu0.b32.cont [12/16] 0.0, 128
    %428 = vxpose.xlu0.b32.cont [13/16] 0.0, 128
    %429 = vxpose.xlu0.b32.cont [14/16] 0.0, 128
    %430 = vxpose.xlu0.b32.cont [15/16] 0.0, 128
    %431 = vxpose.xlu0.b32.end [16/16] 0.0, 128
    %v432 = vpop.trf.xlu0
    %v433 = vpop.trf.xlu0
    %v434 = vpop.trf.xlu0
    %v435 = vpop.trf.xlu0
    %v436 = vpop.trf.xlu0
    %v437 = vpop.trf.xlu0
    %v438 = vpop.trf.xlu0
    %v439 = vpop.trf.xlu0
    %v440 = vpop.trf.xlu0
    %v441 = vpop.trf.xlu0
    %v442 = vpop.trf.xlu0
    %v443 = vpop.trf.xlu0
    %v444 = vpop.trf.xlu0
    %v445 = vpop.trf.xlu0
    %v446 = vpop.trf.xlu0
    %v447 = vpop.trf.xlu0
    %448 = vxpose.xlu0.b32.start [1/16] %v415, 128
    %449 = vxpose.xlu0.b32.cont [2/16] 0.0, 128
    %450 = vxpose.xlu0.b32.cont [3/16] 0.0, 128
    %451 = vxpose.xlu0.b32.cont [4/16] 0.0, 128
    %452 = vxpose.xlu0.b32.cont [5/16] 0.0, 128
    %453 = vxpose.xlu0.b32.cont [6/16] 0.0, 128
    %454 = vxpose.xlu0.b32.cont [7/16] 0.0, 128
    %455 = vxpose.xlu0.b32.cont [8/16] 0.0, 128
    %456 = vxpose.xlu0.b32.cont [9/16] 0.0, 128
    %457 = vxpose.xlu0.b32.cont [10/16] 0.0, 128
    %458 = vxpose.xlu0.b32.cont [11/16] 0.0, 128
    %459 = vxpose.xlu0.b32.cont [12/16] 0.0, 128
    %460 = vxpose.xlu0.b32.cont [13/16] 0.0, 128
    %461 = vxpose.xlu0.b32.cont [14/16] 0.0, 128
    %462 = vxpose.xlu0.b32.cont [15/16] 0.0, 128
    %463 = vxpose.xlu0.b32.end [16/16] 0.0, 128
    %v464 = vpop.trf.xlu0
    %v465 = vpop.trf.xlu0
    %v466 = vpop.trf.xlu0
    %v467 = vpop.trf.xlu0
    %v468 = vpop.trf.xlu0
    %v469 = vpop.trf.xlu0
    %v470 = vpop.trf.xlu0
    %v471 = vpop.trf.xlu0
    %v472 = vpop.trf.xlu0
    %v473 = vpop.trf.xlu0
    %v474 = vpop.trf.xlu0
    %v475 = vpop.trf.xlu0
    %v476 = vpop.trf.xlu0
    %v477 = vpop.trf.xlu0
    %v478 = vpop.trf.xlu0
    %v479 = vpop.trf.xlu0
    %v480 = vld [vmem:[%s11] sm:$0xf]
    %v481 = vld [vmem:[%s13] sm:$0x1]
    %v483 = vperm.slane %v481, 0
    %vm485 = vcmask 31744
    %v487 = vsel %vm485, %v414, 0
    %v490 = vsel %vm485, %v415, 0
    %vm492 = vcmask 1043456
    %v494 = vsel %vm492, %v480, 0
    %496 = vmatpush.msra.mxu0 0.0
    %497 = vmatpush.msra.mxu0 0.0
    %498 = vmatpush.msra.mxu0 0.0
    %499 = vmatpush.msra.mxu0 0.0
    %500 = vmatpush.msra.mxu0 0.0
    %501 = vmatpush.msra.mxu0 0.0
    %502 = vmatpush.msra.mxu0 0.0
    %503 = vmatpush.msra.mxu0 0.0
    %504 = vmatpush.msra.mxu0 0.0
    %505 = vmatpush.msra.mxu0 0.0
    %506 = vmatpush.msra.mxu0 0.0
    %507 = vmatpush.msra.mxu0 0.0
    %508 = vmatpush.msra.mxu0 0.0
    %509 = vmatpush.msra.mxu0 0.0
    %510 = vmatpush.msra.mxu0 0.0
    %511 = vmatpush.msra.mxu0 %v494
    %512 = vmatmul.f32.gmra.mxu0 %v487
    %v513 = vpop.f32.mrf.mxu0
    %v514 = vadd.f32 %v483, %v513
    %515 = vmatmul.f32.gmra.mxu0 %v490
    %v516 = vpop.f32.mrf.mxu0
    %v517 = vadd.f32 %v483, %v516
    %518 = vdwg.mxu0
    %v519 = vld [vmem:[%s15] sm:$0xff]
    %v520 = vld [vmem:[#allocation2] sm:$0x1]
    %v522 = vperm.slane %v520, 0
    %526 = vst [vmem:[#allocation1] ss:$2 sm:$0xff] %v432
    %s527 = scalar_lea.vmem [#allocation1], 1
    %528 = vst [vmem:[%s527] ss:$2 sm:$0xff] %v464
    %v529 = vld.sshfl [vmem:[#allocation1] sm:$0xff pattern:$0x75316420]
    %vm530 = vcmask 64512
    %v531 = vsel %vm530, %v529, 0
    %533 = vmatpush.msra.mxu0 0.0
    %534 = vmatpush.msra.mxu0 0.0
    %535 = vmatpush.msra.mxu0 0.0
    %536 = vmatpush.msra.mxu0 0.0
    %537 = vmatpush.msra.mxu0 0.0
    %538 = vmatpush.msra.mxu0 0.0
    %539 = vmatpush.msra.mxu0 0.0
    %540 = vmatpush.msra.mxu0 0.0
    %541 = vmatpush.msra.mxu0 0.0
    %542 = vmatpush.msra.mxu0 0.0
    %543 = vmatpush.msra.mxu0 0.0
    %544 = vmatpush.msra.mxu0 0.0
    %545 = vmatpush.msra.mxu0 0.0
    %546 = vmatpush.msra.mxu0 0.0
    %547 = vmatpush.msra.mxu0 0.0
    %548 = vmatpush.msra.mxu0 %v519
    %549 = vmatmul.f32.gmra.mxu0 %v531
    %v550 = vpop.f32.mrf.mxu0
    %v551 = vadd.f32 %v522, %v550
    %552 = vdwg.mxu0
    %v554 = vrot.slane %v551, 4
    %v556 = vld [vmem:[%s19] sm:$0xff]
    %v557 = vadd.f32 %v514, %v556
    %v558 = vadd.f32 %v517, %v556
    %v559 = vld [vmem:[%s21] sm:$0xf]
    %v560 = vadd.f32 %v551, %v559
    %v561 = vadd.f32 %v554, %v559
    %v562 = vld [vmem:[%s3] sm:$0xff]
    %v563 = vld [vmem:[%s3 + $0x8] sm:$0xff]
    %v564 = vld [vmem:[%s5] sm:$0xff]
    %v565 = vld [vmem:[%s25] sm:$0xff]
    %v566 = vld [vmem:[%s25 + $0x8] sm:$0xff]
    %v567 = vld [vmem:[%s25 + $0x10] sm:$0xff]
    %v568 = vld [vmem:[%s25 + $0x18] sm:$0xff]
    %v569 = vld [vmem:[%s27] sm:$0x1]
    %v570 = vld [vmem:[#allocation5] sm:$0xff]
    %v571 = vld [vmem:[#allocation5 + $0x8] sm:$0xff]
    %v572 = vld [vmem:[#allocation5 + $0x10] sm:$0xff]
    %v573 = vld [vmem:[#allocation5 + $0x18] sm:$0xff]
    %v574 = vld [vmem:[#allocation7] sm:$0x1]
    %v575 = vld [vmem:[#allocation8] sm:$0x1]
    %v577 = vperm.slane %v569, 0
    %vm579 = vcmask 261120
    %v581 = vsel %vm579, %v557, 0
    %v584 = vsel %vm579, %v558, 0
    %586 = vmatpush.msra.mxu0 0.0
    %587 = vmatpush.msra.mxu0 0.0
    %588 = vmatpush.msra.mxu0 0.0
    %589 = vmatpush.msra.mxu0 0.0
    %590 = vmatpush.msra.mxu0 0.0
    %591 = vmatpush.msra.mxu0 0.0
    %592 = vmatpush.msra.mxu0 0.0
    %593 = vmatpush.msra.mxu0 0.0
    %594 = vmatpush.msra.mxu0 0.0
    %595 = vmatpush.msra.mxu0 0.0
    %596 = vmatpush.msra.mxu0 0.0
    %597 = vmatpush.msra.mxu0 0.0
    %598 = vmatpush.msra.mxu0 %v568
    %599 = vmatpush.msra.mxu0 %v567
    %600 = vmatpush.msra.mxu0 %v566
    %601 = vmatpush.msra.mxu0 %v565
    %602 = vmatmul.f32.gmra.mxu0 %v581
    %v603 = vpop.f32.mrf.mxu0
    %v604 = vadd.f32 %v577, %v603
    %605 = vmatmul.f32.gmra.mxu0 %v584
    %v606 = vpop.f32.mrf.mxu0
    %v607 = vadd.f32 %v577, %v606
    %608 = vdwg.mxu0
    %v610 = vperm.slane %v574, 0
    %612 = vmatpush.msra.mxu0 0.0
    %613 = vmatpush.msra.mxu0 0.0
    %614 = vmatpush.msra.mxu0 0.0
    %615 = vmatpush.msra.mxu0 0.0
    %616 = vmatpush.msra.mxu0 0.0
    %617 = vmatpush.msra.mxu0 0.0
    %618 = vmatpush.msra.mxu0 0.0
    %619 = vmatpush.msra.mxu0 0.0
    %620 = vmatpush.msra.mxu0 0.0
    %621 = vmatpush.msra.mxu0 0.0
    %622 = vmatpush.msra.mxu0 0.0
    %623 = vmatpush.msra.mxu0 0.0
    %624 = vmatpush.msra.mxu0 %v573
    %625 = vmatpush.msra.mxu0 %v572
    %626 = vmatpush.msra.mxu0 %v571
    %627 = vmatpush.msra.mxu0 %v570
    %628 = vmatmul.f32.gmra.mxu0 %v581
    %v629 = vpop.f32.mrf.mxu0
    %v630 = vadd.f32 %v610, %v629
    %631 = vmatmul.f32.gmra.mxu0 %v584
    %v632 = vpop.f32.mrf.mxu0
    %v633 = vadd.f32 %v610, %v632
    %634 = vdwg.mxu0
    %v636 = vperm.slane %v575, 0
    %v638 = vadd.f32 %v636, 0.0
    %v639 = vmul.f32 %v604, %v398
    %v640 = vmul.f32 %v607, %v398
    %v642 = vsel %vm579, %v639, 0
    %v645 = vsel %vm579, %v640, 0
    %v648 = vsel %vm579, %v630, 0
    %v651 = vsel %vm579, %v633, 0
    %653 = vmatpush.xpose.msra.mxu0 0.0
    %654 = vmatpush.xpose.msra.mxu0 0.0
    %655 = vmatpush.xpose.msra.mxu0 0.0
    %656 = vmatpush.xpose.msra.mxu0 0.0
    %657 = vmatpush.xpose.msra.mxu0 0.0
    %658 = vmatpush.xpose.msra.mxu0 0.0
    %659 = vmatpush.xpose.msra.mxu0 0.0
    %660 = vmatpush.xpose.msra.mxu0 0.0
    %661 = vmatpush.xpose.msra.mxu0 0.0
    %662 = vmatpush.xpose.msra.mxu0 0.0
    %663 = vmatpush.xpose.msra.mxu0 0.0
    %664 = vmatpush.xpose.msra.mxu0 0.0
    %665 = vmatpush.xpose.msra.mxu0 0.0
    %666 = vmatpush.xpose.msra.mxu0 0.0
    %667 = vmatpush.xpose.msra.mxu0 %v651
    %668 = vmatpush.xpose.msra.mxu0 %v648
    %669 = vmatmul.f32.gmra.mxu0 %v642
    %v670 = vpop.f32.mrf.mxu0
    %v671 = vadd.f32 %v562, %v670
    %672 = vmatmul.f32.gmra.mxu0 %v645
    %v673 = vpop.f32.mrf.mxu0
    %v674 = vadd.f32 %v563, %v673
    %675 = vdwg.mxu0
    %vm676 = vcmask 130048
    %v677 = vsel %vm676, %v671, -inf
    %678 = vmax.xlane.f32.xlu0 %v677
    %v679 = vpop.xlane.xlu0 %678
    %v680 = vsel %vm676, %v674, -inf
    %681 = vmax.xlane.f32.xlu0 %v680
    %v682 = vpop.xlane.xlu0 %681
    %v683 = vsub.f32 %v671, %v679
    %v684 = vsub.f32 %v674, %v682
    %v685 = vmul.f32 %v683, 1.442695
    %v686 = vpow.pop %v685
    %v687 = vmul.f32 %v684, 1.442695
    %v688 = vpow.pop %v687
    %v689 = vsel %vm676, %v686, 0.0
    %690 = vadd.xlane.f32.xlu0 %v689
    %v691 = vpop.xlane.xlu0 %690
    %v692 = vsel %vm676, %v688, 0.0
    %693 = vadd.xlane.f32.xlu0 %v692
    %v694 = vpop.xlane.xlu0 %693
    %v695 = vrcp.pop %v691
    %v696 = vrcp.pop %v694
    %v697 = vmul.f32 %v686, %v695
    %v698 = vmul.f32 %v688, %v696
    %v699 = vld [vmem:[%s33] sm:$0xff]
    %v700 = vld [vmem:[%s33 + $0x8] sm:$0xff]
    %v701 = vld [vmem:[%s33 + $0x10] sm:$0xff]
    %v702 = vld [vmem:[%s33 + $0x18] sm:$0xff]
    %703 = vmatpush.msra.mxu0 0.0
    %704 = vmatpush.msra.mxu0 0.0
    %705 = vmatpush.msra.mxu0 0.0
    %706 = vmatpush.msra.mxu0 0.0
    %707 = vmatpush.msra.mxu0 0.0
    %708 = vmatpush.msra.mxu0 0.0
    %709 = vmatpush.msra.mxu0 0.0
    %710 = vmatpush.msra.mxu0 0.0
    %711 = vmatpush.msra.mxu0 0.0
    %712 = vmatpush.msra.mxu0 0.0
    %713 = vmatpush.msra.mxu0 0.0
    %714 = vmatpush.msra.mxu0 0.0
    %715 = vmatpush.msra.mxu0 %v702
    %716 = vmatpush.msra.mxu0 %v701
    %717 = vmatpush.msra.mxu0 %v700
    %718 = vmatpush.msra.mxu0 %v699
    %719 = vmatmul.f32.gmra.mxu0 %v581
    %v720 = vpop.f32.mrf.mxu0
    %v721 = vadd.f32 0.0, %v720
    %722 = vmatmul.f32.gmra.mxu0 %v584
    %v723 = vpop.f32.mrf.mxu0
    %v724 = vadd.f32 0.0, %v723
    %725 = vdwg.mxu0
    %v727 = vsel %vm676, %v697, 0
    %v730 = vsel %vm676, %v698, 0
    %732 = vmatpush.msra.mxu0 0.0
    %733 = vmatpush.msra.mxu0 0.0
    %734 = vmatpush.msra.mxu0 0.0
    %735 = vmatpush.msra.mxu0 0.0
    %736 = vmatpush.msra.mxu0 0.0
    %737 = vmatpush.msra.mxu0 0.0
    %738 = vmatpush.msra.mxu0 0.0
    %739 = vmatpush.msra.mxu0 0.0
    %740 = vmatpush.msra.mxu0 0.0
    %741 = vmatpush.msra.mxu0 0.0
    %742 = vmatpush.msra.mxu0 0.0
    %743 = vmatpush.msra.mxu0 0.0
    %744 = vmatpush.msra.mxu0 0.0
    %745 = vmatpush.msra.mxu0 0.0
    %746 = vmatpush.msra.mxu0 %v724
    %747 = vmatpush.msra.mxu0 %v721
    %748 = vmatmul.f32.gmra.mxu0 %v727
    %v749 = vpop.f32.mrf.mxu0
    %v750 = vadd.f32 0.0, %v749
    %751 = vmatmul.f32.gmra.mxu0 %v730
    %v752 = vpop.f32.mrf.mxu0
    %v753 = vadd.f32 0.0, %v752
    %754 = vdwg.mxu0
    %v755 = vadd.f32 %v638, %v750
    %v756 = vadd.f32 %v638, %v753
    %v757 = vmul.f32 %v604, %v403
    %v758 = vmul.f32 %v607, %v403
    %v760 = vsel %vm579, %v757, 0
    %v763 = vsel %vm579, %v758, 0
    %765 = vmatpush.xpose.msra.mxu0 0.0
    %766 = vmatpush.xpose.msra.mxu0 0.0
    %767 = vmatpush.xpose.msra.mxu0 0.0
    %768 = vmatpush.xpose.msra.mxu0 0.0
    %769 = vmatpush.xpose.msra.mxu0 0.0
    %770 = vmatpush.xpose.msra.mxu0 0.0
    %771 = vmatpush.xpose.msra.mxu0 0.0
    %772 = vmatpush.xpose.msra.mxu0 0.0
    %773 = vmatpush.xpose.msra.mxu0 0.0
    %774 = vmatpush.xpose.msra.mxu0 0.0
    %775 = vmatpush.xpose.msra.mxu0 0.0
    %776 = vmatpush.xpose.msra.mxu0 0.0
    %777 = vmatpush.xpose.msra.mxu0 0.0
    %778 = vmatpush.xpose.msra.mxu0 0.0
    %779 = vmatpush.xpose.msra.mxu0 %v651
    %780 = vmatpush.xpose.msra.mxu0 %v648
    %781 = vmatmul.f32.gmra.mxu0 %v760
    %v782 = vpop.f32.mrf.mxu0
    %v783 = vadd.f32 %v562, %v782
    %784 = vmatmul.f32.gmra.mxu0 %v763
    %v785 = vpop.f32.mrf.mxu0
    %v786 = vadd.f32 %v563, %v785
    %787 = vdwg.mxu0
    %v788 = vsel %vm676, %v783, -inf
    %789 = vmax.xlane.f32.xlu0 %v788
    %v790 = vpop.xlane.xlu0 %789
    %v791 = vsel %vm676, %v786, -inf
    %792 = vmax.xlane.f32.xlu0 %v791
    %v793 = vpop.xlane.xlu0 %792
    %v794 = vsub.f32 %v783, %v790
    %v795 = vsub.f32 %v786, %v793
    %v796 = vmul.f32 %v794, 1.442695
    %v797 = vpow.pop %v796
    %v798 = vmul.f32 %v795, 1.442695
    %v799 = vpow.pop %v798
    %v800 = vsel %vm676, %v797, 0.0
    %801 = vadd.xlane.f32.xlu0 %v800
    %v802 = vpop.xlane.xlu0 %801
    %v803 = vsel %vm676, %v799, 0.0
    %804 = vadd.xlane.f32.xlu0 %v803
    %v805 = vpop.xlane.xlu0 %804
    %v806 = vrcp.pop %v802
    %v807 = vrcp.pop %v805
    %v808 = vmul.f32 %v797, %v806
    %v809 = vmul.f32 %v799, %v807
    %s810 = scalar_lea.vmem %s33, 32
    %v811 = vld [vmem:[%s810] sm:$0xff]
    %v812 = vld [vmem:[%s810 + $0x8] sm:$0xff]
    %v813 = vld [vmem:[%s810 + $0x10] sm:$0xff]
    %v814 = vld [vmem:[%s810 + $0x18] sm:$0xff]
    %815 = vmatpush.msra.mxu0 0.0
    %816 = vmatpush.msra.mxu0 0.0
    %817 = vmatpush.msra.mxu0 0.0
    %818 = vmatpush.msra.mxu0 0.0
    %819 = vmatpush.msra.mxu0 0.0
    %820 = vmatpush.msra.mxu0 0.0
    %821 = vmatpush.msra.mxu0 0.0
    %822 = vmatpush.msra.mxu0 0.0
    %823 = vmatpush.msra.mxu0 0.0
    %824 = vmatpush.msra.mxu0 0.0
    %825 = vmatpush.msra.mxu0 0.0
    %826 = vmatpush.msra.mxu0 0.0
    %827 = vmatpush.msra.mxu0 %v814
    %828 = vmatpush.msra.mxu0 %v813
    %829 = vmatpush.msra.mxu0 %v812
    %830 = vmatpush.msra.mxu0 %v811
    %831 = vmatmul.f32.gmra.mxu0 %v581
    %v832 = vpop.f32.mrf.mxu0
    %v833 = vadd.f32 0.0, %v832
    %834 = vmatmul.f32.gmra.mxu0 %v584
    %v835 = vpop.f32.mrf.mxu0
    %v836 = vadd.f32 0.0, %v835
    %837 = vdwg.mxu0
    %v839 = vsel %vm676, %v808, 0
    %v842 = vsel %vm676, %v809, 0
    %844 = vmatpush.msra.mxu0 0.0
    %845 = vmatpush.msra.mxu0 0.0
    %846 = vmatpush.msra.mxu0 0.0
    %847 = vmatpush.msra.mxu0 0.0
    %848 = vmatpush.msra.mxu0 0.0
    %849 = vmatpush.msra.mxu0 0.0
    %850 = vmatpush.msra.mxu0 0.0
    %851 = vmatpush.msra.mxu0 0.0
    %852 = vmatpush.msra.mxu0 0.0
    %853 = vmatpush.msra.mxu0 0.0
    %854 = vmatpush.msra.mxu0 0.0
    %855 = vmatpush.msra.mxu0 0.0
    %856 = vmatpush.msra.mxu0 0.0
    %857 = vmatpush.msra.mxu0 0.0
    %858 = vmatpush.msra.mxu0 %v836
    %859 = vmatpush.msra.mxu0 %v833
    %860 = vmatmul.f32.gmra.mxu0 %v839
    %v861 = vpop.f32.mrf.mxu0
    %v862 = vadd.f32 0.0, %v861
    %863 = vmatmul.f32.gmra.mxu0 %v842
    %v864 = vpop.f32.mrf.mxu0
    %v865 = vadd.f32 0.0, %v864
    %866 = vdwg.mxu0
    %v867 = vadd.f32 %v755, %v862
    %v868 = vadd.f32 %v756, %v865
    %v869 = vmul.f32 %v604, %v408
    %v870 = vmul.f32 %v607, %v408
    %v872 = vsel %vm579, %v869, 0
    %v875 = vsel %vm579, %v870, 0
    %877 = vmatpush.xpose.msra.mxu0 0.0
    %878 = vmatpush.xpose.msra.mxu0 0.0
    %879 = vmatpush.xpose.msra.mxu0 0.0
    %880 = vmatpush.xpose.msra.mxu0 0.0
    %881 = vmatpush.xpose.msra.mxu0 0.0
    %882 = vmatpush.xpose.msra.mxu0 0.0
    %883 = vmatpush.xpose.msra.mxu0 0.0
    %884 = vmatpush.xpose.msra.mxu0 0.0
    %885 = vmatpush.xpose.msra.mxu0 0.0
    %886 = vmatpush.xpose.msra.mxu0 0.0
    %887 = vmatpush.xpose.msra.mxu0 0.0
    %888 = vmatpush.xpose.msra.mxu0 0.0
    %889 = vmatpush.xpose.msra.mxu0 0.0
    %890 = vmatpush.xpose.msra.mxu0 0.0
    %891 = vmatpush.xpose.msra.mxu0 %v651
    %892 = vmatpush.xpose.msra.mxu0 %v648
    %893 = vmatmul.f32.gmra.mxu0 %v872
    %v894 = vpop.f32.mrf.mxu0
    %v895 = vadd.f32 %v562, %v894
    %896 = vmatmul.f32.gmra.mxu0 %v875
    %v897 = vpop.f32.mrf.mxu0
    %v898 = vadd.f32 %v563, %v897
    %899 = vdwg.mxu0
    %v900 = vsel %vm676, %v895, -inf
    %901 = vmax.xlane.f32.xlu0 %v900
    %v902 = vpop.xlane.xlu0 %901
    %v903 = vsel %vm676, %v898, -inf
    %904 = vmax.xlane.f32.xlu0 %v903
    %v905 = vpop.xlane.xlu0 %904
    %v906 = vsub.f32 %v895, %v902
    %v907 = vsub.f32 %v898, %v905
    %v908 = vmul.f32 %v906, 1.442695
    %v909 = vpow.pop %v908
    %v910 = vmul.f32 %v907, 1.442695
    %v911 = vpow.pop %v910
    %v912 = vsel %vm676, %v909, 0.0
    %913 = vadd.xlane.f32.xlu0 %v912
    %v914 = vpop.xlane.xlu0 %913
    %v915 = vsel %vm676, %v911, 0.0
    %916 = vadd.xlane.f32.xlu0 %v915
    %v917 = vpop.xlane.xlu0 %916
    %v918 = vrcp.pop %v914
    %v919 = vrcp.pop %v917
    %v920 = vmul.f32 %v909, %v918
    %v921 = vmul.f32 %v911, %v919
    %s922 = scalar_lea.vmem %s33, 64
    %v923 = vld [vmem:[%s922] sm:$0xff]
    %v924 = vld [vmem:[%s922 + $0x8] sm:$0xff]
    %v925 = vld [vmem:[%s922 + $0x10] sm:$0xff]
    %v926 = vld [vmem:[%s922 + $0x18] sm:$0xff]
    %927 = vmatpush.msra.mxu0 0.0
    %928 = vmatpush.msra.mxu0 0.0
    %929 = vmatpush.msra.mxu0 0.0
    %930 = vmatpush.msra.mxu0 0.0
    %931 = vmatpush.msra.mxu0 0.0
    %932 = vmatpush.msra.mxu0 0.0
    %933 = vmatpush.msra.mxu0 0.0
    %934 = vmatpush.msra.mxu0 0.0
    %935 = vmatpush.msra.mxu0 0.0
    %936 = vmatpush.msra.mxu0 0.0
    %937 = vmatpush.msra.mxu0 0.0
    %938 = vmatpush.msra.mxu0 0.0
    %939 = vmatpush.msra.mxu0 %v926
    %940 = vmatpush.msra.mxu0 %v925
    %941 = vmatpush.msra.mxu0 %v924
    %942 = vmatpush.msra.mxu0 %v923
    %943 = vmatmul.f32.gmra.mxu0 %v581
    %v944 = vpop.f32.mrf.mxu0
    %v945 = vadd.f32 0.0, %v944
    %946 = vmatmul.f32.gmra.mxu0 %v584
    %v947 = vpop.f32.mrf.mxu0
    %v948 = vadd.f32 0.0, %v947
    %949 = vdwg.mxu0
    %v951 = vsel %vm676, %v920, 0
    %v954 = vsel %vm676, %v921, 0
    %956 = vmatpush.msra.mxu0 0.0
    %957 = vmatpush.msra.mxu0 0.0
    %958 = vmatpush.msra.mxu0 0.0
    %959 = vmatpush.msra.mxu0 0.0
    %960 = vmatpush.msra.mxu0 0.0
    %961 = vmatpush.msra.mxu0 0.0
    %962 = vmatpush.msra.mxu0 0.0
    %963 = vmatpush.msra.mxu0 0.0
    %964 = vmatpush.msra.mxu0 0.0
    %965 = vmatpush.msra.mxu0 0.0
    %966 = vmatpush.msra.mxu0 0.0
    %967 = vmatpush.msra.mxu0 0.0
    %968 = vmatpush.msra.mxu0 0.0
    %969 = vmatpush.msra.mxu0 0.0
    %970 = vmatpush.msra.mxu0 %v948
    %971 = vmatpush.msra.mxu0 %v945
    %972 = vmatmul.f32.gmra.mxu0 %v951
    %v973 = vpop.f32.mrf.mxu0
    %v974 = vadd.f32 0.0, %v973
    %975 = vmatmul.f32.gmra.mxu0 %v954
    %v976 = vpop.f32.mrf.mxu0
    %v977 = vadd.f32 0.0, %v976
    %978 = vdwg.mxu0
    %v979 = vadd.f32 %v867, %v974
    %v980 = vadd.f32 %v868, %v977
    %v981 = vmul.f32 %v604, %v413
    %v982 = vmul.f32 %v607, %v413
    %v984 = vsel %vm579, %v981, 0
    %v987 = vsel %vm579, %v982, 0
    %989 = vmatpush.xpose.msra.mxu0 0.0
    %990 = vmatpush.xpose.msra.mxu0 0.0
    %991 = vmatpush.xpose.msra.mxu0 0.0
    %992 = vmatpush.xpose.msra.mxu0 0.0
    %993 = vmatpush.xpose.msra.mxu0 0.0
    %994 = vmatpush.xpose.msra.mxu0 0.0
    %995 = vmatpush.xpose.msra.mxu0 0.0
    %996 = vmatpush.xpose.msra.mxu0 0.0
    %997 = vmatpush.xpose.msra.mxu0 0.0
    %998 = vmatpush.xpose.msra.mxu0 0.0
    %999 = vmatpush.xpose.msra.mxu0 0.0
    %1000 = vmatpush.xpose.msra.mxu0 0.0
    %1001 = vmatpush.xpose.msra.mxu0 0.0
    %1002 = vmatpush.xpose.msra.mxu0 0.0
    %1003 = vmatpush.xpose.msra.mxu0 %v651
    %1004 = vmatpush.xpose.msra.mxu0 %v648
    %1005 = vmatmul.f32.gmra.mxu0 %v984
    %v1006 = vpop.f32.mrf.mxu0
    %v1007 = vadd.f32 %v562, %v1006
    %1008 = vmatmul.f32.gmra.mxu0 %v987
    %v1009 = vpop.f32.mrf.mxu0
    %v1010 = vadd.f32 %v563, %v1009
    %1011 = vdwg.mxu0
    %v1012 = vsel %vm676, %v1007, -inf
    %1013 = vmax.xlane.f32.xlu0 %v1012
    %v1014 = vpop.xlane.xlu0 %1013
    %v1015 = vsel %vm676, %v1010, -inf
    %1016 = vmax.xlane.f32.xlu0 %v1015
    %v1017 = vpop.xlane.xlu0 %1016
    %v1018 = vsub.f32 %v1007, %v1014
    %v1019 = vsub.f32 %v1010, %v1017
    %v1020 = vmul.f32 %v1018, 1.442695
    %v1021 = vpow.pop %v1020
    %v1022 = vmul.f32 %v1019, 1.442695
    %v1023 = vpow.pop %v1022
    %v1024 = vsel %vm676, %v1021, 0.0
    %1025 = vadd.xlane.f32.xlu0 %v1024
    %v1026 = vpop.xlane.xlu0 %1025
    %v1027 = vsel %vm676, %v1023, 0.0
    %1028 = vadd.xlane.f32.xlu0 %v1027
    %v1029 = vpop.xlane.xlu0 %1028
    %v1030 = vrcp.pop %v1026
    %v1031 = vrcp.pop %v1029
    %v1032 = vmul.f32 %v1021, %v1030
    %v1033 = vmul.f32 %v1023, %v1031
    %s1034 = scalar_lea.vmem %s33, 96
    %v1035 = vld [vmem:[%s1034] sm:$0xff]
    %v1036 = vld [vmem:[%s1034 + $0x8] sm:$0xff]
    %v1037 = vld [vmem:[%s1034 + $0x10] sm:$0xff]
    %v1038 = vld [vmem:[%s1034 + $0x18] sm:$0xff]
    %1039 = vmatpush.msra.mxu0 0.0
    %1040 = vmatpush.msra.mxu0 0.0
    %1041 = vmatpush.msra.mxu0 0.0
    %1042 = vmatpush.msra.mxu0 0.0
    %1043 = vmatpush.msra.mxu0 0.0
    %1044 = vmatpush.msra.mxu0 0.0
    %1045 = vmatpush.msra.mxu0 0.0
    %1046 = vmatpush.msra.mxu0 0.0
    %1047 = vmatpush.msra.mxu0 0.0
    %1048 = vmatpush.msra.mxu0 0.0
    %1049 = vmatpush.msra.mxu0 0.0
    %1050 = vmatpush.msra.mxu0 0.0
    %1051 = vmatpush.msra.mxu0 %v1038
    %1052 = vmatpush.msra.mxu0 %v1037
    %1053 = vmatpush.msra.mxu0 %v1036
    %1054 = vmatpush.msra.mxu0 %v1035
    %1055 = vmatmul.f32.gmra.mxu0 %v581
    %v1056 = vpop.f32.mrf.mxu0
    %v1057 = vadd.f32 0.0, %v1056
    %1058 = vmatmul.f32.gmra.mxu0 %v584
    %v1059 = vpop.f32.mrf.mxu0
    %v1060 = vadd.f32 0.0, %v1059
    %1061 = vdwg.mxu0
    %v1063 = vsel %vm676, %v1032, 0
    %v1066 = vsel %vm676, %v1033, 0
    %1068 = vmatpush.msra.mxu0 0.0
    %1069 = vmatpush.msra.mxu0 0.0
    %1070 = vmatpush.msra.mxu0 0.0
    %1071 = vmatpush.msra.mxu0 0.0
    %1072 = vmatpush.msra.mxu0 0.0
    %1073 = vmatpush.msra.mxu0 0.0
    %1074 = vmatpush.msra.mxu0 0.0
    %1075 = vmatpush.msra.mxu0 0.0
    %1076 = vmatpush.msra.mxu0 0.0
    %1077 = vmatpush.msra.mxu0 0.0
    %1078 = vmatpush.msra.mxu0 0.0
    %1079 = vmatpush.msra.mxu0 0.0
    %1080 = vmatpush.msra.mxu0 0.0
    %1081 = vmatpush.msra.mxu0 0.0
    %1082 = vmatpush.msra.mxu0 %v1060
    %1083 = vmatpush.msra.mxu0 %v1057
    %1084 = vmatmul.f32.gmra.mxu0 %v1063
    %v1085 = vpop.f32.mrf.mxu0
    %v1086 = vadd.f32 0.0, %v1085
    %1087 = vmatmul.f32.gmra.mxu0 %v1066
    %v1088 = vpop.f32.mrf.mxu0
    %v1089 = vadd.f32 0.0, %v1088
    %1090 = vdwg.mxu0
    %v1091 = vadd.f32 %v979, %v1086
    %v1092 = vadd.f32 %v980, %v1089
    %v1093 = vadd.f32 %v557, %v1091
    %v1094 = vadd.f32 %v558, %v1092
    %v1095 = vld [vmem:[#allocation10] sm:$0x1]
    %v1096 = vld [vmem:[#allocation11] sm:$0x1]
    %v1097 = vsel %vm579, %v1093, 0.0
    %1098 = vadd.xlane.f32.xlu0 %v1097
    %v1099 = vpop.xlane.xlu0 %1098
    %v1100 = vsel %vm579, %v1094, 0.0
    %1101 = vadd.xlane.f32.xlu0 %v1100
    %v1102 = vpop.xlane.xlu0 %1101
    %v1103 = vrcp.pop 32.0
    %v1104 = vmul.f32 32.0, %v1103
    %v1105 = vsub.f32 1.0, %v1104
    %v1106 = vmul.f32 %v1103, %v1105
    %v1107 = vadd.f32 %v1103, %v1106
    %vm1108 = vweird.f32 %v1103
    %v1109 = vsel %vm1108, %v1103, %v1107
    %v1110 = vmul.f32 %v1099, %v1109
    %v1111 = vmul.f32 %v1102, %v1109
    %v1112 = vsub.f32 %v1093, %v1110
    %v1113 = vsub.f32 %v1094, %v1111
    %v1114 = vmul.f32 %v1112, %v1112
    %v1115 = vmul.f32 %v1113, %v1113
    %v1116 = vsel %vm579, %v1114, 0.0
    %1117 = vadd.xlane.f32.xlu0 %v1116
    %v1118 = vpop.xlane.xlu0 %1117
    %v1119 = vsel %vm579, %v1115, 0.0
    %1120 = vadd.xlane.f32.xlu0 %v1119
    %v1121 = vpop.xlane.xlu0 %1120
    %v1122 = vmul.f32 %v1118, %v1109
    %v1123 = vmul.f32 %v1121, %v1109
    %v1124 = vadd.f32 %v1122, 1e-05
    %v1125 = vadd.f32 %v1123, 1e-05
    %v1126 = vrsqrt.pop %v1124
    %v1127 = vmul.f32 %v1126, %v1124
    %v1128 = vmul.f32 %v1127, %v1126
    %v1129 = vmul.f32 0.5, %v1128
    %v1130 = vsub.f32 1.5, %v1129
    %v1131 = vmul.f32 %v1126, %v1130
    %vm1132 = vweird.f32 %v1124
    %vm1133 = vweird.f32 %v1126
    %vm1134 = vmor %vm1132, %vm1133
    %v1135 = vsel %vm1134, %v1126, %v1131
    %v1136 = vrsqrt.pop %v1125
    %v1137 = vmul.f32 %v1136, %v1125
    %v1138 = vmul.f32 %v1137, %v1136
    %v1139 = vmul.f32 0.5, %v1138
    %v1140 = vsub.f32 1.5, %v1139
    %v1141 = vmul.f32 %v1136, %v1140
    %vm1142 = vweird.f32 %v1125
    %vm1143 = vweird.f32 %v1136
    %vm1144 = vmor %vm1142, %vm1143
    %v1145 = vsel %vm1144, %v1136, %v1141
    %v1146 = vmul.f32 %v1112, %v1135
    %v1147 = vmul.f32 %v1113, %v1145
    %v1149 = vperm.slane %v1095, 0
    %v1151 = vmul.f32 %v1146, %v1149
    %v1152 = vmul.f32 %v1147, %v1149
    %v1154 = vperm.slane %v1096, 0
    %v1156 = vadd.f32 %v1151, %v1154
    %v1157 = vadd.f32 %v1152, %v1154
    %v1158 = vld [vmem:[#allocation13] sm:$0xff]
    %v1159 = vld [vmem:[#allocation13 + $0x8] sm:$0xff]
    %v1160 = vld [vmem:[#allocation13 + $0x10] sm:$0xff]
    %v1161 = vld [vmem:[#allocation13 + $0x18] sm:$0xff]
    %v1162 = vld [vmem:[#allocation14] sm:$0x1]
    %v1164 = vperm.slane %v1162, 0
    %v1167 = vsel %vm579, %v1156, 0
    %v1170 = vsel %vm579, %v1157, 0
    %1172 = vmatpush.msra.mxu0 0.0
    %1173 = vmatpush.msra.mxu0 0.0
    %1174 = vmatpush.msra.mxu0 0.0
    %1175 = vmatpush.msra.mxu0 0.0
    %1176 = vmatpush.msra.mxu0 0.0
    %1177 = vmatpush.msra.mxu0 0.0
    %1178 = vmatpush.msra.mxu0 0.0
    %1179 = vmatpush.msra.mxu0 0.0
    %1180 = vmatpush.msra.mxu0 0.0
    %1181 = vmatpush.msra.mxu0 0.0
    %1182 = vmatpush.msra.mxu0 0.0
    %1183 = vmatpush.msra.mxu0 0.0
    %1184 = vmatpush.msra.mxu0 %v1161
    %1185 = vmatpush.msra.mxu0 %v1160
    %1186 = vmatpush.msra.mxu0 %v1159
    %1187 = vmatpush.msra.mxu0 %v1158
    %1188 = vmatmul.f32.gmra.mxu0 %v1167
    %v1189 = vpop.f32.mrf.mxu0
    %v1190 = vadd.f32 %v1164, %v1189
    %1191 = vmatmul.f32.gmra.mxu0 %v1170
    %v1192 = vpop.f32.mrf.mxu0
    %v1193 = vadd.f32 %v1164, %v1192
    %1194 = vdwg.mxu0
    %v1195 = vmul.f32 %v1190, 0.5
    %v1196 = vmul.f32 %v1193, 0.5
    %v1197 = vmul.f32 %v1190, 0.70710677
    %v1198 = vmul.f32 %v1193, 0.70710677
    %v1199 = vmul.f32 %v1197, %v1197
    %v1200 = vmin.f32 16.0, %v1199
    %v1201 = vmul.f32 %v1200, 2.1237322e-06
    %v1202 = vadd.f32 %v1201, 0.00028619796
    %v1203 = vmul.f32 %v1200, %v1202
    %v1204 = vadd.f32 %v1203, 0.0036580483
    %v1205 = vmul.f32 %v1200, %v1204
    %v1206 = vadd.f32 %v1205, 0.05243302
    %v1207 = vmul.f32 %v1200, %v1206
    %v1208 = vadd.f32 %v1207, 0.18741608
    %v1209 = vmul.f32 %v1200, %v1208
    %v1210 = vadd.f32 %v1209, 1.1283791
    %v1211 = vmul.f32 %v1197, %v1210
    %v1212 = vmul.f32 %v1200, 3.8918573e-05
    %v1213 = vadd.f32 %v1212, 0.001143296
    %v1214 = vmul.f32 %v1200, %v1213
    %v1215 = vadd.f32 %v1214, 0.014752088
    %v1216 = vmul.f32 %v1200, %v1215
    %v1217 = vadd.f32 %v1216, 0.112945676
    %v1218 = vmul.f32 %v1200, %v1217
    %v1219 = vadd.f32 %v1218, 0.4994258
    %v1220 = vmul.f32 %v1200, %v1219
    %v1221 = vadd.f32 %v1220, 1.0
    %v1222 = vrcp.pop %v1221
    %v1223 = vmul.f32 %v1221, %v1222
    %v1224 = vsub.f32 1.0, %v1223
    %v1225 = vmul.f32 %v1222, %v1224
    %v1226 = vadd.f32 %v1222, %v1225
    %vm1227 = vweird.f32 %v1221
    %vm1228 = vweird.f32 %v1222
    %vm1229 = vmor %vm1227, %vm1228
    %v1230 = vsel %vm1229, %v1222, %v1226
    %v1231 = vand.u32 2147483647, %v1221
    %vm1232 = vcmp.eq.f32.partialorder %v1231, 8.507059e+37
    %v1233 = vand.u32 %v1221, 2147483648
    %v1234 = vor.u32 1.1754944e-38, %v1233
    %v1235 = vsel %vm1232, %v1234, %v1230
    %v1236 = vmul.f32 %v1211, %v1235
    %v1237 = vmin.f32 %v1236, 1.0
    %v1238 = vmax.f32 %v1237, -1.0
    %v1239 = vmul.f32 %v1198, %v1198
    %v1240 = vmin.f32 16.0, %v1239
    %v1241 = vmul.f32 %v1240, 2.1237322e-06
    %v1242 = vadd.f32 %v1241, 0.00028619796
    %v1243 = vmul.f32 %v1240, %v1242
    %v1244 = vadd.f32 %v1243, 0.0036580483
    %v1245 = vmul.f32 %v1240, %v1244
    %v1246 = vadd.f32 %v1245, 0.05243302
    %v1247 = vmul.f32 %v1240, %v1246
    %v1248 = vadd.f32 %v1247, 0.18741608
    %v1249 = vmul.f32 %v1240, %v1248
    %v1250 = vadd.f32 %v1249, 1.1283791
    %v1251 = vmul.f32 %v1198, %v1250
    %v1252 = vmul.f32 %v1240, 3.8918573e-05
    %v1253 = vadd.f32 %v1252, 0.001143296
    %v1254 = vmul.f32 %v1240, %v1253
    %v1255 = vadd.f32 %v1254, 0.014752088
    %v1256 = vmul.f32 %v1240, %v1255
    %v1257 = vadd.f32 %v1256, 0.112945676
    %v1258 = vmul.f32 %v1240, %v1257
    %v1259 = vadd.f32 %v1258, 0.4994258
    %v1260 = vmul.f32 %v1240, %v1259
    %v1261 = vadd.f32 %v1260, 1.0
    %v1262 = vrcp.pop %v1261
    %v1263 = vmul.f32 %v1261, %v1262
    %v1264 = vsub.f32 1.0, %v1263
    %v1265 = vmul.f32 %v1262, %v1264
    %v1266 = vadd.f32 %v1262, %v1265
    %vm1267 = vweird.f32 %v1261
    %vm1268 = vweird.f32 %v1262
    %vm1269 = vmor %vm1267, %vm1268
    %v1270 = vsel %vm1269, %v1262, %v1266
    %v1271 = vand.u32 2147483647, %v1261
    %vm1272 = vcmp.eq.f32.partialorder %v1271, 8.507059e+37
    %v1273 = vand.u32 %v1261, 2147483648
    %v1274 = vor.u32 1.1754944e-38, %v1273
    %v1275 = vsel %vm1272, %v1274, %v1270
    %v1276 = vmul.f32 %v1251, %v1275
    %v1277 = vmin.f32 %v1276, 1.0
    %v1278 = vmax.f32 %v1277, -1.0
    %v1279 = vadd.f32 %v1238, 1.0
    %v1280 = vadd.f32 %v1278, 1.0
    %v1281 = vmul.f32 %v1195, %v1279
    %v1282 = vmul.f32 %v1196, %v1280
    %v1283 = vld [vmem:[%s45] sm:$0xff]
    %v1284 = vld [vmem:[%s45 + $0x8] sm:$0xff]
    %v1285 = vld [vmem:[%s45 + $0x10] sm:$0xff]
    %v1286 = vld [vmem:[%s45 + $0x18] sm:$0xff]
    %v1287 = vld [vmem:[%s45 + $0x20] sm:$0xff]
    %v1288 = vld [vmem:[%s45 + $0x28] sm:$0xff]
    %v1289 = vld [vmem:[%s45 + $0x30] sm:$0xff]
    %v1290 = vld [vmem:[%s45 + $0x38] sm:$0xff]
    %v1291 = vld [vmem:[#allocation16] sm:$0x1]
    %v1293 = vperm.slane %v1291, 0
    %vm1295 = vcmask 523264
    %v1297 = vsel %vm1295, %v1281, 0
    %v1300 = vsel %vm1295, %v1282, 0
    %1302 = vmatpush.msra.mxu0 0.0
    %1303 = vmatpush.msra.mxu0 0.0
    %1304 = vmatpush.msra.mxu0 0.0
    %1305 = vmatpush.msra.mxu0 0.0
    %1306 = vmatpush.msra.mxu0 0.0
    %1307 = vmatpush.msra.mxu0 0.0
    %1308 = vmatpush.msra.mxu0 0.0
    %1309 = vmatpush.msra.mxu0 0.0
    %1310 = vmatpush.msra.mxu0 %v1290
    %1311 = vmatpush.msra.mxu0 %v1289
    %1312 = vmatpush.msra.mxu0 %v1288
    %1313 = vmatpush.msra.mxu0 %v1287
    %1314 = vmatpush.msra.mxu0 %v1286
    %1315 = vmatpush.msra.mxu0 %v1285
    %1316 = vmatpush.msra.mxu0 %v1284
    %1317 = vmatpush.msra.mxu0 %v1283
    %1318 = vmatmul.f32.gmra.mxu0 %v1297
    %v1319 = vpop.f32.mrf.mxu0
    %v1320 = vadd.f32 %v1293, %v1319
    %1321 = vmatmul.f32.gmra.mxu0 %v1300
    %v1322 = vpop.f32.mrf.mxu0
    %v1323 = vadd.f32 %v1293, %v1322
    %1324 = vdwg.mxu0
    %v1325 = vadd.f32 %v1156, %v1320
    %v1326 = vadd.f32 %v1157, %v1323
    %v1327 = vld [vmem:[#allocation17] sm:$0x1]
    %v1328 = vld [vmem:[#allocation19] sm:$0x1]
    %v1329 = vsel %vm579, %v1325, 0.0
    %1330 = vadd.xlane.f32.xlu0 %v1329
    %v1331 = vpop.xlane.xlu0 %1330
    %v1332 = vsel %vm579, %v1326, 0.0
    %1333 = vadd.xlane.f32.xlu0 %v1332
    %v1334 = vpop.xlane.xlu0 %1333
    %v1335 = vmul.f32 %v1331, %v1109
    %v1336 = vmul.f32 %v1334, %v1109
    %v1337 = vsub.f32 %v1325, %v1335
    %v1338 = vsub.f32 %v1326, %v1336
    %v1339 = vmul.f32 %v1337, %v1337
    %v1340 = vmul.f32 %v1338, %v1338
    %v1341 = vsel %vm579, %v1339, 0.0
    %1342 = vadd.xlane.f32.xlu0 %v1341
    %v1343 = vpop.xlane.xlu0 %1342
    %v1344 = vsel %vm579, %v1340, 0.0
    %1345 = vadd.xlane.f32.xlu0 %v1344
    %v1346 = vpop.xlane.xlu0 %1345
    %v1347 = vmul.f32 %v1343, %v1109
    %v1348 = vmul.f32 %v1346, %v1109
    %v1349 = vadd.f32 %v1347, 1e-05
    %v1350 = vadd.f32 %v1348, 1e-05
    %v1351 = vrsqrt.pop %v1349
    %v1352 = vmul.f32 %v1351, %v1349
    %v1353 = vmul.f32 %v1352, %v1351
    %v1354 = vmul.f32 0.5, %v1353
    %v1355 = vsub.f32 1.5, %v1354
    %v1356 = vmul.f32 %v1351, %v1355
    %vm1357 = vweird.f32 %v1349
    %vm1358 = vweird.f32 %v1351
    %vm1359 = vmor %vm1357, %vm1358
    %v1360 = vsel %vm1359, %v1351, %v1356
    %v1361 = vrsqrt.pop %v1350
    %v1362 = vmul.f32 %v1361, %v1350
    %v1363 = vmul.f32 %v1362, %v1361
    %v1364 = vmul.f32 0.5, %v1363
    %v1365 = vsub.f32 1.5, %v1364
    %v1366 = vmul.f32 %v1361, %v1365
    %vm1367 = vweird.f32 %v1350
    %vm1368 = vweird.f32 %v1361
    %vm1369 = vmor %vm1367, %vm1368
    %v1370 = vsel %vm1369, %v1361, %v1366
    %v1371 = vmul.f32 %v1337, %v1360
    %v1372 = vmul.f32 %v1338, %v1370
    %v1374 = vperm.slane %v1327, 0
    %v1376 = vmul.f32 %v1371, %v1374
    %v1377 = vmul.f32 %v1372, %v1374
    %v1379 = vperm.slane %v1328, 0
    %v1381 = vadd.f32 %v1376, %v1379
    %v1382 = vadd.f32 %v1377, %v1379
    %s1383 = scalar_lea.vmem %s25, 32
    %v1384 = vld [vmem:[%s1383] sm:$0xff]
    %v1385 = vld [vmem:[%s1383 + $0x8] sm:$0xff]
    %v1386 = vld [vmem:[%s1383 + $0x10] sm:$0xff]
    %v1387 = vld [vmem:[%s1383 + $0x18] sm:$0xff]
    %s1388 = scalar_lea.vmem %s27, 1
    %v1389 = vld [vmem:[%s1388] sm:$0x1]
    %s1390 = scalar_lea.vmem [#allocation5], 32
    %v1391 = vld [vmem:[%s1390] sm:$0xff]
    %v1392 = vld [vmem:[%s1390 + $0x8] sm:$0xff]
    %v1393 = vld [vmem:[%s1390 + $0x10] sm:$0xff]
    %v1394 = vld [vmem:[%s1390 + $0x18] sm:$0xff]
    %s1395 = scalar_lea.vmem [#allocation7], 1
    %v1396 = vld [vmem:[%s1395] sm:$0x1]
    %s1397 = scalar_lea.vmem [#allocation8], 1
    %v1398 = vld [vmem:[%s1397] sm:$0x1]
    %v1400 = vperm.slane %v1389, 0
    %v1403 = vsel %vm579, %v1381, 0
    %v1406 = vsel %vm579, %v1382, 0
    %1408 = vmatpush.msra.mxu0 0.0
    %1409 = vmatpush.msra.mxu0 0.0
    %1410 = vmatpush.msra.mxu0 0.0
    %1411 = vmatpush.msra.mxu0 0.0
    %1412 = vmatpush.msra.mxu0 0.0
    %1413 = vmatpush.msra.mxu0 0.0
    %1414 = vmatpush.msra.mxu0 0.0
    %1415 = vmatpush.msra.mxu0 0.0
    %1416 = vmatpush.msra.mxu0 0.0
    %1417 = vmatpush.msra.mxu0 0.0
    %1418 = vmatpush.msra.mxu0 0.0
    %1419 = vmatpush.msra.mxu0 0.0
    %1420 = vmatpush.msra.mxu0 %v1387
    %1421 = vmatpush.msra.mxu0 %v1386
    %1422 = vmatpush.msra.mxu0 %v1385
    %1423 = vmatpush.msra.mxu0 %v1384
    %1424 = vmatmul.f32.gmra.mxu0 %v1403
    %v1425 = vpop.f32.mrf.mxu0
    %v1426 = vadd.f32 %v1400, %v1425
    %1427 = vmatmul.f32.gmra.mxu0 %v1406
    %v1428 = vpop.f32.mrf.mxu0
    %v1429 = vadd.f32 %v1400, %v1428
    %1430 = vdwg.mxu0
    %v1432 = vperm.slane %v1396, 0
    %1434 = vmatpush.msra.mxu0 0.0
    %1435 = vmatpush.msra.mxu0 0.0
    %1436 = vmatpush.msra.mxu0 0.0
    %1437 = vmatpush.msra.mxu0 0.0
    %1438 = vmatpush.msra.mxu0 0.0
    %1439 = vmatpush.msra.mxu0 0.0
    %1440 = vmatpush.msra.mxu0 0.0
    %1441 = vmatpush.msra.mxu0 0.0
    %1442 = vmatpush.msra.mxu0 0.0
    %1443 = vmatpush.msra.mxu0 0.0
    %1444 = vmatpush.msra.mxu0 0.0
    %1445 = vmatpush.msra.mxu0 0.0
    %1446 = vmatpush.msra.mxu0 %v1394
    %1447 = vmatpush.msra.mxu0 %v1393
    %1448 = vmatpush.msra.mxu0 %v1392
    %1449 = vmatpush.msra.mxu0 %v1391
    %1450 = vmatmul.f32.gmra.mxu0 %v1403
    %v1451 = vpop.f32.mrf.mxu0
    %v1452 = vadd.f32 %v1432, %v1451
    %1453 = vmatmul.f32.gmra.mxu0 %v1406
    %v1454 = vpop.f32.mrf.mxu0
    %v1455 = vadd.f32 %v1432, %v1454
    %1456 = vdwg.mxu0
    %v1458 = vperm.slane %v1398, 0
    %v1460 = vadd.f32 %v1458, 0.0
    %v1461 = vmul.f32 %v1426, %v398
    %v1462 = vmul.f32 %v1429, %v398
    %v1464 = vsel %vm579, %v1461, 0
    %v1467 = vsel %vm579, %v1462, 0
    %v1470 = vsel %vm579, %v1452, 0
    %v1473 = vsel %vm579, %v1455, 0
    %1475 = vmatpush.xpose.msra.mxu0 0.0
    %1476 = vmatpush.xpose.msra.mxu0 0.0
    %1477 = vmatpush.xpose.msra.mxu0 0.0
    %1478 = vmatpush.xpose.msra.mxu0 0.0
    %1479 = vmatpush.xpose.msra.mxu0 0.0
    %1480 = vmatpush.xpose.msra.mxu0 0.0
    %1481 = vmatpush.xpose.msra.mxu0 0.0
    %1482 = vmatpush.xpose.msra.mxu0 0.0
    %1483 = vmatpush.xpose.msra.mxu0 0.0
    %1484 = vmatpush.xpose.msra.mxu0 0.0
    %1485 = vmatpush.xpose.msra.mxu0 0.0
    %1486 = vmatpush.xpose.msra.mxu0 0.0
    %1487 = vmatpush.xpose.msra.mxu0 0.0
    %1488 = vmatpush.xpose.msra.mxu0 0.0
    %1489 = vmatpush.xpose.msra.mxu0 %v1473
    %1490 = vmatpush.xpose.msra.mxu0 %v1470
    %1491 = vmatmul.f32.gmra.mxu0 %v1464
    %v1492 = vpop.f32.mrf.mxu0
    %v1493 = vadd.f32 %v562, %v1492
    %1494 = vmatmul.f32.gmra.mxu0 %v1467
    %v1495 = vpop.f32.mrf.mxu0
    %v1496 = vadd.f32 %v563, %v1495
    %1497 = vdwg.mxu0
    %v1498 = vsel %vm676, %v1493, -inf
    %1499 = vmax.xlane.f32.xlu0 %v1498
    %v1500 = vpop.xlane.xlu0 %1499
    %v1501 = vsel %vm676, %v1496, -inf
    %1502 = vmax.xlane.f32.xlu0 %v1501
    %v1503 = vpop.xlane.xlu0 %1502
    %v1504 = vsub.f32 %v1493, %v1500
    %v1505 = vsub.f32 %v1496, %v1503
    %v1506 = vmul.f32 %v1504, 1.442695
    %v1507 = vpow.pop %v1506
    %v1508 = vmul.f32 %v1505, 1.442695
    %v1509 = vpow.pop %v1508
    %v1510 = vsel %vm676, %v1507, 0.0
    %1511 = vadd.xlane.f32.xlu0 %v1510
    %v1512 = vpop.xlane.xlu0 %1511
    %v1513 = vsel %vm676, %v1509, 0.0
    %1514 = vadd.xlane.f32.xlu0 %v1513
    %v1515 = vpop.xlane.xlu0 %1514
    %v1516 = vrcp.pop %v1512
    %v1517 = vrcp.pop %v1515
    %v1518 = vmul.f32 %v1507, %v1516
    %v1519 = vmul.f32 %v1509, %v1517
    %s1520 = scalar_lea.vmem %s33, 128
    %v1521 = vld [vmem:[%s1520] sm:$0xff]
    %v1522 = vld [vmem:[%s1520 + $0x8] sm:$0xff]
    %v1523 = vld [vmem:[%s1520 + $0x10] sm:$0xff]
    %v1524 = vld [vmem:[%s1520 + $0x18] sm:$0xff]
    %1525 = vmatpush.msra.mxu0 0.0
    %1526 = vmatpush.msra.mxu0 0.0
    %1527 = vmatpush.msra.mxu0 0.0
    %1528 = vmatpush.msra.mxu0 0.0
    %1529 = vmatpush.msra.mxu0 0.0
    %1530 = vmatpush.msra.mxu0 0.0
    %1531 = vmatpush.msra.mxu0 0.0
    %1532 = vmatpush.msra.mxu0 0.0
    %1533 = vmatpush.msra.mxu0 0.0
    %1534 = vmatpush.msra.mxu0 0.0
    %1535 = vmatpush.msra.mxu0 0.0
    %1536 = vmatpush.msra.mxu0 0.0
    %1537 = vmatpush.msra.mxu0 %v1524
    %1538 = vmatpush.msra.mxu0 %v1523
    %1539 = vmatpush.msra.mxu0 %v1522
    %1540 = vmatpush.msra.mxu0 %v1521
    %1541 = vmatmul.f32.gmra.mxu0 %v1403
    %v1542 = vpop.f32.mrf.mxu0
    %v1543 = vadd.f32 0.0, %v1542
    %1544 = vmatmul.f32.gmra.mxu0 %v1406
    %v1545 = vpop.f32.mrf.mxu0
    %v1546 = vadd.f32 0.0, %v1545
    %1547 = vdwg.mxu0
    %v1549 = vsel %vm676, %v1518, 0
    %v1552 = vsel %vm676, %v1519, 0
    %1554 = vmatpush.msra.mxu0 0.0
    %1555 = vmatpush.msra.mxu0 0.0
    %1556 = vmatpush.msra.mxu0 0.0
    %1557 = vmatpush.msra.mxu0 0.0
    %1558 = vmatpush.msra.mxu0 0.0
    %1559 = vmatpush.msra.mxu0 0.0
    %1560 = vmatpush.msra.mxu0 0.0
    %1561 = vmatpush.msra.mxu0 0.0
    %1562 = vmatpush.msra.mxu0 0.0
    %1563 = vmatpush.msra.mxu0 0.0
    %1564 = vmatpush.msra.mxu0 0.0
    %1565 = vmatpush.msra.mxu0 0.0
    %1566 = vmatpush.msra.mxu0 0.0
    %1567 = vmatpush.msra.mxu0 0.0
    %1568 = vmatpush.msra.mxu0 %v1546
    %1569 = vmatpush.msra.mxu0 %v1543
    %1570 = vmatmul.f32.gmra.mxu0 %v1549
    %v1571 = vpop.f32.mrf.mxu0
    %v1572 = vadd.f32 0.0, %v1571
    %1573 = vmatmul.f32.gmra.mxu0 %v1552
    %v1574 = vpop.f32.mrf.mxu0
    %v1575 = vadd.f32 0.0, %v1574
    %1576 = vdwg.mxu0
    %v1577 = vadd.f32 %v1460, %v1572
    %v1578 = vadd.f32 %v1460, %v1575
    %v1579 = vmul.f32 %v1426, %v403
    %v1580 = vmul.f32 %v1429, %v403
    %v1582 = vsel %vm579, %v1579, 0
    %v1585 = vsel %vm579, %v1580, 0
    %1587 = vmatpush.xpose.msra.mxu0 0.0
    %1588 = vmatpush.xpose.msra.mxu0 0.0
    %1589 = vmatpush.xpose.msra.mxu0 0.0
    %1590 = vmatpush.xpose.msra.mxu0 0.0
    %1591 = vmatpush.xpose.msra.mxu0 0.0
    %1592 = vmatpush.xpose.msra.mxu0 0.0
    %1593 = vmatpush.xpose.msra.mxu0 0.0
    %1594 = vmatpush.xpose.msra.mxu0 0.0
    %1595 = vmatpush.xpose.msra.mxu0 0.0
    %1596 = vmatpush.xpose.msra.mxu0 0.0
    %1597 = vmatpush.xpose.msra.mxu0 0.0
    %1598 = vmatpush.xpose.msra.mxu0 0.0
    %1599 = vmatpush.xpose.msra.mxu0 0.0
    %1600 = vmatpush.xpose.msra.mxu0 0.0
    %1601 = vmatpush.xpose.msra.mxu0 %v1473
    %1602 = vmatpush.xpose.msra.mxu0 %v1470
    %1603 = vmatmul.f32.gmra.mxu0 %v1582
    %v1604 = vpop.f32.mrf.mxu0
    %v1605 = vadd.f32 %v562, %v1604
    %1606 = vmatmul.f32.gmra.mxu0 %v1585
    %v1607 = vpop.f32.mrf.mxu0
    %v1608 = vadd.f32 %v563, %v1607
    %1609 = vdwg.mxu0
    %v1610 = vsel %vm676, %v1605, -inf
    %1611 = vmax.xlane.f32.xlu0 %v1610
    %v1612 = vpop.xlane.xlu0 %1611
    %v1613 = vsel %vm676, %v1608, -inf
    %1614 = vmax.xlane.f32.xlu0 %v1613
    %v1615 = vpop.xlane.xlu0 %1614
    %v1616 = vsub.f32 %v1605, %v1612
    %v1617 = vsub.f32 %v1608, %v1615
    %v1618 = vmul.f32 %v1616, 1.442695
    %v1619 = vpow.pop %v1618
    %v1620 = vmul.f32 %v1617, 1.442695
    %v1621 = vpow.pop %v1620
    %v1622 = vsel %vm676, %v1619, 0.0
    %1623 = vadd.xlane.f32.xlu0 %v1622
    %v1624 = vpop.xlane.xlu0 %1623
    %v1625 = vsel %vm676, %v1621, 0.0
    %1626 = vadd.xlane.f32.xlu0 %v1625
    %v1627 = vpop.xlane.xlu0 %1626
    %v1628 = vrcp.pop %v1624
    %v1629 = vrcp.pop %v1627
    %v1630 = vmul.f32 %v1619, %v1628
    %v1631 = vmul.f32 %v1621, %v1629
    %s1632 = scalar_lea.vmem %s33, 160
    %v1633 = vld [vmem:[%s1632] sm:$0xff]
    %v1634 = vld [vmem:[%s1632 + $0x8] sm:$0xff]
    %v1635 = vld [vmem:[%s1632 + $0x10] sm:$0xff]
    %v1636 = vld [vmem:[%s1632 + $0x18] sm:$0xff]
    %1637 = vmatpush.msra.mxu0 0.0
    %1638 = vmatpush.msra.mxu0 0.0
    %1639 = vmatpush.msra.mxu0 0.0
    %1640 = vmatpush.msra.mxu0 0.0
    %1641 = vmatpush.msra.mxu0 0.0
    %1642 = vmatpush.msra.mxu0 0.0
    %1643 = vmatpush.msra.mxu0 0.0
    %1644 = vmatpush.msra.mxu0 0.0
    %1645 = vmatpush.msra.mxu0 0.0
    %1646 = vmatpush.msra.mxu0 0.0
    %1647 = vmatpush.msra.mxu0 0.0
    %1648 = vmatpush.msra.mxu0 0.0
    %1649 = vmatpush.msra.mxu0 %v1636
    %1650 = vmatpush.msra.mxu0 %v1635
    %1651 = vmatpush.msra.mxu0 %v1634
    %1652 = vmatpush.msra.mxu0 %v1633
    %1653 = vmatmul.f32.gmra.mxu0 %v1403
    %v1654 = vpop.f32.mrf.mxu0
    %v1655 = vadd.f32 0.0, %v1654
    %1656 = vmatmul.f32.gmra.mxu0 %v1406
    %v1657 = vpop.f32.mrf.mxu0
    %v1658 = vadd.f32 0.0, %v1657
    %1659 = vdwg.mxu0
    %v1661 = vsel %vm676, %v1630, 0
    %v1664 = vsel %vm676, %v1631, 0
    %1666 = vmatpush.msra.mxu0 0.0
    %1667 = vmatpush.msra.mxu0 0.0
    %1668 = vmatpush.msra.mxu0 0.0
    %1669 = vmatpush.msra.mxu0 0.0
    %1670 = vmatpush.msra.mxu0 0.0
    %1671 = vmatpush.msra.mxu0 0.0
    %1672 = vmatpush.msra.mxu0 0.0
    %1673 = vmatpush.msra.mxu0 0.0
    %1674 = vmatpush.msra.mxu0 0.0
    %1675 = vmatpush.msra.mxu0 0.0
    %1676 = vmatpush.msra.mxu0 0.0
    %1677 = vmatpush.msra.mxu0 0.0
    %1678 = vmatpush.msra.mxu0 0.0
    %1679 = vmatpush.msra.mxu0 0.0
    %1680 = vmatpush.msra.mxu0 %v1658
    %1681 = vmatpush.msra.mxu0 %v1655
    %1682 = vmatmul.f32.gmra.mxu0 %v1661
    %v1683 = vpop.f32.mrf.mxu0
    %v1684 = vadd.f32 0.0, %v1683
    %1685 = vmatmul.f32.gmra.mxu0 %v1664
    %v1686 = vpop.f32.mrf.mxu0
    %v1687 = vadd.f32 0.0, %v1686
    %1688 = vdwg.mxu0
    %v1689 = vadd.f32 %v1577, %v1684
    %v1690 = vadd.f32 %v1578, %v1687
    %v1691 = vmul.f32 %v1426, %v408
    %v1692 = vmul.f32 %v1429, %v408
    %v1694 = vsel %vm579, %v1691, 0
    %v1697 = vsel %vm579, %v1692, 0
    %1699 = vmatpush.xpose.msra.mxu0 0.0
    %1700 = vmatpush.xpose.msra.mxu0 0.0
    %1701 = vmatpush.xpose.msra.mxu0 0.0
    %1702 = vmatpush.xpose.msra.mxu0 0.0
    %1703 = vmatpush.xpose.msra.mxu0 0.0
    %1704 = vmatpush.xpose.msra.mxu0 0.0
    %1705 = vmatpush.xpose.msra.mxu0 0.0
    %1706 = vmatpush.xpose.msra.mxu0 0.0
    %1707 = vmatpush.xpose.msra.mxu0 0.0
    %1708 = vmatpush.xpose.msra.mxu0 0.0
    %1709 = vmatpush.xpose.msra.mxu0 0.0
    %1710 = vmatpush.xpose.msra.mxu0 0.0
    %1711 = vmatpush.xpose.msra.mxu0 0.0
    %1712 = vmatpush.xpose.msra.mxu0 0.0
    %1713 = vmatpush.xpose.msra.mxu0 %v1473
    %1714 = vmatpush.xpose.msra.mxu0 %v1470
    %1715 = vmatmul.f32.gmra.mxu0 %v1694
    %v1716 = vpop.f32.mrf.mxu0
    %v1717 = vadd.f32 %v562, %v1716
    %1718 = vmatmul.f32.gmra.mxu0 %v1697
    %v1719 = vpop.f32.mrf.mxu0
    %v1720 = vadd.f32 %v563, %v1719
    %1721 = vdwg.mxu0
    %v1722 = vsel %vm676, %v1717, -inf
    %1723 = vmax.xlane.f32.xlu0 %v1722
    %v1724 = vpop.xlane.xlu0 %1723
    %v1725 = vsel %vm676, %v1720, -inf
    %1726 = vmax.xlane.f32.xlu0 %v1725
    %v1727 = vpop.xlane.xlu0 %1726
    %v1728 = vsub.f32 %v1717, %v1724
    %v1729 = vsub.f32 %v1720, %v1727
    %v1730 = vmul.f32 %v1728, 1.442695
    %v1731 = vpow.pop %v1730
    %v1732 = vmul.f32 %v1729, 1.442695
    %v1733 = vpow.pop %v1732
    %v1734 = vsel %vm676, %v1731, 0.0
    %1735 = vadd.xlane.f32.xlu0 %v1734
    %v1736 = vpop.xlane.xlu0 %1735
    %v1737 = vsel %vm676, %v1733, 0.0
    %1738 = vadd.xlane.f32.xlu0 %v1737
    %v1739 = vpop.xlane.xlu0 %1738
    %v1740 = vrcp.pop %v1736
    %v1741 = vrcp.pop %v1739
    %v1742 = vmul.f32 %v1731, %v1740
    %v1743 = vmul.f32 %v1733, %v1741
    %s1744 = scalar_lea.vmem %s33, 192
    %v1745 = vld [vmem:[%s1744] sm:$0xff]
    %v1746 = vld [vmem:[%s1744 + $0x8] sm:$0xff]
    %v1747 = vld [vmem:[%s1744 + $0x10] sm:$0xff]
    %v1748 = vld [vmem:[%s1744 + $0x18] sm:$0xff]
    %1749 = vmatpush.msra.mxu0 0.0
    %1750 = vmatpush.msra.mxu0 0.0
    %1751 = vmatpush.msra.mxu0 0.0
    %1752 = vmatpush.msra.mxu0 0.0
    %1753 = vmatpush.msra.mxu0 0.0
    %1754 = vmatpush.msra.mxu0 0.0
    %1755 = vmatpush.msra.mxu0 0.0
    %1756 = vmatpush.msra.mxu0 0.0
    %1757 = vmatpush.msra.mxu0 0.0
    %1758 = vmatpush.msra.mxu0 0.0
    %1759 = vmatpush.msra.mxu0 0.0
    %1760 = vmatpush.msra.mxu0 0.0
    %1761 = vmatpush.msra.mxu0 %v1748
    %1762 = vmatpush.msra.mxu0 %v1747
    %1763 = vmatpush.msra.mxu0 %v1746
    %1764 = vmatpush.msra.mxu0 %v1745
    %1765 = vmatmul.f32.gmra.mxu0 %v1403
    %v1766 = vpop.f32.mrf.mxu0
    %v1767 = vadd.f32 0.0, %v1766
    %1768 = vmatmul.f32.gmra.mxu0 %v1406
    %v1769 = vpop.f32.mrf.mxu0
    %v1770 = vadd.f32 0.0, %v1769
    %1771 = vdwg.mxu0
    %v1773 = vsel %vm676, %v1742, 0
    %v1776 = vsel %vm676, %v1743, 0
    %1778 = vmatpush.msra.mxu0 0.0
    %1779 = vmatpush.msra.mxu0 0.0
    %1780 = vmatpush.msra.mxu0 0.0
    %1781 = vmatpush.msra.mxu0 0.0
    %1782 = vmatpush.msra.mxu0 0.0
    %1783 = vmatpush.msra.mxu0 0.0
    %1784 = vmatpush.msra.mxu0 0.0
    %1785 = vmatpush.msra.mxu0 0.0
    %1786 = vmatpush.msra.mxu0 0.0
    %1787 = vmatpush.msra.mxu0 0.0
    %1788 = vmatpush.msra.mxu0 0.0
    %1789 = vmatpush.msra.mxu0 0.0
    %1790 = vmatpush.msra.mxu0 0.0
    %1791 = vmatpush.msra.mxu0 0.0
    %1792 = vmatpush.msra.mxu0 %v1770
    %1793 = vmatpush.msra.mxu0 %v1767
    %1794 = vmatmul.f32.gmra.mxu0 %v1773
    %v1795 = vpop.f32.mrf.mxu0
    %v1796 = vadd.f32 0.0, %v1795
    %1797 = vmatmul.f32.gmra.mxu0 %v1776
    %v1798 = vpop.f32.mrf.mxu0
    %v1799 = vadd.f32 0.0, %v1798
    %1800 = vdwg.mxu0
    %v1801 = vadd.f32 %v1689, %v1796
    %v1802 = vadd.f32 %v1690, %v1799
    %v1803 = vmul.f32 %v1426, %v413
    %v1804 = vmul.f32 %v1429, %v413
    %v1806 = vsel %vm579, %v1803, 0
    %v1809 = vsel %vm579, %v1804, 0
    %1811 = vmatpush.xpose.msra.mxu0 0.0
    %1812 = vmatpush.xpose.msra.mxu0 0.0
    %1813 = vmatpush.xpose.msra.mxu0 0.0
    %1814 = vmatpush.xpose.msra.mxu0 0.0
    %1815 = vmatpush.xpose.msra.mxu0 0.0
    %1816 = vmatpush.xpose.msra.mxu0 0.0
    %1817 = vmatpush.xpose.msra.mxu0 0.0
    %1818 = vmatpush.xpose.msra.mxu0 0.0
    %1819 = vmatpush.xpose.msra.mxu0 0.0
    %1820 = vmatpush.xpose.msra.mxu0 0.0
    %1821 = vmatpush.xpose.msra.mxu0 0.0
    %1822 = vmatpush.xpose.msra.mxu0 0.0
    %1823 = vmatpush.xpose.msra.mxu0 0.0
    %1824 = vmatpush.xpose.msra.mxu0 0.0
    %1825 = vmatpush.xpose.msra.mxu0 %v1473
    %1826 = vmatpush.xpose.msra.mxu0 %v1470
    %1827 = vmatmul.f32.gmra.mxu0 %v1806
    %v1828 = vpop.f32.mrf.mxu0
    %v1829 = vadd.f32 %v562, %v1828
    %1830 = vmatmul.f32.gmra.mxu0 %v1809
    %v1831 = vpop.f32.mrf.mxu0
    %v1832 = vadd.f32 %v563, %v1831
    %1833 = vdwg.mxu0
    %v1834 = vsel %vm676, %v1829, -inf
    %1835 = vmax.xlane.f32.xlu0 %v1834
    %v1836 = vpop.xlane.xlu0 %1835
    %v1837 = vsel %vm676, %v1832, -inf
    %1838 = vmax.xlane.f32.xlu0 %v1837
    %v1839 = vpop.xlane.xlu0 %1838
    %v1840 = vsub.f32 %v1829, %v1836
    %v1841 = vsub.f32 %v1832, %v1839
    %v1842 = vmul.f32 %v1840, 1.442695
    %v1843 = vpow.pop %v1842
    %v1844 = vmul.f32 %v1841, 1.442695
    %v1845 = vpow.pop %v1844
    %v1846 = vsel %vm676, %v1843, 0.0
    %1847 = vadd.xlane.f32.xlu0 %v1846
    %v1848 = vpop.xlane.xlu0 %1847
    %v1849 = vsel %vm676, %v1845, 0.0
    %1850 = vadd.xlane.f32.xlu0 %v1849
    %v1851 = vpop.xlane.xlu0 %1850
    %v1852 = vrcp.pop %v1848
    %v1853 = vrcp.pop %v1851
    %v1854 = vmul.f32 %v1843, %v1852
    %v1855 = vmul.f32 %v1845, %v1853
    %s1856 = scalar_lea.vmem %s33, 224
    %v1857 = vld [vmem:[%s1856] sm:$0xff]
    %v1858 = vld [vmem:[%s1856 + $0x8] sm:$0xff]
    %v1859 = vld [vmem:[%s1856 + $0x10] sm:$0xff]
    %v1860 = vld [vmem:[%s1856 + $0x18] sm:$0xff]
    %1861 = vmatpush.msra.mxu0 0.0
    %1862 = vmatpush.msra.mxu0 0.0
    %1863 = vmatpush.msra.mxu0 0.0
    %1864 = vmatpush.msra.mxu0 0.0
    %1865 = vmatpush.msra.mxu0 0.0
    %1866 = vmatpush.msra.mxu0 0.0
    %1867 = vmatpush.msra.mxu0 0.0
    %1868 = vmatpush.msra.mxu0 0.0
    %1869 = vmatpush.msra.mxu0 0.0
    %1870 = vmatpush.msra.mxu0 0.0
    %1871 = vmatpush.msra.mxu0 0.0
    %1872 = vmatpush.msra.mxu0 0.0
    %1873 = vmatpush.msra.mxu0 %v1860
    %1874 = vmatpush.msra.mxu0 %v1859
    %1875 = vmatpush.msra.mxu0 %v1858
    %1876 = vmatpush.msra.mxu0 %v1857
    %1877 = vmatmul.f32.gmra.mxu0 %v1403
    %v1878 = vpop.f32.mrf.mxu0
    %v1879 = vadd.f32 0.0, %v1878
    %1880 = vmatmul.f32.gmra.mxu0 %v1406
    %v1881 = vpop.f32.mrf.mxu0
    %v1882 = vadd.f32 0.0, %v1881
    %1883 = vdwg.mxu0
    %v1885 = vsel %vm676, %v1854, 0
    %v1888 = vsel %vm676, %v1855, 0
    %1890 = vmatpush.msra.mxu0 0.0
    %1891 = vmatpush.msra.mxu0 0.0
    %1892 = vmatpush.msra.mxu0 0.0
    %1893 = vmatpush.msra.mxu0 0.0
    %1894 = vmatpush.msra.mxu0 0.0
    %1895 = vmatpush.msra.mxu0 0.0
    %1896 = vmatpush.msra.mxu0 0.0
    %1897 = vmatpush.msra.mxu0 0.0
    %1898 = vmatpush.msra.mxu0 0.0
    %1899 = vmatpush.msra.mxu0 0.0
    %1900 = vmatpush.msra.mxu0 0.0
    %1901 = vmatpush.msra.mxu0 0.0
    %1902 = vmatpush.msra.mxu0 0.0
    %1903 = vmatpush.msra.mxu0 0.0
    %1904 = vmatpush.msra.mxu0 %v1882
    %1905 = vmatpush.msra.mxu0 %v1879
    %1906 = vmatmul.f32.gmra.mxu0 %v1885
    %v1907 = vpop.f32.mrf.mxu0
    %v1908 = vadd.f32 0.0, %v1907
    %1909 = vmatmul.f32.gmra.mxu0 %v1888
    %v1910 = vpop.f32.mrf.mxu0
    %v1911 = vadd.f32 0.0, %v1910
    %1912 = vdwg.mxu0
    %v1913 = vadd.f32 %v1801, %v1908
    %v1914 = vadd.f32 %v1802, %v1911
    %v1915 = vadd.f32 %v1381, %v1913
    %v1916 = vadd.f32 %v1382, %v1914
    %s1917 = scalar_lea.vmem [#allocation10], 1
    %v1918 = vld [vmem:[%s1917] sm:$0x1]
    %s1919 = scalar_lea.vmem [#allocation11], 1
    %v1920 = vld [vmem:[%s1919] sm:$0x1]
    %v1921 = vsel %vm579, %v1915, 0.0
    %1922 = vadd.xlane.f32.xlu0 %v1921
    %v1923 = vpop.xlane.xlu0 %1922
    %v1924 = vsel %vm579, %v1916, 0.0
    %1925 = vadd.xlane.f32.xlu0 %v1924
    %v1926 = vpop.xlane.xlu0 %1925
    %v1927 = vmul.f32 %v1923, %v1109
    %v1928 = vmul.f32 %v1926, %v1109
    %v1929 = vsub.f32 %v1915, %v1927
    %v1930 = vsub.f32 %v1916, %v1928
    %v1931 = vmul.f32 %v1929, %v1929
    %v1932 = vmul.f32 %v1930, %v1930
    %v1933 = vsel %vm579, %v1931, 0.0
    %1934 = vadd.xlane.f32.xlu0 %v1933
    %v1935 = vpop.xlane.xlu0 %1934
    %v1936 = vsel %vm579, %v1932, 0.0
    %1937 = vadd.xlane.f32.xlu0 %v1936
    %v1938 = vpop.xlane.xlu0 %1937
    %v1939 = vmul.f32 %v1935, %v1109
    %v1940 = vmul.f32 %v1938, %v1109
    %v1941 = vadd.f32 %v1939, 1e-05
    %v1942 = vadd.f32 %v1940, 1e-05
    %v1943 = vrsqrt.pop %v1941
    %v1944 = vmul.f32 %v1943, %v1941
    %v1945 = vmul.f32 %v1944, %v1943
    %v1946 = vmul.f32 0.5, %v1945
    %v1947 = vsub.f32 1.5, %v1946
    %v1948 = vmul.f32 %v1943, %v1947
    %vm1949 = vweird.f32 %v1941
    %vm1950 = vweird.f32 %v1943
    %vm1951 = vmor %vm1949, %vm1950
    %v1952 = vsel %vm1951, %v1943, %v1948
    %v1953 = vrsqrt.pop %v1942
    %v1954 = vmul.f32 %v1953, %v1942
    %v1955 = vmul.f32 %v1954, %v1953
    %v1956 = vmul.f32 0.5, %v1955
    %v1957 = vsub.f32 1.5, %v1956
    %v1958 = vmul.f32 %v1953, %v1957
    %vm1959 = vweird.f32 %v1942
    %vm1960 = vweird.f32 %v1953
    %vm1961 = vmor %vm1959, %vm1960
    %v1962 = vsel %vm1961, %v1953, %v1958
    %v1963 = vmul.f32 %v1929, %v1952
    %v1964 = vmul.f32 %v1930, %v1962
    %v1966 = vperm.slane %v1918, 0
    %v1968 = vmul.f32 %v1963, %v1966
    %v1969 = vmul.f32 %v1964, %v1966
    %v1971 = vperm.slane %v1920, 0
    %v1973 = vadd.f32 %v1968, %v1971
    %v1974 = vadd.f32 %v1969, %v1971
    %s1975 = scalar_lea.vmem [#allocation13], 32
    %v1976 = vld [vmem:[%s1975] sm:$0xff]
    %v1977 = vld [vmem:[%s1975 + $0x8] sm:$0xff]
    %v1978 = vld [vmem:[%s1975 + $0x10] sm:$0xff]
    %v1979 = vld [vmem:[%s1975 + $0x18] sm:$0xff]
    %s1980 = scalar_lea.vmem [#allocation14], 1
    %v1981 = vld [vmem:[%s1980] sm:$0x1]
    %v1983 = vperm.slane %v1981, 0
    %v1986 = vsel %vm579, %v1973, 0
    %v1989 = vsel %vm579, %v1974, 0
    %1991 = vmatpush.msra.mxu0 0.0
    %1992 = vmatpush.msra.mxu0 0.0
    %1993 = vmatpush.msra.mxu0 0.0
    %1994 = vmatpush.msra.mxu0 0.0
    %1995 = vmatpush.msra.mxu0 0.0
    %1996 = vmatpush.msra.mxu0 0.0
    %1997 = vmatpush.msra.mxu0 0.0
    %1998 = vmatpush.msra.mxu0 0.0
    %1999 = vmatpush.msra.mxu0 0.0
    %2000 = vmatpush.msra.mxu0 0.0
    %2001 = vmatpush.msra.mxu0 0.0
    %2002 = vmatpush.msra.mxu0 0.0
    %2003 = vmatpush.msra.mxu0 %v1979
    %2004 = vmatpush.msra.mxu0 %v1978
    %2005 = vmatpush.msra.mxu0 %v1977
    %2006 = vmatpush.msra.mxu0 %v1976
    %2007 = vmatmul.f32.gmra.mxu0 %v1986
    %v2008 = vpop.f32.mrf.mxu0
    %v2009 = vadd.f32 %v1983, %v2008
    %2010 = vmatmul.f32.gmra.mxu0 %v1989
    %v2011 = vpop.f32.mrf.mxu0
    %v2012 = vadd.f32 %v1983, %v2011
    %2013 = vdwg.mxu0
    %v2014 = vmul.f32 %v2009, 0.5
    %v2015 = vmul.f32 %v2012, 0.5
    %v2016 = vmul.f32 %v2009, 0.70710677
    %v2017 = vmul.f32 %v2012, 0.70710677
    %v2018 = vmul.f32 %v2016, %v2016
    %v2019 = vmin.f32 16.0, %v2018
    %v2020 = vmul.f32 %v2019, 2.1237322e-06
    %v2021 = vadd.f32 %v2020, 0.00028619796
    %v2022 = vmul.f32 %v2019, %v2021
    %v2023 = vadd.f32 %v2022, 0.0036580483
    %v2024 = vmul.f32 %v2019, %v2023
    %v2025 = vadd.f32 %v2024, 0.05243302
    %v2026 = vmul.f32 %v2019, %v2025
    %v2027 = vadd.f32 %v2026, 0.18741608
    %v2028 = vmul.f32 %v2019, %v2027
    %v2029 = vadd.f32 %v2028, 1.1283791
    %v2030 = vmul.f32 %v2016, %v2029
    %v2031 = vmul.f32 %v2019, 3.8918573e-05
    %v2032 = vadd.f32 %v2031, 0.001143296
    %v2033 = vmul.f32 %v2019, %v2032
    %v2034 = vadd.f32 %v2033, 0.014752088
    %v2035 = vmul.f32 %v2019, %v2034
    %v2036 = vadd.f32 %v2035, 0.112945676
    %v2037 = vmul.f32 %v2019, %v2036
    %v2038 = vadd.f32 %v2037, 0.4994258
    %v2039 = vmul.f32 %v2019, %v2038
    %v2040 = vadd.f32 %v2039, 1.0
    %v2041 = vrcp.pop %v2040
    %v2042 = vmul.f32 %v2040, %v2041
    %v2043 = vsub.f32 1.0, %v2042
    %v2044 = vmul.f32 %v2041, %v2043
    %v2045 = vadd.f32 %v2041, %v2044
    %vm2046 = vweird.f32 %v2040
    %vm2047 = vweird.f32 %v2041
    %vm2048 = vmor %vm2046, %vm2047
    %v2049 = vsel %vm2048, %v2041, %v2045
    %v2050 = vand.u32 2147483647, %v2040
    %vm2051 = vcmp.eq.f32.partialorder %v2050, 8.507059e+37
    %v2052 = vand.u32 %v2040, 2147483648
    %v2053 = vor.u32 1.1754944e-38, %v2052
    %v2054 = vsel %vm2051, %v2053, %v2049
    %v2055 = vmul.f32 %v2030, %v2054
    %v2056 = vmin.f32 %v2055, 1.0
    %v2057 = vmax.f32 %v2056, -1.0
    %v2058 = vmul.f32 %v2017, %v2017
    %v2059 = vmin.f32 16.0, %v2058
    %v2060 = vmul.f32 %v2059, 2.1237322e-06
    %v2061 = vadd.f32 %v2060, 0.00028619796
    %v2062 = vmul.f32 %v2059, %v2061
    %v2063 = vadd.f32 %v2062, 0.0036580483
    %v2064 = vmul.f32 %v2059, %v2063
    %v2065 = vadd.f32 %v2064, 0.05243302
    %v2066 = vmul.f32 %v2059, %v2065
    %v2067 = vadd.f32 %v2066, 0.18741608
    %v2068 = vmul.f32 %v2059, %v2067
    %v2069 = vadd.f32 %v2068, 1.1283791
    %v2070 = vmul.f32 %v2017, %v2069
    %v2071 = vmul.f32 %v2059, 3.8918573e-05
    %v2072 = vadd.f32 %v2071, 0.001143296
    %v2073 = vmul.f32 %v2059, %v2072
    %v2074 = vadd.f32 %v2073, 0.014752088
    %v2075 = vmul.f32 %v2059, %v2074
    %v2076 = vadd.f32 %v2075, 0.112945676
    %v2077 = vmul.f32 %v2059, %v2076
    %v2078 = vadd.f32 %v2077, 0.4994258
    %v2079 = vmul.f32 %v2059, %v2078
    %v2080 = vadd.f32 %v2079, 1.0
    %v2081 = vrcp.pop %v2080
    %v2082 = vmul.f32 %v2080, %v2081
    %v2083 = vsub.f32 1.0, %v2082
    %v2084 = vmul.f32 %v2081, %v2083
    %v2085 = vadd.f32 %v2081, %v2084
    %vm2086 = vweird.f32 %v2080
    %vm2087 = vweird.f32 %v2081
    %vm2088 = vmor %vm2086, %vm2087
    %v2089 = vsel %vm2088, %v2081, %v2085
    %v2090 = vand.u32 2147483647, %v2080
    %vm2091 = vcmp.eq.f32.partialorder %v2090, 8.507059e+37
    %v2092 = vand.u32 %v2080, 2147483648
    %v2093 = vor.u32 1.1754944e-38, %v2092
    %v2094 = vsel %vm2091, %v2093, %v2089
    %v2095 = vmul.f32 %v2070, %v2094
    %v2096 = vmin.f32 %v2095, 1.0
    %v2097 = vmax.f32 %v2096, -1.0
    %v2098 = vadd.f32 %v2057, 1.0
    %v2099 = vadd.f32 %v2097, 1.0
    %v2100 = vmul.f32 %v2014, %v2098
    %v2101 = vmul.f32 %v2015, %v2099
    %s2102 = scalar_lea.vmem %s45, 64
    %v2103 = vld [vmem:[%s2102] sm:$0xff]
    %v2104 = vld [vmem:[%s2102 + $0x8] sm:$0xff]
    %v2105 = vld [vmem:[%s2102 + $0x10] sm:$0xff]
    %v2106 = vld [vmem:[%s2102 + $0x18] sm:$0xff]
    %v2107 = vld [vmem:[%s2102 + $0x20] sm:$0xff]
    %v2108 = vld [vmem:[%s2102 + $0x28] sm:$0xff]
    %v2109 = vld [vmem:[%s2102 + $0x30] sm:$0xff]
    %v2110 = vld [vmem:[%s2102 + $0x38] sm:$0xff]
    %s2111 = scalar_lea.vmem [#allocation16], 1
    %v2112 = vld [vmem:[%s2111] sm:$0x1]
    %v2114 = vperm.slane %v2112, 0
    %v2117 = vsel %vm1295, %v2100, 0
    %v2120 = vsel %vm1295, %v2101, 0
    %2122 = vmatpush.msra.mxu0 0.0
    %2123 = vmatpush.msra.mxu0 0.0
    %2124 = vmatpush.msra.mxu0 0.0
    %2125 = vmatpush.msra.mxu0 0.0
    %2126 = vmatpush.msra.mxu0 0.0
    %2127 = vmatpush.msra.mxu0 0.0
    %2128 = vmatpush.msra.mxu0 0.0
    %2129 = vmatpush.msra.mxu0 0.0
    %2130 = vmatpush.msra.mxu0 %v2110
    %2131 = vmatpush.msra.mxu0 %v2109
    %2132 = vmatpush.msra.mxu0 %v2108
    %2133 = vmatpush.msra.mxu0 %v2107
    %2134 = vmatpush.msra.mxu0 %v2106
    %2135 = vmatpush.msra.mxu0 %v2105
    %2136 = vmatpush.msra.mxu0 %v2104
    %2137 = vmatpush.msra.mxu0 %v2103
    %2138 = vmatmul.f32.gmra.mxu0 %v2117
    %v2139 = vpop.f32.mrf.mxu0
    %v2140 = vadd.f32 %v2114, %v2139
    %2141 = vmatmul.f32.gmra.mxu0 %v2120
    %v2142 = vpop.f32.mrf.mxu0
    %v2143 = vadd.f32 %v2114, %v2142
    %2144 = vdwg.mxu0
    %v2145 = vadd.f32 %v1973, %v2140
    %v2146 = vadd.f32 %v1974, %v2143
    %s2147 = scalar_lea.vmem [#allocation17], 1
    %v2148 = vld [vmem:[%s2147] sm:$0x1]
    %s2149 = scalar_lea.vmem [#allocation19], 1
    %v2150 = vld [vmem:[%s2149] sm:$0x1]
    %v2151 = vsel %vm579, %v2145, 0.0
    %2152 = vadd.xlane.f32.xlu0 %v2151
    %v2153 = vpop.xlane.xlu0 %2152
    %v2154 = vsel %vm579, %v2146, 0.0
    %2155 = vadd.xlane.f32.xlu0 %v2154
    %v2156 = vpop.xlane.xlu0 %2155
    %v2157 = vmul.f32 %v2153, %v1109
    %v2158 = vmul.f32 %v2156, %v1109
    %v2159 = vsub.f32 %v2145, %v2157
    %v2160 = vsub.f32 %v2146, %v2158
    %v2161 = vmul.f32 %v2159, %v2159
    %v2162 = vmul.f32 %v2160, %v2160
    %v2163 = vsel %vm579, %v2161, 0.0
    %2164 = vadd.xlane.f32.xlu0 %v2163
    %v2165 = vpop.xlane.xlu0 %2164
    %v2166 = vsel %vm579, %v2162, 0.0
    %2167 = vadd.xlane.f32.xlu0 %v2166
    %v2168 = vpop.xlane.xlu0 %2167
    %v2169 = vmul.f32 %v2165, %v1109
    %v2170 = vmul.f32 %v2168, %v1109
    %v2171 = vadd.f32 %v2169, 1e-05
    %v2172 = vadd.f32 %v2170, 1e-05
    %v2173 = vrsqrt.pop %v2171
    %v2174 = vmul.f32 %v2173, %v2171
    %v2175 = vmul.f32 %v2174, %v2173
    %v2176 = vmul.f32 0.5, %v2175
    %v2177 = vsub.f32 1.5, %v2176
    %v2178 = vmul.f32 %v2173, %v2177
    %vm2179 = vweird.f32 %v2171
    %vm2180 = vweird.f32 %v2173
    %vm2181 = vmor %vm2179, %vm2180
    %v2182 = vsel %vm2181, %v2173, %v2178
    %v2183 = vrsqrt.pop %v2172
    %v2184 = vmul.f32 %v2183, %v2172
    %v2185 = vmul.f32 %v2184, %v2183
    %v2186 = vmul.f32 0.5, %v2185
    %v2187 = vsub.f32 1.5, %v2186
    %v2188 = vmul.f32 %v2183, %v2187
    %vm2189 = vweird.f32 %v2172
    %vm2190 = vweird.f32 %v2183
    %vm2191 = vmor %vm2189, %vm2190
    %v2192 = vsel %vm2191, %v2183, %v2188
    %v2193 = vmul.f32 %v2159, %v2182
    %v2194 = vmul.f32 %v2160, %v2192
    %v2196 = vperm.slane %v2148, 0
    %v2198 = vmul.f32 %v2193, %v2196
    %v2199 = vmul.f32 %v2194, %v2196
    %v2201 = vperm.slane %v2150, 0
    %v2203 = vadd.f32 %v2198, %v2201
    %v2204 = vadd.f32 %v2199, %v2201
    %s2205 = scalar_lea.vmem %s25, 64
    %v2206 = vld [vmem:[%s2205] sm:$0xff]
    %v2207 = vld [vmem:[%s2205 + $0x8] sm:$0xff]
    %v2208 = vld [vmem:[%s2205 + $0x10] sm:$0xff]
    %v2209 = vld [vmem:[%s2205 + $0x18] sm:$0xff]
    %s2210 = scalar_lea.vmem %s27, 2
    %v2211 = vld [vmem:[%s2210] sm:$0x1]
    %s2212 = scalar_lea.vmem [#allocation5], 64
    %v2213 = vld [vmem:[%s2212] sm:$0xff]
    %v2214 = vld [vmem:[%s2212 + $0x8] sm:$0xff]
    %v2215 = vld [vmem:[%s2212 + $0x10] sm:$0xff]
    %v2216 = vld [vmem:[%s2212 + $0x18] sm:$0xff]
    %s2217 = scalar_lea.vmem [#allocation7], 2
    %v2218 = vld [vmem:[%s2217] sm:$0x1]
    %s2219 = scalar_lea.vmem [#allocation8], 2
    %v2220 = vld [vmem:[%s2219] sm:$0x1]
    %v2222 = vperm.slane %v2211, 0
    %2226 = vst [vmem:[#allocation1] ss:$2 sm:$0xff] %v560
    %s2227 = scalar_lea.vmem [#allocation1], 1
    %2228 = vst [vmem:[%s2227] ss:$2 sm:$0xff] %v561
    %v2229 = vld.sshfl [vmem:[#allocation1] sm:$0xff pattern:$0x75316420]
    %v2230 = vsel %vm579, %v2229, 0
    %2232 = vmatpush.msra.mxu0 0.0
    %2233 = vmatpush.msra.mxu0 0.0
    %2234 = vmatpush.msra.mxu0 0.0
    %2235 = vmatpush.msra.mxu0 0.0
    %2236 = vmatpush.msra.mxu0 0.0
    %2237 = vmatpush.msra.mxu0 0.0
    %2238 = vmatpush.msra.mxu0 0.0
    %2239 = vmatpush.msra.mxu0 0.0
    %2240 = vmatpush.msra.mxu0 0.0
    %2241 = vmatpush.msra.mxu0 0.0
    %2242 = vmatpush.msra.mxu0 0.0
    %2243 = vmatpush.msra.mxu0 0.0
    %2244 = vmatpush.msra.mxu0 %v2209
    %2245 = vmatpush.msra.mxu0 %v2208
    %2246 = vmatpush.msra.mxu0 %v2207
    %2247 = vmatpush.msra.mxu0 %v2206
    %2248 = vmatmul.f32.gmra.mxu0 %v2230
    %v2249 = vpop.f32.mrf.mxu0
    %v2250 = vadd.f32 %v2222, %v2249
    %2251 = vdwg.mxu0
    %v2253 = vperm.slane %v2218, 0
    %2255 = vst [vmem:[#allocation1] ss:$2 sm:$0xff] %v560
    %s2256 = scalar_lea.vmem [#allocation1], 1
    %2257 = vst [vmem:[%s2256] ss:$2 sm:$0xff] %v561
    %v2258 = vld.sshfl [vmem:[#allocation1] sm:$0xff pattern:$0x75316420]
    %v2259 = vsel %vm579, %v2258, 0
    %2261 = vmatpush.msra.mxu0 0.0
    %2262 = vmatpush.msra.mxu0 0.0
    %2263 = vmatpush.msra.mxu0 0.0
    %2264 = vmatpush.msra.mxu0 0.0
    %2265 = vmatpush.msra.mxu0 0.0
    %2266 = vmatpush.msra.mxu0 0.0
    %2267 = vmatpush.msra.mxu0 0.0
    %2268 = vmatpush.msra.mxu0 0.0
    %2269 = vmatpush.msra.mxu0 0.0
    %2270 = vmatpush.msra.mxu0 0.0
    %2271 = vmatpush.msra.mxu0 0.0
    %2272 = vmatpush.msra.mxu0 0.0
    %2273 = vmatpush.msra.mxu0 %v2216
    %2274 = vmatpush.msra.mxu0 %v2215
    %2275 = vmatpush.msra.mxu0 %v2214
    %2276 = vmatpush.msra.mxu0 %v2213
    %2277 = vmatmul.f32.gmra.mxu0 %v2259
    %v2278 = vpop.f32.mrf.mxu0
    %v2279 = vadd.f32 %v2253, %v2278
    %2280 = vdwg.mxu0
    %v2282 = vperm.slane %v2220, 0
    %v2284 = vadd.f32 %v2282, 0.0
    %v2285 = vmul.f32 %v2250, %v398
    %v2287 = vsel %vm579, %v2285, 0
    %v2290 = vsel %vm579, %v2279, 0
    %2292 = vmatpush.xpose.msra.mxu0 0.0
    %2293 = vmatpush.xpose.msra.mxu0 0.0
    %2294 = vmatpush.xpose.msra.mxu0 0.0
    %2295 = vmatpush.xpose.msra.mxu0 0.0
    %2296 = vmatpush.xpose.msra.mxu0 0.0
    %2297 = vmatpush.xpose.msra.mxu0 0.0
    %2298 = vmatpush.xpose.msra.mxu0 0.0
    %2299 = vmatpush.xpose.msra.mxu0 0.0
    %2300 = vmatpush.xpose.msra.mxu0 0.0
    %2301 = vmatpush.xpose.msra.mxu0 0.0
    %2302 = vmatpush.xpose.msra.mxu0 0.0
    %2303 = vmatpush.xpose.msra.mxu0 0.0
    %2304 = vmatpush.xpose.msra.mxu0 0.0
    %2305 = vmatpush.xpose.msra.mxu0 0.0
    %2306 = vmatpush.xpose.msra.mxu0 0.0
    %2307 = vmatpush.xpose.msra.mxu0 %v2290
    %2308 = vmatmul.f32.gmra.mxu0 %v2287
    %v2309 = vpop.f32.mrf.mxu0
    %v2310 = vadd.f32 %v564, %v2309
    %2311 = vdwg.mxu0
    %v2312 = vsel %vm530, %v2310, -inf
    %2313 = vmax.xlane.f32.xlu0 %v2312
    %v2314 = vpop.xlane.xlu0 %2313
    %v2315 = vsub.f32 %v2310, %v2314
    %v2316 = vmul.f32 %v2315, 1.442695
    %v2317 = vpow.pop %v2316
    %v2318 = vsel %vm530, %v2317, 0.0
    %2319 = vadd.xlane.f32.xlu0 %v2318
    %v2320 = vpop.xlane.xlu0 %2319
    %v2321 = vrcp.pop %v2320
    %v2322 = vmul.f32 %v2317, %v2321
    %s2323 = scalar_lea.vmem %s33, 256
    %v2324 = vld [vmem:[%s2323] sm:$0xff]
    %v2325 = vld [vmem:[%s2323 + $0x8] sm:$0xff]
    %v2326 = vld [vmem:[%s2323 + $0x10] sm:$0xff]
    %v2327 = vld [vmem:[%s2323 + $0x18] sm:$0xff]
    %2328 = vst [vmem:[#allocation1] ss:$2 sm:$0xff] %v560
    %s2329 = scalar_lea.vmem [#allocation1], 1
    %2330 = vst [vmem:[%s2329] ss:$2 sm:$0xff] %v561
    %v2331 = vld.sshfl [vmem:[#allocation1] sm:$0xff pattern:$0x75316420]
    %v2332 = vsel %vm579, %v2331, 0
    %2334 = vmatpush.msra.mxu0 0.0
    %2335 = vmatpush.msra.mxu0 0.0
    %2336 = vmatpush.msra.mxu0 0.0
    %2337 = vmatpush.msra.mxu0 0.0
    %2338 = vmatpush.msra.mxu0 0.0
    %2339 = vmatpush.msra.mxu0 0.0
    %2340 = vmatpush.msra.mxu0 0.0
    %2341 = vmatpush.msra.mxu0 0.0
    %2342 = vmatpush.msra.mxu0 0.0
    %2343 = vmatpush.msra.mxu0 0.0
    %2344 = vmatpush.msra.mxu0 0.0
    %2345 = vmatpush.msra.mxu0 0.0
    %2346 = vmatpush.msra.mxu0 %v2327
    %2347 = vmatpush.msra.mxu0 %v2326
    %2348 = vmatpush.msra.mxu0 %v2325
    %2349 = vmatpush.msra.mxu0 %v2324
    %2350 = vmatmul.f32.gmra.mxu0 %v2332
    %v2351 = vpop.f32.mrf.mxu0
    %v2352 = vadd.f32 0.0, %v2351
    %2353 = vdwg.mxu0
    %v2355 = vsel %vm530, %v2322, 0
    %2357 = vmatpush.msra.mxu0 0.0
    %2358 = vmatpush.msra.mxu0 0.0
    %2359 = vmatpush.msra.mxu0 0.0
    %2360 = vmatpush.msra.mxu0 0.0
    %2361 = vmatpush.msra.mxu0 0.0
    %2362 = vmatpush.msra.mxu0 0.0
    %2363 = vmatpush.msra.mxu0 0.0
    %2364 = vmatpush.msra.mxu0 0.0
    %2365 = vmatpush.msra.mxu0 0.0
    %2366 = vmatpush.msra.mxu0 0.0
    %2367 = vmatpush.msra.mxu0 0.0
    %2368 = vmatpush.msra.mxu0 0.0
    %2369 = vmatpush.msra.mxu0 0.0
    %2370 = vmatpush.msra.mxu0 0.0
    %2371 = vmatpush.msra.mxu0 0.0
    %2372 = vmatpush.msra.mxu0 %v2352
    %2373 = vmatmul.f32.gmra.mxu0 %v2355
    %v2374 = vpop.f32.mrf.mxu0
    %v2375 = vadd.f32 0.0, %v2374
    %2376 = vdwg.mxu0
    %v2377 = vadd.f32 %v2284, %v2375
    %v2378 = vmul.f32 %v2250, %v403
    %v2380 = vsel %vm579, %v2378, 0
    %2382 = vmatpush.xpose.msra.mxu0 0.0
    %2383 = vmatpush.xpose.msra.mxu0 0.0
    %2384 = vmatpush.xpose.msra.mxu0 0.0
    %2385 = vmatpush.xpose.msra.mxu0 0.0
    %2386 = vmatpush.xpose.msra.mxu0 0.0
    %2387 = vmatpush.xpose.msra.mxu0 0.0
    %2388 = vmatpush.xpose.msra.mxu0 0.0
    %2389 = vmatpush.xpose.msra.mxu0 0.0
    %2390 = vmatpush.xpose.msra.mxu0 0.0
    %2391 = vmatpush.xpose.msra.mxu0 0.0
    %2392 = vmatpush.xpose.msra.mxu0 0.0
    %2393 = vmatpush.xpose.msra.mxu0 0.0
    %2394 = vmatpush.xpose.msra.mxu0 0.0
    %2395 = vmatpush.xpose.msra.mxu0 0.0
    %2396 = vmatpush.xpose.msra.mxu0 0.0
    %2397 = vmatpush.xpose.msra.mxu0 %v2290
    %2398 = vmatmul.f32.gmra.mxu0 %v2380
    %v2399 = vpop.f32.mrf.mxu0
    %v2400 = vadd.f32 %v564, %v2399
    %2401 = vdwg.mxu0
    %v2402 = vsel %vm530, %v2400, -inf
    %2403 = vmax.xlane.f32.xlu0 %v2402
    %v2404 = vpop.xlane.xlu0 %2403
    %v2405 = vsub.f32 %v2400, %v2404
    %v2406 = vmul.f32 %v2405, 1.442695
    %v2407 = vpow.pop %v2406
    %v2408 = vsel %vm530, %v2407, 0.0
    %2409 = vadd.xlane.f32.xlu0 %v2408
    %v2410 = vpop.xlane.xlu0 %2409
    %v2411 = vrcp.pop %v2410
    %v2412 = vmul.f32 %v2407, %v2411
    %s2413 = scalar_lea.vmem %s33, 288
    %v2414 = vld [vmem:[%s2413] sm:$0xff]
    %v2415 = vld [vmem:[%s2413 + $0x8] sm:$0xff]
    %v2416 = vld [vmem:[%s2413 + $0x10] sm:$0xff]
    %v2417 = vld [vmem:[%s2413 + $0x18] sm:$0xff]
    %2418 = vst [vmem:[#allocation1] ss:$2 sm:$0xff] %v560
    %s2419 = scalar_lea.vmem [#allocation1], 1
    %2420 = vst [vmem:[%s2419] ss:$2 sm:$0xff] %v561
    %v2421 = vld.sshfl [vmem:[#allocation1] sm:$0xff pattern:$0x75316420]
    %v2422 = vsel %vm579, %v2421, 0
    %2424 = vmatpush.msra.mxu0 0.0
    %2425 = vmatpush.msra.mxu0 0.0
    %2426 = vmatpush.msra.mxu0 0.0
    %2427 = vmatpush.msra.mxu0 0.0
    %2428 = vmatpush.msra.mxu0 0.0
    %2429 = vmatpush.msra.mxu0 0.0
    %2430 = vmatpush.msra.mxu0 0.0
    %2431 = vmatpush.msra.mxu0 0.0
    %2432 = vmatpush.msra.mxu0 0.0
    %2433 = vmatpush.msra.mxu0 0.0
    %2434 = vmatpush.msra.mxu0 0.0
    %2435 = vmatpush.msra.mxu0 0.0
    %2436 = vmatpush.msra.mxu0 %v2417
    %2437 = vmatpush.msra.mxu0 %v2416
    %2438 = vmatpush.msra.mxu0 %v2415
    %2439 = vmatpush.msra.mxu0 %v2414
    %2440 = vmatmul.f32.gmra.mxu0 %v2422
    %v2441 = vpop.f32.mrf.mxu0
    %v2442 = vadd.f32 0.0, %v2441
    %2443 = vdwg.mxu0
    %v2445 = vsel %vm530, %v2412, 0
    %2447 = vmatpush.msra.mxu0 0.0
    %2448 = vmatpush.msra.mxu0 0.0
    %2449 = vmatpush.msra.mxu0 0.0
    %2450 = vmatpush.msra.mxu0 0.0
    %2451 = vmatpush.msra.mxu0 0.0
    %2452 = vmatpush.msra.mxu0 0.0
    %2453 = vmatpush.msra.mxu0 0.0
    %2454 = vmatpush.msra.mxu0 0.0
    %2455 = vmatpush.msra.mxu0 0.0
    %2456 = vmatpush.msra.mxu0 0.0
    %2457 = vmatpush.msra.mxu0 0.0
    %2458 = vmatpush.msra.mxu0 0.0
    %2459 = vmatpush.msra.mxu0 0.0
    %2460 = vmatpush.msra.mxu0 0.0
    %2461 = vmatpush.msra.mxu0 0.0
    %2462 = vmatpush.msra.mxu0 %v2442
    %2463 = vmatmul.f32.gmra.mxu0 %v2445
    %v2464 = vpop.f32.mrf.mxu0
    %v2465 = vadd.f32 0.0, %v2464
    %2466 = vdwg.mxu0
    %v2467 = vadd.f32 %v2377, %v2465
    %v2468 = vmul.f32 %v2250, %v408
    %v2470 = vsel %vm579, %v2468, 0
    %2472 = vmatpush.xpose.msra.mxu0 0.0
    %2473 = vmatpush.xpose.msra.mxu0 0.0
    %2474 = vmatpush.xpose.msra.mxu0 0.0
    %2475 = vmatpush.xpose.msra.mxu0 0.0
    %2476 = vmatpush.xpose.msra.mxu0 0.0
    %2477 = vmatpush.xpose.msra.mxu0 0.0
    %2478 = vmatpush.xpose.msra.mxu0 0.0
    %2479 = vmatpush.xpose.msra.mxu0 0.0
    %2480 = vmatpush.xpose.msra.mxu0 0.0
    %2481 = vmatpush.xpose.msra.mxu0 0.0
    %2482 = vmatpush.xpose.msra.mxu0 0.0
    %2483 = vmatpush.xpose.msra.mxu0 0.0
    %2484 = vmatpush.xpose.msra.mxu0 0.0
    %2485 = vmatpush.xpose.msra.mxu0 0.0
    %2486 = vmatpush.xpose.msra.mxu0 0.0
    %2487 = vmatpush.xpose.msra.mxu0 %v2290
    %2488 = vmatmul.f32.gmra.mxu0 %v2470
    %v2489 = vpop.f32.mrf.mxu0
    %v2490 = vadd.f32 %v564, %v2489
    %2491 = vdwg.mxu0
    %v2492 = vsel %vm530, %v2490, -inf
    %2493 = vmax.xlane.f32.xlu0 %v2492
    %v2494 = vpop.xlane.xlu0 %2493
    %v2495 = vsub.f32 %v2490, %v2494
    %v2496 = vmul.f32 %v2495, 1.442695
    %v2497 = vpow.pop %v2496
    %v2498 = vsel %vm530, %v2497, 0.0
    %2499 = vadd.xlane.f32.xlu0 %v2498
    %v2500 = vpop.xlane.xlu0 %2499
    %v2501 = vrcp.pop %v2500
    %v2502 = vmul.f32 %v2497, %v2501
    %s2503 = scalar_lea.vmem %s33, 320
    %v2504 = vld [vmem:[%s2503] sm:$0xff]
    %v2505 = vld [vmem:[%s2503 + $0x8] sm:$0xff]
    %v2506 = vld [vmem:[%s2503 + $0x10] sm:$0xff]
    %v2507 = vld [vmem:[%s2503 + $0x18] sm:$0xff]
    %2508 = vst [vmem:[#allocation1] ss:$2 sm:$0xff] %v560
    %s2509 = scalar_lea.vmem [#allocation1], 1
    %2510 = vst [vmem:[%s2509] ss:$2 sm:$0xff] %v561
    %v2511 = vld.sshfl [vmem:[#allocation1] sm:$0xff pattern:$0x75316420]
    %v2512 = vsel %vm579, %v2511, 0
    %2514 = vmatpush.msra.mxu0 0.0
    %2515 = vmatpush.msra.mxu0 0.0
    %2516 = vmatpush.msra.mxu0 0.0
    %2517 = vmatpush.msra.mxu0 0.0
    %2518 = vmatpush.msra.mxu0 0.0
    %2519 = vmatpush.msra.mxu0 0.0
    %2520 = vmatpush.msra.mxu0 0.0
    %2521 = vmatpush.msra.mxu0 0.0
    %2522 = vmatpush.msra.mxu0 0.0
    %2523 = vmatpush.msra.mxu0 0.0
    %2524 = vmatpush.msra.mxu0 0.0
    %2525 = vmatpush.msra.mxu0 0.0
    %2526 = vmatpush.msra.mxu0 %v2507
    %2527 = vmatpush.msra.mxu0 %v2506
    %2528 = vmatpush.msra.mxu0 %v2505
    %2529 = vmatpush.msra.mxu0 %v2504
    %2530 = vmatmul.f32.gmra.mxu0 %v2512
    %v2531 = vpop.f32.mrf.mxu0
    %v2532 = vadd.f32 0.0, %v2531
    %2533 = vdwg.mxu0
    %v2535 = vsel %vm530, %v2502, 0
    %2537 = vmatpush.msra.mxu0 0.0
    %2538 = vmatpush.msra.mxu0 0.0
    %2539 = vmatpush.msra.mxu0 0.0
    %2540 = vmatpush.msra.mxu0 0.0
    %2541 = vmatpush.msra.mxu0 0.0
    %2542 = vmatpush.msra.mxu0 0.0
    %2543 = vmatpush.msra.mxu0 0.0
    %2544 = vmatpush.msra.mxu0 0.0
    %2545 = vmatpush.msra.mxu0 0.0
    %2546 = vmatpush.msra.mxu0 0.0
    %2547 = vmatpush.msra.mxu0 0.0
    %2548 = vmatpush.msra.mxu0 0.0
    %2549 = vmatpush.msra.mxu0 0.0
    %2550 = vmatpush.msra.mxu0 0.0
    %2551 = vmatpush.msra.mxu0 0.0
    %2552 = vmatpush.msra.mxu0 %v2532
    %2553 = vmatmul.f32.gmra.mxu0 %v2535
    %v2554 = vpop.f32.mrf.mxu0
    %v2555 = vadd.f32 0.0, %v2554
    %2556 = vdwg.mxu0
    %v2557 = vadd.f32 %v2467, %v2555
    %v2558 = vmul.f32 %v2250, %v413
    %v2560 = vsel %vm579, %v2558, 0
    %2562 = vmatpush.xpose.msra.mxu0 0.0
    %2563 = vmatpush.xpose.msra.mxu0 0.0
    %2564 = vmatpush.xpose.msra.mxu0 0.0
    %2565 = vmatpush.xpose.msra.mxu0 0.0
    %2566 = vmatpush.xpose.msra.mxu0 0.0
    %2567 = vmatpush.xpose.msra.mxu0 0.0
    %2568 = vmatpush.xpose.msra.mxu0 0.0
    %2569 = vmatpush.xpose.msra.mxu0 0.0
    %2570 = vmatpush.xpose.msra.mxu0 0.0
    %2571 = vmatpush.xpose.msra.mxu0 0.0
    %2572 = vmatpush.xpose.msra.mxu0 0.0
    %2573 = vmatpush.xpose.msra.mxu0 0.0
    %2574 = vmatpush.xpose.msra.mxu0 0.0
    %2575 = vmatpush.xpose.msra.mxu0 0.0
    %2576 = vmatpush.xpose.msra.mxu0 0.0
    %2577 = vmatpush.xpose.msra.mxu0 %v2290
    %2578 = vmatmul.f32.gmra.mxu0 %v2560
    %v2579 = vpop.f32.mrf.mxu0
    %v2580 = vadd.f32 %v564, %v2579
    %2581 = vdwg.mxu0
    %v2582 = vsel %vm530, %v2580, -inf
    %2583 = vmax.xlane.f32.xlu0 %v2582
    %v2584 = vpop.xlane.xlu0 %2583
    %v2585 = vsub.f32 %v2580, %v2584
    %v2586 = vmul.f32 %v2585, 1.442695
    %v2587 = vpow.pop %v2586
    %v2588 = vsel %vm530, %v2587, 0.0
    %2589 = vadd.xlane.f32.xlu0 %v2588
    %v2590 = vpop.xlane.xlu0 %2589
    %v2591 = vrcp.pop %v2590
    %v2592 = vmul.f32 %v2587, %v2591
    %s2593 = scalar_lea.vmem %s33, 352
    %v2594 = vld [vmem:[%s2593] sm:$0xff]
    %v2595 = vld [vmem:[%s2593 + $0x8] sm:$0xff]
    %v2596 = vld [vmem:[%s2593 + $0x10] sm:$0xff]
    %v2597 = vld [vmem:[%s2593 + $0x18] sm:$0xff]
    %2598 = vst [vmem:[#allocation1] ss:$2 sm:$0xff] %v560
    %s2599 = scalar_lea.vmem [#allocation1], 1
    %2600 = vst [vmem:[%s2599] ss:$2 sm:$0xff] %v561
    %v2601 = vld.sshfl [vmem:[#allocation1] sm:$0xff pattern:$0x75316420]
    %v2602 = vsel %vm579, %v2601, 0
    %2604 = vmatpush.msra.mxu0 0.0
    %2605 = vmatpush.msra.mxu0 0.0
    %2606 = vmatpush.msra.mxu0 0.0
    %2607 = vmatpush.msra.mxu0 0.0
    %2608 = vmatpush.msra.mxu0 0.0
    %2609 = vmatpush.msra.mxu0 0.0
    %2610 = vmatpush.msra.mxu0 0.0
    %2611 = vmatpush.msra.mxu0 0.0
    %2612 = vmatpush.msra.mxu0 0.0
    %2613 = vmatpush.msra.mxu0 0.0
    %2614 = vmatpush.msra.mxu0 0.0
    %2615 = vmatpush.msra.mxu0 0.0
    %2616 = vmatpush.msra.mxu0 %v2597
    %2617 = vmatpush.msra.mxu0 %v2596
    %2618 = vmatpush.msra.mxu0 %v2595
    %2619 = vmatpush.msra.mxu0 %v2594
    %2620 = vmatmul.f32.gmra.mxu0 %v2602
    %v2621 = vpop.f32.mrf.mxu0
    %v2622 = vadd.f32 0.0, %v2621
    %2623 = vdwg.mxu0
    %v2625 = vsel %vm530, %v2592, 0
    %2627 = vmatpush.msra.mxu0 0.0
    %2628 = vmatpush.msra.mxu0 0.0
    %2629 = vmatpush.msra.mxu0 0.0
    %2630 = vmatpush.msra.mxu0 0.0
    %2631 = vmatpush.msra.mxu0 0.0
    %2632 = vmatpush.msra.mxu0 0.0
    %2633 = vmatpush.msra.mxu0 0.0
    %2634 = vmatpush.msra.mxu0 0.0
    %2635 = vmatpush.msra.mxu0 0.0
    %2636 = vmatpush.msra.mxu0 0.0
    %2637 = vmatpush.msra.mxu0 0.0
    %2638 = vmatpush.msra.mxu0 0.0
    %2639 = vmatpush.msra.mxu0 0.0
    %2640 = vmatpush.msra.mxu0 0.0
    %2641 = vmatpush.msra.mxu0 0.0
    %2642 = vmatpush.msra.mxu0 %v2622
    %2643 = vmatmul.f32.gmra.mxu0 %v2625
    %v2644 = vpop.f32.mrf.mxu0
    %v2645 = vadd.f32 0.0, %v2644
    %2646 = vdwg.mxu0
    %v2647 = vadd.f32 %v2557, %v2645
    %v2649 = vrot.slane %v2647, 4
    %v2651 = vadd.f32 %v560, %v2647
    %v2652 = vadd.f32 %v561, %v2649
    %s2653 = scalar_lea.vmem [#allocation10], 2
    %v2654 = vld [vmem:[%s2653] sm:$0x1]
    %s2655 = scalar_lea.vmem [#allocation11], 2
    %v2656 = vld [vmem:[%s2655] sm:$0x1]
    %vm2657 = vcmask 257024
    %v2658 = vsel %vm2657, %v2651, 0.0
    %2659 = vadd.xlane.f32.xlu0 %v2658
    %v2660 = vpop.xlane.xlu0 %2659
    %v2661 = vsel %vm2657, %v2652, 0.0
    %2662 = vadd.xlane.f32.xlu0 %v2661
    %v2663 = vpop.xlane.xlu0 %2662
    %v2664 = vmul.f32 %v2660, %v1109
    %v2665 = vmul.f32 %v2663, %v1109
    %v2666 = vsub.f32 %v2651, %v2664
    %v2667 = vsub.f32 %v2652, %v2665
    %v2668 = vmul.f32 %v2666, %v2666
    %v2669 = vmul.f32 %v2667, %v2667
    %v2670 = vsel %vm2657, %v2668, 0.0
    %2671 = vadd.xlane.f32.xlu0 %v2670
    %v2672 = vpop.xlane.xlu0 %2671
    %v2673 = vsel %vm2657, %v2669, 0.0
    %2674 = vadd.xlane.f32.xlu0 %v2673
    %v2675 = vpop.xlane.xlu0 %2674
    %v2676 = vmul.f32 %v2672, %v1109
    %v2677 = vmul.f32 %v2675, %v1109
    %v2678 = vadd.f32 %v2676, 1e-05
    %v2679 = vadd.f32 %v2677, 1e-05
    %v2680 = vrsqrt.pop %v2678
    %v2681 = vmul.f32 %v2680, %v2678
    %v2682 = vmul.f32 %v2681, %v2680
    %v2683 = vmul.f32 0.5, %v2682
    %v2684 = vsub.f32 1.5, %v2683
    %v2685 = vmul.f32 %v2680, %v2684
    %vm2686 = vweird.f32 %v2678
    %vm2687 = vweird.f32 %v2680
    %vm2688 = vmor %vm2686, %vm2687
    %v2689 = vsel %vm2688, %v2680, %v2685
    %v2690 = vrsqrt.pop %v2679
    %v2691 = vmul.f32 %v2690, %v2679
    %v2692 = vmul.f32 %v2691, %v2690
    %v2693 = vmul.f32 0.5, %v2692
    %v2694 = vsub.f32 1.5, %v2693
    %v2695 = vmul.f32 %v2690, %v2694
    %vm2696 = vweird.f32 %v2679
    %vm2697 = vweird.f32 %v2690
    %vm2698 = vmor %vm2696, %vm2697
    %v2699 = vsel %vm2698, %v2690, %v2695
    %v2700 = vmul.f32 %v2666, %v2689
    %v2701 = vmul.f32 %v2667, %v2699
    %v2703 = vperm.slane %v2654, 0
    %v2705 = vmul.f32 %v2700, %v2703
    %v2706 = vmul.f32 %v2701, %v2703
    %v2708 = vperm.slane %v2656, 0
    %v2710 = vadd.f32 %v2705, %v2708
    %v2711 = vadd.f32 %v2706, %v2708
    %s2712 = scalar_lea.vmem [#allocation13], 64
    %v2713 = vld [vmem:[%s2712] sm:$0xff]
    %v2714 = vld [vmem:[%s2712 + $0x8] sm:$0xff]
    %v2715 = vld [vmem:[%s2712 + $0x10] sm:$0xff]
    %v2716 = vld [vmem:[%s2712 + $0x18] sm:$0xff]
    %s2717 = scalar_lea.vmem [#allocation14], 2
    %v2718 = vld [vmem:[%s2717] sm:$0x1]
    %v2720 = vperm.slane %v2718, 0
    %2724 = vst [vmem:[#allocation1] ss:$2 sm:$0xff] %v2710
    %s2725 = scalar_lea.vmem [#allocation1], 1
    %2726 = vst [vmem:[%s2725] ss:$2 sm:$0xff] %v2711
    %v2727 = vld.sshfl [vmem:[#allocation1] sm:$0xff pattern:$0x75316420]
    %v2728 = vsel %vm579, %v2727, 0
    %2730 = vmatpush.msra.mxu0 0.0
    %2731 = vmatpush.msra.mxu0 0.0
    %2732 = vmatpush.msra.mxu0 0.0
    %2733 = vmatpush.msra.mxu0 0.0
    %2734 = vmatpush.msra.mxu0 0.0
    %2735 = vmatpush.msra.mxu0 0.0
    %2736 = vmatpush.msra.mxu0 0.0
    %2737 = vmatpush.msra.mxu0 0.0
    %2738 = vmatpush.msra.mxu0 0.0
    %2739 = vmatpush.msra.mxu0 0.0
    %2740 = vmatpush.msra.mxu0 0.0
    %2741 = vmatpush.msra.mxu0 0.0
    %2742 = vmatpush.msra.mxu0 %v2716
    %2743 = vmatpush.msra.mxu0 %v2715
    %2744 = vmatpush.msra.mxu0 %v2714
    %2745 = vmatpush.msra.mxu0 %v2713
    %2746 = vmatmul.f32.gmra.mxu0 %v2728
    %v2747 = vpop.f32.mrf.mxu0
    %v2748 = vadd.f32 %v2720, %v2747
    %2749 = vdwg.mxu0
    %v2750 = vmul.f32 %v2748, 0.5
    %v2751 = vmul.f32 %v2748, 0.70710677
    %v2752 = vmul.f32 %v2751, %v2751
    %v2753 = vmin.f32 16.0, %v2752
    %v2754 = vmul.f32 %v2753, 2.1237322e-06
    %v2755 = vadd.f32 %v2754, 0.00028619796
    %v2756 = vmul.f32 %v2753, %v2755
    %v2757 = vadd.f32 %v2756, 0.0036580483
    %v2758 = vmul.f32 %v2753, %v2757
    %v2759 = vadd.f32 %v2758, 0.05243302
    %v2760 = vmul.f32 %v2753, %v2759
    %v2761 = vadd.f32 %v2760, 0.18741608
    %v2762 = vmul.f32 %v2753, %v2761
    %v2763 = vadd.f32 %v2762, 1.1283791
    %v2764 = vmul.f32 %v2751, %v2763
    %v2765 = vmul.f32 %v2753, 3.8918573e-05
    %v2766 = vadd.f32 %v2765, 0.001143296
    %v2767 = vmul.f32 %v2753, %v2766
    %v2768 = vadd.f32 %v2767, 0.014752088
    %v2769 = vmul.f32 %v2753, %v2768
    %v2770 = vadd.f32 %v2769, 0.112945676
    %v2771 = vmul.f32 %v2753, %v2770
    %v2772 = vadd.f32 %v2771, 0.4994258
    %v2773 = vmul.f32 %v2753, %v2772
    %v2774 = vadd.f32 %v2773, 1.0
    %v2775 = vrcp.pop %v2774
    %v2776 = vmul.f32 %v2774, %v2775
    %v2777 = vsub.f32 1.0, %v2776
    %v2778 = vmul.f32 %v2775, %v2777
    %v2779 = vadd.f32 %v2775, %v2778
    %vm2780 = vweird.f32 %v2774
    %vm2781 = vweird.f32 %v2775
    %vm2782 = vmor %vm2780, %vm2781
    %v2783 = vsel %vm2782, %v2775, %v2779
    %v2784 = vand.u32 2147483647, %v2774
    %vm2785 = vcmp.eq.f32.partialorder %v2784, 8.507059e+37
    %v2786 = vand.u32 %v2774, 2147483648
    %v2787 = vor.u32 1.1754944e-38, %v2786
    %v2788 = vsel %vm2785, %v2787, %v2783
    %v2789 = vmul.f32 %v2764, %v2788
    %v2790 = vmin.f32 %v2789, 1.0
    %v2791 = vmax.f32 %v2790, -1.0
    %v2792 = vadd.f32 %v2791, 1.0
    %v2793 = vmul.f32 %v2750, %v2792
    %s2794 = scalar_lea.vmem %s45, 128
    %v2795 = vld [vmem:[%s2794] sm:$0xff]
    %v2796 = vld [vmem:[%s2794 + $0x8] sm:$0xff]
    %v2797 = vld [vmem:[%s2794 + $0x10] sm:$0xff]
    %v2798 = vld [vmem:[%s2794 + $0x18] sm:$0xff]
    %v2799 = vld [vmem:[%s2794 + $0x20] sm:$0xff]
    %v2800 = vld [vmem:[%s2794 + $0x28] sm:$0xff]
    %v2801 = vld [vmem:[%s2794 + $0x30] sm:$0xff]
    %v2802 = vld [vmem:[%s2794 + $0x38] sm:$0xff]
    %s2803 = scalar_lea.vmem [#allocation16], 2
    %v2804 = vld [vmem:[%s2803] sm:$0x1]
    %v2806 = vperm.slane %v2804, 0
    %v2809 = vsel %vm1295, %v2793, 0
    %2811 = vmatpush.msra.mxu0 0.0
    %2812 = vmatpush.msra.mxu0 0.0
    %2813 = vmatpush.msra.mxu0 0.0
    %2814 = vmatpush.msra.mxu0 0.0
    %2815 = vmatpush.msra.mxu0 0.0
    %2816 = vmatpush.msra.mxu0 0.0
    %2817 = vmatpush.msra.mxu0 0.0
    %2818 = vmatpush.msra.mxu0 0.0
    %2819 = vmatpush.msra.mxu0 %v2802
    %2820 = vmatpush.msra.mxu0 %v2801
    %2821 = vmatpush.msra.mxu0 %v2800
    %2822 = vmatpush.msra.mxu0 %v2799
    %2823 = vmatpush.msra.mxu0 %v2798
    %2824 = vmatpush.msra.mxu0 %v2797
    %2825 = vmatpush.msra.mxu0 %v2796
    %2826 = vmatpush.msra.mxu0 %v2795
    %2827 = vmatmul.f32.gmra.mxu0 %v2809
    %v2828 = vpop.f32.mrf.mxu0
    %v2829 = vadd.f32 %v2806, %v2828
    %2830 = vdwg.mxu0
    %v2832 = vrot.slane %v2829, 4
    %v2834 = vadd.f32 %v2710, %v2829
    %v2835 = vadd.f32 %v2711, %v2832
    %s2836 = scalar_lea.vmem [#allocation17], 2
    %v2837 = vld [vmem:[%s2836] sm:$0x1]
    %s2838 = scalar_lea.vmem [#allocation19], 2
    %v2839 = vld [vmem:[%s2838] sm:$0x1]
    %v2840 = vsel %vm2657, %v2834, 0.0
    %2841 = vadd.xlane.f32.xlu0 %v2840
    %v2842 = vpop.xlane.xlu0 %2841
    %v2843 = vsel %vm2657, %v2835, 0.0
    %2844 = vadd.xlane.f32.xlu0 %v2843
    %v2845 = vpop.xlane.xlu0 %2844
    %v2846 = vmul.f32 %v2842, %v1109
    %v2847 = vmul.f32 %v2845, %v1109
    %v2848 = vsub.f32 %v2834, %v2846
    %v2849 = vsub.f32 %v2835, %v2847
    %v2850 = vmul.f32 %v2848, %v2848
    %v2851 = vmul.f32 %v2849, %v2849
    %v2852 = vsel %vm2657, %v2850, 0.0
    %2853 = vadd.xlane.f32.xlu0 %v2852
    %v2854 = vpop.xlane.xlu0 %2853
    %v2855 = vsel %vm2657, %v2851, 0.0
    %2856 = vadd.xlane.f32.xlu0 %v2855
    %v2857 = vpop.xlane.xlu0 %2856
    %v2858 = vmul.f32 %v2854, %v1109
    %v2859 = vmul.f32 %v2857, %v1109
    %v2860 = vadd.f32 %v2858, 1e-05
    %v2861 = vadd.f32 %v2859, 1e-05
    %v2862 = vrsqrt.pop %v2860
    %v2863 = vmul.f32 %v2862, %v2860
    %v2864 = vmul.f32 %v2863, %v2862
    %v2865 = vmul.f32 0.5, %v2864
    %v2866 = vsub.f32 1.5, %v2865
    %v2867 = vmul.f32 %v2862, %v2866
    %vm2868 = vweird.f32 %v2860
    %vm2869 = vweird.f32 %v2862
    %vm2870 = vmor %vm2868, %vm2869
    %v2871 = vsel %vm2870, %v2862, %v2867
    %v2872 = vrsqrt.pop %v2861
    %v2873 = vmul.f32 %v2872, %v2861
    %v2874 = vmul.f32 %v2873, %v2872
    %v2875 = vmul.f32 0.5, %v2874
    %v2876 = vsub.f32 1.5, %v2875
    %v2877 = vmul.f32 %v2872, %v2876
    %vm2878 = vweird.f32 %v2861
    %vm2879 = vweird.f32 %v2872
    %vm2880 = vmor %vm2878, %vm2879
    %v2881 = vsel %vm2880, %v2872, %v2877
    %v2882 = vmul.f32 %v2848, %v2871
    %v2883 = vmul.f32 %v2849, %v2881
    %v2885 = vperm.slane %v2837, 0
    %v2887 = vmul.f32 %v2882, %v2885
    %v2888 = vmul.f32 %v2883, %v2885
    %v2890 = vperm.slane %v2839, 0
    %v2892 = vadd.f32 %v2887, %v2890
    %v2893 = vadd.f32 %v2888, %v2890
    %s2894 = scalar_lea.vmem %s25, 96
    %v2895 = vld [vmem:[%s2894] sm:$0xff]
    %v2896 = vld [vmem:[%s2894 + $0x8] sm:$0xff]
    %v2897 = vld [vmem:[%s2894 + $0x10] sm:$0xff]
    %v2898 = vld [vmem:[%s2894 + $0x18] sm:$0xff]
    %s2899 = scalar_lea.vmem %s27, 3
    %v2900 = vld [vmem:[%s2899] sm:$0x1]
    %s2901 = scalar_lea.vmem [#allocation5], 96
    %v2902 = vld [vmem:[%s2901] sm:$0xff]
    %v2903 = vld [vmem:[%s2901 + $0x8] sm:$0xff]
    %v2904 = vld [vmem:[%s2901 + $0x10] sm:$0xff]
    %v2905 = vld [vmem:[%s2901 + $0x18] sm:$0xff]
    %s2906 = scalar_lea.vmem [#allocation7], 3
    %v2907 = vld [vmem:[%s2906] sm:$0x1]
    %s2908 = scalar_lea.vmem [#allocation8], 3
    %v2909 = vld [vmem:[%s2908] sm:$0x1]
    %v2911 = vperm.slane %v2900, 0
    %2915 = vst [vmem:[#allocation1] ss:$2 sm:$0xff] %v2892
    %s2916 = scalar_lea.vmem [#allocation1], 1
    %2917 = vst [vmem:[%s2916] ss:$2 sm:$0xff] %v2893
    %v2918 = vld.sshfl [vmem:[#allocation1] sm:$0xff pattern:$0x75316420]
    %v2919 = vsel %vm579, %v2918, 0
    %2921 = vmatpush.msra.mxu0 0.0
    %2922 = vmatpush.msra.mxu0 0.0
    %2923 = vmatpush.msra.mxu0 0.0
    %2924 = vmatpush.msra.mxu0 0.0
    %2925 = vmatpush.msra.mxu0 0.0
    %2926 = vmatpush.msra.mxu0 0.0
    %2927 = vmatpush.msra.mxu0 0.0
    %2928 = vmatpush.msra.mxu0 0.0
    %2929 = vmatpush.msra.mxu0 0.0
    %2930 = vmatpush.msra.mxu0 0.0
    %2931 = vmatpush.msra.mxu0 0.0
    %2932 = vmatpush.msra.mxu0 0.0
    %2933 = vmatpush.msra.mxu0 %v2898
    %2934 = vmatpush.msra.mxu0 %v2897
    %2935 = vmatpush.msra.mxu0 %v2896
    %2936 = vmatpush.msra.mxu0 %v2895
    %2937 = vmatmul.f32.gmra.mxu0 %v2919
    %v2938 = vpop.f32.mrf.mxu0
    %v2939 = vadd.f32 %v2911, %v2938
    %2940 = vdwg.mxu0
    %v2942 = vperm.slane %v2907, 0
    %2944 = vst [vmem:[#allocation1] ss:$2 sm:$0xff] %v2892
    %s2945 = scalar_lea.vmem [#allocation1], 1
    %2946 = vst [vmem:[%s2945] ss:$2 sm:$0xff] %v2893
    %v2947 = vld.sshfl [vmem:[#allocation1] sm:$0xff pattern:$0x75316420]
    %v2948 = vsel %vm579, %v2947, 0
    %2950 = vmatpush.msra.mxu0 0.0
    %2951 = vmatpush.msra.mxu0 0.0
    %2952 = vmatpush.msra.mxu0 0.0
    %2953 = vmatpush.msra.mxu0 0.0
    %2954 = vmatpush.msra.mxu0 0.0
    %2955 = vmatpush.msra.mxu0 0.0
    %2956 = vmatpush.msra.mxu0 0.0
    %2957 = vmatpush.msra.mxu0 0.0
    %2958 = vmatpush.msra.mxu0 0.0
    %2959 = vmatpush.msra.mxu0 0.0
    %2960 = vmatpush.msra.mxu0 0.0
    %2961 = vmatpush.msra.mxu0 0.0
    %2962 = vmatpush.msra.mxu0 %v2905
    %2963 = vmatpush.msra.mxu0 %v2904
    %2964 = vmatpush.msra.mxu0 %v2903
    %2965 = vmatpush.msra.mxu0 %v2902
    %2966 = vmatmul.f32.gmra.mxu0 %v2948
    %v2967 = vpop.f32.mrf.mxu0
    %v2968 = vadd.f32 %v2942, %v2967
    %2969 = vdwg.mxu0
    %v2971 = vperm.slane %v2909, 0
    %v2973 = vadd.f32 %v2971, 0.0
    %v2974 = vmul.f32 %v2939, %v398
    %v2976 = vsel %vm579, %v2974, 0
    %v2979 = vsel %vm579, %v2968, 0
    %2981 = vmatpush.xpose.msra.mxu0 0.0
    %2982 = vmatpush.xpose.msra.mxu0 0.0
    %2983 = vmatpush.xpose.msra.mxu0 0.0
    %2984 = vmatpush.xpose.msra.mxu0 0.0
    %2985 = vmatpush.xpose.msra.mxu0 0.0
    %2986 = vmatpush.xpose.msra.mxu0 0.0
    %2987 = vmatpush.xpose.msra.mxu0 0.0
    %2988 = vmatpush.xpose.msra.mxu0 0.0
    %2989 = vmatpush.xpose.msra.mxu0 0.0
    %2990 = vmatpush.xpose.msra.mxu0 0.0
    %2991 = vmatpush.xpose.msra.mxu0 0.0
    %2992 = vmatpush.xpose.msra.mxu0 0.0
    %2993 = vmatpush.xpose.msra.mxu0 0.0
    %2994 = vmatpush.xpose.msra.mxu0 0.0
    %2995 = vmatpush.xpose.msra.mxu0 0.0
    %2996 = vmatpush.xpose.msra.mxu0 %v2979
    %2997 = vmatmul.f32.gmra.mxu0 %v2976
    %v2998 = vpop.f32.mrf.mxu0
    %v2999 = vadd.f32 %v564, %v2998
    %3000 = vdwg.mxu0
    %v3001 = vsel %vm530, %v2999, -inf
    %3002 = vmax.xlane.f32.xlu0 %v3001
    %v3003 = vpop.xlane.xlu0 %3002
    %v3004 = vsub.f32 %v2999, %v3003
    %v3005 = vmul.f32 %v3004, 1.442695
    %v3006 = vpow.pop %v3005
    %v3007 = vsel %vm530, %v3006, 0.0
    %3008 = vadd.xlane.f32.xlu0 %v3007
    %v3009 = vpop.xlane.xlu0 %3008
    %v3010 = vrcp.pop %v3009
    %v3011 = vmul.f32 %v3006, %v3010
    %s3012 = scalar_lea.vmem %s33, 384
    %v3013 = vld [vmem:[%s3012] sm:$0xff]
    %v3014 = vld [vmem:[%s3012 + $0x8] sm:$0xff]
    %v3015 = vld [vmem:[%s3012 + $0x10] sm:$0xff]
    %v3016 = vld [vmem:[%s3012 + $0x18] sm:$0xff]
    %3017 = vst [vmem:[#allocation1] ss:$2 sm:$0xff] %v2892
    %s3018 = scalar_lea.vmem [#allocation1], 1
    %3019 = vst [vmem:[%s3018] ss:$2 sm:$0xff] %v2893
    %v3020 = vld.sshfl [vmem:[#allocation1] sm:$0xff pattern:$0x75316420]
    %v3021 = vsel %vm579, %v3020, 0
    %3023 = vmatpush.msra.mxu0 0.0
    %3024 = vmatpush.msra.mxu0 0.0
    %3025 = vmatpush.msra.mxu0 0.0
    %3026 = vmatpush.msra.mxu0 0.0
    %3027 = vmatpush.msra.mxu0 0.0
    %3028 = vmatpush.msra.mxu0 0.0
    %3029 = vmatpush.msra.mxu0 0.0
    %3030 = vmatpush.msra.mxu0 0.0
    %3031 = vmatpush.msra.mxu0 0.0
    %3032 = vmatpush.msra.mxu0 0.0
    %3033 = vmatpush.msra.mxu0 0.0
    %3034 = vmatpush.msra.mxu0 0.0
    %3035 = vmatpush.msra.mxu0 %v3016
    %3036 = vmatpush.msra.mxu0 %v3015
    %3037 = vmatpush.msra.mxu0 %v3014
    %3038 = vmatpush.msra.mxu0 %v3013
    %3039 = vmatmul.f32.gmra.mxu0 %v3021
    %v3040 = vpop.f32.mrf.mxu0
    %v3041 = vadd.f32 0.0, %v3040
    %3042 = vdwg.mxu0
    %v3044 = vsel %vm530, %v3011, 0
    %3046 = vmatpush.msra.mxu0 0.0
    %3047 = vmatpush.msra.mxu0 0.0
    %3048 = vmatpush.msra.mxu0 0.0
    %3049 = vmatpush.msra.mxu0 0.0
    %3050 = vmatpush.msra.mxu0 0.0
    %3051 = vmatpush.msra.mxu0 0.0
    %3052 = vmatpush.msra.mxu0 0.0
    %3053 = vmatpush.msra.mxu0 0.0
    %3054 = vmatpush.msra.mxu0 0.0
    %3055 = vmatpush.msra.mxu0 0.0
    %3056 = vmatpush.msra.mxu0 0.0
    %3057 = vmatpush.msra.mxu0 0.0
    %3058 = vmatpush.msra.mxu0 0.0
    %3059 = vmatpush.msra.mxu0 0.0
    %3060 = vmatpush.msra.mxu0 0.0
    %3061 = vmatpush.msra.mxu0 %v3041
    %3062 = vmatmul.f32.gmra.mxu0 %v3044
    %v3063 = vpop.f32.mrf.mxu0
    %v3064 = vadd.f32 0.0, %v3063
    %3065 = vdwg.mxu0
    %v3066 = vadd.f32 %v2973, %v3064
    %v3067 = vmul.f32 %v2939, %v403
    %v3069 = vsel %vm579, %v3067, 0
    %3071 = vmatpush.xpose.msra.mxu0 0.0
    %3072 = vmatpush.xpose.msra.mxu0 0.0
    %3073 = vmatpush.xpose.msra.mxu0 0.0
    %3074 = vmatpush.xpose.msra.mxu0 0.0
    %3075 = vmatpush.xpose.msra.mxu0 0.0
    %3076 = vmatpush.xpose.msra.mxu0 0.0
    %3077 = vmatpush.xpose.msra.mxu0 0.0
    %3078 = vmatpush.xpose.msra.mxu0 0.0
    %3079 = vmatpush.xpose.msra.mxu0 0.0
    %3080 = vmatpush.xpose.msra.mxu0 0.0
    %3081 = vmatpush.xpose.msra.mxu0 0.0
    %3082 = vmatpush.xpose.msra.mxu0 0.0
    %3083 = vmatpush.xpose.msra.mxu0 0.0
    %3084 = vmatpush.xpose.msra.mxu0 0.0
    %3085 = vmatpush.xpose.msra.mxu0 0.0
    %3086 = vmatpush.xpose.msra.mxu0 %v2979
    %3087 = vmatmul.f32.gmra.mxu0 %v3069
    %v3088 = vpop.f32.mrf.mxu0
    %v3089 = vadd.f32 %v564, %v3088
    %3090 = vdwg.mxu0
    %v3091 = vsel %vm530, %v3089, -inf
    %3092 = vmax.xlane.f32.xlu0 %v3091
    %v3093 = vpop.xlane.xlu0 %3092
    %v3094 = vsub.f32 %v3089, %v3093
    %v3095 = vmul.f32 %v3094, 1.442695
    %v3096 = vpow.pop %v3095
    %v3097 = vsel %vm530, %v3096, 0.0
    %3098 = vadd.xlane.f32.xlu0 %v3097
    %v3099 = vpop.xlane.xlu0 %3098
    %v3100 = vrcp.pop %v3099
    %v3101 = vmul.f32 %v3096, %v3100
    %s3102 = scalar_lea.vmem %s33, 416
    %v3103 = vld [vmem:[%s3102] sm:$0xff]
    %v3104 = vld [vmem:[%s3102 + $0x8] sm:$0xff]
    %v3105 = vld [vmem:[%s3102 + $0x10] sm:$0xff]
    %v3106 = vld [vmem:[%s3102 + $0x18] sm:$0xff]
    %3107 = vst [vmem:[#allocation1] ss:$2 sm:$0xff] %v2892
    %s3108 = scalar_lea.vmem [#allocation1], 1
    %3109 = vst [vmem:[%s3108] ss:$2 sm:$0xff] %v2893
    %v3110 = vld.sshfl [vmem:[#allocation1] sm:$0xff pattern:$0x75316420]
    %v3111 = vsel %vm579, %v3110, 0
    %3113 = vmatpush.msra.mxu0 0.0
    %3114 = vmatpush.msra.mxu0 0.0
    %3115 = vmatpush.msra.mxu0 0.0
    %3116 = vmatpush.msra.mxu0 0.0
    %3117 = vmatpush.msra.mxu0 0.0
    %3118 = vmatpush.msra.mxu0 0.0
    %3119 = vmatpush.msra.mxu0 0.0
    %3120 = vmatpush.msra.mxu0 0.0
    %3121 = vmatpush.msra.mxu0 0.0
    %3122 = vmatpush.msra.mxu0 0.0
    %3123 = vmatpush.msra.mxu0 0.0
    %3124 = vmatpush.msra.mxu0 0.0
    %3125 = vmatpush.msra.mxu0 %v3106
    %3126 = vmatpush.msra.mxu0 %v3105
    %3127 = vmatpush.msra.mxu0 %v3104
    %3128 = vmatpush.msra.mxu0 %v3103
    %3129 = vmatmul.f32.gmra.mxu0 %v3111
    %v3130 = vpop.f32.mrf.mxu0
    %v3131 = vadd.f32 0.0, %v3130
    %3132 = vdwg.mxu0
    %v3134 = vsel %vm530, %v3101, 0
    %3136 = vmatpush.msra.mxu0 0.0
    %3137 = vmatpush.msra.mxu0 0.0
    %3138 = vmatpush.msra.mxu0 0.0
    %3139 = vmatpush.msra.mxu0 0.0
    %3140 = vmatpush.msra.mxu0 0.0
    %3141 = vmatpush.msra.mxu0 0.0
    %3142 = vmatpush.msra.mxu0 0.0
    %3143 = vmatpush.msra.mxu0 0.0
    %3144 = vmatpush.msra.mxu0 0.0
    %3145 = vmatpush.msra.mxu0 0.0
    %3146 = vmatpush.msra.mxu0 0.0
    %3147 = vmatpush.msra.mxu0 0.0
    %3148 = vmatpush.msra.mxu0 0.0
    %3149 = vmatpush.msra.mxu0 0.0
    %3150 = vmatpush.msra.mxu0 0.0
    %3151 = vmatpush.msra.mxu0 %v3131
    %3152 = vmatmul.f32.gmra.mxu0 %v3134
    %v3153 = vpop.f32.mrf.mxu0
    %v3154 = vadd.f32 0.0, %v3153
    %3155 = vdwg.mxu0
    %v3156 = vadd.f32 %v3066, %v3154
    %v3157 = vmul.f32 %v2939, %v408
    %v3159 = vsel %vm579, %v3157, 0
    %3161 = vmatpush.xpose.msra.mxu0 0.0
    %3162 = vmatpush.xpose.msra.mxu0 0.0
    %3163 = vmatpush.xpose.msra.mxu0 0.0
    %3164 = vmatpush.xpose.msra.mxu0 0.0
    %3165 = vmatpush.xpose.msra.mxu0 0.0
    %3166 = vmatpush.xpose.msra.mxu0 0.0
    %3167 = vmatpush.xpose.msra.mxu0 0.0
    %3168 = vmatpush.xpose.msra.mxu0 0.0
    %3169 = vmatpush.xpose.msra.mxu0 0.0
    %3170 = vmatpush.xpose.msra.mxu0 0.0
    %3171 = vmatpush.xpose.msra.mxu0 0.0
    %3172 = vmatpush.xpose.msra.mxu0 0.0
    %3173 = vmatpush.xpose.msra.mxu0 0.0
    %3174 = vmatpush.xpose.msra.mxu0 0.0
    %3175 = vmatpush.xpose.msra.mxu0 0.0
    %3176 = vmatpush.xpose.msra.mxu0 %v2979
    %3177 = vmatmul.f32.gmra.mxu0 %v3159
    %v3178 = vpop.f32.mrf.mxu0
    %v3179 = vadd.f32 %v564, %v3178
    %3180 = vdwg.mxu0
    %v3181 = vsel %vm530, %v3179, -inf
    %3182 = vmax.xlane.f32.xlu0 %v3181
    %v3183 = vpop.xlane.xlu0 %3182
    %v3184 = vsub.f32 %v3179, %v3183
    %v3185 = vmul.f32 %v3184, 1.442695
    %v3186 = vpow.pop %v3185
    %v3187 = vsel %vm530, %v3186, 0.0
    %3188 = vadd.xlane.f32.xlu0 %v3187
    %v3189 = vpop.xlane.xlu0 %3188
    %v3190 = vrcp.pop %v3189
    %v3191 = vmul.f32 %v3186, %v3190
    %s3192 = scalar_lea.vmem %s33, 448
    %v3193 = vld [vmem:[%s3192] sm:$0xff]
    %v3194 = vld [vmem:[%s3192 + $0x8] sm:$0xff]
    %v3195 = vld [vmem:[%s3192 + $0x10] sm:$0xff]
    %v3196 = vld [vmem:[%s3192 + $0x18] sm:$0xff]
    %3197 = vst [vmem:[#allocation1] ss:$2 sm:$0xff] %v2892
    %s3198 = scalar_lea.vmem [#allocation1], 1
    %3199 = vst [vmem:[%s3198] ss:$2 sm:$0xff] %v2893
    %v3200 = vld.sshfl [vmem:[#allocation1] sm:$0xff pattern:$0x75316420]
    %v3201 = vsel %vm579, %v3200, 0
    %3203 = vmatpush.msra.mxu0 0.0
    %3204 = vmatpush.msra.mxu0 0.0
    %3205 = vmatpush.msra.mxu0 0.0
    %3206 = vmatpush.msra.mxu0 0.0
    %3207 = vmatpush.msra.mxu0 0.0
    %3208 = vmatpush.msra.mxu0 0.0
    %3209 = vmatpush.msra.mxu0 0.0
    %3210 = vmatpush.msra.mxu0 0.0
    %3211 = vmatpush.msra.mxu0 0.0
    %3212 = vmatpush.msra.mxu0 0.0
    %3213 = vmatpush.msra.mxu0 0.0
    %3214 = vmatpush.msra.mxu0 0.0
    %3215 = vmatpush.msra.mxu0 %v3196
    %3216 = vmatpush.msra.mxu0 %v3195
    %3217 = vmatpush.msra.mxu0 %v3194
    %3218 = vmatpush.msra.mxu0 %v3193
    %3219 = vmatmul.f32.gmra.mxu0 %v3201
    %v3220 = vpop.f32.mrf.mxu0
    %v3221 = vadd.f32 0.0, %v3220
    %3222 = vdwg.mxu0
    %v3224 = vsel %vm530, %v3191, 0
    %3226 = vmatpush.msra.mxu0 0.0
    %3227 = vmatpush.msra.mxu0 0.0
    %3228 = vmatpush.msra.mxu0 0.0
    %3229 = vmatpush.msra.mxu0 0.0
    %3230 = vmatpush.msra.mxu0 0.0
    %3231 = vmatpush.msra.mxu0 0.0
    %3232 = vmatpush.msra.mxu0 0.0
    %3233 = vmatpush.msra.mxu0 0.0
    %3234 = vmatpush.msra.mxu0 0.0
    %3235 = vmatpush.msra.mxu0 0.0
    %3236 = vmatpush.msra.mxu0 0.0
    %3237 = vmatpush.msra.mxu0 0.0
    %3238 = vmatpush.msra.mxu0 0.0
    %3239 = vmatpush.msra.mxu0 0.0
    %3240 = vmatpush.msra.mxu0 0.0
    %3241 = vmatpush.msra.mxu0 %v3221
    %3242 = vmatmul.f32.gmra.mxu0 %v3224
    %v3243 = vpop.f32.mrf.mxu0
    %v3244 = vadd.f32 0.0, %v3243
    %3245 = vdwg.mxu0
    %v3246 = vadd.f32 %v3156, %v3244
    %v3247 = vmul.f32 %v2939, %v413
    %v3249 = vsel %vm579, %v3247, 0
    %3251 = vmatpush.xpose.msra.mxu0 0.0
    %3252 = vmatpush.xpose.msra.mxu0 0.0
    %3253 = vmatpush.xpose.msra.mxu0 0.0
    %3254 = vmatpush.xpose.msra.mxu0 0.0
    %3255 = vmatpush.xpose.msra.mxu0 0.0
    %3256 = vmatpush.xpose.msra.mxu0 0.0
    %3257 = vmatpush.xpose.msra.mxu0 0.0
    %3258 = vmatpush.xpose.msra.mxu0 0.0
    %3259 = vmatpush.xpose.msra.mxu0 0.0
    %3260 = vmatpush.xpose.msra.mxu0 0.0
    %3261 = vmatpush.xpose.msra.mxu0 0.0
    %3262 = vmatpush.xpose.msra.mxu0 0.0
    %3263 = vmatpush.xpose.msra.mxu0 0.0
    %3264 = vmatpush.xpose.msra.mxu0 0.0
    %3265 = vmatpush.xpose.msra.mxu0 0.0
    %3266 = vmatpush.xpose.msra.mxu0 %v2979
    %3267 = vmatmul.f32.gmra.mxu0 %v3249
    %v3268 = vpop.f32.mrf.mxu0
    %v3269 = vadd.f32 %v564, %v3268
    %3270 = vdwg.mxu0
    %v3271 = vsel %vm530, %v3269, -inf
    %3272 = vmax.xlane.f32.xlu0 %v3271
    %v3273 = vpop.xlane.xlu0 %3272
    %v3274 = vsub.f32 %v3269, %v3273
    %v3275 = vmul.f32 %v3274, 1.442695
    %v3276 = vpow.pop %v3275
    %v3277 = vsel %vm530, %v3276, 0.0
    %3278 = vadd.xlane.f32.xlu0 %v3277
    %v3279 = vpop.xlane.xlu0 %3278
    %v3280 = vrcp.pop %v3279
    %v3281 = vmul.f32 %v3276, %v3280
    %s3282 = scalar_lea.vmem %s33, 480
    %v3283 = vld [vmem:[%s3282] sm:$0xff]
    %v3284 = vld [vmem:[%s3282 + $0x8] sm:$0xff]
    %v3285 = vld [vmem:[%s3282 + $0x10] sm:$0xff]
    %v3286 = vld [vmem:[%s3282 + $0x18] sm:$0xff]
    %3287 = vst [vmem:[#allocation1] ss:$2 sm:$0xff] %v2892
    %s3288 = scalar_lea.vmem [#allocation1], 1
    %3289 = vst [vmem:[%s3288] ss:$2 sm:$0xff] %v2893
    %v3290 = vld.sshfl [vmem:[#allocation1] sm:$0xff pattern:$0x75316420]
    %v3291 = vsel %vm579, %v3290, 0
    %3293 = vmatpush.msra.mxu0 0.0
    %3294 = vmatpush.msra.mxu0 0.0
    %3295 = vmatpush.msra.mxu0 0.0
    %3296 = vmatpush.msra.mxu0 0.0
    %3297 = vmatpush.msra.mxu0 0.0
    %3298 = vmatpush.msra.mxu0 0.0
    %3299 = vmatpush.msra.mxu0 0.0
    %3300 = vmatpush.msra.mxu0 0.0
    %3301 = vmatpush.msra.mxu0 0.0
    %3302 = vmatpush.msra.mxu0 0.0
    %3303 = vmatpush.msra.mxu0 0.0
    %3304 = vmatpush.msra.mxu0 0.0
    %3305 = vmatpush.msra.mxu0 %v3286
    %3306 = vmatpush.msra.mxu0 %v3285
    %3307 = vmatpush.msra.mxu0 %v3284
    %3308 = vmatpush.msra.mxu0 %v3283
    %3309 = vmatmul.f32.gmra.mxu0 %v3291
    %v3310 = vpop.f32.mrf.mxu0
    %v3311 = vadd.f32 0.0, %v3310
    %3312 = vdwg.mxu0
    %v3314 = vsel %vm530, %v3281, 0
    %3316 = vmatpush.msra.mxu0 0.0
    %3317 = vmatpush.msra.mxu0 0.0
    %3318 = vmatpush.msra.mxu0 0.0
    %3319 = vmatpush.msra.mxu0 0.0
    %3320 = vmatpush.msra.mxu0 0.0
    %3321 = vmatpush.msra.mxu0 0.0
    %3322 = vmatpush.msra.mxu0 0.0
    %3323 = vmatpush.msra.mxu0 0.0
    %3324 = vmatpush.msra.mxu0 0.0
    %3325 = vmatpush.msra.mxu0 0.0
    %3326 = vmatpush.msra.mxu0 0.0
    %3327 = vmatpush.msra.mxu0 0.0
    %3328 = vmatpush.msra.mxu0 0.0
    %3329 = vmatpush.msra.mxu0 0.0
    %3330 = vmatpush.msra.mxu0 0.0
    %3331 = vmatpush.msra.mxu0 %v3311
    %3332 = vmatmul.f32.gmra.mxu0 %v3314
    %v3333 = vpop.f32.mrf.mxu0
    %v3334 = vadd.f32 0.0, %v3333
    %3335 = vdwg.mxu0
    %v3336 = vadd.f32 %v3246, %v3334
    %v3338 = vrot.slane %v3336, 4
    %v3340 = vadd.f32 %v2892, %v3336
    %v3341 = vadd.f32 %v2893, %v3338
    %s3342 = scalar_lea.vmem [#allocation10], 3
    %v3343 = vld [vmem:[%s3342] sm:$0x1]
    %s3344 = scalar_lea.vmem [#allocation11], 3
    %v3345 = vld [vmem:[%s3344] sm:$0x1]
    %v3346 = vsel %vm2657, %v3340, 0.0
    %3347 = vadd.xlane.f32.xlu0 %v3346
    %v3348 = vpop.xlane.xlu0 %3347
    %v3349 = vsel %vm2657, %v3341, 0.0
    %3350 = vadd.xlane.f32.xlu0 %v3349
    %v3351 = vpop.xlane.xlu0 %3350
    %v3352 = vmul.f32 %v3348, %v1109
    %v3353 = vmul.f32 %v3351, %v1109
    %v3354 = vsub.f32 %v3340, %v3352
    %v3355 = vsub.f32 %v3341, %v3353
    %v3356 = vmul.f32 %v3354, %v3354
    %v3357 = vmul.f32 %v3355, %v3355
    %v3358 = vsel %vm2657, %v3356, 0.0
    %3359 = vadd.xlane.f32.xlu0 %v3358
    %v3360 = vpop.xlane.xlu0 %3359
    %v3361 = vsel %vm2657, %v3357, 0.0
    %3362 = vadd.xlane.f32.xlu0 %v3361
    %v3363 = vpop.xlane.xlu0 %3362
    %v3364 = vmul.f32 %v3360, %v1109
    %v3365 = vmul.f32 %v3363, %v1109
    %v3366 = vadd.f32 %v3364, 1e-05
    %v3367 = vadd.f32 %v3365, 1e-05
    %v3368 = vrsqrt.pop %v3366
    %v3369 = vmul.f32 %v3368, %v3366
    %v3370 = vmul.f32 %v3369, %v3368
    %v3371 = vmul.f32 0.5, %v3370
    %v3372 = vsub.f32 1.5, %v3371
    %v3373 = vmul.f32 %v3368, %v3372
    %vm3374 = vweird.f32 %v3366
    %vm3375 = vweird.f32 %v3368
    %vm3376 = vmor %vm3374, %vm3375
    %v3377 = vsel %vm3376, %v3368, %v3373
    %v3378 = vrsqrt.pop %v3367
    %v3379 = vmul.f32 %v3378, %v3367
    %v3380 = vmul.f32 %v3379, %v3378
    %v3381 = vmul.f32 0.5, %v3380
    %v3382 = vsub.f32 1.5, %v3381
    %v3383 = vmul.f32 %v3378, %v3382
    %vm3384 = vweird.f32 %v3367
    %vm3385 = vweird.f32 %v3378
    %vm3386 = vmor %vm3384, %vm3385
    %v3387 = vsel %vm3386, %v3378, %v3383
    %v3388 = vmul.f32 %v3354, %v3377
    %v3389 = vmul.f32 %v3355, %v3387
    %v3391 = vperm.slane %v3343, 0
    %v3393 = vmul.f32 %v3388, %v3391
    %v3394 = vmul.f32 %v3389, %v3391
    %v3396 = vperm.slane %v3345, 0
    %v3398 = vadd.f32 %v3393, %v3396
    %v3399 = vadd.f32 %v3394, %v3396
    %s3400 = scalar_lea.vmem [#allocation13], 96
    %v3401 = vld [vmem:[%s3400] sm:$0xff]
    %v3402 = vld [vmem:[%s3400 + $0x8] sm:$0xff]
    %v3403 = vld [vmem:[%s3400 + $0x10] sm:$0xff]
    %v3404 = vld [vmem:[%s3400 + $0x18] sm:$0xff]
    %s3405 = scalar_lea.vmem [#allocation14], 3
    %v3406 = vld [vmem:[%s3405] sm:$0x1]
    %v3408 = vperm.slane %v3406, 0
    %3412 = vst [vmem:[#allocation1] ss:$2 sm:$0xff] %v3398
    %s3413 = scalar_lea.vmem [#allocation1], 1
    %3414 = vst [vmem:[%s3413] ss:$2 sm:$0xff] %v3399
    %v3415 = vld.sshfl [vmem:[#allocation1] sm:$0xff pattern:$0x75316420]
    %v3416 = vsel %vm579, %v3415, 0
    %3418 = vmatpush.msra.mxu0 0.0
    %3419 = vmatpush.msra.mxu0 0.0
    %3420 = vmatpush.msra.mxu0 0.0
    %3421 = vmatpush.msra.mxu0 0.0
    %3422 = vmatpush.msra.mxu0 0.0
    %3423 = vmatpush.msra.mxu0 0.0
    %3424 = vmatpush.msra.mxu0 0.0
    %3425 = vmatpush.msra.mxu0 0.0
    %3426 = vmatpush.msra.mxu0 0.0
    %3427 = vmatpush.msra.mxu0 0.0
    %3428 = vmatpush.msra.mxu0 0.0
    %3429 = vmatpush.msra.mxu0 0.0
    %3430 = vmatpush.msra.mxu0 %v3404
    %3431 = vmatpush.msra.mxu0 %v3403
    %3432 = vmatpush.msra.mxu0 %v3402
    %3433 = vmatpush.msra.mxu0 %v3401
    %3434 = vmatmul.f32.gmra.mxu0 %v3416
    %v3435 = vpop.f32.mrf.mxu0
    %v3436 = vadd.f32 %v3408, %v3435
    %3437 = vdwg.mxu0
    %v3438 = vmul.f32 %v3436, 0.5
    %v3439 = vmul.f32 %v3436, 0.70710677
    %v3440 = vmul.f32 %v3439, %v3439
    %v3441 = vmin.f32 16.0, %v3440
    %v3442 = vmul.f32 %v3441, 2.1237322e-06
    %v3443 = vadd.f32 %v3442, 0.00028619796
    %v3444 = vmul.f32 %v3441, %v3443
    %v3445 = vadd.f32 %v3444, 0.0036580483
    %v3446 = vmul.f32 %v3441, %v3445
    %v3447 = vadd.f32 %v3446, 0.05243302
    %v3448 = vmul.f32 %v3441, %v3447
    %v3449 = vadd.f32 %v3448, 0.18741608
    %v3450 = vmul.f32 %v3441, %v3449
    %v3451 = vadd.f32 %v3450, 1.1283791
    %v3452 = vmul.f32 %v3439, %v3451
    %v3453 = vmul.f32 %v3441, 3.8918573e-05
    %v3454 = vadd.f32 %v3453, 0.001143296
    %v3455 = vmul.f32 %v3441, %v3454
    %v3456 = vadd.f32 %v3455, 0.014752088
    %v3457 = vmul.f32 %v3441, %v3456
    %v3458 = vadd.f32 %v3457, 0.112945676
    %v3459 = vmul.f32 %v3441, %v3458
    %v3460 = vadd.f32 %v3459, 0.4994258
    %v3461 = vmul.f32 %v3441, %v3460
    %v3462 = vadd.f32 %v3461, 1.0
    %v3463 = vrcp.pop %v3462
    %v3464 = vmul.f32 %v3462, %v3463
    %v3465 = vsub.f32 1.0, %v3464
    %v3466 = vmul.f32 %v3463, %v3465
    %v3467 = vadd.f32 %v3463, %v3466
    %vm3468 = vweird.f32 %v3462
    %vm3469 = vweird.f32 %v3463
    %vm3470 = vmor %vm3468, %vm3469
    %v3471 = vsel %vm3470, %v3463, %v3467
    %v3472 = vand.u32 2147483647, %v3462
    %vm3473 = vcmp.eq.f32.partialorder %v3472, 8.507059e+37
    %v3474 = vand.u32 %v3462, 2147483648
    %v3475 = vor.u32 1.1754944e-38, %v3474
    %v3476 = vsel %vm3473, %v3475, %v3471
    %v3477 = vmul.f32 %v3452, %v3476
    %v3478 = vmin.f32 %v3477, 1.0
    %v3479 = vmax.f32 %v3478, -1.0
    %v3480 = vadd.f32 %v3479, 1.0
    %v3481 = vmul.f32 %v3438, %v3480
    %s3482 = scalar_lea.vmem %s45, 192
    %v3483 = vld [vmem:[%s3482] sm:$0xff]
    %v3484 = vld [vmem:[%s3482 + $0x8] sm:$0xff]
    %v3485 = vld [vmem:[%s3482 + $0x10] sm:$0xff]
    %v3486 = vld [vmem:[%s3482 + $0x18] sm:$0xff]
    %v3487 = vld [vmem:[%s3482 + $0x20] sm:$0xff]
    %v3488 = vld [vmem:[%s3482 + $0x28] sm:$0xff]
    %v3489 = vld [vmem:[%s3482 + $0x30] sm:$0xff]
    %v3490 = vld [vmem:[%s3482 + $0x38] sm:$0xff]
    %s3491 = scalar_lea.vmem [#allocation16], 3
    %v3492 = vld [vmem:[%s3491] sm:$0x1]
    %v3494 = vperm.slane %v3492, 0
    %v3497 = vsel %vm1295, %v3481, 0
    %3499 = vmatpush.msra.mxu0 0.0
    %3500 = vmatpush.msra.mxu0 0.0
    %3501 = vmatpush.msra.mxu0 0.0
    %3502 = vmatpush.msra.mxu0 0.0
    %3503 = vmatpush.msra.mxu0 0.0
    %3504 = vmatpush.msra.mxu0 0.0
    %3505 = vmatpush.msra.mxu0 0.0
    %3506 = vmatpush.msra.mxu0 0.0
    %3507 = vmatpush.msra.mxu0 %v3490
    %3508 = vmatpush.msra.mxu0 %v3489
    %3509 = vmatpush.msra.mxu0 %v3488
    %3510 = vmatpush.msra.mxu0 %v3487
    %3511 = vmatpush.msra.mxu0 %v3486
    %3512 = vmatpush.msra.mxu0 %v3485
    %3513 = vmatpush.msra.mxu0 %v3484
    %3514 = vmatpush.msra.mxu0 %v3483
    %3515 = vmatmul.f32.gmra.mxu0 %v3497
    %v3516 = vpop.f32.mrf.mxu0
    %v3517 = vadd.f32 %v3494, %v3516
    %3518 = vdwg.mxu0
    %v3520 = vrot.slane %v3517, 4
    %v3522 = vadd.f32 %v3398, %v3517
    %v3523 = vadd.f32 %v3399, %v3520
    %s3524 = scalar_lea.vmem [#allocation17], 3
    %v3525 = vld [vmem:[%s3524] sm:$0x1]
    %s3526 = scalar_lea.vmem [#allocation19], 3
    %v3527 = vld [vmem:[%s3526] sm:$0x1]
    %v3528 = vsel %vm2657, %v3522, 0.0
    %3529 = vadd.xlane.f32.xlu0 %v3528
    %v3530 = vpop.xlane.xlu0 %3529
    %v3531 = vsel %vm2657, %v3523, 0.0
    %3532 = vadd.xlane.f32.xlu0 %v3531
    %v3533 = vpop.xlane.xlu0 %3532
    %v3534 = vmul.f32 %v3530, %v1109
    %v3535 = vmul.f32 %v3533, %v1109
    %v3536 = vsub.f32 %v3522, %v3534
    %v3537 = vsub.f32 %v3523, %v3535
    %v3538 = vmul.f32 %v3536, %v3536
    %v3539 = vmul.f32 %v3537, %v3537
    %v3540 = vsel %vm2657, %v3538, 0.0
    %3541 = vadd.xlane.f32.xlu0 %v3540
    %v3542 = vpop.xlane.xlu0 %3541
    %v3543 = vsel %vm2657, %v3539, 0.0
    %3544 = vadd.xlane.f32.xlu0 %v3543
    %v3545 = vpop.xlane.xlu0 %3544
    %v3546 = vmul.f32 %v3542, %v1109
    %v3547 = vmul.f32 %v3545, %v1109
    %v3548 = vadd.f32 %v3546, 1e-05
    %v3549 = vadd.f32 %v3547, 1e-05
    %v3550 = vrsqrt.pop %v3548
    %v3551 = vmul.f32 %v3550, %v3548
    %v3552 = vmul.f32 %v3551, %v3550
    %v3553 = vmul.f32 0.5, %v3552
    %v3554 = vsub.f32 1.5, %v3553
    %v3555 = vmul.f32 %v3550, %v3554
    %vm3556 = vweird.f32 %v3548
    %vm3557 = vweird.f32 %v3550
    %vm3558 = vmor %vm3556, %vm3557
    %v3559 = vsel %vm3558, %v3550, %v3555
    %v3560 = vrsqrt.pop %v3549
    %v3561 = vmul.f32 %v3560, %v3549
    %v3562 = vmul.f32 %v3561, %v3560
    %v3563 = vmul.f32 0.5, %v3562
    %v3564 = vsub.f32 1.5, %v3563
    %v3565 = vmul.f32 %v3560, %v3564
    %vm3566 = vweird.f32 %v3549
    %vm3567 = vweird.f32 %v3560
    %vm3568 = vmor %vm3566, %vm3567
    %v3569 = vsel %vm3568, %v3560, %v3565
    %v3570 = vmul.f32 %v3536, %v3559
    %v3571 = vmul.f32 %v3537, %v3569
    %v3573 = vperm.slane %v3525, 0
    %v3575 = vmul.f32 %v3570, %v3573
    %v3576 = vmul.f32 %v3571, %v3573
    %v3578 = vperm.slane %v3527, 0
    %v3580 = vadd.f32 %v3575, %v3578
    %v3581 = vadd.f32 %v3576, %v3578
    %v3582 = vadd.f32 %v2203, %v556
    %v3583 = vadd.f32 %v2204, %v556
    %v3584 = vld [vmem:[%s23] sm:$0xf]
    %v3585 = vadd.f32 %v3580, %v3584
    %v3586 = vadd.f32 %v3581, %v3584
    %v3587 = vld [vmem:[%s53] sm:$0xff]
    %v3588 = vld [vmem:[%s53 + $0x8] sm:$0xff]
    %v3589 = vld [vmem:[%s53 + $0x10] sm:$0xff]
    %v3590 = vld [vmem:[%s53 + $0x18] sm:$0xff]
    %v3591 = vld [vmem:[%s55] sm:$0x1]
    %v3592 = vld [vmem:[#allocation20] sm:$0xff]
    %v3593 = vld [vmem:[#allocation20 + $0x8] sm:$0xff]
    %v3594 = vld [vmem:[#allocation20 + $0x10] sm:$0xff]
    %v3595 = vld [vmem:[#allocation20 + $0x18] sm:$0xff]
    %v3596 = vld [vmem:[#allocation22] sm:$0x1]
    %v3597 = vld [vmem:[#allocation25] sm:$0x1]
    %v3598 = vld [vmem:[%s7] sm:$0xff]
    %v3599 = vld [vmem:[%s7 + $0x8] sm:$0xff]
    %v3601 = vperm.slane %v3591, 0
    %v3604 = vsel %vm579, %v3582, 0
    %v3607 = vsel %vm579, %v3583, 0
    %3609 = vmatpush.msra.mxu0 0.0
    %3610 = vmatpush.msra.mxu0 0.0
    %3611 = vmatpush.msra.mxu0 0.0
    %3612 = vmatpush.msra.mxu0 0.0
    %3613 = vmatpush.msra.mxu0 0.0
    %3614 = vmatpush.msra.mxu0 0.0
    %3615 = vmatpush.msra.mxu0 0.0
    %3616 = vmatpush.msra.mxu0 0.0
    %3617 = vmatpush.msra.mxu0 0.0
    %3618 = vmatpush.msra.mxu0 0.0
    %3619 = vmatpush.msra.mxu0 0.0
    %3620 = vmatpush.msra.mxu0 0.0
    %3621 = vmatpush.msra.mxu0 %v3590
    %3622 = vmatpush.msra.mxu0 %v3589
    %3623 = vmatpush.msra.mxu0 %v3588
    %3624 = vmatpush.msra.mxu0 %v3587
    %3625 = vmatmul.f32.gmra.mxu0 %v3604
    %v3626 = vpop.f32.mrf.mxu0
    %v3627 = vadd.f32 %v3601, %v3626
    %3628 = vmatmul.f32.gmra.mxu0 %v3607
    %v3629 = vpop.f32.mrf.mxu0
    %v3630 = vadd.f32 %v3601, %v3629
    %3631 = vdwg.mxu0
    %v3633 = vperm.slane %v3596, 0
    %3637 = vst [vmem:[#allocation1] ss:$2 sm:$0xff] %v3585
    %s3638 = scalar_lea.vmem [#allocation1], 1
    %3639 = vst [vmem:[%s3638] ss:$2 sm:$0xff] %v3586
    %v3640 = vld.sshfl [vmem:[#allocation1] sm:$0xff pattern:$0x75316420]
    %v3641 = vsel %vm579, %v3640, 0
    %3643 = vmatpush.msra.mxu0 0.0
    %3644 = vmatpush.msra.mxu0 0.0
    %3645 = vmatpush.msra.mxu0 0.0
    %3646 = vmatpush.msra.mxu0 0.0
    %3647 = vmatpush.msra.mxu0 0.0
    %3648 = vmatpush.msra.mxu0 0.0
    %3649 = vmatpush.msra.mxu0 0.0
    %3650 = vmatpush.msra.mxu0 0.0
    %3651 = vmatpush.msra.mxu0 0.0
    %3652 = vmatpush.msra.mxu0 0.0
    %3653 = vmatpush.msra.mxu0 0.0
    %3654 = vmatpush.msra.mxu0 0.0
    %3655 = vmatpush.msra.mxu0 %v3595
    %3656 = vmatpush.msra.mxu0 %v3594
    %3657 = vmatpush.msra.mxu0 %v3593
    %3658 = vmatpush.msra.mxu0 %v3592
    %3659 = vmatmul.f32.gmra.mxu0 %v3641
    %v3660 = vpop.f32.mrf.mxu0
    %v3661 = vadd.f32 %v3633, %v3660
    %3662 = vdwg.mxu0
    %v3664 = vperm.slane %v3597, 0
    %v3666 = vadd.f32 %v3664, 0.0
    %v3667 = vmul.f32 %v3627, %v398
    %v3668 = vmul.f32 %v3630, %v398
    %v3670 = vsel %vm579, %v3667, 0
    %v3673 = vsel %vm579, %v3668, 0
    %v3676 = vsel %vm579, %v3661, 0
    %3678 = vmatpush.xpose.msra.mxu0 0.0
    %3679 = vmatpush.xpose.msra.mxu0 0.0
    %3680 = vmatpush.xpose.msra.mxu0 0.0
    %3681 = vmatpush.xpose.msra.mxu0 0.0
    %3682 = vmatpush.xpose.msra.mxu0 0.0
    %3683 = vmatpush.xpose.msra.mxu0 0.0
    %3684 = vmatpush.xpose.msra.mxu0 0.0
    %3685 = vmatpush.xpose.msra.mxu0 0.0
    %3686 = vmatpush.xpose.msra.mxu0 0.0
    %3687 = vmatpush.xpose.msra.mxu0 0.0
    %3688 = vmatpush.xpose.msra.mxu0 0.0
    %3689 = vmatpush.xpose.msra.mxu0 0.0
    %3690 = vmatpush.xpose.msra.mxu0 0.0
    %3691 = vmatpush.xpose.msra.mxu0 0.0
    %3692 = vmatpush.xpose.msra.mxu0 0.0
    %3693 = vmatpush.xpose.msra.mxu0 %v3676
    %3694 = vmatmul.f32.gmra.mxu0 %v3670
    %v3695 = vpop.f32.mrf.mxu0
    %v3696 = vadd.f32 %v3598, %v3695
    %3697 = vmatmul.f32.gmra.mxu0 %v3673
    %v3698 = vpop.f32.mrf.mxu0
    %v3699 = vadd.f32 %v3599, %v3698
    %3700 = vdwg.mxu0
    %v3701 = vsel %vm530, %v3696, -inf
    %3702 = vmax.xlane.f32.xlu0 %v3701
    %v3703 = vpop.xlane.xlu0 %3702
    %v3704 = vsel %vm530, %v3699, -inf
    %3705 = vmax.xlane.f32.xlu0 %v3704
    %v3706 = vpop.xlane.xlu0 %3705
    %v3707 = vsub.f32 %v3696, %v3703
    %v3708 = vsub.f32 %v3699, %v3706
    %v3709 = vmul.f32 %v3707, 1.442695
    %v3710 = vpow.pop %v3709
    %v3711 = vmul.f32 %v3708, 1.442695
    %v3712 = vpow.pop %v3711
    %v3713 = vsel %vm530, %v3710, 0.0
    %3714 = vadd.xlane.f32.xlu0 %v3713
    %v3715 = vpop.xlane.xlu0 %3714
    %v3716 = vsel %vm530, %v3712, 0.0
    %3717 = vadd.xlane.f32.xlu0 %v3716
    %v3718 = vpop.xlane.xlu0 %3717
    %v3719 = vrcp.pop %v3715
    %v3720 = vrcp.pop %v3718
    %v3721 = vmul.f32 %v3710, %v3719
    %v3722 = vmul.f32 %v3712, %v3720
    %v3723 = vld [vmem:[#allocation23] sm:$0xff]
    %v3724 = vld [vmem:[#allocation23 + $0x8] sm:$0xff]
    %v3725 = vld [vmem:[#allocation23 + $0x10] sm:$0xff]
    %v3726 = vld [vmem:[#allocation23 + $0x18] sm:$0xff]
    %3727 = vst [vmem:[#allocation1] ss:$2 sm:$0xff] %v3585
    %s3728 = scalar_lea.vmem [#allocation1], 1
    %3729 = vst [vmem:[%s3728] ss:$2 sm:$0xff] %v3586
    %v3730 = vld.sshfl [vmem:[#allocation1] sm:$0xff pattern:$0x75316420]
    %v3731 = vsel %vm579, %v3730, 0
    %3733 = vmatpush.msra.mxu0 0.0
    %3734 = vmatpush.msra.mxu0 0.0
    %3735 = vmatpush.msra.mxu0 0.0
    %3736 = vmatpush.msra.mxu0 0.0
    %3737 = vmatpush.msra.mxu0 0.0
    %3738 = vmatpush.msra.mxu0 0.0
    %3739 = vmatpush.msra.mxu0 0.0
    %3740 = vmatpush.msra.mxu0 0.0
    %3741 = vmatpush.msra.mxu0 0.0
    %3742 = vmatpush.msra.mxu0 0.0
    %3743 = vmatpush.msra.mxu0 0.0
    %3744 = vmatpush.msra.mxu0 0.0
    %3745 = vmatpush.msra.mxu0 %v3726
    %3746 = vmatpush.msra.mxu0 %v3725
    %3747 = vmatpush.msra.mxu0 %v3724
    %3748 = vmatpush.msra.mxu0 %v3723
    %3749 = vmatmul.f32.gmra.mxu0 %v3731
    %v3750 = vpop.f32.mrf.mxu0
    %v3751 = vadd.f32 0.0, %v3750
    %3752 = vdwg.mxu0
    %v3754 = vsel %vm530, %v3721, 0
    %v3757 = vsel %vm530, %v3722, 0
    %3759 = vmatpush.msra.mxu0 0.0
    %3760 = vmatpush.msra.mxu0 0.0
    %3761 = vmatpush.msra.mxu0 0.0
    %3762 = vmatpush.msra.mxu0 0.0
    %3763 = vmatpush.msra.mxu0 0.0
    %3764 = vmatpush.msra.mxu0 0.0
    %3765 = vmatpush.msra.mxu0 0.0
    %3766 = vmatpush.msra.mxu0 0.0
    %3767 = vmatpush.msra.mxu0 0.0
    %3768 = vmatpush.msra.mxu0 0.0
    %3769 = vmatpush.msra.mxu0 0.0
    %3770 = vmatpush.msra.mxu0 0.0
    %3771 = vmatpush.msra.mxu0 0.0
    %3772 = vmatpush.msra.mxu0 0.0
    %3773 = vmatpush.msra.mxu0 0.0
    %3774 = vmatpush.msra.mxu0 %v3751
    %3775 = vmatmul.f32.gmra.mxu0 %v3754
    %v3776 = vpop.f32.mrf.mxu0
    %v3777 = vadd.f32 0.0, %v3776
    %3778 = vmatmul.f32.gmra.mxu0 %v3757
    %v3779 = vpop.f32.mrf.mxu0
    %v3780 = vadd.f32 0.0, %v3779
    %3781 = vdwg.mxu0
    %v3782 = vadd.f32 %v3666, %v3777
    %v3783 = vadd.f32 %v3666, %v3780
    %v3784 = vmul.f32 %v3627, %v403
    %v3785 = vmul.f32 %v3630, %v403
    %v3787 = vsel %vm579, %v3784, 0
    %v3790 = vsel %vm579, %v3785, 0
    %3792 = vmatpush.xpose.msra.mxu0 0.0
    %3793 = vmatpush.xpose.msra.mxu0 0.0
    %3794 = vmatpush.xpose.msra.mxu0 0.0
    %3795 = vmatpush.xpose.msra.mxu0 0.0
    %3796 = vmatpush.xpose.msra.mxu0 0.0
    %3797 = vmatpush.xpose.msra.mxu0 0.0
    %3798 = vmatpush.xpose.msra.mxu0 0.0
    %3799 = vmatpush.xpose.msra.mxu0 0.0
    %3800 = vmatpush.xpose.msra.mxu0 0.0
    %3801 = vmatpush.xpose.msra.mxu0 0.0
    %3802 = vmatpush.xpose.msra.mxu0 0.0
    %3803 = vmatpush.xpose.msra.mxu0 0.0
    %3804 = vmatpush.xpose.msra.mxu0 0.0
    %3805 = vmatpush.xpose.msra.mxu0 0.0
    %3806 = vmatpush.xpose.msra.mxu0 0.0
    %3807 = vmatpush.xpose.msra.mxu0 %v3676
    %3808 = vmatmul.f32.gmra.mxu0 %v3787
    %v3809 = vpop.f32.mrf.mxu0
    %v3810 = vadd.f32 %v3598, %v3809
    %3811 = vmatmul.f32.gmra.mxu0 %v3790
    %v3812 = vpop.f32.mrf.mxu0
    %v3813 = vadd.f32 %v3599, %v3812
    %3814 = vdwg.mxu0
    %v3815 = vsel %vm530, %v3810, -inf
    %3816 = vmax.xlane.f32.xlu0 %v3815
    %v3817 = vpop.xlane.xlu0 %3816
    %v3818 = vsel %vm530, %v3813, -inf
    %3819 = vmax.xlane.f32.xlu0 %v3818
    %v3820 = vpop.xlane.xlu0 %3819
    %v3821 = vsub.f32 %v3810, %v3817
    %v3822 = vsub.f32 %v3813, %v3820
    %v3823 = vmul.f32 %v3821, 1.442695
    %v3824 = vpow.pop %v3823
    %v3825 = vmul.f32 %v3822, 1.442695
    %v3826 = vpow.pop %v3825
    %v3827 = vsel %vm530, %v3824, 0.0
    %3828 = vadd.xlane.f32.xlu0 %v3827
    %v3829 = vpop.xlane.xlu0 %3828
    %v3830 = vsel %vm530, %v3826, 0.0
    %3831 = vadd.xlane.f32.xlu0 %v3830
    %v3832 = vpop.xlane.xlu0 %3831
    %v3833 = vrcp.pop %v3829
    %v3834 = vrcp.pop %v3832
    %v3835 = vmul.f32 %v3824, %v3833
    %v3836 = vmul.f32 %v3826, %v3834
    %s3837 = scalar_lea.vmem [#allocation23], 32
    %v3838 = vld [vmem:[%s3837] sm:$0xff]
    %v3839 = vld [vmem:[%s3837 + $0x8] sm:$0xff]
    %v3840 = vld [vmem:[%s3837 + $0x10] sm:$0xff]
    %v3841 = vld [vmem:[%s3837 + $0x18] sm:$0xff]
    %3842 = vst [vmem:[#allocation1] ss:$2 sm:$0xff] %v3585
    %s3843 = scalar_lea.vmem [#allocation1], 1
    %3844 = vst [vmem:[%s3843] ss:$2 sm:$0xff] %v3586
    %v3845 = vld.sshfl [vmem:[#allocation1] sm:$0xff pattern:$0x75316420]
    %v3846 = vsel %vm579, %v3845, 0
    %3848 = vmatpush.msra.mxu0 0.0
    %3849 = vmatpush.msra.mxu0 0.0
    %3850 = vmatpush.msra.mxu0 0.0
    %3851 = vmatpush.msra.mxu0 0.0
    %3852 = vmatpush.msra.mxu0 0.0
    %3853 = vmatpush.msra.mxu0 0.0
    %3854 = vmatpush.msra.mxu0 0.0
    %3855 = vmatpush.msra.mxu0 0.0
    %3856 = vmatpush.msra.mxu0 0.0
    %3857 = vmatpush.msra.mxu0 0.0
    %3858 = vmatpush.msra.mxu0 0.0
    %3859 = vmatpush.msra.mxu0 0.0
    %3860 = vmatpush.msra.mxu0 %v3841
    %3861 = vmatpush.msra.mxu0 %v3840
    %3862 = vmatpush.msra.mxu0 %v3839
    %3863 = vmatpush.msra.mxu0 %v3838
    %3864 = vmatmul.f32.gmra.mxu0 %v3846
    %v3865 = vpop.f32.mrf.mxu0
    %v3866 = vadd.f32 0.0, %v3865
    %3867 = vdwg.mxu0
    %v3869 = vsel %vm530, %v3835, 0
    %v3872 = vsel %vm530, %v3836, 0
    %3874 = vmatpush.msra.mxu0 0.0
    %3875 = vmatpush.msra.mxu0 0.0
    %3876 = vmatpush.msra.mxu0 0.0
    %3877 = vmatpush.msra.mxu0 0.0
    %3878 = vmatpush.msra.mxu0 0.0
    %3879 = vmatpush.msra.mxu0 0.0
    %3880 = vmatpush.msra.mxu0 0.0
    %3881 = vmatpush.msra.mxu0 0.0
    %3882 = vmatpush.msra.mxu0 0.0
    %3883 = vmatpush.msra.mxu0 0.0
    %3884 = vmatpush.msra.mxu0 0.0
    %3885 = vmatpush.msra.mxu0 0.0
    %3886 = vmatpush.msra.mxu0 0.0
    %3887 = vmatpush.msra.mxu0 0.0
    %3888 = vmatpush.msra.mxu0 0.0
    %3889 = vmatpush.msra.mxu0 %v3866
    %3890 = vmatmul.f32.gmra.mxu0 %v3869
    %v3891 = vpop.f32.mrf.mxu0
    %v3892 = vadd.f32 0.0, %v3891
    %3893 = vmatmul.f32.gmra.mxu0 %v3872
    %v3894 = vpop.f32.mrf.mxu0
    %v3895 = vadd.f32 0.0, %v3894
    %3896 = vdwg.mxu0
    %v3897 = vadd.f32 %v3782, %v3892
    %v3898 = vadd.f32 %v3783, %v3895
    %v3899 = vmul.f32 %v3627, %v408
    %v3900 = vmul.f32 %v3630, %v408
    %v3902 = vsel %vm579, %v3899, 0
    %v3905 = vsel %vm579, %v3900, 0
    %3907 = vmatpush.xpose.msra.mxu0 0.0
    %3908 = vmatpush.xpose.msra.mxu0 0.0
    %3909 = vmatpush.xpose.msra.mxu0 0.0
    %3910 = vmatpush.xpose.msra.mxu0 0.0
    %3911 = vmatpush.xpose.msra.mxu0 0.0
    %3912 = vmatpush.xpose.msra.mxu0 0.0
    %3913 = vmatpush.xpose.msra.mxu0 0.0
    %3914 = vmatpush.xpose.msra.mxu0 0.0
    %3915 = vmatpush.xpose.msra.mxu0 0.0
    %3916 = vmatpush.xpose.msra.mxu0 0.0
    %3917 = vmatpush.xpose.msra.mxu0 0.0
    %3918 = vmatpush.xpose.msra.mxu0 0.0
    %3919 = vmatpush.xpose.msra.mxu0 0.0
    %3920 = vmatpush.xpose.msra.mxu0 0.0
    %3921 = vmatpush.xpose.msra.mxu0 0.0
    %3922 = vmatpush.xpose.msra.mxu0 %v3676
    %3923 = vmatmul.f32.gmra.mxu0 %v3902
    %v3924 = vpop.f32.mrf.mxu0
    %v3925 = vadd.f32 %v3598, %v3924
    %3926 = vmatmul.f32.gmra.mxu0 %v3905
    %v3927 = vpop.f32.mrf.mxu0
    %v3928 = vadd.f32 %v3599, %v3927
    %3929 = vdwg.mxu0
    %v3930 = vsel %vm530, %v3925, -inf
    %3931 = vmax.xlane.f32.xlu0 %v3930
    %v3932 = vpop.xlane.xlu0 %3931
    %v3933 = vsel %vm530, %v3928, -inf
    %3934 = vmax.xlane.f32.xlu0 %v3933
    %v3935 = vpop.xlane.xlu0 %3934
    %v3936 = vsub.f32 %v3925, %v3932
    %v3937 = vsub.f32 %v3928, %v3935
    %v3938 = vmul.f32 %v3936, 1.442695
    %v3939 = vpow.pop %v3938
    %v3940 = vmul.f32 %v3937, 1.442695
    %v3941 = vpow.pop %v3940
    %v3942 = vsel %vm530, %v3939, 0.0
    %3943 = vadd.xlane.f32.xlu0 %v3942
    %v3944 = vpop.xlane.xlu0 %3943
    %v3945 = vsel %vm530, %v3941, 0.0
    %3946 = vadd.xlane.f32.xlu0 %v3945
    %v3947 = vpop.xlane.xlu0 %3946
    %v3948 = vrcp.pop %v3944
    %v3949 = vrcp.pop %v3947
    %v3950 = vmul.f32 %v3939, %v3948
    %v3951 = vmul.f32 %v3941, %v3949
    %s3952 = scalar_lea.vmem [#allocation23], 64
    %v3953 = vld [vmem:[%s3952] sm:$0xff]
    %v3954 = vld [vmem:[%s3952 + $0x8] sm:$0xff]
    %v3955 = vld [vmem:[%s3952 + $0x10] sm:$0xff]
    %v3956 = vld [vmem:[%s3952 + $0x18] sm:$0xff]
    %3957 = vst [vmem:[#allocation1] ss:$2 sm:$0xff] %v3585
    %s3958 = scalar_lea.vmem [#allocation1], 1
    %3959 = vst [vmem:[%s3958] ss:$2 sm:$0xff] %v3586
    %v3960 = vld.sshfl [vmem:[#allocation1] sm:$0xff pattern:$0x75316420]
    %v3961 = vsel %vm579, %v3960, 0
    %3963 = vmatpush.msra.mxu0 0.0
    %3964 = vmatpush.msra.mxu0 0.0
    %3965 = vmatpush.msra.mxu0 0.0
    %3966 = vmatpush.msra.mxu0 0.0
    %3967 = vmatpush.msra.mxu0 0.0
    %3968 = vmatpush.msra.mxu0 0.0
    %3969 = vmatpush.msra.mxu0 0.0
    %3970 = vmatpush.msra.mxu0 0.0
    %3971 = vmatpush.msra.mxu0 0.0
    %3972 = vmatpush.msra.mxu0 0.0
    %3973 = vmatpush.msra.mxu0 0.0
    %3974 = vmatpush.msra.mxu0 0.0
    %3975 = vmatpush.msra.mxu0 %v3956
    %3976 = vmatpush.msra.mxu0 %v3955
    %3977 = vmatpush.msra.mxu0 %v3954
    %3978 = vmatpush.msra.mxu0 %v3953
    %3979 = vmatmul.f32.gmra.mxu0 %v3961
    %v3980 = vpop.f32.mrf.mxu0
    %v3981 = vadd.f32 0.0, %v3980
    %3982 = vdwg.mxu0
    %v3984 = vsel %vm530, %v3950, 0
    %v3987 = vsel %vm530, %v3951, 0
    %3989 = vmatpush.msra.mxu0 0.0
    %3990 = vmatpush.msra.mxu0 0.0
    %3991 = vmatpush.msra.mxu0 0.0
    %3992 = vmatpush.msra.mxu0 0.0
    %3993 = vmatpush.msra.mxu0 0.0
    %3994 = vmatpush.msra.mxu0 0.0
    %3995 = vmatpush.msra.mxu0 0.0
    %3996 = vmatpush.msra.mxu0 0.0
    %3997 = vmatpush.msra.mxu0 0.0
    %3998 = vmatpush.msra.mxu0 0.0
    %3999 = vmatpush.msra.mxu0 0.0
    %4000 = vmatpush.msra.mxu0 0.0
    %4001 = vmatpush.msra.mxu0 0.0
    %4002 = vmatpush.msra.mxu0 0.0
    %4003 = vmatpush.msra.mxu0 0.0
    %4004 = vmatpush.msra.mxu0 %v3981
    %4005 = vmatmul.f32.gmra.mxu0 %v3984
    %v4006 = vpop.f32.mrf.mxu0
    %v4007 = vadd.f32 0.0, %v4006
    %4008 = vmatmul.f32.gmra.mxu0 %v3987
    %v4009 = vpop.f32.mrf.mxu0
    %v4010 = vadd.f32 0.0, %v4009
    %4011 = vdwg.mxu0
    %v4012 = vadd.f32 %v3897, %v4007
    %v4013 = vadd.f32 %v3898, %v4010
    %v4014 = vmul.f32 %v3627, %v413
    %v4015 = vmul.f32 %v3630, %v413
    %v4017 = vsel %vm579, %v4014, 0
    %v4020 = vsel %vm579, %v4015, 0
    %4022 = vmatpush.xpose.msra.mxu0 0.0
    %4023 = vmatpush.xpose.msra.mxu0 0.0
    %4024 = vmatpush.xpose.msra.mxu0 0.0
    %4025 = vmatpush.xpose.msra.mxu0 0.0
    %4026 = vmatpush.xpose.msra.mxu0 0.0
    %4027 = vmatpush.xpose.msra.mxu0 0.0
    %4028 = vmatpush.xpose.msra.mxu0 0.0
    %4029 = vmatpush.xpose.msra.mxu0 0.0
    %4030 = vmatpush.xpose.msra.mxu0 0.0
    %4031 = vmatpush.xpose.msra.mxu0 0.0
    %4032 = vmatpush.xpose.msra.mxu0 0.0
    %4033 = vmatpush.xpose.msra.mxu0 0.0
    %4034 = vmatpush.xpose.msra.mxu0 0.0
    %4035 = vmatpush.xpose.msra.mxu0 0.0
    %4036 = vmatpush.xpose.msra.mxu0 0.0
    %4037 = vmatpush.xpose.msra.mxu0 %v3676
    %4038 = vmatmul.f32.gmra.mxu0 %v4017
    %v4039 = vpop.f32.mrf.mxu0
    %v4040 = vadd.f32 %v3598, %v4039
    %4041 = vmatmul.f32.gmra.mxu0 %v4020
    %v4042 = vpop.f32.mrf.mxu0
    %v4043 = vadd.f32 %v3599, %v4042
    %4044 = vdwg.mxu0
    %v4045 = vsel %vm530, %v4040, -inf
    %4046 = vmax.xlane.f32.xlu0 %v4045
    %v4047 = vpop.xlane.xlu0 %4046
    %v4048 = vsel %vm530, %v4043, -inf
    %4049 = vmax.xlane.f32.xlu0 %v4048
    %v4050 = vpop.xlane.xlu0 %4049
    %v4051 = vsub.f32 %v4040, %v4047
    %v4052 = vsub.f32 %v4043, %v4050
    %v4053 = vmul.f32 %v4051, 1.442695
    %v4054 = vpow.pop %v4053
    %v4055 = vmul.f32 %v4052, 1.442695
    %v4056 = vpow.pop %v4055
    %v4057 = vsel %vm530, %v4054, 0.0
    %4058 = vadd.xlane.f32.xlu0 %v4057
    %v4059 = vpop.xlane.xlu0 %4058
    %v4060 = vsel %vm530, %v4056, 0.0
    %4061 = vadd.xlane.f32.xlu0 %v4060
    %v4062 = vpop.xlane.xlu0 %4061
    %v4063 = vrcp.pop %v4059
    %v4064 = vrcp.pop %v4062
    %v4065 = vmul.f32 %v4054, %v4063
    %v4066 = vmul.f32 %v4056, %v4064
    %s4067 = scalar_lea.vmem [#allocation23], 96
    %v4068 = vld [vmem:[%s4067] sm:$0xff]
    %v4069 = vld [vmem:[%s4067 + $0x8] sm:$0xff]
    %v4070 = vld [vmem:[%s4067 + $0x10] sm:$0xff]
    %v4071 = vld [vmem:[%s4067 + $0x18] sm:$0xff]
    %4072 = vst [vmem:[#allocation1] ss:$2 sm:$0xff] %v3585
    %s4073 = scalar_lea.vmem [#allocation1], 1
    %4074 = vst [vmem:[%s4073] ss:$2 sm:$0xff] %v3586
    %v4075 = vld.sshfl [vmem:[#allocation1] sm:$0xff pattern:$0x75316420]
    %v4076 = vsel %vm579, %v4075, 0
    %4078 = vmatpush.msra.mxu0 0.0
    %4079 = vmatpush.msra.mxu0 0.0
    %4080 = vmatpush.msra.mxu0 0.0
    %4081 = vmatpush.msra.mxu0 0.0
    %4082 = vmatpush.msra.mxu0 0.0
    %4083 = vmatpush.msra.mxu0 0.0
    %4084 = vmatpush.msra.mxu0 0.0
    %4085 = vmatpush.msra.mxu0 0.0
    %4086 = vmatpush.msra.mxu0 0.0
    %4087 = vmatpush.msra.mxu0 0.0
    %4088 = vmatpush.msra.mxu0 0.0
    %4089 = vmatpush.msra.mxu0 0.0
    %4090 = vmatpush.msra.mxu0 %v4071
    %4091 = vmatpush.msra.mxu0 %v4070
    %4092 = vmatpush.msra.mxu0 %v4069
    %4093 = vmatpush.msra.mxu0 %v4068
    %4094 = vmatmul.f32.gmra.mxu0 %v4076
    %v4095 = vpop.f32.mrf.mxu0
    %v4096 = vadd.f32 0.0, %v4095
    %4097 = vdwg.mxu0
    %v4099 = vsel %vm530, %v4065, 0
    %v4102 = vsel %vm530, %v4066, 0
    %4104 = vmatpush.msra.mxu0 0.0
    %4105 = vmatpush.msra.mxu0 0.0
    %4106 = vmatpush.msra.mxu0 0.0
    %4107 = vmatpush.msra.mxu0 0.0
    %4108 = vmatpush.msra.mxu0 0.0
    %4109 = vmatpush.msra.mxu0 0.0
    %4110 = vmatpush.msra.mxu0 0.0
    %4111 = vmatpush.msra.mxu0 0.0
    %4112 = vmatpush.msra.mxu0 0.0
    %4113 = vmatpush.msra.mxu0 0.0
    %4114 = vmatpush.msra.mxu0 0.0
    %4115 = vmatpush.msra.mxu0 0.0
    %4116 = vmatpush.msra.mxu0 0.0
    %4117 = vmatpush.msra.mxu0 0.0
    %4118 = vmatpush.msra.mxu0 0.0
    %4119 = vmatpush.msra.mxu0 %v4096
    %4120 = vmatmul.f32.gmra.mxu0 %v4099
    %v4121 = vpop.f32.mrf.mxu0
    %v4122 = vadd.f32 0.0, %v4121
    %4123 = vmatmul.f32.gmra.mxu0 %v4102
    %v4124 = vpop.f32.mrf.mxu0
    %v4125 = vadd.f32 0.0, %v4124
    %4126 = vdwg.mxu0
    %v4127 = vadd.f32 %v4012, %v4122
    %v4128 = vadd.f32 %v4013, %v4125
    %s4129 = scalar_lea.vmem %s53, 32
    %v4130 = vld [vmem:[%s4129] sm:$0xff]
    %v4131 = vld [vmem:[%s4129 + $0x8] sm:$0xff]
    %v4132 = vld [vmem:[%s4129 + $0x10] sm:$0xff]
    %v4133 = vld [vmem:[%s4129 + $0x18] sm:$0xff]
    %s4134 = scalar_lea.vmem %s55, 1
    %v4135 = vld [vmem:[%s4134] sm:$0x1]
    %s4136 = scalar_lea.vmem [#allocation20], 32
    %v4137 = vld [vmem:[%s4136] sm:$0xff]
    %v4138 = vld [vmem:[%s4136 + $0x8] sm:$0xff]
    %v4139 = vld [vmem:[%s4136 + $0x10] sm:$0xff]
    %v4140 = vld [vmem:[%s4136 + $0x18] sm:$0xff]
    %s4141 = scalar_lea.vmem [#allocation22], 1
    %v4142 = vld [vmem:[%s4141] sm:$0x1]
    %s4143 = scalar_lea.vmem [#allocation25], 1
    %v4144 = vld [vmem:[%s4143] sm:$0x1]
    %v4145 = vld [vmem:[%s9] sm:$0xff]
    %v4147 = vperm.slane %v4135, 0
    %4149 = vst [vmem:[#allocation1] ss:$2 sm:$0xff] %v3585
    %s4150 = scalar_lea.vmem [#allocation1], 1
    %4151 = vst [vmem:[%s4150] ss:$2 sm:$0xff] %v3586
    %v4152 = vld.sshfl [vmem:[#allocation1] sm:$0xff pattern:$0x75316420]
    %v4153 = vsel %vm579, %v4152, 0
    %4155 = vmatpush.msra.mxu0 0.0
    %4156 = vmatpush.msra.mxu0 0.0
    %4157 = vmatpush.msra.mxu0 0.0
    %4158 = vmatpush.msra.mxu0 0.0
    %4159 = vmatpush.msra.mxu0 0.0
    %4160 = vmatpush.msra.mxu0 0.0
    %4161 = vmatpush.msra.mxu0 0.0
    %4162 = vmatpush.msra.mxu0 0.0
    %4163 = vmatpush.msra.mxu0 0.0
    %4164 = vmatpush.msra.mxu0 0.0
    %4165 = vmatpush.msra.mxu0 0.0
    %4166 = vmatpush.msra.mxu0 0.0
    %4167 = vmatpush.msra.mxu0 %v4133
    %4168 = vmatpush.msra.mxu0 %v4132
    %4169 = vmatpush.msra.mxu0 %v4131
    %4170 = vmatpush.msra.mxu0 %v4130
    %4171 = vmatmul.f32.gmra.mxu0 %v4153
    %v4172 = vpop.f32.mrf.mxu0
    %v4173 = vadd.f32 %v4147, %v4172
    %4174 = vdwg.mxu0
    %v4176 = vperm.slane %v4142, 0
    %4178 = vmatpush.msra.mxu0 0.0
    %4179 = vmatpush.msra.mxu0 0.0
    %4180 = vmatpush.msra.mxu0 0.0
    %4181 = vmatpush.msra.mxu0 0.0
    %4182 = vmatpush.msra.mxu0 0.0
    %4183 = vmatpush.msra.mxu0 0.0
    %4184 = vmatpush.msra.mxu0 0.0
    %4185 = vmatpush.msra.mxu0 0.0
    %4186 = vmatpush.msra.mxu0 0.0
    %4187 = vmatpush.msra.mxu0 0.0
    %4188 = vmatpush.msra.mxu0 0.0
    %4189 = vmatpush.msra.mxu0 0.0
    %4190 = vmatpush.msra.mxu0 %v4140
    %4191 = vmatpush.msra.mxu0 %v4139
    %4192 = vmatpush.msra.mxu0 %v4138
    %4193 = vmatpush.msra.mxu0 %v4137
    %4194 = vmatmul.f32.gmra.mxu0 %v3604
    %v4195 = vpop.f32.mrf.mxu0
    %v4196 = vadd.f32 %v4176, %v4195
    %4197 = vmatmul.f32.gmra.mxu0 %v3607
    %v4198 = vpop.f32.mrf.mxu0
    %v4199 = vadd.f32 %v4176, %v4198
    %4200 = vdwg.mxu0
    %v4202 = vperm.slane %v4144, 0
    %v4204 = vadd.f32 %v4202, 0.0
    %v4205 = vmul.f32 %v4173, %v398
    %v4207 = vsel %vm579, %v4205, 0
    %v4210 = vsel %vm579, %v4196, 0
    %v4213 = vsel %vm579, %v4199, 0
    %4215 = vmatpush.xpose.msra.mxu0 0.0
    %4216 = vmatpush.xpose.msra.mxu0 0.0
    %4217 = vmatpush.xpose.msra.mxu0 0.0
    %4218 = vmatpush.xpose.msra.mxu0 0.0
    %4219 = vmatpush.xpose.msra.mxu0 0.0
    %4220 = vmatpush.xpose.msra.mxu0 0.0
    %4221 = vmatpush.xpose.msra.mxu0 0.0
    %4222 = vmatpush.xpose.msra.mxu0 0.0
    %4223 = vmatpush.xpose.msra.mxu0 0.0
    %4224 = vmatpush.xpose.msra.mxu0 0.0
    %4225 = vmatpush.xpose.msra.mxu0 0.0
    %4226 = vmatpush.xpose.msra.mxu0 0.0
    %4227 = vmatpush.xpose.msra.mxu0 0.0
    %4228 = vmatpush.xpose.msra.mxu0 0.0
    %4229 = vmatpush.xpose.msra.mxu0 %v4213
    %4230 = vmatpush.xpose.msra.mxu0 %v4210
    %4231 = vmatmul.f32.gmra.mxu0 %v4207
    %v4232 = vpop.f32.mrf.mxu0
    %v4233 = vadd.f32 %v4145, %v4232
    %4234 = vdwg.mxu0
    %v4235 = vsel %vm676, %v4233, -inf
    %4236 = vmax.xlane.f32.xlu0 %v4235
    %v4237 = vpop.xlane.xlu0 %4236
    %v4238 = vsub.f32 %v4233, %v4237
    %v4239 = vmul.f32 %v4238, 1.442695
    %v4240 = vpow.pop %v4239
    %v4241 = vsel %vm676, %v4240, 0.0
    %4242 = vadd.xlane.f32.xlu0 %v4241
    %v4243 = vpop.xlane.xlu0 %4242
    %v4244 = vrcp.pop %v4243
    %v4245 = vmul.f32 %v4240, %v4244
    %s4246 = scalar_lea.vmem [#allocation23], 128
    %v4247 = vld [vmem:[%s4246] sm:$0xff]
    %v4248 = vld [vmem:[%s4246 + $0x8] sm:$0xff]
    %v4249 = vld [vmem:[%s4246 + $0x10] sm:$0xff]
    %v4250 = vld [vmem:[%s4246 + $0x18] sm:$0xff]
    %4251 = vmatpush.msra.mxu0 0.0
    %4252 = vmatpush.msra.mxu0 0.0
    %4253 = vmatpush.msra.mxu0 0.0
    %4254 = vmatpush.msra.mxu0 0.0
    %4255 = vmatpush.msra.mxu0 0.0
    %4256 = vmatpush.msra.mxu0 0.0
    %4257 = vmatpush.msra.mxu0 0.0
    %4258 = vmatpush.msra.mxu0 0.0
    %4259 = vmatpush.msra.mxu0 0.0
    %4260 = vmatpush.msra.mxu0 0.0
    %4261 = vmatpush.msra.mxu0 0.0
    %4262 = vmatpush.msra.mxu0 0.0
    %4263 = vmatpush.msra.mxu0 %v4250
    %4264 = vmatpush.msra.mxu0 %v4249
    %4265 = vmatpush.msra.mxu0 %v4248
    %4266 = vmatpush.msra.mxu0 %v4247
    %4267 = vmatmul.f32.gmra.mxu0 %v3604
    %v4268 = vpop.f32.mrf.mxu0
    %v4269 = vadd.f32 0.0, %v4268
    %4270 = vmatmul.f32.gmra.mxu0 %v3607
    %v4271 = vpop.f32.mrf.mxu0
    %v4272 = vadd.f32 0.0, %v4271
    %4273 = vdwg.mxu0
    %v4275 = vsel %vm676, %v4245, 0
    %4277 = vmatpush.msra.mxu0 0.0
    %4278 = vmatpush.msra.mxu0 0.0
    %4279 = vmatpush.msra.mxu0 0.0
    %4280 = vmatpush.msra.mxu0 0.0
    %4281 = vmatpush.msra.mxu0 0.0
    %4282 = vmatpush.msra.mxu0 0.0
    %4283 = vmatpush.msra.mxu0 0.0
    %4284 = vmatpush.msra.mxu0 0.0
    %4285 = vmatpush.msra.mxu0 0.0
    %4286 = vmatpush.msra.mxu0 0.0
    %4287 = vmatpush.msra.mxu0 0.0
    %4288 = vmatpush.msra.mxu0 0.0
    %4289 = vmatpush.msra.mxu0 0.0
    %4290 = vmatpush.msra.mxu0 0.0
    %4291 = vmatpush.msra.mxu0 %v4272
    %4292 = vmatpush.msra.mxu0 %v4269
    %4293 = vmatmul.f32.gmra.mxu0 %v4275
    %v4294 = vpop.f32.mrf.mxu0
    %v4295 = vadd.f32 0.0, %v4294
    %4296 = vdwg.mxu0
    %v4297 = vadd.f32 %v4204, %v4295
    %v4298 = vmul.f32 %v4173, %v403
    %v4300 = vsel %vm579, %v4298, 0
    %4302 = vmatpush.xpose.msra.mxu0 0.0
    %4303 = vmatpush.xpose.msra.mxu0 0.0
    %4304 = vmatpush.xpose.msra.mxu0 0.0
    %4305 = vmatpush.xpose.msra.mxu0 0.0
    %4306 = vmatpush.xpose.msra.mxu0 0.0
    %4307 = vmatpush.xpose.msra.mxu0 0.0
    %4308 = vmatpush.xpose.msra.mxu0 0.0
    %4309 = vmatpush.xpose.msra.mxu0 0.0
    %4310 = vmatpush.xpose.msra.mxu0 0.0
    %4311 = vmatpush.xpose.msra.mxu0 0.0
    %4312 = vmatpush.xpose.msra.mxu0 0.0
    %4313 = vmatpush.xpose.msra.mxu0 0.0
    %4314 = vmatpush.xpose.msra.mxu0 0.0
    %4315 = vmatpush.xpose.msra.mxu0 0.0
    %4316 = vmatpush.xpose.msra.mxu0 %v4213
    %4317 = vmatpush.xpose.msra.mxu0 %v4210
    %4318 = vmatmul.f32.gmra.mxu0 %v4300
    %v4319 = vpop.f32.mrf.mxu0
    %v4320 = vadd.f32 %v4145, %v4319
    %4321 = vdwg.mxu0
    %v4322 = vsel %vm676, %v4320, -inf
    %4323 = vmax.xlane.f32.xlu0 %v4322
    %v4324 = vpop.xlane.xlu0 %4323
    %v4325 = vsub.f32 %v4320, %v4324
    %v4326 = vmul.f32 %v4325, 1.442695
    %v4327 = vpow.pop %v4326
    %v4328 = vsel %vm676, %v4327, 0.0
    %4329 = vadd.xlane.f32.xlu0 %v4328
    %v4330 = vpop.xlane.xlu0 %4329
    %v4331 = vrcp.pop %v4330
    %v4332 = vmul.f32 %v4327, %v4331
    %s4333 = scalar_lea.vmem [#allocation23], 160
    %v4334 = vld [vmem:[%s4333] sm:$0xff]
    %v4335 = vld [vmem:[%s4333 + $0x8] sm:$0xff]
    %v4336 = vld [vmem:[%s4333 + $0x10] sm:$0xff]
    %v4337 = vld [vmem:[%s4333 + $0x18] sm:$0xff]
    %4338 = vmatpush.msra.mxu0 0.0
    %4339 = vmatpush.msra.mxu0 0.0
    %4340 = vmatpush.msra.mxu0 0.0
    %4341 = vmatpush.msra.mxu0 0.0
    %4342 = vmatpush.msra.mxu0 0.0
    %4343 = vmatpush.msra.mxu0 0.0
    %4344 = vmatpush.msra.mxu0 0.0
    %4345 = vmatpush.msra.mxu0 0.0
    %4346 = vmatpush.msra.mxu0 0.0
    %4347 = vmatpush.msra.mxu0 0.0
    %4348 = vmatpush.msra.mxu0 0.0
    %4349 = vmatpush.msra.mxu0 0.0
    %4350 = vmatpush.msra.mxu0 %v4337
    %4351 = vmatpush.msra.mxu0 %v4336
    %4352 = vmatpush.msra.mxu0 %v4335
    %4353 = vmatpush.msra.mxu0 %v4334
    %4354 = vmatmul.f32.gmra.mxu0 %v3604
    %v4355 = vpop.f32.mrf.mxu0
    %v4356 = vadd.f32 0.0, %v4355
    %4357 = vmatmul.f32.gmra.mxu0 %v3607
    %v4358 = vpop.f32.mrf.mxu0
    %v4359 = vadd.f32 0.0, %v4358
    %4360 = vdwg.mxu0
    %v4362 = vsel %vm676, %v4332, 0
    %4364 = vmatpush.msra.mxu0 0.0
    %4365 = vmatpush.msra.mxu0 0.0
    %4366 = vmatpush.msra.mxu0 0.0
    %4367 = vmatpush.msra.mxu0 0.0
    %4368 = vmatpush.msra.mxu0 0.0
    %4369 = vmatpush.msra.mxu0 0.0
    %4370 = vmatpush.msra.mxu0 0.0
    %4371 = vmatpush.msra.mxu0 0.0
    %4372 = vmatpush.msra.mxu0 0.0
    %4373 = vmatpush.msra.mxu0 0.0
    %4374 = vmatpush.msra.mxu0 0.0
    %4375 = vmatpush.msra.mxu0 0.0
    %4376 = vmatpush.msra.mxu0 0.0
    %4377 = vmatpush.msra.mxu0 0.0
    %4378 = vmatpush.msra.mxu0 %v4359
    %4379 = vmatpush.msra.mxu0 %v4356
    %4380 = vmatmul.f32.gmra.mxu0 %v4362
    %v4381 = vpop.f32.mrf.mxu0
    %v4382 = vadd.f32 0.0, %v4381
    %4383 = vdwg.mxu0
    %v4384 = vadd.f32 %v4297, %v4382
    %v4385 = vmul.f32 %v4173, %v408
    %v4387 = vsel %vm579, %v4385, 0
    %4389 = vmatpush.xpose.msra.mxu0 0.0
    %4390 = vmatpush.xpose.msra.mxu0 0.0
    %4391 = vmatpush.xpose.msra.mxu0 0.0
    %4392 = vmatpush.xpose.msra.mxu0 0.0
    %4393 = vmatpush.xpose.msra.mxu0 0.0
    %4394 = vmatpush.xpose.msra.mxu0 0.0
    %4395 = vmatpush.xpose.msra.mxu0 0.0
    %4396 = vmatpush.xpose.msra.mxu0 0.0
    %4397 = vmatpush.xpose.msra.mxu0 0.0
    %4398 = vmatpush.xpose.msra.mxu0 0.0
    %4399 = vmatpush.xpose.msra.mxu0 0.0
    %4400 = vmatpush.xpose.msra.mxu0 0.0
    %4401 = vmatpush.xpose.msra.mxu0 0.0
    %4402 = vmatpush.xpose.msra.mxu0 0.0
    %4403 = vmatpush.xpose.msra.mxu0 %v4213
    %4404 = vmatpush.xpose.msra.mxu0 %v4210
    %4405 = vmatmul.f32.gmra.mxu0 %v4387
    %v4406 = vpop.f32.mrf.mxu0
    %v4407 = vadd.f32 %v4145, %v4406
    %4408 = vdwg.mxu0
    %v4409 = vsel %vm676, %v4407, -inf
    %4410 = vmax.xlane.f32.xlu0 %v4409
    %v4411 = vpop.xlane.xlu0 %4410
    %v4412 = vsub.f32 %v4407, %v4411
    %v4413 = vmul.f32 %v4412, 1.442695
    %v4414 = vpow.pop %v4413
    %v4415 = vsel %vm676, %v4414, 0.0
    %4416 = vadd.xlane.f32.xlu0 %v4415
    %v4417 = vpop.xlane.xlu0 %4416
    %v4418 = vrcp.pop %v4417
    %v4419 = vmul.f32 %v4414, %v4418
    %s4420 = scalar_lea.vmem [#allocation23], 192
    %v4421 = vld [vmem:[%s4420] sm:$0xff]
    %v4422 = vld [vmem:[%s4420 + $0x8] sm:$0xff]
    %v4423 = vld [vmem:[%s4420 + $0x10] sm:$0xff]
    %v4424 = vld [vmem:[%s4420 + $0x18] sm:$0xff]
    %4425 = vmatpush.msra.mxu0 0.0
    %4426 = vmatpush.msra.mxu0 0.0
    %4427 = vmatpush.msra.mxu0 0.0
    %4428 = vmatpush.msra.mxu0 0.0
    %4429 = vmatpush.msra.mxu0 0.0
    %4430 = vmatpush.msra.mxu0 0.0
    %4431 = vmatpush.msra.mxu0 0.0
    %4432 = vmatpush.msra.mxu0 0.0
    %4433 = vmatpush.msra.mxu0 0.0
    %4434 = vmatpush.msra.mxu0 0.0
    %4435 = vmatpush.msra.mxu0 0.0
    %4436 = vmatpush.msra.mxu0 0.0
    %4437 = vmatpush.msra.mxu0 %v4424
    %4438 = vmatpush.msra.mxu0 %v4423
    %4439 = vmatpush.msra.mxu0 %v4422
    %4440 = vmatpush.msra.mxu0 %v4421
    %4441 = vmatmul.f32.gmra.mxu0 %v3604
    %v4442 = vpop.f32.mrf.mxu0
    %v4443 = vadd.f32 0.0, %v4442
    %4444 = vmatmul.f32.gmra.mxu0 %v3607
    %v4445 = vpop.f32.mrf.mxu0
    %v4446 = vadd.f32 0.0, %v4445
    %4447 = vdwg.mxu0
    %v4449 = vsel %vm676, %v4419, 0
    %4451 = vmatpush.msra.mxu0 0.0
    %4452 = vmatpush.msra.mxu0 0.0
    %4453 = vmatpush.msra.mxu0 0.0
    %4454 = vmatpush.msra.mxu0 0.0
    %4455 = vmatpush.msra.mxu0 0.0
    %4456 = vmatpush.msra.mxu0 0.0
    %4457 = vmatpush.msra.mxu0 0.0
    %4458 = vmatpush.msra.mxu0 0.0
    %4459 = vmatpush.msra.mxu0 0.0
    %4460 = vmatpush.msra.mxu0 0.0
    %4461 = vmatpush.msra.mxu0 0.0
    %4462 = vmatpush.msra.mxu0 0.0
    %4463 = vmatpush.msra.mxu0 0.0
    %4464 = vmatpush.msra.mxu0 0.0
    %4465 = vmatpush.msra.mxu0 %v4446
    %4466 = vmatpush.msra.mxu0 %v4443
    %4467 = vmatmul.f32.gmra.mxu0 %v4449
    %v4468 = vpop.f32.mrf.mxu0
    %v4469 = vadd.f32 0.0, %v4468
    %4470 = vdwg.mxu0
    %v4471 = vadd.f32 %v4384, %v4469
    %v4472 = vmul.f32 %v4173, %v413
    %v4474 = vsel %vm579, %v4472, 0
    %4476 = vmatpush.xpose.msra.mxu0 0.0
    %4477 = vmatpush.xpose.msra.mxu0 0.0
    %4478 = vmatpush.xpose.msra.mxu0 0.0
    %4479 = vmatpush.xpose.msra.mxu0 0.0
    %4480 = vmatpush.xpose.msra.mxu0 0.0
    %4481 = vmatpush.xpose.msra.mxu0 0.0
    %4482 = vmatpush.xpose.msra.mxu0 0.0
    %4483 = vmatpush.xpose.msra.mxu0 0.0
    %4484 = vmatpush.xpose.msra.mxu0 0.0
    %4485 = vmatpush.xpose.msra.mxu0 0.0
    %4486 = vmatpush.xpose.msra.mxu0 0.0
    %4487 = vmatpush.xpose.msra.mxu0 0.0
    %4488 = vmatpush.xpose.msra.mxu0 0.0
    %4489 = vmatpush.xpose.msra.mxu0 0.0
    %4490 = vmatpush.xpose.msra.mxu0 %v4213
    %4491 = vmatpush.xpose.msra.mxu0 %v4210
    %4492 = vmatmul.f32.gmra.mxu0 %v4474
    %v4493 = vpop.f32.mrf.mxu0
    %v4494 = vadd.f32 %v4145, %v4493
    %4495 = vdwg.mxu0
    %v4496 = vsel %vm676, %v4494, -inf
    %4497 = vmax.xlane.f32.xlu0 %v4496
    %v4498 = vpop.xlane.xlu0 %4497
    %v4499 = vsub.f32 %v4494, %v4498
    %v4500 = vmul.f32 %v4499, 1.442695
    %v4501 = vpow.pop %v4500
    %v4502 = vsel %vm676, %v4501, 0.0
    %4503 = vadd.xlane.f32.xlu0 %v4502
    %v4504 = vpop.xlane.xlu0 %4503
    %v4505 = vrcp.pop %v4504
    %v4506 = vmul.f32 %v4501, %v4505
    %s4507 = scalar_lea.vmem [#allocation23], 224
    %v4508 = vld [vmem:[%s4507] sm:$0xff]
    %v4509 = vld [vmem:[%s4507 + $0x8] sm:$0xff]
    %v4510 = vld [vmem:[%s4507 + $0x10] sm:$0xff]
    %v4511 = vld [vmem:[%s4507 + $0x18] sm:$0xff]
    %4512 = vmatpush.msra.mxu0 0.0
    %4513 = vmatpush.msra.mxu0 0.0
    %4514 = vmatpush.msra.mxu0 0.0
    %4515 = vmatpush.msra.mxu0 0.0
    %4516 = vmatpush.msra.mxu0 0.0
    %4517 = vmatpush.msra.mxu0 0.0
    %4518 = vmatpush.msra.mxu0 0.0
    %4519 = vmatpush.msra.mxu0 0.0
    %4520 = vmatpush.msra.mxu0 0.0
    %4521 = vmatpush.msra.mxu0 0.0
    %4522 = vmatpush.msra.mxu0 0.0
    %4523 = vmatpush.msra.mxu0 0.0
    %4524 = vmatpush.msra.mxu0 %v4511
    %4525 = vmatpush.msra.mxu0 %v4510
    %4526 = vmatpush.msra.mxu0 %v4509
    %4527 = vmatpush.msra.mxu0 %v4508
    %4528 = vmatmul.f32.gmra.mxu0 %v3604
    %v4529 = vpop.f32.mrf.mxu0
    %v4530 = vadd.f32 0.0, %v4529
    %4531 = vmatmul.f32.gmra.mxu0 %v3607
    %v4532 = vpop.f32.mrf.mxu0
    %v4533 = vadd.f32 0.0, %v4532
    %4534 = vdwg.mxu0
    %v4536 = vsel %vm676, %v4506, 0
    %4538 = vmatpush.msra.mxu0 0.0
    %4539 = vmatpush.msra.mxu0 0.0
    %4540 = vmatpush.msra.mxu0 0.0
    %4541 = vmatpush.msra.mxu0 0.0
    %4542 = vmatpush.msra.mxu0 0.0
    %4543 = vmatpush.msra.mxu0 0.0
    %4544 = vmatpush.msra.mxu0 0.0
    %4545 = vmatpush.msra.mxu0 0.0
    %4546 = vmatpush.msra.mxu0 0.0
    %4547 = vmatpush.msra.mxu0 0.0
    %4548 = vmatpush.msra.mxu0 0.0
    %4549 = vmatpush.msra.mxu0 0.0
    %4550 = vmatpush.msra.mxu0 0.0
    %4551 = vmatpush.msra.mxu0 0.0
    %4552 = vmatpush.msra.mxu0 %v4533
    %4553 = vmatpush.msra.mxu0 %v4530
    %4554 = vmatmul.f32.gmra.mxu0 %v4536
    %v4555 = vpop.f32.mrf.mxu0
    %v4556 = vadd.f32 0.0, %v4555
    %4557 = vdwg.mxu0
    %v4558 = vadd.f32 %v4471, %v4556
    %v4560 = vrot.slane %v4558, 4
    %v4561 = vld [vmem:[%s65] sm:$0xff]
    %v4562 = vld [vmem:[%s65 + $0x8] sm:$0xff]
    %v4563 = vld [vmem:[%s65 + $0x10] sm:$0xff]
    %v4564 = vld [vmem:[%s65 + $0x18] sm:$0xff]
    %v4565 = vld [vmem:[%s65 + $0x20] sm:$0xff]
    %v4566 = vld [vmem:[%s65 + $0x28] sm:$0xff]
    %v4567 = vld [vmem:[%s65 + $0x30] sm:$0xff]
    %v4568 = vld [vmem:[%s65 + $0x38] sm:$0xff]
    %v4569 = vld [vmem:[%s65 + $0x40] sm:$0xff]
    %v4570 = vld [vmem:[%s65 + $0x48] sm:$0xff]
    %v4571 = vld [vmem:[%s65 + $0x50] sm:$0xff]
    %v4572 = vld [vmem:[%s65 + $0x58] sm:$0xff]
    %v4573 = vld [vmem:[%s65 + $0x60] sm:$0xff]
    %v4574 = vld [vmem:[%s65 + $0x68] sm:$0xff]
    %v4575 = vld [vmem:[%s65 + $0x70] sm:$0xff]
    %v4576 = vld [vmem:[%s65 + $0x78] sm:$0xff]
    %v4577 = vld [vmem:[%s65 + $0x80] sm:$0xff]
    %v4578 = vld [vmem:[%s65 + $0x88] sm:$0xff]
    %v4579 = vld [vmem:[%s65 + $0x90] sm:$0xff]
    %v4580 = vld [vmem:[%s65 + $0x98] sm:$0xff]
    %v4581 = vld [vmem:[%s65 + $0xa0] sm:$0xff]
    %v4582 = vld [vmem:[%s65 + $0xa8] sm:$0xff]
    %v4583 = vld [vmem:[%s65 + $0xb0] sm:$0xff]
    %v4584 = vld [vmem:[%s65 + $0xb8] sm:$0xff]
    %v4585 = vld [vmem:[%s65 + $0xc0] sm:$0xff]
    %v4586 = vld [vmem:[%s65 + $0xc8] sm:$0xff]
    %v4587 = vld [vmem:[%s65 + $0xd0] sm:$0xff]
    %v4588 = vld [vmem:[%s65 + $0xd8] sm:$0xff]
    %v4589 = vld [vmem:[%s65 + $0xe0] sm:$0xff]
    %v4590 = vld [vmem:[%s65 + $0xe8] sm:$0xff]
    %v4591 = vld [vmem:[%s65 + $0xf0] sm:$0xff]
    %v4592 = vld [vmem:[%s65 + $0xf8] sm:$0xff]
    %v4593 = vld [vmem:[%s67] sm:$0xff]
    %v4594 = vld [vmem:[%s67 + $0x8] sm:$0xff]
    %v4595 = vld [vmem:[%s67 + $0x10] sm:$0xff]
    %v4596 = vld [vmem:[%s67 + $0x18] sm:$0xff]
    %v4597 = vld [vmem:[%s67 + $0x20] sm:$0xff]
    %v4598 = vld [vmem:[%s67 + $0x28] sm:$0xff]
    %v4599 = vld [vmem:[%s67 + $0x30] sm:$0xff]
    %v4600 = vld [vmem:[%s67 + $0x38] sm:$0xff]
    %v4601 = vld [vmem:[%s67 + $0x40] sm:$0xff]
    %v4602 = vld [vmem:[%s67 + $0x48] sm:$0xff]
    %v4603 = vld [vmem:[%s67 + $0x50] sm:$0xff]
    %v4604 = vld [vmem:[%s67 + $0x58] sm:$0xff]
    %v4605 = vld [vmem:[%s67 + $0x60] sm:$0xff]
    %v4606 = vld [vmem:[%s67 + $0x68] sm:$0xff]
    %v4607 = vld [vmem:[%s67 + $0x70] sm:$0xff]
    %v4608 = vld [vmem:[%s67 + $0x78] sm:$0xff]
    %v4609 = vld [vmem:[#allocation26] sm:$0x1]
    %v4611 = vperm.slane %v4609, 0
    %v4613 = vadd.f32 %v4611, 0.0
    %v4616 = vrot.slane %v4128, 7
    %vm4617 = vcmask 1041409
    %v4618 = vsel %vm4617, %v4616, %v4127
    %v4619 = vsel %vm579, %v4618, 0
    %4621 = vmatpush.msra.mxu0 0.0
    %4622 = vmatpush.msra.mxu0 0.0
    %4623 = vmatpush.msra.mxu0 0.0
    %4624 = vmatpush.msra.mxu0 0.0
    %4625 = vmatpush.msra.mxu0 0.0
    %4626 = vmatpush.msra.mxu0 0.0
    %4627 = vmatpush.msra.mxu0 0.0
    %4628 = vmatpush.msra.mxu0 0.0
    %4629 = vmatpush.msra.mxu0 0.0
    %4630 = vmatpush.msra.mxu0 0.0
    %4631 = vmatpush.msra.mxu0 0.0
    %4632 = vmatpush.msra.mxu0 0.0
    %4633 = vmatpush.msra.mxu0 %v4564
    %4634 = vmatpush.msra.mxu0 %v4563
    %4635 = vmatpush.msra.mxu0 %v4562
    %4636 = vmatpush.msra.mxu0 %v4561
    %4637 = vmatmul.f32.gmra.mxu0 %v4619
    %v4638 = vpop.f32.mrf.mxu0
    %v4639 = vadd.f32 0.0, %v4638
    %4640 = vdwg.mxu0
    %v4641 = vadd.f32 %v4613, %v4639
    %v4642 = vrot.slane %v4127, 1
    %v4643 = vsel %vm4617, %v4128, %v4642
    %v4644 = vsel %vm579, %v4643, 0
    %4646 = vmatpush.msra.mxu0 0.0
    %4647 = vmatpush.msra.mxu0 0.0
    %4648 = vmatpush.msra.mxu0 0.0
    %4649 = vmatpush.msra.mxu0 0.0
    %4650 = vmatpush.msra.mxu0 0.0
    %4651 = vmatpush.msra.mxu0 0.0
    %4652 = vmatpush.msra.mxu0 0.0
    %4653 = vmatpush.msra.mxu0 0.0
    %4654 = vmatpush.msra.mxu0 0.0
    %4655 = vmatpush.msra.mxu0 0.0
    %4656 = vmatpush.msra.mxu0 0.0
    %4657 = vmatpush.msra.mxu0 0.0
    %4658 = vmatpush.msra.mxu0 %v4568
    %4659 = vmatpush.msra.mxu0 %v4567
    %4660 = vmatpush.msra.mxu0 %v4566
    %4661 = vmatpush.msra.mxu0 %v4565
    %4662 = vmatmul.f32.gmra.mxu0 %v4644
    %v4663 = vpop.f32.mrf.mxu0
    %v4664 = vadd.f32 0.0, %v4663
    %4665 = vdwg.mxu0
    %v4666 = vadd.f32 %v4641, %v4664
    %v4667 = vrot.slane %v4127, 2
    %v4668 = vrot.slane %v4128, 1
    %v4669 = vsel %vm4617, %v4668, %v4667
    %v4670 = vsel %vm579, %v4669, 0
    %4672 = vmatpush.msra.mxu0 0.0
    %4673 = vmatpush.msra.mxu0 0.0
    %4674 = vmatpush.msra.mxu0 0.0
    %4675 = vmatpush.msra.mxu0 0.0
    %4676 = vmatpush.msra.mxu0 0.0
    %4677 = vmatpush.msra.mxu0 0.0
    %4678 = vmatpush.msra.mxu0 0.0
    %4679 = vmatpush.msra.mxu0 0.0
    %4680 = vmatpush.msra.mxu0 0.0
    %4681 = vmatpush.msra.mxu0 0.0
    %4682 = vmatpush.msra.mxu0 0.0
    %4683 = vmatpush.msra.mxu0 0.0
    %4684 = vmatpush.msra.mxu0 %v4572
    %4685 = vmatpush.msra.mxu0 %v4571
    %4686 = vmatpush.msra.mxu0 %v4570
    %4687 = vmatpush.msra.mxu0 %v4569
    %4688 = vmatmul.f32.gmra.mxu0 %v4670
    %v4689 = vpop.f32.mrf.mxu0
    %v4690 = vadd.f32 0.0, %v4689
    %4691 = vdwg.mxu0
    %v4692 = vadd.f32 %v4666, %v4690
    %v4693 = vrot.slane %v4127, 3
    %v4694 = vrot.slane %v4128, 2
    %v4695 = vsel %vm4617, %v4694, %v4693
    %v4696 = vsel %vm579, %v4695, 0
    %4698 = vmatpush.msra.mxu0 0.0
    %4699 = vmatpush.msra.mxu0 0.0
    %4700 = vmatpush.msra.mxu0 0.0
    %4701 = vmatpush.msra.mxu0 0.0
    %4702 = vmatpush.msra.mxu0 0.0
    %4703 = vmatpush.msra.mxu0 0.0
    %4704 = vmatpush.msra.mxu0 0.0
    %4705 = vmatpush.msra.mxu0 0.0
    %4706 = vmatpush.msra.mxu0 0.0
    %4707 = vmatpush.msra.mxu0 0.0
    %4708 = vmatpush.msra.mxu0 0.0
    %4709 = vmatpush.msra.mxu0 0.0
    %4710 = vmatpush.msra.mxu0 %v4576
    %4711 = vmatpush.msra.mxu0 %v4575
    %4712 = vmatpush.msra.mxu0 %v4574
    %4713 = vmatpush.msra.mxu0 %v4573
    %4714 = vmatmul.f32.gmra.mxu0 %v4696
    %v4715 = vpop.f32.mrf.mxu0
    %v4716 = vadd.f32 0.0, %v4715
    %4717 = vdwg.mxu0
    %v4718 = vadd.f32 %v4692, %v4716
    %v4719 = vrot.slane %v4127, 4
    %v4720 = vrot.slane %v4128, 3
    %v4721 = vsel %vm4617, %v4720, %v4719
    %v4722 = vsel %vm579, %v4721, 0
    %4724 = vmatpush.msra.mxu0 0.0
    %4725 = vmatpush.msra.mxu0 0.0
    %4726 = vmatpush.msra.mxu0 0.0
    %4727 = vmatpush.msra.mxu0 0.0
    %4728 = vmatpush.msra.mxu0 0.0
    %4729 = vmatpush.msra.mxu0 0.0
    %4730 = vmatpush.msra.mxu0 0.0
    %4731 = vmatpush.msra.mxu0 0.0
    %4732 = vmatpush.msra.mxu0 0.0
    %4733 = vmatpush.msra.mxu0 0.0
    %4734 = vmatpush.msra.mxu0 0.0
    %4735 = vmatpush.msra.mxu0 0.0
    %4736 = vmatpush.msra.mxu0 %v4580
    %4737 = vmatpush.msra.mxu0 %v4579
    %4738 = vmatpush.msra.mxu0 %v4578
    %4739 = vmatpush.msra.mxu0 %v4577
    %4740 = vmatmul.f32.gmra.mxu0 %v4722
    %v4741 = vpop.f32.mrf.mxu0
    %v4742 = vadd.f32 0.0, %v4741
    %4743 = vdwg.mxu0
    %v4744 = vadd.f32 %v4718, %v4742
    %v4745 = vrot.slane %v4127, 5
    %v4746 = vrot.slane %v4128, 4
    %v4747 = vsel %vm4617, %v4746, %v4745
    %v4748 = vsel %vm579, %v4747, 0
    %4750 = vmatpush.msra.mxu0 0.0
    %4751 = vmatpush.msra.mxu0 0.0
    %4752 = vmatpush.msra.mxu0 0.0
    %4753 = vmatpush.msra.mxu0 0.0
    %4754 = vmatpush.msra.mxu0 0.0
    %4755 = vmatpush.msra.mxu0 0.0
    %4756 = vmatpush.msra.mxu0 0.0
    %4757 = vmatpush.msra.mxu0 0.0
    %4758 = vmatpush.msra.mxu0 0.0
    %4759 = vmatpush.msra.mxu0 0.0
    %4760 = vmatpush.msra.mxu0 0.0
    %4761 = vmatpush.msra.mxu0 0.0
    %4762 = vmatpush.msra.mxu0 %v4584
    %4763 = vmatpush.msra.mxu0 %v4583
    %4764 = vmatpush.msra.mxu0 %v4582
    %4765 = vmatpush.msra.mxu0 %v4581
    %4766 = vmatmul.f32.gmra.mxu0 %v4748
    %v4767 = vpop.f32.mrf.mxu0
    %v4768 = vadd.f32 0.0, %v4767
    %4769 = vdwg.mxu0
    %v4770 = vadd.f32 %v4744, %v4768
    %v4771 = vrot.slane %v4127, 6
    %v4772 = vrot.slane %v4128, 5
    %v4773 = vsel %vm4617, %v4772, %v4771
    %v4774 = vsel %vm579, %v4773, 0
    %4776 = vmatpush.msra.mxu0 0.0
    %4777 = vmatpush.msra.mxu0 0.0
    %4778 = vmatpush.msra.mxu0 0.0
    %4779 = vmatpush.msra.mxu0 0.0
    %4780 = vmatpush.msra.mxu0 0.0
    %4781 = vmatpush.msra.mxu0 0.0
    %4782 = vmatpush.msra.mxu0 0.0
    %4783 = vmatpush.msra.mxu0 0.0
    %4784 = vmatpush.msra.mxu0 0.0
    %4785 = vmatpush.msra.mxu0 0.0
    %4786 = vmatpush.msra.mxu0 0.0
    %4787 = vmatpush.msra.mxu0 0.0
    %4788 = vmatpush.msra.mxu0 %v4588
    %4789 = vmatpush.msra.mxu0 %v4587
    %4790 = vmatpush.msra.mxu0 %v4586
    %4791 = vmatpush.msra.mxu0 %v4585
    %4792 = vmatmul.f32.gmra.mxu0 %v4774
    %v4793 = vpop.f32.mrf.mxu0
    %v4794 = vadd.f32 0.0, %v4793
    %4795 = vdwg.mxu0
    %v4796 = vadd.f32 %v4770, %v4794
    %v4797 = vrot.slane %v4127, 7
    %v4798 = vrot.slane %v4128, 6
    %v4799 = vsel %vm4617, %v4798, %v4797
    %v4800 = vsel %vm579, %v4799, 0
    %4802 = vmatpush.msra.mxu0 0.0
    %4803 = vmatpush.msra.mxu0 0.0
    %4804 = vmatpush.msra.mxu0 0.0
    %4805 = vmatpush.msra.mxu0 0.0
    %4806 = vmatpush.msra.mxu0 0.0
    %4807 = vmatpush.msra.mxu0 0.0
    %4808 = vmatpush.msra.mxu0 0.0
    %4809 = vmatpush.msra.mxu0 0.0
    %4810 = vmatpush.msra.mxu0 0.0
    %4811 = vmatpush.msra.mxu0 0.0
    %4812 = vmatpush.msra.mxu0 0.0
    %4813 = vmatpush.msra.mxu0 0.0
    %4814 = vmatpush.msra.mxu0 %v4592
    %4815 = vmatpush.msra.mxu0 %v4591
    %4816 = vmatpush.msra.mxu0 %v4590
    %4817 = vmatpush.msra.mxu0 %v4589
    %4818 = vmatmul.f32.gmra.mxu0 %v4800
    %v4819 = vpop.f32.mrf.mxu0
    %v4820 = vadd.f32 0.0, %v4819
    %4821 = vdwg.mxu0
    %v4822 = vadd.f32 %v4796, %v4820
    %v4823 = vperm.slane %v4558, 0
    %v4824 = vperm.slane %v4560, 0
    %v4825 = vsel %vm4617, %v4824, %v4823
    %v4826 = vsel %vm579, %v4825, 0
    %4828 = vmatpush.msra.mxu0 0.0
    %4829 = vmatpush.msra.mxu0 0.0
    %4830 = vmatpush.msra.mxu0 0.0
    %4831 = vmatpush.msra.mxu0 0.0
    %4832 = vmatpush.msra.mxu0 0.0
    %4833 = vmatpush.msra.mxu0 0.0
    %4834 = vmatpush.msra.mxu0 0.0
    %4835 = vmatpush.msra.mxu0 0.0
    %4836 = vmatpush.msra.mxu0 0.0
    %4837 = vmatpush.msra.mxu0 0.0
    %4838 = vmatpush.msra.mxu0 0.0
    %4839 = vmatpush.msra.mxu0 0.0
    %4840 = vmatpush.msra.mxu0 %v4596
    %4841 = vmatpush.msra.mxu0 %v4595
    %4842 = vmatpush.msra.mxu0 %v4594
    %4843 = vmatpush.msra.mxu0 %v4593
    %4844 = vmatmul.f32.gmra.mxu0 %v4826
    %v4845 = vpop.f32.mrf.mxu0
    %v4846 = vadd.f32 0.0, %v4845
    %4847 = vdwg.mxu0
    %v4848 = vadd.f32 %v4822, %v4846
    %v4849 = vperm.slane %v4558, 1
    %v4850 = vperm.slane %v4560, 1
    %v4851 = vsel %vm4617, %v4850, %v4849
    %v4852 = vsel %vm579, %v4851, 0
    %4854 = vmatpush.msra.mxu0 0.0
    %4855 = vmatpush.msra.mxu0 0.0
    %4856 = vmatpush.msra.mxu0 0.0
    %4857 = vmatpush.msra.mxu0 0.0
    %4858 = vmatpush.msra.mxu0 0.0
    %4859 = vmatpush.msra.mxu0 0.0
    %4860 = vmatpush.msra.mxu0 0.0
    %4861 = vmatpush.msra.mxu0 0.0
    %4862 = vmatpush.msra.mxu0 0.0
    %4863 = vmatpush.msra.mxu0 0.0
    %4864 = vmatpush.msra.mxu0 0.0
    %4865 = vmatpush.msra.mxu0 0.0
    %4866 = vmatpush.msra.mxu0 %v4600
    %4867 = vmatpush.msra.mxu0 %v4599
    %4868 = vmatpush.msra.mxu0 %v4598
    %4869 = vmatpush.msra.mxu0 %v4597
    %4870 = vmatmul.f32.gmra.mxu0 %v4852
    %v4871 = vpop.f32.mrf.mxu0
    %v4872 = vadd.f32 0.0, %v4871
    %4873 = vdwg.mxu0
    %v4874 = vadd.f32 %v4848, %v4872
    %v4875 = vperm.slane %v4558, 2
    %v4876 = vperm.slane %v4560, 2
    %v4877 = vsel %vm4617, %v4876, %v4875
    %v4878 = vsel %vm579, %v4877, 0
    %4880 = vmatpush.msra.mxu0 0.0
    %4881 = vmatpush.msra.mxu0 0.0
    %4882 = vmatpush.msra.mxu0 0.0
    %4883 = vmatpush.msra.mxu0 0.0
    %4884 = vmatpush.msra.mxu0 0.0
    %4885 = vmatpush.msra.mxu0 0.0
    %4886 = vmatpush.msra.mxu0 0.0
    %4887 = vmatpush.msra.mxu0 0.0
    %4888 = vmatpush.msra.mxu0 0.0
    %4889 = vmatpush.msra.mxu0 0.0
    %4890 = vmatpush.msra.mxu0 0.0
    %4891 = vmatpush.msra.mxu0 0.0
    %4892 = vmatpush.msra.mxu0 %v4604
    %4893 = vmatpush.msra.mxu0 %v4603
    %4894 = vmatpush.msra.mxu0 %v4602
    %4895 = vmatpush.msra.mxu0 %v4601
    %4896 = vmatmul.f32.gmra.mxu0 %v4878
    %v4897 = vpop.f32.mrf.mxu0
    %v4898 = vadd.f32 0.0, %v4897
    %4899 = vdwg.mxu0
    %v4900 = vadd.f32 %v4874, %v4898
    %v4901 = vperm.slane %v4558, 3
    %v4902 = vperm.slane %v4560, 3
    %v4903 = vsel %vm4617, %v4902, %v4901
    %v4904 = vsel %vm579, %v4903, 0
    %4906 = vmatpush.msra.mxu0 0.0
    %4907 = vmatpush.msra.mxu0 0.0
    %4908 = vmatpush.msra.mxu0 0.0
    %4909 = vmatpush.msra.mxu0 0.0
    %4910 = vmatpush.msra.mxu0 0.0
    %4911 = vmatpush.msra.mxu0 0.0
    %4912 = vmatpush.msra.mxu0 0.0
    %4913 = vmatpush.msra.mxu0 0.0
    %4914 = vmatpush.msra.mxu0 0.0
    %4915 = vmatpush.msra.mxu0 0.0
    %4916 = vmatpush.msra.mxu0 0.0
    %4917 = vmatpush.msra.mxu0 0.0
    %4918 = vmatpush.msra.mxu0 %v4608
    %4919 = vmatpush.msra.mxu0 %v4607
    %4920 = vmatpush.msra.mxu0 %v4606
    %4921 = vmatpush.msra.mxu0 %v4605
    %4922 = vmatmul.f32.gmra.mxu0 %v4904
    %v4923 = vpop.f32.mrf.mxu0
    %v4924 = vadd.f32 0.0, %v4923
    %4925 = vdwg.mxu0
    %v4926 = vadd.f32 %v4900, %v4924
    %vm4927 = vcmask 17408
    %4928 = vst.msk [vmem:[#allocation28] sm:$0x3] %vm4927, %v4926
    // Predicated region
    $region206: #{forward.1} parent=1 // pred_check
      _
    $region207: #{forward.1} parent=1 // pred_check_branch
      %4930 = sbr.rel (0) target = $region209
    $region208: #{forward.1} parent=1 // pred_region
      %4932 = vsyncadd [#allocation4], 0
      %s4934 = sshll.u32 [#allocation28], 4
      %s4935 = int_to_ptr.vmem [resolvable:$true] %s4934
      %s4936 = sshll.u32 %s71, 4
      %s4937 = int_to_ptr.hbm [resolvable:$true] %s4936
      %4939 = dma.vmem_to_hbm [thread:$0]  %s4935, 32, %s4937, [#allocation4]
    $region209: #{forward.1} parent=1 // pred_fallthru
      _
    // Predicated region
    $region210: #{forward.1} parent=1 // pred_check
      _
    $region211: #{forward.1} parent=1 // pred_check_branch
      %4941 = sbr.rel (0) target = $region213
    $region212: #{forward.1} parent=1 // pred_region
      %4943 = dma.done [#allocation4], 32
    $region213: #{forward.1} parent=1 // pred_fallthru
      _
    %4944 = vsyncpa [#allocation3], 1
    %4945 = vsyncpa [#allocation6], 1
    %4946 = vsyncpa [#allocation9], 1
    %4947 = vsyncpa [#allocation12], 1
    %4948 = vsyncpa [#allocation15], 1
    %4949 = vsyncpa [#allocation18], 1
    %4950 = vsyncpa [#allocation21], 1
    %4951 = vsyncpa [#allocation24], 1
    %4952 = vsyncpa [#allocation27], 1
    %4953 = vsyncpa [#allocation4], 1

</llo_original>
